<compile_context>
chip_gen: v7x
topology: tpu7x:2x2x1
jax: 0.10.0
libtpu: 0.0.40
codegen_flags: <defaults>
</compile_context>

<pallas_src>
import jax
import jax.numpy as jnp
import numpy as np
from jax import lax
from jax.experimental import pallas as pl
from jax.experimental.pallas import tpu as pltpu

LEAKY_SLOPE = 0.1
BN_EPS = 1e-5
MARGIN = 128            # lane margin around every padded-flat slab (>= max tap offset)


# ----------------------------------------------------------------------------
# In-kernel helpers
# ----------------------------------------------------------------------------
def _conv3x3(src_ref, w_ref, b_ref, offs, length):
    """3x3 conv (+ BN-folded bias) + LeakyReLU on a padded-flat lane layout.

    src_ref: (Cin, MARGIN + length + MARGIN) VMEM ref; data lanes hold the
             zero-padded image(s) row-major, margins are zero.
    w_ref:   (9, Cout, Cin) BN-scale-folded weights, tap-major (dy, dx).
    b_ref:   (Cout, 1) folded shift = beta + (bias - mean) * scale.
    Returns a (Cout, length) f32 value.  Entries at padded-border lanes are
    finite garbage and are either masked or never selected downstream.
    """
    cin = w_ref.shape[2]
    acc = None
    for t, off in enumerate(offs):
        tap = src_ref[:, pl.ds(MARGIN + off, length)]        # (Cin, length)
        if cin == 1:
            y = w_ref[t] * tap                               # VPU broadcast (K=1 matmul is waste)
        else:
            y = jnp.dot(w_ref[t], tap, preferred_element_type=jnp.float32)
        acc = y if acc is None else acc + y
    y = acc + b_ref[...]
    return jnp.where(y > 0.0, y, LEAKY_SLOPE * y)


def _make_encoder_kernel(n_batch, channels, geoms):
    n_blocks = len(channels)

    def kernel(*refs):
        it = iter(refs)
        x_ref = next(it)
        blk = []
        for i in range(n_blocks):
            w1, b1, w2, b2, mk, ee = (next(it) for _ in range(6))
            gg = next(it) if i < n_blocks - 1 else None
            blk.append((w1, b1, w2, b2, mk, ee, gg))
        f_refs = [next(it) for _ in range(n_blocks)]
        scratch = list(it)

        # Margin lanes are read (for masked/unselected border outputs) before they
        # are ever written -> they must be finite.  Zeroing everything is ~60 KB.
        for s in scratch:
            s[...] = jnp.zeros(s.shape, s.dtype)

        src = x_ref
        si = 0
        for i in range(n_blocks):
            h, w, _, length, offs = geoms[i]
            w1, b1, w2, b2, mk, ee, gg = blk[i]

            # conv1 + BN + LeakyReLU; zero padded borders so it can feed conv2.
            sa = scratch[si]; si += 1
            a = _conv3x3(src, w1, b1, offs, length) * mk[...]
            sa[:, pl.ds(MARGIN, length)] = a

            # Dropout2d: identity (inference).  conv2 + BN + LeakyReLU.
            a = _conv3x3(sa, w2, b2, offs, length)

            # Feature output in flat NCHW: per-image interior selection matmul.
            for img in range(n_batch):
                f_refs[i][img] = jnp.dot(a, ee[img],
                                         preferred_element_type=jnp.float32)

            # 2x2 max-pool -> padded-flat layout of the next block (skipped for the
            # last block: Encoder.forward discards the final pooled x).
            if i < n_blocks - 1:
                sb = scratch[si]; si += 1
                sp = scratch[si]; si += 1
                sb[:, pl.ds(MARGIN, length)] = a
                wp = w + 2
                m = a
                for d in (1, wp, wp + 1):
                    m = jnp.maximum(m, sb[:, pl.ds(MARGIN + d, length)])
                next_len = geoms[i + 1][3]
                pooled = jnp.dot(m, gg[...], preferred_element_type=jnp.float32)
                sp[:, pl.ds(MARGIN, next_len)] = pooled
                src = sp

    return kernel


# ----------------------------------------------------------------------------
# One-time constant builders (trace-time numpy; 0/1 selection matrices)
# ----------------------------------------------------------------------------
def _to_padded_flat(x):
    """(N, C, H, W) -> (C, MARGIN + N*(H+2)*(W+2) + MARGIN), zero borders/margins."""
    n, c, h, w = x.shape
    xp = jnp.pad(x, ((0, 0), (0, 0), (1, 1), (1, 1)))
    flat = xp.transpose(1, 0, 2, 3).reshape(c, n * (h + 2) * (w + 2))
    return jnp.pad(flat, ((0, 0), (MARGIN, MARGIN)))


def _interior_mask(n, h, w):
    m = np.zeros((h + 2, w + 2), np.float32)
    m[1:h + 1, 1:w + 1] = 1.0
    return jnp.asarray(np.tile(m.reshape(1, -1), (1, n)))          # (1, n*P)


def _interior_extract(n, h, w):
    """E[i] maps the padded-flat slab (lanes) -> image i's flat NCHW pixels."""
    hp, wp = h + 2, w + 2
    pp = hp * wp
    e = np.zeros((n, n * pp, h * w), np.float32)
    for i in range(n):
        for y in range(h):
            for x in range(w):
                e[i, i * pp + (y + 1) * wp + (x + 1), y * w + x] = 1.0
    return jnp.asarray(e)


def _pool_select(n, h, w):
    """G maps the top-left-of-2x2 lanes of the current level to the interior lanes
    of the next level's padded-flat layout (borders come out zero)."""
    hp, wp = h + 2, w + 2
    h2, w2 = h // 2, w // 2
    hp2, wp2 = h2 + 2, w2 + 2
    pi, po = hp * wp, hp2 * wp2
    g = np.zeros((n * pi, n * po), np.float32)
    for k in range(n):
        for i in range(h2):
            for j in range(w2):
                g[k * pi + (2 * i + 1) * wp + (2 * j + 1),
                  k * po + (i + 1) * wp2 + (j + 1)] = 1.0
    return jnp.asarray(g)


# ----------------------------------------------------------------------------
# Encoder forward: single fused pallas_call
# ----------------------------------------------------------------------------
def encoder_forward(x, params):
    x = x.astype(jnp.float32)
    n, _, h, w = x.shape
    channels = [int(p["w1"].shape[1]) for p in params]
    n_blocks = len(channels)

    # Static per-block geometry of the padded-flat lane layout.
    geoms = []
    hh, ww = h, w
    for _ in channels:
        wp = ww + 2
        pp = (hh + 2) * wp
        offs = tuple((dy - 1) * wp + (dx - 1) for dy in range(3) for dx in range(3))
        geoms.append((hh, ww, pp, n * pp, offs))
        hh, ww = hh // 2, ww // 2

    inputs = [_to_padded_flat(x)]
    for i, (p, (hh, ww, _, _, _)) in enumerate(zip(params, geoms)):
        inputs += [p["w1"], p["shift1"], p["w2"], p["shift2"],
                   _interior_mask(n, hh, ww), _interior_extract(n, hh, ww)]
        if i < n_blocks - 1:
            inputs.append(_pool_select(n, hh, ww))

    out_shape = tuple(
        jax.ShapeDtypeStruct((n, co, hh * ww), jnp.float32)
        for co, (hh, ww, _, _, _) in zip(channels, geoms))

    scratch = []
    for i, (co, (_, _, _, length, _)) in enumerate(zip(channels, geoms)):
        scratch.append(pltpu.VMEM((co, length + 2 * MARGIN), jnp.float32))
        if i < n_blocks - 1:
            scratch.append(pltpu.VMEM((co, length + 2 * MARGIN), jnp.float32))
            scratch.append(pltpu.VMEM((co, geoms[i + 1][3] + 2 * MARGIN), jnp.float32))

    feats = pl.pallas_call(
        _make_encoder_kernel(n, channels, geoms),
        out_shape=out_shape,
        scratch_shapes=scratch,
    )(*inputs)

    # (N, C, H*W) is already flat NCHW -> free reshape, no transpose.
    return [f.reshape(n, co, hh, ww)
            for f, co, (hh, ww, _, _, _) in zip(feats, channels, geoms)]


# ----------------------------------------------------------------------------
# Deterministic synthetic parameters (shapes per Encoder.__init__, in_ch = 1)
# ----------------------------------------------------------------------------
def init_params(key, channels):
    params = []
    in_ch = 1
    for out_ch in channels:
        block = {}
        for idx, (ci, co) in enumerate([(in_ch, out_ch), (out_ch, out_ch)], start=1):
            key, kw, kb, kg, kbe, km, kv = jax.random.split(key, 7)
            w = jax.random.normal(kw, (co, ci, 3, 3), jnp.float32) / np.sqrt(9 * ci)
            b = 0.1 * jax.random.normal(kb, (co,), jnp.float32)
            gamma = 1.0 + 0.1 * jax.random.normal(kg, (co,), jnp.float32)
            beta = 0.1 * jax.random.normal(kbe, (co,), jnp.float32)
            mean = 0.1 * jax.random.normal(km, (co,), jnp.float32)
            var = 1.0 + 0.1 * jax.random.uniform(kv, (co,), jnp.float32)
            scale = gamma / jnp.sqrt(var + BN_EPS)
            # Reference (torch-layout) params
            block[f"wconv{idx}"] = w
            block[f"b{idx}"] = b
            block[f"gamma{idx}"] = gamma
            block[f"beta{idx}"] = beta
            block[f"mean{idx}"] = mean
            block[f"var{idx}"] = var
            # Kernel-layout params: BN scale folded into weights, tap-major (9,Cout,Cin)
            block[f"w{idx}"] = (w * scale[:, None, None, None]
                                ).transpose(2, 3, 0, 1).reshape(9, co, ci)
            block[f"shift{idx}"] = (beta + (b - mean) * scale).reshape(co, 1)
        params.append(block)
        in_ch = out_ch
    return params


# ----------------------------------------------------------------------------
# Pure-JAX reference (eval-mode semantics)
# ----------------------------------------------------------------------------
def _ref_conv_bn_lrelu(x, w, b, gamma, beta, mean, var):
    y = lax.conv_general_dilated(
        x, w, (1, 1), "SAME",
        dimension_numbers=("NCHW", "OIHW", "NCHW"),
        precision=lax.Precision.HIGHEST)
    y = y + b[None, :, None, None]
    y = (y - mean[None, :, None, None]) * (gamma / jnp.sqrt(var + BN_EPS))[None, :, None, None]
    y = y + beta[None, :, None, None]
    return jnp.where(y > 0, y, LEAKY_SLOPE * y)


def ref_forward(x, params):
    x = x.astype(jnp.float32)
    feats = []
    for p in params:
        x = _ref_conv_bn_lrelu(x, p["wconv1"], p["b1"], p["gamma1"], p["beta1"],
                               p["mean1"], p["var1"])
        x = _ref_conv_bn_lrelu(x, p["wconv2"], p["b2"], p["gamma2"], p["beta2"],
                               p["mean2"], p["var2"])
        feats.append(x)
        n, c, h, w = x.shape
        x = x.reshape(n, c, h // 2, 2, w // 2, 2).max(axis=(3, 5))
    return feats


if __name__ == "__main__":
    key = jax.random.PRNGKey(0)
    kx, kp = jax.random.split(key)

    channels = (4, 8)                                        # Encoder(channels=[4, 8])
    x = jax.random.normal(kx, (2, 1, 16, 16), jnp.float32)   # NCHW, in_ch = 1
    params = init_params(kp, channels)

    fwd = jax.jit(encoder_forward)
    feats = jax.block_until_ready(fwd(x, params))
    refs = ref_forward(x, params)

    assert len(feats) == len(channels)
    for got, ref in zip(feats, refs):
        assert got.shape == ref.shape, (got.shape, ref.shape)
        err = float(jnp.max(jnp.abs(got - ref)))
        assert jnp.allclose(got, ref, rtol=2e-2, atol=2e-2), err

    print("KERNEL_OK")
</pallas_src>

<mosaic_0001>
module attributes {stable_mosaic.version = 11 : i64} {
  func.func @kernel(%arg0: memref<1x904xf32, #tpu.memory_space<vmem>>, %arg1: memref<9x4x1xf32, #tpu.memory_space<vmem>>, %arg2: memref<4x1xf32, #tpu.memory_space<vmem>>, %arg3: memref<9x4x4xf32, #tpu.memory_space<vmem>>, %arg4: memref<4x1xf32, #tpu.memory_space<vmem>>, %arg5: memref<1x648xf32, #tpu.memory_space<vmem>>, %arg6: memref<2x648x256xf32, #tpu.memory_space<vmem>>, %arg7: memref<648x200xf32, #tpu.memory_space<vmem>>, %arg8: memref<9x8x4xf32, #tpu.memory_space<vmem>>, %arg9: memref<8x1xf32, #tpu.memory_space<vmem>>, %arg10: memref<9x8x8xf32, #tpu.memory_space<vmem>>, %arg11: memref<8x1xf32, #tpu.memory_space<vmem>>, %arg12: memref<1x200xf32, #tpu.memory_space<vmem>>, %arg13: memref<2x200x64xf32, #tpu.memory_space<vmem>>, %arg14: memref<2x4x256xf32, #tpu.memory_space<vmem>>, %arg15: memref<2x8x64xf32, #tpu.memory_space<vmem>>, %arg16: memref<4x904xf32, #tpu.memory_space<vmem>>, %arg17: memref<4x904xf32, #tpu.memory_space<vmem>>, %arg18: memref<4x456xf32, #tpu.memory_space<vmem>>, %arg19: memref<8x456xf32, #tpu.memory_space<vmem>>) attributes {dimension_semantics = [], scalar_prefetch = 0 : i64, scratch_operands = 4 : i64, tpu.core_type = #tpu.core_type<tc>} {
    %cst = arith.constant 0.000000e+00 : f32
    %0 = vector.broadcast %cst : f32 to vector<4x904xf32>
    %c0 = arith.constant 0 : index
    %c0_0 = arith.constant 0 : index
    %1 = vector.load %arg16[%c0, %c0_0] : memref<4x904xf32, #tpu.memory_space<vmem>>, vector<4x904xf32>
    tpu.vector_store %arg16[%c0, %c0_0], %0 {strides = array<i32>} : memref<4x904xf32, #tpu.memory_space<vmem>>, vector<4x904xf32>,
    %cst_1 = arith.constant 0.000000e+00 : f32
    %2 = vector.broadcast %cst_1 : f32 to vector<4x904xf32>
    %c0_2 = arith.constant 0 : index
    %c0_3 = arith.constant 0 : index
    %3 = vector.load %arg17[%c0_2, %c0_3] : memref<4x904xf32, #tpu.memory_space<vmem>>, vector<4x904xf32>
    tpu.vector_store %arg17[%c0_2, %c0_3], %2 {strides = array<i32>} : memref<4x904xf32, #tpu.memory_space<vmem>>, vector<4x904xf32>,
    %cst_4 = arith.constant 0.000000e+00 : f32
    %4 = vector.broadcast %cst_4 : f32 to vector<4x456xf32>
    %c0_5 = arith.constant 0 : index
    %c0_6 = arith.constant 0 : index
    %5 = vector.load %arg18[%c0_5, %c0_6] : memref<4x456xf32, #tpu.memory_space<vmem>>, vector<4x456xf32>
    tpu.vector_store %arg18[%c0_5, %c0_6], %4 {strides = array<i32>} : memref<4x456xf32, #tpu.memory_space<vmem>>, vector<4x456xf32>,
    %cst_7 = arith.constant 0.000000e+00 : f32
    %6 = vector.broadcast %cst_7 : f32 to vector<8x456xf32>
    %c0_8 = arith.constant 0 : index
    %c0_9 = arith.constant 0 : index
    %7 = vector.load %arg19[%c0_8, %c0_9] : memref<8x456xf32, #tpu.memory_space<vmem>>, vector<8x456xf32>
    tpu.vector_store %arg19[%c0_8, %c0_9], %6 {strides = array<i32>} : memref<8x456xf32, #tpu.memory_space<vmem>>, vector<8x456xf32>,
    %c0_10 = arith.constant 0 : index
    %c109 = arith.constant 109 : index
    %8 = vector.load %arg0[%c0_10, %c109] : memref<1x904xf32, #tpu.memory_space<vmem>>, vector<1x648xf32>
    %c0_11 = arith.constant 0 : index
    %c0_12 = arith.constant 0 : index
    %c0_13 = arith.constant 0 : index
    %9 = vector.load %arg1[%c0_11, %c0_12, %c0_13] : memref<9x4x1xf32, #tpu.memory_space<vmem>>, vector<1x4x1xf32>
    %10 = vector.shape_cast %9 : vector<1x4x1xf32> to vector<4x1xf32>
    %11 = vector.broadcast %10 : vector<4x1xf32> to vector<4x648xf32>
    %12 = vector.broadcast %8 : vector<1x648xf32> to vector<4x648xf32>
    %13 = arith.mulf %11, %12 : vector<4x648xf32>
    %c0_14 = arith.constant 0 : index
    %c110 = arith.constant 110 : index
    %14 = vector.load %arg0[%c0_14, %c110] : memref<1x904xf32, #tpu.memory_space<vmem>>, vector<1x648xf32>
    %c1 = arith.constant 1 : index
    %c0_15 = arith.constant 0 : index
    %c0_16 = arith.constant 0 : index
    %15 = vector.load %arg1[%c1, %c0_15, %c0_16] : memref<9x4x1xf32, #tpu.memory_space<vmem>>, vector<1x4x1xf32>
    %16 = vector.shape_cast %15 : vector<1x4x1xf32> to vector<4x1xf32>
    %17 = vector.broadcast %16 : vector<4x1xf32> to vector<4x648xf32>
    %18 = vector.broadcast %14 : vector<1x648xf32> to vector<4x648xf32>
    %19 = arith.mulf %17, %18 : vector<4x648xf32>
    %20 = arith.addf %13, %19 : vector<4x648xf32>
    %c0_17 = arith.constant 0 : index
    %c111 = arith.constant 111 : index
    %21 = vector.load %arg0[%c0_17, %c111] : memref<1x904xf32, #tpu.memory_space<vmem>>, vector<1x648xf32>
    %c2 = arith.constant 2 : index
    %c0_18 = arith.constant 0 : index
    %c0_19 = arith.constant 0 : index
    %22 = vector.load %arg1[%c2, %c0_18, %c0_19] : memref<9x4x1xf32, #tpu.memory_space<vmem>>, vector<1x4x1xf32>
    %23 = vector.shape_cast %22 : vector<1x4x1xf32> to vector<4x1xf32>
    %24 = vector.broadcast %23 : vector<4x1xf32> to vector<4x648xf32>
    %25 = vector.broadcast %21 : vector<1x648xf32> to vector<4x648xf32>
    %26 = arith.mulf %24, %25 : vector<4x648xf32>
    %27 = arith.addf %20, %26 : vector<4x648xf32>
    %c0_20 = arith.constant 0 : index
    %c127 = arith.constant 127 : index
    %28 = vector.load %arg0[%c0_20, %c127] : memref<1x904xf32, #tpu.memory_space<vmem>>, vector<1x648xf32>
    %c3 = arith.constant 3 : index
    %c0_21 = arith.constant 0 : index
    %c0_22 = arith.constant 0 : index
    %29 = vector.load %arg1[%c3, %c0_21, %c0_22] : memref<9x4x1xf32, #tpu.memory_space<vmem>>, vector<1x4x1xf32>
    %30 = vector.shape_cast %29 : vector<1x4x1xf32> to vector<4x1xf32>
    %31 = vector.broadcast %30 : vector<4x1xf32> to vector<4x648xf32>
    %32 = vector.broadcast %28 : vector<1x648xf32> to vector<4x648xf32>
    %33 = arith.mulf %31, %32 : vector<4x648xf32>
    %34 = arith.addf %27, %33 : vector<4x648xf32>
    %c0_23 = arith.constant 0 : index
    %c128 = arith.constant 128 : index
    %35 = vector.load %arg0[%c0_23, %c128] : memref<1x904xf32, #tpu.memory_space<vmem>>, vector<1x648xf32>
    %c4 = arith.constant 4 : index
    %c0_24 = arith.constant 0 : index
    %c0_25 = arith.constant 0 : index
    %36 = vector.load %arg1[%c4, %c0_24, %c0_25] : memref<9x4x1xf32, #tpu.memory_space<vmem>>, vector<1x4x1xf32>
    %37 = vector.shape_cast %36 : vector<1x4x1xf32> to vector<4x1xf32>
    %38 = vector.broadcast %37 : vector<4x1xf32> to vector<4x648xf32>
    %39 = vector.broadcast %35 : vector<1x648xf32> to vector<4x648xf32>
    %40 = arith.mulf %38, %39 : vector<4x648xf32>
    %41 = arith.addf %34, %40 : vector<4x648xf32>
    %c0_26 = arith.constant 0 : index
    %c129 = arith.constant 129 : index
    %42 = vector.load %arg0[%c0_26, %c129] : memref<1x904xf32, #tpu.memory_space<vmem>>, vector<1x648xf32>
    %c5 = arith.constant 5 : index
    %c0_27 = arith.constant 0 : index
    %c0_28 = arith.constant 0 : index
    %43 = vector.load %arg1[%c5, %c0_27, %c0_28] : memref<9x4x1xf32, #tpu.memory_space<vmem>>, vector<1x4x1xf32>
    %44 = vector.shape_cast %43 : vector<1x4x1xf32> to vector<4x1xf32>
    %45 = vector.broadcast %44 : vector<4x1xf32> to vector<4x648xf32>
    %46 = vector.broadcast %42 : vector<1x648xf32> to vector<4x648xf32>
    %47 = arith.mulf %45, %46 : vector<4x648xf32>
    %48 = arith.addf %41, %47 : vector<4x648xf32>
    %c0_29 = arith.constant 0 : index
    %c145 = arith.constant 145 : index
    %49 = vector.load %arg0[%c0_29, %c145] : memref<1x904xf32, #tpu.memory_space<vmem>>, vector<1x648xf32>
    %c6 = arith.constant 6 : index
    %c0_30 = arith.constant 0 : index
    %c0_31 = arith.constant 0 : index
    %50 = vector.load %arg1[%c6, %c0_30, %c0_31] : memref<9x4x1xf32, #tpu.memory_space<vmem>>, vector<1x4x1xf32>
    %51 = vector.shape_cast %50 : vector<1x4x1xf32> to vector<4x1xf32>
    %52 = vector.broadcast %51 : vector<4x1xf32> to vector<4x648xf32>
    %53 = vector.broadcast %49 : vector<1x648xf32> to vector<4x648xf32>
    %54 = arith.mulf %52, %53 : vector<4x648xf32>
    %55 = arith.addf %48, %54 : vector<4x648xf32>
    %c0_32 = arith.constant 0 : index
    %c146 = arith.constant 146 : index
    %56 = vector.load %arg0[%c0_32, %c146] : memref<1x904xf32, #tpu.memory_space<vmem>>, vector<1x648xf32>
    %c7 = arith.constant 7 : index
    %c0_33 = arith.constant 0 : index
    %c0_34 = arith.constant 0 : index
    %57 = vector.load %arg1[%c7, %c0_33, %c0_34] : memref<9x4x1xf32, #tpu.memory_space<vmem>>, vector<1x4x1xf32>
    %58 = vector.shape_cast %57 : vector<1x4x1xf32> to vector<4x1xf32>
    %59 = vector.broadcast %58 : vector<4x1xf32> to vector<4x648xf32>
    %60 = vector.broadcast %56 : vector<1x648xf32> to vector<4x648xf32>
    %61 = arith.mulf %59, %60 : vector<4x648xf32>
    %62 = arith.addf %55, %61 : vector<4x648xf32>
    %c0_35 = arith.constant 0 : index
    %c147 = arith.constant 147 : index
    %63 = vector.load %arg0[%c0_35, %c147] : memref<1x904xf32, #tpu.memory_space<vmem>>, vector<1x648xf32>
    %c8 = arith.constant 8 : index
    %c0_36 = arith.constant 0 : index
    %c0_37 = arith.constant 0 : index
    %64 = vector.load %arg1[%c8, %c0_36, %c0_37] : memref<9x4x1xf32, #tpu.memory_space<vmem>>, vector<1x4x1xf32>
    %65 = vector.shape_cast %64 : vector<1x4x1xf32> to vector<4x1xf32>
    %66 = vector.broadcast %65 : vector<4x1xf32> to vector<4x648xf32>
    %67 = vector.broadcast %63 : vector<1x648xf32> to vector<4x648xf32>
    %68 = arith.mulf %66, %67 : vector<4x648xf32>
    %69 = arith.addf %62, %68 : vector<4x648xf32>
    %c0_38 = arith.constant 0 : index
    %c0_39 = arith.constant 0 : index
    %70 = vector.load %arg2[%c0_38, %c0_39] : memref<4x1xf32, #tpu.memory_space<vmem>>, vector<4x1xf32>
    %71 = vector.broadcast %70 : vector<4x1xf32> to vector<4x648xf32>
    %72 = arith.addf %69, %71 : vector<4x648xf32>
    %cst_40 = arith.constant 0.000000e+00 : f32
    %73 = vector.broadcast %cst_40 : f32 to vector<4x648xf32>
    %74 = arith.cmpf ogt, %72, %73 : vector<4x648xf32>
    %cst_41 = arith.constant 1.000000e-01 : f32
    %75 = vector.broadcast %cst_41 : f32 to vector<4x648xf32>
    %76 = arith.mulf %75, %72 : vector<4x648xf32>
    %77 = arith.select %74, %72, %76 : vector<4x648xi1>, vector<4x648xf32>
    %c0_42 = arith.constant 0 : index
    %c0_43 = arith.constant 0 : index
    %78 = vector.load %arg5[%c0_42, %c0_43] : memref<1x648xf32, #tpu.memory_space<vmem>>, vector<1x648xf32>
    %79 = vector.broadcast %78 : vector<1x648xf32> to vector<4x648xf32>
    %80 = arith.mulf %77, %79 : vector<4x648xf32>
    %c0_44 = arith.constant 0 : index
    %c128_45 = arith.constant 128 : index
    %81 = vector.load %arg16[%c0_44, %c128_45] : memref<4x904xf32, #tpu.memory_space<vmem>>, vector<4x648xf32>
    tpu.vector_store %arg16[%c0_44, %c128_45], %80 {strides = array<i32>} : memref<4x904xf32, #tpu.memory_space<vmem>>, vector<4x648xf32>,
    %c0_46 = arith.constant 0 : index
    %c109_47 = arith.constant 109 : index
    %82 = vector.load %arg16[%c0_46, %c109_47] : memref<4x904xf32, #tpu.memory_space<vmem>>, vector<4x648xf32>
    %c0_48 = arith.constant 0 : index
    %c0_49 = arith.constant 0 : index
    %c0_50 = arith.constant 0 : index
    %83 = vector.load %arg3[%c0_48, %c0_49, %c0_50] : memref<9x4x4xf32, #tpu.memory_space<vmem>>, vector<1x4x4xf32>
    %84 = vector.shape_cast %83 : vector<1x4x4xf32> to vector<4x4xf32>
    %cst_51 = arith.constant dense<0.000000e+00> : vector<4x648xf32>
    %85 = tpu.matmul %84, %82, %cst_51 {dimension_numbers = #tpu.dot_dimension_numbers<[1], [0], [0], [1], [0, 0, 1, 1], [], []>} : vector<4x4xf32>, vector<4x648xf32>, vector<4x648xf32> -> vector<4x648xf32>
    %c0_52 = arith.constant 0 : index
    %c110_53 = arith.constant 110 : index
    %86 = vector.load %arg16[%c0_52, %c110_53] : memref<4x904xf32, #tpu.memory_space<vmem>>, vector<4x648xf32>
    %c1_54 = arith.constant 1 : index
    %c0_55 = arith.constant 0 : index
    %c0_56 = arith.constant 0 : index
    %87 = vector.load %arg3[%c1_54, %c0_55, %c0_56] : memref<9x4x4xf32, #tpu.memory_space<vmem>>, vector<1x4x4xf32>
    %88 = vector.shape_cast %87 : vector<1x4x4xf32> to vector<4x4xf32>
    %cst_57 = arith.constant dense<0.000000e+00> : vector<4x648xf32>
    %89 = tpu.matmul %88, %86, %cst_57 {dimension_numbers = #tpu.dot_dimension_numbers<[1], [0], [0], [1], [0, 0, 1, 1], [], []>} : vector<4x4xf32>, vector<4x648xf32>, vector<4x648xf32> -> vector<4x648xf32>
    %90 = arith.addf %85, %89 : vector<4x648xf32>
    %c0_58 = arith.constant 0 : index
    %c111_59 = arith.constant 111 : index
    %91 = vector.load %arg16[%c0_58, %c111_59] : memref<4x904xf32, #tpu.memory_space<vmem>>, vector<4x648xf32>
    %c2_60 = arith.constant 2 : index
    %c0_61 = arith.constant 0 : index
    %c0_62 = arith.constant 0 : index
    %92 = vector.load %arg3[%c2_60, %c0_61, %c0_62] : memref<9x4x4xf32, #tpu.memory_space<vmem>>, vector<1x4x4xf32>
    %93 = vector.shape_cast %92 : vector<1x4x4xf32> to vector<4x4xf32>
    %cst_63 = arith.constant dense<0.000000e+00> : vector<4x648xf32>
    %94 = tpu.matmul %93, %91, %cst_63 {dimension_numbers = #tpu.dot_dimension_numbers<[1], [0], [0], [1], [0, 0, 1, 1], [], []>} : vector<4x4xf32>, vector<4x648xf32>, vector<4x648xf32> -> vector<4x648xf32>
    %95 = arith.addf %90, %94 : vector<4x648xf32>
    %c0_64 = arith.constant 0 : index
    %c127_65 = arith.constant 127 : index
    %96 = vector.load %arg16[%c0_64, %c127_65] : memref<4x904xf32, #tpu.memory_space<vmem>>, vector<4x648xf32>
    %c3_66 = arith.constant 3 : index
    %c0_67 = arith.constant 0 : index
    %c0_68 = arith.constant 0 : index
    %97 = vector.load %arg3[%c3_66, %c0_67, %c0_68] : memref<9x4x4xf32, #tpu.memory_space<vmem>>, vector<1x4x4xf32>
    %98 = vector.shape_cast %97 : vector<1x4x4xf32> to vector<4x4xf32>
    %cst_69 = arith.constant dense<0.000000e+00> : vector<4x648xf32>
    %99 = tpu.matmul %98, %96, %cst_69 {dimension_numbers = #tpu.dot_dimension_numbers<[1], [0], [0], [1], [0, 0, 1, 1], [], []>} : vector<4x4xf32>, vector<4x648xf32>, vector<4x648xf32> -> vector<4x648xf32>
    %100 = arith.addf %95, %99 : vector<4x648xf32>
    %c0_70 = arith.constant 0 : index
    %c128_71 = arith.constant 128 : index
    %101 = vector.load %arg16[%c0_70, %c128_71] : memref<4x904xf32, #tpu.memory_space<vmem>>, vector<4x648xf32>
    %c4_72 = arith.constant 4 : index
    %c0_73 = arith.constant 0 : index
    %c0_74 = arith.constant 0 : index
    %102 = vector.load %arg3[%c4_72, %c0_73, %c0_74] : memref<9x4x4xf32, #tpu.memory_space<vmem>>, vector<1x4x4xf32>
    %103 = vector.shape_cast %102 : vector<1x4x4xf32> to vector<4x4xf32>
    %cst_75 = arith.constant dense<0.000000e+00> : vector<4x648xf32>
    %104 = tpu.matmul %103, %101, %cst_75 {dimension_numbers = #tpu.dot_dimension_numbers<[1], [0], [0], [1], [0, 0, 1, 1], [], []>} : vector<4x4xf32>, vector<4x648xf32>, vector<4x648xf32> -> vector<4x648xf32>
    %105 = arith.addf %100, %104 : vector<4x648xf32>
    %c0_76 = arith.constant 0 : index
    %c129_77 = arith.constant 129 : index
    %106 = vector.load %arg16[%c0_76, %c129_77] : memref<4x904xf32, #tpu.memory_space<vmem>>, vector<4x648xf32>
    %c5_78 = arith.constant 5 : index
    %c0_79 = arith.constant 0 : index
    %c0_80 = arith.constant 0 : index
    %107 = vector.load %arg3[%c5_78, %c0_79, %c0_80] : memref<9x4x4xf32, #tpu.memory_space<vmem>>, vector<1x4x4xf32>
    %108 = vector.shape_cast %107 : vector<1x4x4xf32> to vector<4x4xf32>
    %cst_81 = arith.constant dense<0.000000e+00> : vector<4x648xf32>
    %109 = tpu.matmul %108, %106, %cst_81 {dimension_numbers = #tpu.dot_dimension_numbers<[1], [0], [0], [1], [0, 0, 1, 1], [], []>} : vector<4x4xf32>, vector<4x648xf32>, vector<4x648xf32> -> vector<4x648xf32>
    %110 = arith.addf %105, %109 : vector<4x648xf32>
    %c0_82 = arith.constant 0 : index
    %c145_83 = arith.constant 145 : index
    %111 = vector.load %arg16[%c0_82, %c145_83] : memref<4x904xf32, #tpu.memory_space<vmem>>, vector<4x648xf32>
    %c6_84 = arith.constant 6 : index
    %c0_85 = arith.constant 0 : index
    %c0_86 = arith.constant 0 : index
    %112 = vector.load %arg3[%c6_84, %c0_85, %c0_86] : memref<9x4x4xf32, #tpu.memory_space<vmem>>, vector<1x4x4xf32>
    %113 = vector.shape_cast %112 : vector<1x4x4xf32> to vector<4x4xf32>
    %cst_87 = arith.constant dense<0.000000e+00> : vector<4x648xf32>
    %114 = tpu.matmul %113, %111, %cst_87 {dimension_numbers = #tpu.dot_dimension_numbers<[1], [0], [0], [1], [0, 0, 1, 1], [], []>} : vector<4x4xf32>, vector<4x648xf32>, vector<4x648xf32> -> vector<4x648xf32>
    %115 = arith.addf %110, %114 : vector<4x648xf32>
    %c0_88 = arith.constant 0 : index
    %c146_89 = arith.constant 146 : index
    %116 = vector.load %arg16[%c0_88, %c146_89] : memref<4x904xf32, #tpu.memory_space<vmem>>, vector<4x648xf32>
    %c7_90 = arith.constant 7 : index
    %c0_91 = arith.constant 0 : index
    %c0_92 = arith.constant 0 : index
    %117 = vector.load %arg3[%c7_90, %c0_91, %c0_92] : memref<9x4x4xf32, #tpu.memory_space<vmem>>, vector<1x4x4xf32>
    %118 = vector.shape_cast %117 : vector<1x4x4xf32> to vector<4x4xf32>
    %cst_93 = arith.constant dense<0.000000e+00> : vector<4x648xf32>
    %119 = tpu.matmul %118, %116, %cst_93 {dimension_numbers = #tpu.dot_dimension_numbers<[1], [0], [0], [1], [0, 0, 1, 1], [], []>} : vector<4x4xf32>, vector<4x648xf32>, vector<4x648xf32> -> vector<4x648xf32>
    %120 = arith.addf %115, %119 : vector<4x648xf32>
    %c0_94 = arith.constant 0 : index
    %c147_95 = arith.constant 147 : index
    %121 = vector.load %arg16[%c0_94, %c147_95] : memref<4x904xf32, #tpu.memory_space<vmem>>, vector<4x648xf32>
    %c8_96 = arith.constant 8 : index
    %c0_97 = arith.constant 0 : index
    %c0_98 = arith.constant 0 : index
    %122 = vector.load %arg3[%c8_96, %c0_97, %c0_98] : memref<9x4x4xf32, #tpu.memory_space<vmem>>, vector<1x4x4xf32>
    %123 = vector.shape_cast %122 : vector<1x4x4xf32> to vector<4x4xf32>
    %cst_99 = arith.constant dense<0.000000e+00> : vector<4x648xf32>
    %124 = tpu.matmul %123, %121, %cst_99 {dimension_numbers = #tpu.dot_dimension_numbers<[1], [0], [0], [1], [0, 0, 1, 1], [], []>} : vector<4x4xf32>, vector<4x648xf32>, vector<4x648xf32> -> vector<4x648xf32>
    %125 = arith.addf %120, %124 : vector<4x648xf32>
    %c0_100 = arith.constant 0 : index
    %c0_101 = arith.constant 0 : index
    %126 = vector.load %arg4[%c0_100, %c0_101] : memref<4x1xf32, #tpu.memory_space<vmem>>, vector<4x1xf32>
    %127 = vector.broadcast %126 : vector<4x1xf32> to vector<4x648xf32>
    %128 = arith.addf %125, %127 : vector<4x648xf32>
    %cst_102 = arith.constant 0.000000e+00 : f32
    %129 = vector.broadcast %cst_102 : f32 to vector<4x648xf32>
    %130 = arith.cmpf ogt, %128, %129 : vector<4x648xf32>
    %cst_103 = arith.constant 1.000000e-01 : f32
    %131 = vector.broadcast %cst_103 : f32 to vector<4x648xf32>
    %132 = arith.mulf %131, %128 : vector<4x648xf32>
    %133 = arith.select %130, %128, %132 : vector<4x648xi1>, vector<4x648xf32>
    %c0_104 = arith.constant 0 : index
    %c0_105 = arith.constant 0 : index
    %c0_106 = arith.constant 0 : index
    %134 = vector.load %arg6[%c0_104, %c0_105, %c0_106] : memref<2x648x256xf32, #tpu.memory_space<vmem>>, vector<1x648x256xf32>
    %135 = vector.shape_cast %134 : vector<1x648x256xf32> to vector<648x256xf32>
    %cst_107 = arith.constant dense<0.000000e+00> : vector<4x256xf32>
    %136 = tpu.matmul %133, %135, %cst_107 {dimension_numbers = #tpu.dot_dimension_numbers<[1], [0], [0], [1], [0, 0, 1, 1], [], []>} : vector<4x648xf32>, vector<648x256xf32>, vector<4x256xf32> -> vector<4x256xf32>
    %c0_108 = arith.constant 0 : index
    %c0_109 = arith.constant 0 : index
    %c0_110 = arith.constant 0 : index
    %137 = vector.load %arg14[%c0_108, %c0_109, %c0_110] : memref<2x4x256xf32, #tpu.memory_space<vmem>>, vector<1x4x256xf32>
    %138 = vector.shape_cast %137 : vector<1x4x256xf32> to vector<4x256xf32>
    %139 = vector.shape_cast %136 : vector<4x256xf32> to vector<1x4x256xf32>
    tpu.vector_store %arg14[%c0_108, %c0_109, %c0_110], %139 {strides = array<i32>} : memref<2x4x256xf32, #tpu.memory_space<vmem>>, vector<1x4x256xf32>,
    %c1_111 = arith.constant 1 : index
    %c0_112 = arith.constant 0 : index
    %c0_113 = arith.constant 0 : index
    %140 = vector.load %arg6[%c1_111, %c0_112, %c0_113] : memref<2x648x256xf32, #tpu.memory_space<vmem>>, vector<1x648x256xf32>
    %141 = vector.shape_cast %140 : vector<1x648x256xf32> to vector<648x256xf32>
    %cst_114 = arith.constant dense<0.000000e+00> : vector<4x256xf32>
    %142 = tpu.matmul %133, %141, %cst_114 {dimension_numbers = #tpu.dot_dimension_numbers<[1], [0], [0], [1], [0, 0, 1, 1], [], []>} : vector<4x648xf32>, vector<648x256xf32>, vector<4x256xf32> -> vector<4x256xf32>
    %c1_115 = arith.constant 1 : index
    %c0_116 = arith.constant 0 : index
    %c0_117 = arith.constant 0 : index
    %143 = vector.load %arg14[%c1_115, %c0_116, %c0_117] : memref<2x4x256xf32, #tpu.memory_space<vmem>>, vector<1x4x256xf32>
    %144 = vector.shape_cast %143 : vector<1x4x256xf32> to vector<4x256xf32>
    %145 = vector.shape_cast %142 : vector<4x256xf32> to vector<1x4x256xf32>
    tpu.vector_store %arg14[%c1_115, %c0_116, %c0_117], %145 {strides = array<i32>} : memref<2x4x256xf32, #tpu.memory_space<vmem>>, vector<1x4x256xf32>,
    %c0_118 = arith.constant 0 : index
    %c128_119 = arith.constant 128 : index
    %146 = vector.load %arg17[%c0_118, %c128_119] : memref<4x904xf32, #tpu.memory_space<vmem>>, vector<4x648xf32>
    tpu.vector_store %arg17[%c0_118, %c128_119], %133 {strides = array<i32>} : memref<4x904xf32, #tpu.memory_space<vmem>>, vector<4x648xf32>,
    %c0_120 = arith.constant 0 : index
    %c129_121 = arith.constant 129 : index
    %147 = vector.load %arg17[%c0_120, %c129_121] : memref<4x904xf32, #tpu.memory_space<vmem>>, vector<4x648xf32>
    %148 = arith.maximumf %133, %147 : vector<4x648xf32>
    %c0_122 = arith.constant 0 : index
    %c146_123 = arith.constant 146 : index
    %149 = vector.load %arg17[%c0_122, %c146_123] : memref<4x904xf32, #tpu.memory_space<vmem>>, vector<4x648xf32>
    %150 = arith.maximumf %148, %149 : vector<4x648xf32>
    %c0_124 = arith.constant 0 : index
    %c147_125 = arith.constant 147 : index
    %151 = vector.load %arg17[%c0_124, %c147_125] : memref<4x904xf32, #tpu.memory_space<vmem>>, vector<4x648xf32>
    %152 = arith.maximumf %150, %151 : vector<4x648xf32>
    %c0_126 = arith.constant 0 : index
    %c0_127 = arith.constant 0 : index
    %153 = vector.load %arg7[%c0_126, %c0_127] : memref<648x200xf32, #tpu.memory_space<vmem>>, vector<648x200xf32>
    %cst_128 = arith.constant dense<0.000000e+00> : vector<4x200xf32>
    %154 = tpu.matmul %152, %153, %cst_128 {dimension_numbers = #tpu.dot_dimension_numbers<[1], [0], [0], [1], [0, 0, 1, 1], [], []>} : vector<4x648xf32>, vector<648x200xf32>, vector<4x200xf32> -> vector<4x200xf32>
    %c0_129 = arith.constant 0 : index
    %c128_130 = arith.constant 128 : index
    %155 = vector.load %arg18[%c0_129, %c128_130] : memref<4x456xf32, #tpu.memory_space<vmem>>, vector<4x200xf32>
    tpu.vector_store %arg18[%c0_129, %c128_130], %154 {strides = array<i32>} : memref<4x456xf32, #tpu.memory_space<vmem>>, vector<4x200xf32>,
    %c0_131 = arith.constant 0 : index
    %c117 = arith.constant 117 : index
    %156 = vector.load %arg18[%c0_131, %c117] : memref<4x456xf32, #tpu.memory_space<vmem>>, vector<4x200xf32>
    %c0_132 = arith.constant 0 : index
    %c0_133 = arith.constant 0 : index
    %c0_134 = arith.constant 0 : index
    %157 = vector.load %arg8[%c0_132, %c0_133, %c0_134] : memref<9x8x4xf32, #tpu.memory_space<vmem>>, vector<1x8x4xf32>
    %158 = vector.shape_cast %157 : vector<1x8x4xf32> to vector<8x4xf32>
    %cst_135 = arith.constant dense<0.000000e+00> : vector<8x200xf32>
    %159 = tpu.matmul %158, %156, %cst_135 {dimension_numbers = #tpu.dot_dimension_numbers<[1], [0], [0], [1], [0, 0, 1, 1], [], []>} : vector<8x4xf32>, vector<4x200xf32>, vector<8x200xf32> -> vector<8x200xf32>
    %c0_136 = arith.constant 0 : index
    %c118 = arith.constant 118 : index
    %160 = vector.load %arg18[%c0_136, %c118] : memref<4x456xf32, #tpu.memory_space<vmem>>, vector<4x200xf32>
    %c1_137 = arith.constant 1 : index
    %c0_138 = arith.constant 0 : index
    %c0_139 = arith.constant 0 : index
    %161 = vector.load %arg8[%c1_137, %c0_138, %c0_139] : memref<9x8x4xf32, #tpu.memory_space<vmem>>, vector<1x8x4xf32>
    %162 = vector.shape_cast %161 : vector<1x8x4xf32> to vector<8x4xf32>
    %cst_140 = arith.constant dense<0.000000e+00> : vector<8x200xf32>
    %163 = tpu.matmul %162, %160, %cst_140 {dimension_numbers = #tpu.dot_dimension_numbers<[1], [0], [0], [1], [0, 0, 1, 1], [], []>} : vector<8x4xf32>, vector<4x200xf32>, vector<8x200xf32> -> vector<8x200xf32>
    %164 = arith.addf %159, %163 : vector<8x200xf32>
    %c0_141 = arith.constant 0 : index
    %c119 = arith.constant 119 : index
    %165 = vector.load %arg18[%c0_141, %c119] : memref<4x456xf32, #tpu.memory_space<vmem>>, vector<4x200xf32>
    %c2_142 = arith.constant 2 : index
    %c0_143 = arith.constant 0 : index
    %c0_144 = arith.constant 0 : index
    %166 = vector.load %arg8[%c2_142, %c0_143, %c0_144] : memref<9x8x4xf32, #tpu.memory_space<vmem>>, vector<1x8x4xf32>
    %167 = vector.shape_cast %166 : vector<1x8x4xf32> to vector<8x4xf32>
    %cst_145 = arith.constant dense<0.000000e+00> : vector<8x200xf32>
    %168 = tpu.matmul %167, %165, %cst_145 {dimension_numbers = #tpu.dot_dimension_numbers<[1], [0], [0], [1], [0, 0, 1, 1], [], []>} : vector<8x4xf32>, vector<4x200xf32>, vector<8x200xf32> -> vector<8x200xf32>
    %169 = arith.addf %164, %168 : vector<8x200xf32>
    %c0_146 = arith.constant 0 : index
    %c127_147 = arith.constant 127 : index
    %170 = vector.load %arg18[%c0_146, %c127_147] : memref<4x456xf32, #tpu.memory_space<vmem>>, vector<4x200xf32>
    %c3_148 = arith.constant 3 : index
    %c0_149 = arith.constant 0 : index
    %c0_150 = arith.constant 0 : index
    %171 = vector.load %arg8[%c3_148, %c0_149, %c0_150] : memref<9x8x4xf32, #tpu.memory_space<vmem>>, vector<1x8x4xf32>
    %172 = vector.shape_cast %171 : vector<1x8x4xf32> to vector<8x4xf32>
    %cst_151 = arith.constant dense<0.000000e+00> : vector<8x200xf32>
    %173 = tpu.matmul %172, %170, %cst_151 {dimension_numbers = #tpu.dot_dimension_numbers<[1], [0], [0], [1], [0, 0, 1, 1], [], []>} : vector<8x4xf32>, vector<4x200xf32>, vector<8x200xf32> -> vector<8x200xf32>
    %174 = arith.addf %169, %173 : vector<8x200xf32>
    %c0_152 = arith.constant 0 : index
    %c128_153 = arith.constant 128 : index
    %175 = vector.load %arg18[%c0_152, %c128_153] : memref<4x456xf32, #tpu.memory_space<vmem>>, vector<4x200xf32>
    %c4_154 = arith.constant 4 : index
    %c0_155 = arith.constant 0 : index
    %c0_156 = arith.constant 0 : index
    %176 = vector.load %arg8[%c4_154, %c0_155, %c0_156] : memref<9x8x4xf32, #tpu.memory_space<vmem>>, vector<1x8x4xf32>
    %177 = vector.shape_cast %176 : vector<1x8x4xf32> to vector<8x4xf32>
    %cst_157 = arith.constant dense<0.000000e+00> : vector<8x200xf32>
    %178 = tpu.matmul %177, %175, %cst_157 {dimension_numbers = #tpu.dot_dimension_numbers<[1], [0], [0], [1], [0, 0, 1, 1], [], []>} : vector<8x4xf32>, vector<4x200xf32>, vector<8x200xf32> -> vector<8x200xf32>
    %179 = arith.addf %174, %178 : vector<8x200xf32>
    %c0_158 = arith.constant 0 : index
    %c129_159 = arith.constant 129 : index
    %180 = vector.load %arg18[%c0_158, %c129_159] : memref<4x456xf32, #tpu.memory_space<vmem>>, vector<4x200xf32>
    %c5_160 = arith.constant 5 : index
    %c0_161 = arith.constant 0 : index
    %c0_162 = arith.constant 0 : index
    %181 = vector.load %arg8[%c5_160, %c0_161, %c0_162] : memref<9x8x4xf32, #tpu.memory_space<vmem>>, vector<1x8x4xf32>
    %182 = vector.shape_cast %181 : vector<1x8x4xf32> to vector<8x4xf32>
    %cst_163 = arith.constant dense<0.000000e+00> : vector<8x200xf32>
    %183 = tpu.matmul %182, %180, %cst_163 {dimension_numbers = #tpu.dot_dimension_numbers<[1], [0], [0], [1], [0, 0, 1, 1], [], []>} : vector<8x4xf32>, vector<4x200xf32>, vector<8x200xf32> -> vector<8x200xf32>
    %184 = arith.addf %179, %183 : vector<8x200xf32>
    %c0_164 = arith.constant 0 : index
    %c137 = arith.constant 137 : index
    %185 = vector.load %arg18[%c0_164, %c137] : memref<4x456xf32, #tpu.memory_space<vmem>>, vector<4x200xf32>
    %c6_165 = arith.constant 6 : index
    %c0_166 = arith.constant 0 : index
    %c0_167 = arith.constant 0 : index
    %186 = vector.load %arg8[%c6_165, %c0_166, %c0_167] : memref<9x8x4xf32, #tpu.memory_space<vmem>>, vector<1x8x4xf32>
    %187 = vector.shape_cast %186 : vector<1x8x4xf32> to vector<8x4xf32>
    %cst_168 = arith.constant dense<0.000000e+00> : vector<8x200xf32>
    %188 = tpu.matmul %187, %185, %cst_168 {dimension_numbers = #tpu.dot_dimension_numbers<[1], [0], [0], [1], [0, 0, 1, 1], [], []>} : vector<8x4xf32>, vector<4x200xf32>, vector<8x200xf32> -> vector<8x200xf32>
    %189 = arith.addf %184, %188 : vector<8x200xf32>
    %c0_169 = arith.constant 0 : index
    %c138 = arith.constant 138 : index
    %190 = vector.load %arg18[%c0_169, %c138] : memref<4x456xf32, #tpu.memory_space<vmem>>, vector<4x200xf32>
    %c7_170 = arith.constant 7 : index
    %c0_171 = arith.constant 0 : index
    %c0_172 = arith.constant 0 : index
    %191 = vector.load %arg8[%c7_170, %c0_171, %c0_172] : memref<9x8x4xf32, #tpu.memory_space<vmem>>, vector<1x8x4xf32>
    %192 = vector.shape_cast %191 : vector<1x8x4xf32> to vector<8x4xf32>
    %cst_173 = arith.constant dense<0.000000e+00> : vector<8x200xf32>
    %193 = tpu.matmul %192, %190, %cst_173 {dimension_numbers = #tpu.dot_dimension_numbers<[1], [0], [0], [1], [0, 0, 1, 1], [], []>} : vector<8x4xf32>, vector<4x200xf32>, vector<8x200xf32> -> vector<8x200xf32>
    %194 = arith.addf %189, %193 : vector<8x200xf32>
    %c0_174 = arith.constant 0 : index
    %c139 = arith.constant 139 : index
    %195 = vector.load %arg18[%c0_174, %c139] : memref<4x456xf32, #tpu.memory_space<vmem>>, vector<4x200xf32>
    %c8_175 = arith.constant 8 : index
    %c0_176 = arith.constant 0 : index
    %c0_177 = arith.constant 0 : index
    %196 = vector.load %arg8[%c8_175, %c0_176, %c0_177] : memref<9x8x4xf32, #tpu.memory_space<vmem>>, vector<1x8x4xf32>
    %197 = vector.shape_cast %196 : vector<1x8x4xf32> to vector<8x4xf32>
    %cst_178 = arith.constant dense<0.000000e+00> : vector<8x200xf32>
    %198 = tpu.matmul %197, %195, %cst_178 {dimension_numbers = #tpu.dot_dimension_numbers<[1], [0], [0], [1], [0, 0, 1, 1], [], []>} : vector<8x4xf32>, vector<4x200xf32>, vector<8x200xf32> -> vector<8x200xf32>
    %199 = arith.addf %194, %198 : vector<8x200xf32>
    %c0_179 = arith.constant 0 : index
    %c0_180 = arith.constant 0 : index
    %200 = vector.load %arg9[%c0_179, %c0_180] : memref<8x1xf32, #tpu.memory_space<vmem>>, vector<8x1xf32>
    %201 = vector.broadcast %200 : vector<8x1xf32> to vector<8x200xf32>
    %202 = arith.addf %199, %201 : vector<8x200xf32>
    %cst_181 = arith.constant 0.000000e+00 : f32
    %203 = vector.broadcast %cst_181 : f32 to vector<8x200xf32>
    %204 = arith.cmpf ogt, %202, %203 : vector<8x200xf32>
    %cst_182 = arith.constant 1.000000e-01 : f32
    %205 = vector.broadcast %cst_182 : f32 to vector<8x200xf32>
    %206 = arith.mulf %205, %202 : vector<8x200xf32>
    %207 = arith.select %204, %202, %206 : vector<8x200xi1>, vector<8x200xf32>
    %c0_183 = arith.constant 0 : index
    %c0_184 = arith.constant 0 : index
    %208 = vector.load %arg12[%c0_183, %c0_184] : memref<1x200xf32, #tpu.memory_space<vmem>>, vector<1x200xf32>
    %209 = vector.broadcast %208 : vector<1x200xf32> to vector<8x200xf32>
    %210 = arith.mulf %207, %209 : vector<8x200xf32>
    %c0_185 = arith.constant 0 : index
    %c128_186 = arith.constant 128 : index
    %211 = vector.load %arg19[%c0_185, %c128_186] : memref<8x456xf32, #tpu.memory_space<vmem>>, vector<8x200xf32>
    tpu.vector_store %arg19[%c0_185, %c128_186], %210 {strides = array<i32>} : memref<8x456xf32, #tpu.memory_space<vmem>>, vector<8x200xf32>,
    %c0_187 = arith.constant 0 : index
    %c117_188 = arith.constant 117 : index
    %212 = vector.load %arg19[%c0_187, %c117_188] : memref<8x456xf32, #tpu.memory_space<vmem>>, vector<8x200xf32>
    %c0_189 = arith.constant 0 : index
    %c0_190 = arith.constant 0 : index
    %c0_191 = arith.constant 0 : index
    %213 = vector.load %arg10[%c0_189, %c0_190, %c0_191] : memref<9x8x8xf32, #tpu.memory_space<vmem>>, vector<1x8x8xf32>
    %214 = vector.shape_cast %213 : vector<1x8x8xf32> to vector<8x8xf32>
    %cst_192 = arith.constant dense<0.000000e+00> : vector<8x200xf32>
    %215 = tpu.matmul %214, %212, %cst_192 {dimension_numbers = #tpu.dot_dimension_numbers<[1], [0], [0], [1], [0, 0, 1, 1], [], []>} : vector<8x8xf32>, vector<8x200xf32>, vector<8x200xf32> -> vector<8x200xf32>
    %c0_193 = arith.constant 0 : index
    %c118_194 = arith.constant 118 : index
    %216 = vector.load %arg19[%c0_193, %c118_194] : memref<8x456xf32, #tpu.memory_space<vmem>>, vector<8x200xf32>
    %c1_195 = arith.constant 1 : index
    %c0_196 = arith.constant 0 : index
    %c0_197 = arith.constant 0 : index
    %217 = vector.load %arg10[%c1_195, %c0_196, %c0_197] : memref<9x8x8xf32, #tpu.memory_space<vmem>>, vector<1x8x8xf32>
    %218 = vector.shape_cast %217 : vector<1x8x8xf32> to vector<8x8xf32>
    %cst_198 = arith.constant dense<0.000000e+00> : vector<8x200xf32>
    %219 = tpu.matmul %218, %216, %cst_198 {dimension_numbers = #tpu.dot_dimension_numbers<[1], [0], [0], [1], [0, 0, 1, 1], [], []>} : vector<8x8xf32>, vector<8x200xf32>, vector<8x200xf32> -> vector<8x200xf32>
    %220 = arith.addf %215, %219 : vector<8x200xf32>
    %c0_199 = arith.constant 0 : index
    %c119_200 = arith.constant 119 : index
    %221 = vector.load %arg19[%c0_199, %c119_200] : memref<8x456xf32, #tpu.memory_space<vmem>>, vector<8x200xf32>
    %c2_201 = arith.constant 2 : index
    %c0_202 = arith.constant 0 : index
    %c0_203 = arith.constant 0 : index
    %222 = vector.load %arg10[%c2_201, %c0_202, %c0_203] : memref<9x8x8xf32, #tpu.memory_space<vmem>>, vector<1x8x8xf32>
    %223 = vector.shape_cast %222 : vector<1x8x8xf32> to vector<8x8xf32>
    %cst_204 = arith.constant dense<0.000000e+00> : vector<8x200xf32>
    %224 = tpu.matmul %223, %221, %cst_204 {dimension_numbers = #tpu.dot_dimension_numbers<[1], [0], [0], [1], [0, 0, 1, 1], [], []>} : vector<8x8xf32>, vector<8x200xf32>, vector<8x200xf32> -> vector<8x200xf32>
    %225 = arith.addf %220, %224 : vector<8x200xf32>
    %c0_205 = arith.constant 0 : index
    %c127_206 = arith.constant 127 : index
    %226 = vector.load %arg19[%c0_205, %c127_206] : memref<8x456xf32, #tpu.memory_space<vmem>>, vector<8x200xf32>
    %c3_207 = arith.constant 3 : index
    %c0_208 = arith.constant 0 : index
    %c0_209 = arith.constant 0 : index
    %227 = vector.load %arg10[%c3_207, %c0_208, %c0_209] : memref<9x8x8xf32, #tpu.memory_space<vmem>>, vector<1x8x8xf32>
    %228 = vector.shape_cast %227 : vector<1x8x8xf32> to vector<8x8xf32>
    %cst_210 = arith.constant dense<0.000000e+00> : vector<8x200xf32>
    %229 = tpu.matmul %228, %226, %cst_210 {dimension_numbers = #tpu.dot_dimension_numbers<[1], [0], [0], [1], [0, 0, 1, 1], [], []>} : vector<8x8xf32>, vector<8x200xf32>, vector<8x200xf32> -> vector<8x200xf32>
    %230 = arith.addf %225, %229 : vector<8x200xf32>
    %c0_211 = arith.constant 0 : index
    %c128_212 = arith.constant 128 : index
    %231 = vector.load %arg19[%c0_211, %c128_212] : memref<8x456xf32, #tpu.memory_space<vmem>>, vector<8x200xf32>
    %c4_213 = arith.constant 4 : index
    %c0_214 = arith.constant 0 : index
    %c0_215 = arith.constant 0 : index
    %232 = vector.load %arg10[%c4_213, %c0_214, %c0_215] : memref<9x8x8xf32, #tpu.memory_space<vmem>>, vector<1x8x8xf32>
    %233 = vector.shape_cast %232 : vector<1x8x8xf32> to vector<8x8xf32>
    %cst_216 = arith.constant dense<0.000000e+00> : vector<8x200xf32>
    %234 = tpu.matmul %233, %231, %cst_216 {dimension_numbers = #tpu.dot_dimension_numbers<[1], [0], [0], [1], [0, 0, 1, 1], [], []>} : vector<8x8xf32>, vector<8x200xf32>, vector<8x200xf32> -> vector<8x200xf32>
    %235 = arith.addf %230, %234 : vector<8x200xf32>
    %c0_217 = arith.constant 0 : index
    %c129_218 = arith.constant 129 : index
    %236 = vector.load %arg19[%c0_217, %c129_218] : memref<8x456xf32, #tpu.memory_space<vmem>>, vector<8x200xf32>
    %c5_219 = arith.constant 5 : index
    %c0_220 = arith.constant 0 : index
    %c0_221 = arith.constant 0 : index
    %237 = vector.load %arg10[%c5_219, %c0_220, %c0_221] : memref<9x8x8xf32, #tpu.memory_space<vmem>>, vector<1x8x8xf32>
    %238 = vector.shape_cast %237 : vector<1x8x8xf32> to vector<8x8xf32>
    %cst_222 = arith.constant dense<0.000000e+00> : vector<8x200xf32>
    %239 = tpu.matmul %238, %236, %cst_222 {dimension_numbers = #tpu.dot_dimension_numbers<[1], [0], [0], [1], [0, 0, 1, 1], [], []>} : vector<8x8xf32>, vector<8x200xf32>, vector<8x200xf32> -> vector<8x200xf32>
    %240 = arith.addf %235, %239 : vector<8x200xf32>
    %c0_223 = arith.constant 0 : index
    %c137_224 = arith.constant 137 : index
    %241 = vector.load %arg19[%c0_223, %c137_224] : memref<8x456xf32, #tpu.memory_space<vmem>>, vector<8x200xf32>
    %c6_225 = arith.constant 6 : index
    %c0_226 = arith.constant 0 : index
    %c0_227 = arith.constant 0 : index
    %242 = vector.load %arg10[%c6_225, %c0_226, %c0_227] : memref<9x8x8xf32, #tpu.memory_space<vmem>>, vector<1x8x8xf32>
    %243 = vector.shape_cast %242 : vector<1x8x8xf32> to vector<8x8xf32>
    %cst_228 = arith.constant dense<0.000000e+00> : vector<8x200xf32>
    %244 = tpu.matmul %243, %241, %cst_228 {dimension_numbers = #tpu.dot_dimension_numbers<[1], [0], [0], [1], [0, 0, 1, 1], [], []>} : vector<8x8xf32>, vector<8x200xf32>, vector<8x200xf32> -> vector<8x200xf32>
    %245 = arith.addf %240, %244 : vector<8x200xf32>
    %c0_229 = arith.constant 0 : index
    %c138_230 = arith.constant 138 : index
    %246 = vector.load %arg19[%c0_229, %c138_230] : memref<8x456xf32, #tpu.memory_space<vmem>>, vector<8x200xf32>
    %c7_231 = arith.constant 7 : index
    %c0_232 = arith.constant 0 : index
    %c0_233 = arith.constant 0 : index
    %247 = vector.load %arg10[%c7_231, %c0_232, %c0_233] : memref<9x8x8xf32, #tpu.memory_space<vmem>>, vector<1x8x8xf32>
    %248 = vector.shape_cast %247 : vector<1x8x8xf32> to vector<8x8xf32>
    %cst_234 = arith.constant dense<0.000000e+00> : vector<8x200xf32>
    %249 = tpu.matmul %248, %246, %cst_234 {dimension_numbers = #tpu.dot_dimension_numbers<[1], [0], [0], [1], [0, 0, 1, 1], [], []>} : vector<8x8xf32>, vector<8x200xf32>, vector<8x200xf32> -> vector<8x200xf32>
    %250 = arith.addf %245, %249 : vector<8x200xf32>
    %c0_235 = arith.constant 0 : index
    %c139_236 = arith.constant 139 : index
    %251 = vector.load %arg19[%c0_235, %c139_236] : memref<8x456xf32, #tpu.memory_space<vmem>>, vector<8x200xf32>
    %c8_237 = arith.constant 8 : index
    %c0_238 = arith.constant 0 : index
    %c0_239 = arith.constant 0 : index
    %252 = vector.load %arg10[%c8_237, %c0_238, %c0_239] : memref<9x8x8xf32, #tpu.memory_space<vmem>>, vector<1x8x8xf32>
    %253 = vector.shape_cast %252 : vector<1x8x8xf32> to vector<8x8xf32>
    %cst_240 = arith.constant dense<0.000000e+00> : vector<8x200xf32>
    %254 = tpu.matmul %253, %251, %cst_240 {dimension_numbers = #tpu.dot_dimension_numbers<[1], [0], [0], [1], [0, 0, 1, 1], [], []>} : vector<8x8xf32>, vector<8x200xf32>, vector<8x200xf32> -> vector<8x200xf32>
    %255 = arith.addf %250, %254 : vector<8x200xf32>
    %c0_241 = arith.constant 0 : index
    %c0_242 = arith.constant 0 : index
    %256 = vector.load %arg11[%c0_241, %c0_242] : memref<8x1xf32, #tpu.memory_space<vmem>>, vector<8x1xf32>
    %257 = vector.broadcast %256 : vector<8x1xf32> to vector<8x200xf32>
    %258 = arith.addf %255, %257 : vector<8x200xf32>
    %cst_243 = arith.constant 0.000000e+00 : f32
    %259 = vector.broadcast %cst_243 : f32 to vector<8x200xf32>
    %260 = arith.cmpf ogt, %258, %259 : vector<8x200xf32>
    %cst_244 = arith.constant 1.000000e-01 : f32
    %261 = vector.broadcast %cst_244 : f32 to vector<8x200xf32>
    %262 = arith.mulf %261, %258 : vector<8x200xf32>
    %263 = arith.select %260, %258, %262 : vector<8x200xi1>, vector<8x200xf32>
    %c0_245 = arith.constant 0 : index
    %c0_246 = arith.constant 0 : index
    %c0_247 = arith.constant 0 : index
    %264 = vector.load %arg13[%c0_245, %c0_246, %c0_247] : memref<2x200x64xf32, #tpu.memory_space<vmem>>, vector<1x200x64xf32>
    %265 = vector.shape_cast %264 : vector<1x200x64xf32> to vector<200x64xf32>
    %cst_248 = arith.constant dense<0.000000e+00> : vector<8x64xf32>
    %266 = tpu.matmul %263, %265, %cst_248 {dimension_numbers = #tpu.dot_dimension_numbers<[1], [0], [0], [1], [0, 0, 1, 1], [], []>} : vector<8x200xf32>, vector<200x64xf32>, vector<8x64xf32> -> vector<8x64xf32>
    %c0_249 = arith.constant 0 : index
    %c0_250 = arith.constant 0 : index
    %c0_251 = arith.constant 0 : index
    %267 = vector.load %arg15[%c0_249, %c0_250, %c0_251] : memref<2x8x64xf32, #tpu.memory_space<vmem>>, vector<1x8x64xf32>
    %268 = vector.shape_cast %267 : vector<1x8x64xf32> to vector<8x64xf32>
    %269 = vector.shape_cast %266 : vector<8x64xf32> to vector<1x8x64xf32>
    tpu.vector_store %arg15[%c0_249, %c0_250, %c0_251], %269 {strides = array<i32>} : memref<2x8x64xf32, #tpu.memory_space<vmem>>, vector<1x8x64xf32>,
    %c1_252 = arith.constant 1 : index
    %c0_253 = arith.constant 0 : index
    %c0_254 = arith.constant 0 : index
    %270 = vector.load %arg13[%c1_252, %c0_253, %c0_254] : memref<2x200x64xf32, #tpu.memory_space<vmem>>, vector<1x200x64xf32>
    %271 = vector.shape_cast %270 : vector<1x200x64xf32> to vector<200x64xf32>
    %cst_255 = arith.constant dense<0.000000e+00> : vector<8x64xf32>
    %272 = tpu.matmul %263, %271, %cst_255 {dimension_numbers = #tpu.dot_dimension_numbers<[1], [0], [0], [1], [0, 0, 1, 1], [], []>} : vector<8x200xf32>, vector<200x64xf32>, vector<8x64xf32> -> vector<8x64xf32>
    %c1_256 = arith.constant 1 : index
    %c0_257 = arith.constant 0 : index
    %c0_258 = arith.constant 0 : index
    %273 = vector.load %arg15[%c1_256, %c0_257, %c0_258] : memref<2x8x64xf32, #tpu.memory_space<vmem>>, vector<1x8x64xf32>
    %274 = vector.shape_cast %273 : vector<1x8x64xf32> to vector<8x64xf32>
    %275 = vector.shape_cast %272 : vector<8x64xf32> to vector<1x8x64xf32>
    tpu.vector_store %arg15[%c1_256, %c0_257, %c0_258], %275 {strides = array<i32>} : memref<2x8x64xf32, #tpu.memory_space<vmem>>, vector<1x8x64xf32>,
    return
  }
}

</mosaic_0001>

<llo_original>
// kernel: encoder_forward.1
$region0: #{encoder_forward.1}
  #allocation0 [shape = 'u32[]', space=smem, size = 0x4, offset = 0x4, fixed_abs, tag = 'smem constant byte address 0x4 - core index']
  #allocation1 [shape = 'u32[144,128]{1,0:T(1,128)}', space=vmem, size = 0x12000, scoped, tag = 'internal scratch']
  #allocation2 [shape = 'f32[4,904]{1,0:T(4,128)}', space=vmem, size = 0x4000, scoped, tag = 'scratch operand']
  #allocation3 [shape = 'f32[4,904]{1,0:T(4,128)}', space=vmem, size = 0x4000, scoped, tag = 'scratch operand']
  #allocation4 [shape = 'f32[4,456]{1,0:T(4,128)}', space=vmem, size = 0x2000, scoped, tag = 'scratch operand']
  #allocation5 [shape = 'f32[8,456]{1,0:T(8,128)}', space=vmem, size = 0x4000, scoped, tag = 'scratch operand']
  %s0 = inlined_call_operand.vmem [shape: f32[1,904], index: 0, kind: input, shape index: {}]
  %s1 = inlined_call_operand.vmem [shape: f32[9,4,1], index: 1, kind: input, shape index: {}]
  %s2 = inlined_call_operand.vmem [shape: f32[4,1], index: 2, kind: input, shape index: {}]
  %s3 = inlined_call_operand.vmem [shape: f32[9,4,4], index: 3, kind: input, shape index: {}]
  %s4 = inlined_call_operand.vmem [shape: f32[4,1], index: 4, kind: input, shape index: {}]
  %s5 = inlined_call_operand.hbm [shape: f32[1,648], index: 5, kind: input, shape index: {}]
  %s6 = inlined_call_operand.hbm [shape: f32[2,648,256], index: 6, kind: input, shape index: {}]
  %s7 = inlined_call_operand.hbm [shape: f32[648,200], index: 7, kind: input, shape index: {}]
  %s8 = inlined_call_operand.vmem [shape: f32[9,8,4], index: 8, kind: input, shape index: {}]
  %s9 = inlined_call_operand.vmem [shape: f32[8,1], index: 9, kind: input, shape index: {}]
  %s10 = inlined_call_operand.vmem [shape: f32[9,8,8], index: 10, kind: input, shape index: {}]
  %s11 = inlined_call_operand.vmem [shape: f32[8,1], index: 11, kind: input, shape index: {}]
  %s12 = inlined_call_operand.hbm [shape: f32[1,200], index: 12, kind: input, shape index: {}]
  %s13 = inlined_call_operand.hbm [shape: f32[2,200,64], index: 13, kind: input, shape index: {}]
  %s14 = inlined_call_operand.vmem [shape: f32[2,4,256], index: 14, kind: output, shape index: {0}]
  %s15 = inlined_call_operand.vmem [shape: f32[2,8,64], index: 15, kind: output, shape index: {1}]
  %16 = xla_tuple %s14, %s15
  %s17 = sld [smem:[#allocation0]]
  $region94: #{encoder_forward.1} parent=0
    _
  %s19 = ssub.s32 1, %s17
  %s20 = scalar_select 0, %s19, %s17
  $region1: #{encoder_forward.1} parent=0
    #allocation6 [shape = 'u8[3072]{0}', space=vmem, size = 0xc00, scoped, tag = 'input window, operand 5, single buffered']
    #allocation7 [shape = 's32[1]{0}', space=sflag, size = 0x4, scoped, tag = 'scoped memory for encoder_forward.1']
    #allocation8 [shape = 'u8[1327104]{0}', space=vmem, size = 0x144000, scoped, tag = 'input window, operand 6, single buffered']
    #allocation9 [shape = 's32[1]{0}', space=sflag, size = 0x4, scoped, tag = 'scoped memory for encoder_forward.1']
    #allocation10 [shape = 'u8[663552]{0}', space=vmem, size = 0xa2000, scoped, tag = 'input window, operand 7, single buffered']
    #allocation11 [shape = 'u8[1024]{0}', space=vmem, size = 0x400, scoped, tag = 'input window, operand 12, single buffered']
    #allocation12 [shape = 's32[1]{0}', space=sflag, size = 0x4, scoped, tag = 'scoped memory for encoder_forward.1']
    #allocation13 [shape = 'u8[204800]{0}', space=vmem, size = 0x32000, scoped, tag = 'input window, operand 13, single buffered']
    %21 = vsyncpa [#allocation7], 0
    %22 = vsyncpa [#allocation9], 0
    %23 = vsyncpa [#allocation12], 0
    // Predicated region
    $region2: #{encoder_forward.1} parent=1 // pred_check
      _
    $region3: #{encoder_forward.1} parent=1 // pred_check_branch
      %25 = sbr.rel (0) target = $region5
    $region4: #{encoder_forward.1} parent=1 // pred_region
      _
    $region5: #{encoder_forward.1} parent=1 // pred_fallthru
      _
    // Predicated region
    $region6: #{encoder_forward.1} parent=1 // pred_check
      _
    $region7: #{encoder_forward.1} parent=1 // pred_check_branch
      %27 = sbr.rel (0) target = $region9
    $region8: #{encoder_forward.1} parent=1 // pred_region
      _
    $region9: #{encoder_forward.1} parent=1 // pred_fallthru
      _
    // Predicated region
    $region10: #{encoder_forward.1} parent=1 // pred_check
      _
    $region11: #{encoder_forward.1} parent=1 // pred_check_branch
      %29 = sbr.rel (0) target = $region13
    $region12: #{encoder_forward.1} parent=1 // pred_region
      _
    $region13: #{encoder_forward.1} parent=1 // pred_fallthru
      _
    // Predicated region
    $region14: #{encoder_forward.1} parent=1 // pred_check
      _
    $region15: #{encoder_forward.1} parent=1 // pred_check_branch
      %31 = sbr.rel (0) target = $region17
    $region16: #{encoder_forward.1} parent=1 // pred_region
      _
    $region17: #{encoder_forward.1} parent=1 // pred_fallthru
      _
    // Predicated region
    $region18: #{encoder_forward.1} parent=1 // pred_check
      _
    $region19: #{encoder_forward.1} parent=1 // pred_check_branch
      %33 = sbr.rel (0) target = $region21
    $region20: #{encoder_forward.1} parent=1 // pred_region
      _
    $region21: #{encoder_forward.1} parent=1 // pred_fallthru
      _
    // Predicated region
    $region22: #{encoder_forward.1} parent=1 // pred_check
      _
    $region23: #{encoder_forward.1} parent=1 // pred_check_branch
      %35 = sbr.rel (0) target = $region25
    $region24: #{encoder_forward.1} parent=1 // pred_region
      %s37 = ssub.s32 96, 96
      %38 = vsyncadd [#allocation7], %s37
      %s40 = sshll.u32 [#allocation6], 4
      %s41 = int_to_ptr.vmem [resolvable:$true] %s40
      %43 = dma.hbm_to_vmem [thread:$0]  %s5, 96, %s41, [#allocation7]
    $region25: #{encoder_forward.1} parent=1 // pred_fallthru
      _
    // Predicated region
    $region26: #{encoder_forward.1} parent=1 // pred_check
      _
    $region27: #{encoder_forward.1} parent=1 // pred_check_branch
      %45 = sbr.rel (0) target = $region29
    $region28: #{encoder_forward.1} parent=1 // pred_region
      %s47 = ssub.s32 41472, 41472
      %48 = vsyncadd [#allocation9], %s47
      %s49 = sshll.u32 [#allocation8], 4
      %s50 = int_to_ptr.vmem [resolvable:$true] %s49
      %55 = dma.hbm_to_vmem [thread:$0]  %s6, 41472, %s50, [#allocation9], 256, 256, 16
    $region29: #{encoder_forward.1} parent=1 // pred_fallthru
      _
    // Predicated region
    $region30: #{encoder_forward.1} parent=1 // pred_check
      _
    $region31: #{encoder_forward.1} parent=1 // pred_check_branch
      %57 = sbr.rel (0) target = $region33
    $region32: #{encoder_forward.1} parent=1 // pred_region
      %s59 = ssub.s32 20736, 20736
      %60 = vsyncadd [#allocation9], %s59
      %s61 = sshll.u32 [#allocation10], 4
      %s62 = int_to_ptr.vmem [resolvable:$true] %s61
      %67 = dma.hbm_to_vmem [thread:$0]  %s7, 20736, %s62, [#allocation9], 256, 256, 16
    $region33: #{encoder_forward.1} parent=1 // pred_fallthru
      _
    // Predicated region
    $region34: #{encoder_forward.1} parent=1 // pred_check
      _
    $region35: #{encoder_forward.1} parent=1 // pred_check_branch
      %69 = sbr.rel (0) target = $region37
    $region36: #{encoder_forward.1} parent=1 // pred_region
      _
    $region37: #{encoder_forward.1} parent=1 // pred_fallthru
      _
    // Predicated region
    $region38: #{encoder_forward.1} parent=1 // pred_check
      _
    $region39: #{encoder_forward.1} parent=1 // pred_check_branch
      %71 = sbr.rel (0) target = $region41
    $region40: #{encoder_forward.1} parent=1 // pred_region
      _
    $region41: #{encoder_forward.1} parent=1 // pred_fallthru
      _
    // Predicated region
    $region42: #{encoder_forward.1} parent=1 // pred_check
      _
    $region43: #{encoder_forward.1} parent=1 // pred_check_branch
      %73 = sbr.rel (0) target = $region45
    $region44: #{encoder_forward.1} parent=1 // pred_region
      _
    $region45: #{encoder_forward.1} parent=1 // pred_fallthru
      _
    // Predicated region
    $region46: #{encoder_forward.1} parent=1 // pred_check
      _
    $region47: #{encoder_forward.1} parent=1 // pred_check_branch
      %75 = sbr.rel (0) target = $region49
    $region48: #{encoder_forward.1} parent=1 // pred_region
      _
    $region49: #{encoder_forward.1} parent=1 // pred_fallthru
      _
    // Predicated region
    $region50: #{encoder_forward.1} parent=1 // pred_check
      _
    $region51: #{encoder_forward.1} parent=1 // pred_check_branch
      %77 = sbr.rel (0) target = $region53
    $region52: #{encoder_forward.1} parent=1 // pred_region
      %s79 = ssub.s32 32, 32
      %80 = vsyncadd [#allocation12], %s79
      %s82 = sshll.u32 [#allocation11], 4
      %s83 = int_to_ptr.vmem [resolvable:$true] %s82
      %85 = dma.hbm_to_vmem [thread:$0]  %s12, 32, %s83, [#allocation12]
    $region53: #{encoder_forward.1} parent=1 // pred_fallthru
      _
    // Predicated region
    $region54: #{encoder_forward.1} parent=1 // pred_check
      _
    $region55: #{encoder_forward.1} parent=1 // pred_check_branch
      %87 = sbr.rel (0) target = $region57
    $region56: #{encoder_forward.1} parent=1 // pred_region
      %s89 = ssub.s32 6400, 6400
      %90 = vsyncadd [#allocation12], %s89
      %s91 = sshll.u32 [#allocation13], 4
      %s92 = int_to_ptr.vmem [resolvable:$true] %s91
      %97 = dma.hbm_to_vmem [thread:$0]  %s13, 6400, %s92, [#allocation12], 128, 128, 8
    $region57: #{encoder_forward.1} parent=1 // pred_fallthru
      _
    // Predicated region
    $region58: #{encoder_forward.1} parent=1 // pred_check
      _
    $region59: #{encoder_forward.1} parent=1 // pred_check_branch
      %99 = sbr.rel (0) target = $region61
    $region60: #{encoder_forward.1} parent=1 // pred_region
      %100 = dma.done [#allocation7], 96
    $region61: #{encoder_forward.1} parent=1 // pred_fallthru
      _
    // Predicated region
    $region62: #{encoder_forward.1} parent=1 // pred_check
      _
    $region63: #{encoder_forward.1} parent=1 // pred_check_branch
      %102 = sbr.rel (0) target = $region65
    $region64: #{encoder_forward.1} parent=1 // pred_region
      %103 = dma.done [#allocation9], 41472
    $region65: #{encoder_forward.1} parent=1 // pred_fallthru
      _
    // Predicated region
    $region66: #{encoder_forward.1} parent=1 // pred_check
      _
    $region67: #{encoder_forward.1} parent=1 // pred_check_branch
      %105 = sbr.rel (0) target = $region69
    $region68: #{encoder_forward.1} parent=1 // pred_region
      %106 = dma.done [#allocation9], 20736
    $region69: #{encoder_forward.1} parent=1 // pred_fallthru
      _
    // Predicated region
    $region70: #{encoder_forward.1} parent=1 // pred_check
      _
    $region71: #{encoder_forward.1} parent=1 // pred_check_branch
      %108 = sbr.rel (0) target = $region73
    $region72: #{encoder_forward.1} parent=1 // pred_region
      %109 = dma.done [#allocation12], 32
    $region73: #{encoder_forward.1} parent=1 // pred_fallthru
      _
    // Predicated region
    $region74: #{encoder_forward.1} parent=1 // pred_check
      _
    $region75: #{encoder_forward.1} parent=1 // pred_check_branch
      %111 = sbr.rel (0) target = $region77
    $region76: #{encoder_forward.1} parent=1 // pred_region
      %112 = dma.done [#allocation12], 6400
    $region77: #{encoder_forward.1} parent=1 // pred_fallthru
      _
    %113 = vst [vmem:[#allocation2] sm:$0xff] 0.0
    %114 = vst [vmem:[#allocation2 + $0x8] sm:$0xff] 0.0
    %115 = vst [vmem:[#allocation2 + $0x10] sm:$0xff] 0.0
    %vm116 = vcmask 1043456
    %vm117 = vcmask 64516
    %vm118 = vmor %vm117, %vm116
    %119 = vst.msk [vmem:[#allocation2 + $0x18] sm:$0xff] %vm118, 0.0
    %120 = vst [vmem:[#allocation3] sm:$0xff] 0.0
    %121 = vst [vmem:[#allocation3 + $0x8] sm:$0xff] 0.0
    %122 = vst [vmem:[#allocation3 + $0x10] sm:$0xff] 0.0
    %123 = vst.msk [vmem:[#allocation3 + $0x18] sm:$0xff] %vm118, 0.0
    %124 = vst [vmem:[#allocation4] sm:$0xff] 0.0
    %vm125 = vcmask 588804
    %vm126 = vmor %vm125, %vm116
    %127 = vst.msk [vmem:[#allocation4 + $0x8] sm:$0xff] %vm126, 0.0
    %128 = vst [vmem:[#allocation5] sm:$0xff] 0.0
    %129 = vst [vmem:[#allocation5 + $0x8] sm:$0xff] 0.0
    %130 = vst [vmem:[#allocation5 + $0x10] sm:$0xff] 0.0
    %vm131 = vcmask 588800
    %132 = vst.msk [vmem:[#allocation5 + $0x18] sm:$0xff] %vm131, 0.0
    %v133 = vld [vmem:[%s0] sm:$0x3f]
    %v134 = vld [vmem:[%s1] sm:$0xf]
    %136 = vset.pattern.permute.xlu0 0
    %137 = vperm.xlu0 %136, %v134
    %v138 = vpop.permute.xlu0 %137
    %v141 = vlaneseq
    %v142 = vshrl.u32 %v141, 7
    %v143 = vsub.s32 0, %v142
    %v144 = vrot.slane %v133, %v143
    %v145 = vlaneseq
    %v146 = vshrl.u32 %v145, 7
    %v147 = vsub.s32 1, %v146
    %v148 = vrot.slane %v133, %v147
    %v149 = vlaneseq
    %v150 = vshrl.u32 %v149, 7
    %v151 = vsub.s32 2, %v150
    %v152 = vrot.slane %v133, %v151
    %v153 = vlaneseq
    %v154 = vshrl.u32 %v153, 7
    %v155 = vsub.s32 3, %v154
    %v156 = vrot.slane %v133, %v155
    %v157 = vlaneseq
    %v158 = vshrl.u32 %v157, 7
    %v159 = vsub.s32 4, %v158
    %v160 = vrot.slane %v133, %v159
    %v161 = vlaneseq
    %v162 = vshrl.u32 %v161, 7
    %v163 = vsub.s32 5, %v162
    %v164 = vrot.slane %v133, %v163
    %v171 = vmul.f32 %v138, %v144
    %v172 = vmul.f32 %v138, %v148
    %v173 = vmul.f32 %v138, %v152
    %v174 = vmul.f32 %v138, %v156
    %v175 = vmul.f32 %v138, %v160
    %v176 = vmul.f32 %v138, %v164
    %s177 = scalar_lea.vmem %s1, 4
    %v178 = vld [vmem:[%s177] sm:$0xf]
    %180 = vset.pattern.permute.xlu0 0
    %181 = vperm.xlu0 %180, %v178
    %v182 = vpop.permute.xlu0 %181
    %v184 = vmul.f32 %v182, %v144
    %v185 = vmul.f32 %v182, %v148
    %v186 = vmul.f32 %v182, %v152
    %v187 = vmul.f32 %v182, %v156
    %v188 = vmul.f32 %v182, %v160
    %v189 = vmul.f32 %v182, %v164
    %196 = vrot.lane.b32.xlu0 %v184, 127
    %v197 = vpop.permute.xlu0 %196
    %198 = vrot.lane.b32.xlu0 %v185, 127
    %v199 = vpop.permute.xlu0 %198
    %200 = vrot.lane.b32.xlu0 %v186, 127
    %v201 = vpop.permute.xlu0 %200
    %202 = vrot.lane.b32.xlu0 %v187, 127
    %v203 = vpop.permute.xlu0 %202
    %204 = vrot.lane.b32.xlu0 %v188, 127
    %v205 = vpop.permute.xlu0 %204
    %206 = vrot.lane.b32.xlu0 %v189, 127
    %v207 = vpop.permute.xlu0 %206
    %vm208 = vcmask 1039360
    %v209 = vsel %vm208, %v197, %v199
    %v210 = vsel %vm208, %v199, %v201
    %v211 = vsel %vm208, %v201, %v203
    %v212 = vsel %vm208, %v203, %v205
    %v213 = vsel %vm208, %v205, %v207
    %v220 = vadd.f32 %v171, %v209
    %v221 = vadd.f32 %v172, %v210
    %v222 = vadd.f32 %v173, %v211
    %v223 = vadd.f32 %v174, %v212
    %v224 = vadd.f32 %v175, %v213
    %v225 = vadd.f32 %v176, %v207
    %s226 = scalar_lea.vmem %s1, 8
    %v227 = vld [vmem:[%s226] sm:$0xf]
    %229 = vset.pattern.permute.xlu0 0
    %230 = vperm.xlu0 %229, %v227
    %v231 = vpop.permute.xlu0 %230
    %v233 = vmul.f32 %v231, %v144
    %v234 = vmul.f32 %v231, %v148
    %v235 = vmul.f32 %v231, %v152
    %v236 = vmul.f32 %v231, %v156
    %v237 = vmul.f32 %v231, %v160
    %v238 = vmul.f32 %v231, %v164
    %245 = vrot.lane.b32.xlu0 %v233, 126
    %v246 = vpop.permute.xlu0 %245
    %247 = vrot.lane.b32.xlu0 %v234, 126
    %v248 = vpop.permute.xlu0 %247
    %249 = vrot.lane.b32.xlu0 %v235, 126
    %v250 = vpop.permute.xlu0 %249
    %251 = vrot.lane.b32.xlu0 %v236, 126
    %v252 = vpop.permute.xlu0 %251
    %253 = vrot.lane.b32.xlu0 %v237, 126
    %v254 = vpop.permute.xlu0 %253
    %255 = vrot.lane.b32.xlu0 %v238, 126
    %v256 = vpop.permute.xlu0 %255
    %vm257 = vcmask 1031168
    %v258 = vsel %vm257, %v246, %v248
    %v259 = vsel %vm257, %v248, %v250
    %v260 = vsel %vm257, %v250, %v252
    %v261 = vsel %vm257, %v252, %v254
    %v262 = vsel %vm257, %v254, %v256
    %v269 = vadd.f32 %v220, %v258
    %v270 = vadd.f32 %v221, %v259
    %v271 = vadd.f32 %v222, %v260
    %v272 = vadd.f32 %v223, %v261
    %v273 = vadd.f32 %v224, %v262
    %v274 = vadd.f32 %v225, %v256
    %v275 = vld [vmem:[%s0] sm:$0x7f]
    %s276 = scalar_lea.vmem %s1, 12
    %v277 = vld [vmem:[%s276] sm:$0xf]
    %279 = vset.pattern.permute.xlu0 0
    %280 = vperm.xlu0 %279, %v277
    %v281 = vpop.permute.xlu0 %280
    %v284 = vlaneseq
    %v285 = vshrl.u32 %v284, 7
    %v286 = vsub.s32 0, %v285
    %v287 = vrot.slane %v275, %v286
    %v288 = vlaneseq
    %v289 = vshrl.u32 %v288, 7
    %v290 = vsub.s32 1, %v289
    %v291 = vrot.slane %v275, %v290
    %v292 = vlaneseq
    %v293 = vshrl.u32 %v292, 7
    %v294 = vsub.s32 2, %v293
    %v295 = vrot.slane %v275, %v294
    %v296 = vlaneseq
    %v297 = vshrl.u32 %v296, 7
    %v298 = vsub.s32 3, %v297
    %v299 = vrot.slane %v275, %v298
    %v300 = vlaneseq
    %v301 = vshrl.u32 %v300, 7
    %v302 = vsub.s32 4, %v301
    %v303 = vrot.slane %v275, %v302
    %v304 = vlaneseq
    %v305 = vshrl.u32 %v304, 7
    %v306 = vsub.s32 5, %v305
    %v307 = vrot.slane %v275, %v306
    %v308 = vlaneseq
    %v309 = vshrl.u32 %v308, 7
    %v310 = vsub.s32 6, %v309
    %v311 = vrot.slane %v275, %v310
    %v319 = vmul.f32 %v281, %v287
    %v320 = vmul.f32 %v281, %v291
    %v321 = vmul.f32 %v281, %v295
    %v322 = vmul.f32 %v281, %v299
    %v323 = vmul.f32 %v281, %v303
    %v324 = vmul.f32 %v281, %v307
    %v325 = vmul.f32 %v281, %v311
    %333 = vrot.lane.b32.xlu0 %v319, 110
    %v334 = vpop.permute.xlu0 %333
    %335 = vrot.lane.b32.xlu0 %v320, 110
    %v336 = vpop.permute.xlu0 %335
    %337 = vrot.lane.b32.xlu0 %v321, 110
    %v338 = vpop.permute.xlu0 %337
    %339 = vrot.lane.b32.xlu0 %v322, 110
    %v340 = vpop.permute.xlu0 %339
    %341 = vrot.lane.b32.xlu0 %v323, 110
    %v342 = vpop.permute.xlu0 %341
    %343 = vrot.lane.b32.xlu0 %v324, 110
    %v344 = vpop.permute.xlu0 %343
    %345 = vrot.lane.b32.xlu0 %v325, 110
    %v346 = vpop.permute.xlu0 %345
    %vm347 = vcmask 900096
    %v348 = vsel %vm347, %v334, %v336
    %v349 = vsel %vm347, %v336, %v338
    %v350 = vsel %vm347, %v338, %v340
    %v351 = vsel %vm347, %v340, %v342
    %v352 = vsel %vm347, %v342, %v344
    %v353 = vsel %vm347, %v344, %v346
    %v360 = vadd.f32 %v269, %v348
    %v361 = vadd.f32 %v270, %v349
    %v362 = vadd.f32 %v271, %v350
    %v363 = vadd.f32 %v272, %v351
    %v364 = vadd.f32 %v273, %v352
    %v365 = vadd.f32 %v274, %v353
    %v366 = vld [vmem:[%s0 + $0x1] sm:$0x3f]
    %s367 = scalar_lea.vmem %s1, 16
    %v368 = vld [vmem:[%s367] sm:$0xf]
    %370 = vset.pattern.permute.xlu0 0
    %371 = vperm.xlu0 %370, %v368
    %v372 = vpop.permute.xlu0 %371
    %v375 = vlaneseq
    %v376 = vshrl.u32 %v375, 7
    %v377 = vsub.s32 0, %v376
    %v378 = vrot.slane %v366, %v377
    %v379 = vlaneseq
    %v380 = vshrl.u32 %v379, 7
    %v381 = vsub.s32 1, %v380
    %v382 = vrot.slane %v366, %v381
    %v383 = vlaneseq
    %v384 = vshrl.u32 %v383, 7
    %v385 = vsub.s32 2, %v384
    %v386 = vrot.slane %v366, %v385
    %v387 = vlaneseq
    %v388 = vshrl.u32 %v387, 7
    %v389 = vsub.s32 3, %v388
    %v390 = vrot.slane %v366, %v389
    %v391 = vlaneseq
    %v392 = vshrl.u32 %v391, 7
    %v393 = vsub.s32 4, %v392
    %v394 = vrot.slane %v366, %v393
    %v395 = vlaneseq
    %v396 = vshrl.u32 %v395, 7
    %v397 = vsub.s32 5, %v396
    %v398 = vrot.slane %v366, %v397
    %v405 = vmul.f32 %v372, %v378
    %v406 = vmul.f32 %v372, %v382
    %v407 = vmul.f32 %v372, %v386
    %v408 = vmul.f32 %v372, %v390
    %v409 = vmul.f32 %v372, %v394
    %v410 = vmul.f32 %v372, %v398
    %417 = vrot.lane.b32.xlu0 %v405, 109
    %v418 = vpop.permute.xlu0 %417
    %419 = vrot.lane.b32.xlu0 %v406, 109
    %v420 = vpop.permute.xlu0 %419
    %421 = vrot.lane.b32.xlu0 %v407, 109
    %v422 = vpop.permute.xlu0 %421
    %423 = vrot.lane.b32.xlu0 %v408, 109
    %v424 = vpop.permute.xlu0 %423
    %425 = vrot.lane.b32.xlu0 %v409, 109
    %v426 = vpop.permute.xlu0 %425
    %427 = vrot.lane.b32.xlu0 %v410, 109
    %v428 = vpop.permute.xlu0 %427
    %vm429 = vcmask 891904
    %v430 = vsel %vm429, %v418, %v420
    %v431 = vsel %vm429, %v420, %v422
    %v432 = vsel %vm429, %v422, %v424
    %v433 = vsel %vm429, %v424, %v426
    %v434 = vsel %vm429, %v426, %v428
    %v441 = vadd.f32 %v360, %v418
    %v442 = vadd.f32 %v361, %v430
    %v443 = vadd.f32 %v362, %v431
    %v444 = vadd.f32 %v363, %v432
    %v445 = vadd.f32 %v364, %v433
    %v446 = vadd.f32 %v365, %v434
    %s447 = scalar_lea.vmem %s1, 20
    %v448 = vld [vmem:[%s447] sm:$0xf]
    %450 = vset.pattern.permute.xlu0 0
    %451 = vperm.xlu0 %450, %v448
    %v452 = vpop.permute.xlu0 %451
    %v454 = vmul.f32 %v452, %v378
    %v455 = vmul.f32 %v452, %v382
    %v456 = vmul.f32 %v452, %v386
    %v457 = vmul.f32 %v452, %v390
    %v458 = vmul.f32 %v452, %v394
    %v459 = vmul.f32 %v452, %v398
    %466 = vrot.lane.b32.xlu0 %v454, 108
    %v467 = vpop.permute.xlu0 %466
    %468 = vrot.lane.b32.xlu0 %v455, 108
    %v469 = vpop.permute.xlu0 %468
    %470 = vrot.lane.b32.xlu0 %v456, 108
    %v471 = vpop.permute.xlu0 %470
    %472 = vrot.lane.b32.xlu0 %v457, 108
    %v473 = vpop.permute.xlu0 %472
    %474 = vrot.lane.b32.xlu0 %v458, 108
    %v475 = vpop.permute.xlu0 %474
    %476 = vrot.lane.b32.xlu0 %v459, 108
    %v477 = vpop.permute.xlu0 %476
    %vm478 = vcmask 883712
    %v479 = vsel %vm478, %v467, %v469
    %v480 = vsel %vm478, %v469, %v471
    %v481 = vsel %vm478, %v471, %v473
    %v482 = vsel %vm478, %v473, %v475
    %v483 = vsel %vm478, %v475, %v477
    %v490 = vadd.f32 %v441, %v467
    %v491 = vadd.f32 %v442, %v479
    %v492 = vadd.f32 %v443, %v480
    %v493 = vadd.f32 %v444, %v481
    %v494 = vadd.f32 %v445, %v482
    %v495 = vadd.f32 %v446, %v483
    %s496 = scalar_lea.vmem %s1, 24
    %v497 = vld [vmem:[%s496] sm:$0xf]
    %499 = vset.pattern.permute.xlu0 0
    %500 = vperm.xlu0 %499, %v497
    %v501 = vpop.permute.xlu0 %500
    %v503 = vmul.f32 %v501, %v378
    %v504 = vmul.f32 %v501, %v382
    %v505 = vmul.f32 %v501, %v386
    %v506 = vmul.f32 %v501, %v390
    %v507 = vmul.f32 %v501, %v394
    %v508 = vmul.f32 %v501, %v398
    %515 = vrot.lane.b32.xlu0 %v503, 92
    %v516 = vpop.permute.xlu0 %515
    %517 = vrot.lane.b32.xlu0 %v504, 92
    %v518 = vpop.permute.xlu0 %517
    %519 = vrot.lane.b32.xlu0 %v505, 92
    %v520 = vpop.permute.xlu0 %519
    %521 = vrot.lane.b32.xlu0 %v506, 92
    %v522 = vpop.permute.xlu0 %521
    %523 = vrot.lane.b32.xlu0 %v507, 92
    %v524 = vpop.permute.xlu0 %523
    %525 = vrot.lane.b32.xlu0 %v508, 92
    %v526 = vpop.permute.xlu0 %525
    %vm527 = vcmask 752640
    %v528 = vsel %vm527, %v516, %v518
    %v529 = vsel %vm527, %v518, %v520
    %v530 = vsel %vm527, %v520, %v522
    %v531 = vsel %vm527, %v522, %v524
    %v532 = vsel %vm527, %v524, %v526
    %v539 = vadd.f32 %v490, %v516
    %v540 = vadd.f32 %v491, %v528
    %v541 = vadd.f32 %v492, %v529
    %v542 = vadd.f32 %v493, %v530
    %v543 = vadd.f32 %v494, %v531
    %v544 = vadd.f32 %v495, %v532
    %s545 = scalar_lea.vmem %s1, 28
    %v546 = vld [vmem:[%s545] sm:$0xf]
    %548 = vset.pattern.permute.xlu0 0
    %549 = vperm.xlu0 %548, %v546
    %v550 = vpop.permute.xlu0 %549
    %v552 = vmul.f32 %v550, %v378
    %v553 = vmul.f32 %v550, %v382
    %v554 = vmul.f32 %v550, %v386
    %v555 = vmul.f32 %v550, %v390
    %v556 = vmul.f32 %v550, %v394
    %v557 = vmul.f32 %v550, %v398
    %564 = vrot.lane.b32.xlu0 %v552, 91
    %v565 = vpop.permute.xlu0 %564
    %566 = vrot.lane.b32.xlu0 %v553, 91
    %v567 = vpop.permute.xlu0 %566
    %568 = vrot.lane.b32.xlu0 %v554, 91
    %v569 = vpop.permute.xlu0 %568
    %570 = vrot.lane.b32.xlu0 %v555, 91
    %v571 = vpop.permute.xlu0 %570
    %572 = vrot.lane.b32.xlu0 %v556, 91
    %v573 = vpop.permute.xlu0 %572
    %574 = vrot.lane.b32.xlu0 %v557, 91
    %v575 = vpop.permute.xlu0 %574
    %vm576 = vcmask 744448
    %v577 = vsel %vm576, %v565, %v567
    %v578 = vsel %vm576, %v567, %v569
    %v579 = vsel %vm576, %v569, %v571
    %v580 = vsel %vm576, %v571, %v573
    %v581 = vsel %vm576, %v573, %v575
    %v588 = vadd.f32 %v539, %v565
    %v589 = vadd.f32 %v540, %v577
    %v590 = vadd.f32 %v541, %v578
    %v591 = vadd.f32 %v542, %v579
    %v592 = vadd.f32 %v543, %v580
    %v593 = vadd.f32 %v544, %v581
    %s594 = scalar_lea.vmem %s1, 32
    %v595 = vld [vmem:[%s594] sm:$0xf]
    %597 = vset.pattern.permute.xlu0 0
    %598 = vperm.xlu0 %597, %v595
    %v599 = vpop.permute.xlu0 %598
    %v601 = vmul.f32 %v599, %v378
    %v602 = vmul.f32 %v599, %v382
    %v603 = vmul.f32 %v599, %v386
    %v604 = vmul.f32 %v599, %v390
    %v605 = vmul.f32 %v599, %v394
    %v606 = vmul.f32 %v599, %v398
    %613 = vrot.lane.b32.xlu0 %v601, 90
    %v614 = vpop.permute.xlu0 %613
    %615 = vrot.lane.b32.xlu0 %v602, 90
    %v616 = vpop.permute.xlu0 %615
    %617 = vrot.lane.b32.xlu0 %v603, 90
    %v618 = vpop.permute.xlu0 %617
    %619 = vrot.lane.b32.xlu0 %v604, 90
    %v620 = vpop.permute.xlu0 %619
    %621 = vrot.lane.b32.xlu0 %v605, 90
    %v622 = vpop.permute.xlu0 %621
    %623 = vrot.lane.b32.xlu0 %v606, 90
    %v624 = vpop.permute.xlu0 %623
    %vm625 = vcmask 736256
    %v626 = vsel %vm625, %v614, %v616
    %v627 = vsel %vm625, %v616, %v618
    %v628 = vsel %vm625, %v618, %v620
    %v629 = vsel %vm625, %v620, %v622
    %v630 = vsel %vm625, %v622, %v624
    %v637 = vadd.f32 %v588, %v614
    %v638 = vadd.f32 %v589, %v626
    %v639 = vadd.f32 %v590, %v627
    %v640 = vadd.f32 %v591, %v628
    %v641 = vadd.f32 %v592, %v629
    %v642 = vadd.f32 %v593, %v630
    %v643 = vld [vmem:[%s2] sm:$0xf]
    %645 = vset.pattern.permute.xlu0 0
    %646 = vperm.xlu0 %645, %v643
    %v647 = vpop.permute.xlu0 %646
    %v649 = vadd.f32 %v637, %v647
    %v650 = vadd.f32 %v638, %v647
    %v651 = vadd.f32 %v639, %v647
    %v652 = vadd.f32 %v640, %v647
    %v653 = vadd.f32 %v641, %v647
    %v654 = vadd.f32 %v642, %v647
    %vm655 = vcmp.gt.f32.partialorder %v649, 0.0
    %vm656 = vcmp.gt.f32.partialorder %v650, 0.0
    %vm657 = vcmp.gt.f32.partialorder %v651, 0.0
    %vm658 = vcmp.gt.f32.partialorder %v652, 0.0
    %vm659 = vcmp.gt.f32.partialorder %v653, 0.0
    %vm660 = vcmp.gt.f32.partialorder %v654, 0.0
    %v661 = vmul.f32 %v649, 0.1
    %v662 = vmul.f32 %v650, 0.1
    %v663 = vmul.f32 %v651, 0.1
    %v664 = vmul.f32 %v652, 0.1
    %v665 = vmul.f32 %v653, 0.1
    %v666 = vmul.f32 %v654, 0.1
    %v667 = vsel %vm655, %v649, %v661
    %v668 = vsel %vm656, %v650, %v662
    %v669 = vsel %vm657, %v651, %v663
    %v670 = vsel %vm658, %v652, %v664
    %v671 = vsel %vm659, %v653, %v665
    %v672 = vsel %vm660, %v654, %v666
    %v673 = vld [vmem:[#allocation6] sm:$0x3f]
    %v675 = vlaneseq
    %v676 = vshrl.u32 %v675, 7
    %v677 = vsub.s32 0, %v676
    %v678 = vrot.slane %v673, %v677
    %v679 = vlaneseq
    %v680 = vshrl.u32 %v679, 7
    %v681 = vsub.s32 1, %v680
    %v682 = vrot.slane %v673, %v681
    %v683 = vlaneseq
    %v684 = vshrl.u32 %v683, 7
    %v685 = vsub.s32 2, %v684
    %v686 = vrot.slane %v673, %v685
    %v687 = vlaneseq
    %v688 = vshrl.u32 %v687, 7
    %v689 = vsub.s32 3, %v688
    %v690 = vrot.slane %v673, %v689
    %v691 = vlaneseq
    %v692 = vshrl.u32 %v691, 7
    %v693 = vsub.s32 4, %v692
    %v694 = vrot.slane %v673, %v693
    %v695 = vlaneseq
    %v696 = vshrl.u32 %v695, 7
    %v697 = vsub.s32 5, %v696
    %v698 = vrot.slane %v673, %v697
    %699 = vrot.lane.b32.xlu0 %v678, 109
    %v700 = vpop.permute.xlu0 %699
    %701 = vrot.lane.b32.xlu0 %v682, 109
    %v702 = vpop.permute.xlu0 %701
    %703 = vrot.lane.b32.xlu0 %v686, 109
    %v704 = vpop.permute.xlu0 %703
    %705 = vrot.lane.b32.xlu0 %v690, 109
    %v706 = vpop.permute.xlu0 %705
    %707 = vrot.lane.b32.xlu0 %v694, 109
    %v708 = vpop.permute.xlu0 %707
    %709 = vrot.lane.b32.xlu0 %v698, 109
    %v710 = vpop.permute.xlu0 %709
    %v711 = vsel %vm429, %v700, %v702
    %v712 = vsel %vm429, %v702, %v704
    %v713 = vsel %vm429, %v704, %v706
    %v714 = vsel %vm429, %v706, %v708
    %v715 = vsel %vm429, %v708, %v710
    %v722 = vmul.f32 %v667, %v700
    %v723 = vmul.f32 %v668, %v711
    %v724 = vmul.f32 %v669, %v712
    %v725 = vmul.f32 %v670, %v713
    %v726 = vmul.f32 %v671, %v714
    %v727 = vmul.f32 %v672, %v715
    %v734 = vcombine.low %v722, %v723
    %v735 = vcombine.low %v724, %v725
    %v736 = vcombine.low %v726, %v727
    %737 = vrot.lane.b32.xlu0 %v734, 19
    %v738 = vpop.permute.xlu0 %737
    %739 = vrot.lane.b32.xlu0 %v735, 19
    %v740 = vpop.permute.xlu0 %739
    %741 = vrot.lane.b32.xlu0 %v736, 19
    %v742 = vpop.permute.xlu0 %741
    %v743 = vrot.slane %v738, 4
    %v744 = vrot.slane %v740, 4
    %v745 = vrot.slane %v742, 4
    %v746 = vsel %vm116, %v743, %v744
    %vm747 = vcmask 154624
    %v748 = vsel %vm747, %v738, %v746
    %v749 = vsel %vm116, %v744, %v745
    %v750 = vsel %vm747, %v740, %v749
    %v751 = vsel %vm747, %v742, %v745
    %755 = vst [vmem:[#allocation2 + $0x4] sm:$0xff] %v748
    %756 = vst [vmem:[#allocation2 + $0xc] sm:$0xff] %v750
    %757 = vst.msk [vmem:[#allocation2 + $0x14] sm:$0xff] %vm118, %v751
    %v758 = vld [vmem:[#allocation2] sm:$0xff]
    %v759 = vld [vmem:[#allocation2 + $0x8] sm:$0xff]
    %v760 = vld [vmem:[#allocation2 + $0x10] sm:$0xff]
    %v761 = vld [vmem:[%s3] sm:$0xf]
    %s762 = scalar_lea.vmem %s3, 4
    %v763 = vld [vmem:[%s762] sm:$0xf]
    %v767 = vcombine.high %v758, %v758
    %v768 = vcombine.high %v759, %v759
    %v769 = vcombine.high %v760, %v760
    %770 = vrot.lane.b32.xlu0 %v758, 18
    %v771 = vpop.permute.xlu0 %770
    %772 = vrot.lane.b32.xlu0 %v767, 18
    %v773 = vpop.permute.xlu0 %772
    %774 = vrot.lane.b32.xlu0 %v759, 18
    %v775 = vpop.permute.xlu0 %774
    %776 = vrot.lane.b32.xlu0 %v768, 18
    %v777 = vpop.permute.xlu0 %776
    %778 = vrot.lane.b32.xlu0 %v760, 18
    %v779 = vpop.permute.xlu0 %778
    %780 = vrot.lane.b32.xlu0 %v769, 18
    %v781 = vpop.permute.xlu0 %780
    %vm782 = vcmask 146432
    %v783 = vsel %vm782, %v771, %v773
    %v784 = vsel %vm782, %v773, %v775
    %v785 = vsel %vm782, %v775, %v777
    %v786 = vsel %vm782, %v777, %v779
    %v787 = vsel %vm782, %v779, %v781
    %vm788 = vcmask 31744
    %v790 = vsel %vm788, %v763, 0
    %v792 = vsel %vm116, %v783, 0
    %v794 = vsel %vm116, %v784, 0
    %v796 = vsel %vm116, %v785, 0
    %v798 = vsel %vm116, %v786, 0
    %v800 = vsel %vm116, %v787, 0
    %v802 = vsel %vm116, %v781, 0
    %804 = vmatprep.subr.mxu0 %v794
    %805 = vmatpush1.msra.mxu0 %v792
    %806 = vmatprep.subr.mxu0 0.0
    %807 = vmatpush1.msra.mxu0 0.0
    %808 = vmatprep.subr.mxu0 0.0
    %809 = vmatpush1.msra.mxu0 0.0
    %810 = vmatprep.subr.mxu0 0.0
    %811 = vmatpush1.msra.mxu0 0.0
    %812 = vmatprep.subr.mxu0 0.0
    %813 = vmatpush1.msra.mxu0 0.0
    %814 = vmatprep.subr.mxu0 0.0
    %815 = vmatpush1.msra.mxu0 0.0
    %816 = vmatprep.subr.mxu0 0.0
    %817 = vmatpush1.msra.mxu0 0.0
    %818 = vmatprep.subr.mxu0 0.0
    %819 = vmatpush1.msra.mxu0 0.0
    %820 = vmatprep.subr.mxu0 0.0
    %821 = vmatpush1.msra.mxu0 0.0
    %822 = vmatprep.subr.mxu0 0.0
    %823 = vmatpush1.msra.mxu0 0.0
    %824 = vmatprep.subr.mxu0 0.0
    %825 = vmatpush1.msra.mxu0 0.0
    %826 = vmatprep.subr.mxu0 0.0
    %827 = vmatpush1.msra.mxu0 0.0
    %828 = vmatprep.subr.mxu0 0.0
    %829 = vmatpush1.msra.mxu0 0.0
    %830 = vmatprep.subr.mxu0 0.0
    %831 = vmatpush1.msra.mxu0 0.0
    %832 = vmatprep.subr.mxu0 0.0
    %833 = vmatpush1.msra.mxu0 0.0
    %834 = vmatprep.subr.mxu0 0.0
    %835 = vmatpush1.msra.mxu0 0.0
    %836 = vmatprep.subr.mxu0 0.0
    %837 = vmatpush1.msra.mxu0 0.0
    %838 = vmatprep.subr.mxu0 0.0
    %839 = vmatpush1.msra.mxu0 0.0
    %840 = vmatprep.subr.mxu0 0.0
    %841 = vmatpush1.msra.mxu0 0.0
    %842 = vmatprep.subr.mxu0 0.0
    %843 = vmatpush1.msra.mxu0 0.0
    %844 = vmatprep.subr.mxu0 0.0
    %845 = vmatpush1.msra.mxu0 0.0
    %846 = vmatprep.subr.mxu0 0.0
    %847 = vmatpush1.msra.mxu0 0.0
    %848 = vmatprep.subr.mxu0 0.0
    %849 = vmatpush1.msra.mxu0 0.0
    %850 = vmatprep.subr.mxu0 0.0
    %851 = vmatpush1.msra.mxu0 0.0
    %852 = vmatprep.subr.mxu0 0.0
    %853 = vmatpush1.msra.mxu0 0.0
    %854 = vmatprep.subr.mxu0 0.0
    %855 = vmatpush1.msra.mxu0 0.0
    %856 = vmatprep.subr.mxu0 0.0
    %857 = vmatpush1.msra.mxu0 0.0
    %858 = vmatprep.subr.mxu0 0.0
    %859 = vmatpush1.msra.mxu0 0.0
    %860 = vmatprep.subr.mxu0 0.0
    %861 = vmatpush1.msra.mxu0 0.0
    %862 = vmatprep.subr.mxu0 0.0
    %863 = vmatpush1.msra.mxu0 0.0
    %864 = vmatprep.subr.mxu0 0.0
    %865 = vmatpush1.msra.mxu0 0.0
    %866 = vmatprep.subr.mxu0 0.0
    %867 = vmatpush1.msra.mxu0 0.0
    %868 = vmatprep.mubr.f32.mxu0 0.0
    %869 = vmatmul.mubr.f32.gmra.mrb[0].mxu0 %v790
    %v870 = vpop.f32.mrb[0].mxu0
    %v871 = vadd.f32 0.0, %v870
    %v872 = vpop.f32.mrb[0].mxu0
    %v873 = vadd.f32 0.0, %v872
    %874 = vdwg.mxu0
    %875 = vmatprep.subr.mxu0 %v798
    %876 = vmatpush1.msra.mxu0 %v796
    %877 = vmatprep.subr.mxu0 0.0
    %878 = vmatpush1.msra.mxu0 0.0
    %879 = vmatprep.subr.mxu0 0.0
    %880 = vmatpush1.msra.mxu0 0.0
    %881 = vmatprep.subr.mxu0 0.0
    %882 = vmatpush1.msra.mxu0 0.0
    %883 = vmatprep.subr.mxu0 0.0
    %884 = vmatpush1.msra.mxu0 0.0
    %885 = vmatprep.subr.mxu0 0.0
    %886 = vmatpush1.msra.mxu0 0.0
    %887 = vmatprep.subr.mxu0 0.0
    %888 = vmatpush1.msra.mxu0 0.0
    %889 = vmatprep.subr.mxu0 0.0
    %890 = vmatpush1.msra.mxu0 0.0
    %891 = vmatprep.subr.mxu0 0.0
    %892 = vmatpush1.msra.mxu0 0.0
    %893 = vmatprep.subr.mxu0 0.0
    %894 = vmatpush1.msra.mxu0 0.0
    %895 = vmatprep.subr.mxu0 0.0
    %896 = vmatpush1.msra.mxu0 0.0
    %897 = vmatprep.subr.mxu0 0.0
    %898 = vmatpush1.msra.mxu0 0.0
    %899 = vmatprep.subr.mxu0 0.0
    %900 = vmatpush1.msra.mxu0 0.0
    %901 = vmatprep.subr.mxu0 0.0
    %902 = vmatpush1.msra.mxu0 0.0
    %903 = vmatprep.subr.mxu0 0.0
    %904 = vmatpush1.msra.mxu0 0.0
    %905 = vmatprep.subr.mxu0 0.0
    %906 = vmatpush1.msra.mxu0 0.0
    %907 = vmatprep.subr.mxu0 0.0
    %908 = vmatpush1.msra.mxu0 0.0
    %909 = vmatprep.subr.mxu0 0.0
    %910 = vmatpush1.msra.mxu0 0.0
    %911 = vmatprep.subr.mxu0 0.0
    %912 = vmatpush1.msra.mxu0 0.0
    %913 = vmatprep.subr.mxu0 0.0
    %914 = vmatpush1.msra.mxu0 0.0
    %915 = vmatprep.subr.mxu0 0.0
    %916 = vmatpush1.msra.mxu0 0.0
    %917 = vmatprep.subr.mxu0 0.0
    %918 = vmatpush1.msra.mxu0 0.0
    %919 = vmatprep.subr.mxu0 0.0
    %920 = vmatpush1.msra.mxu0 0.0
    %921 = vmatprep.subr.mxu0 0.0
    %922 = vmatpush1.msra.mxu0 0.0
    %923 = vmatprep.subr.mxu0 0.0
    %924 = vmatpush1.msra.mxu0 0.0
    %925 = vmatprep.subr.mxu0 0.0
    %926 = vmatpush1.msra.mxu0 0.0
    %927 = vmatprep.subr.mxu0 0.0
    %928 = vmatpush1.msra.mxu0 0.0
    %929 = vmatprep.subr.mxu0 0.0
    %930 = vmatpush1.msra.mxu0 0.0
    %931 = vmatprep.subr.mxu0 0.0
    %932 = vmatpush1.msra.mxu0 0.0
    %933 = vmatprep.subr.mxu0 0.0
    %934 = vmatpush1.msra.mxu0 0.0
    %935 = vmatprep.subr.mxu0 0.0
    %936 = vmatpush1.msra.mxu0 0.0
    %937 = vmatprep.subr.mxu0 0.0
    %938 = vmatpush1.msra.mxu0 0.0
    %939 = vmatprep.mubr.f32.mxu0 0.0
    %940 = vmatmul.mubr.f32.gmra.mrb[0].mxu0 %v790
    %v941 = vpop.f32.mrb[0].mxu0
    %v942 = vadd.f32 0.0, %v941
    %v943 = vpop.f32.mrb[0].mxu0
    %v944 = vadd.f32 0.0, %v943
    %945 = vdwg.mxu0
    %946 = vmatprep.subr.mxu0 %v802
    %947 = vmatpush1.msra.mxu0 %v800
    %948 = vmatprep.subr.mxu0 0.0
    %949 = vmatpush1.msra.mxu0 0.0
    %950 = vmatprep.subr.mxu0 0.0
    %951 = vmatpush1.msra.mxu0 0.0
    %952 = vmatprep.subr.mxu0 0.0
    %953 = vmatpush1.msra.mxu0 0.0
    %954 = vmatprep.subr.mxu0 0.0
    %955 = vmatpush1.msra.mxu0 0.0
    %956 = vmatprep.subr.mxu0 0.0
    %957 = vmatpush1.msra.mxu0 0.0
    %958 = vmatprep.subr.mxu0 0.0
    %959 = vmatpush1.msra.mxu0 0.0
    %960 = vmatprep.subr.mxu0 0.0
    %961 = vmatpush1.msra.mxu0 0.0
    %962 = vmatprep.subr.mxu0 0.0
    %963 = vmatpush1.msra.mxu0 0.0
    %964 = vmatprep.subr.mxu0 0.0
    %965 = vmatpush1.msra.mxu0 0.0
    %966 = vmatprep.subr.mxu0 0.0
    %967 = vmatpush1.msra.mxu0 0.0
    %968 = vmatprep.subr.mxu0 0.0
    %969 = vmatpush1.msra.mxu0 0.0
    %970 = vmatprep.subr.mxu0 0.0
    %971 = vmatpush1.msra.mxu0 0.0
    %972 = vmatprep.subr.mxu0 0.0
    %973 = vmatpush1.msra.mxu0 0.0
    %974 = vmatprep.subr.mxu0 0.0
    %975 = vmatpush1.msra.mxu0 0.0
    %976 = vmatprep.subr.mxu0 0.0
    %977 = vmatpush1.msra.mxu0 0.0
    %978 = vmatprep.subr.mxu0 0.0
    %979 = vmatpush1.msra.mxu0 0.0
    %980 = vmatprep.subr.mxu0 0.0
    %981 = vmatpush1.msra.mxu0 0.0
    %982 = vmatprep.subr.mxu0 0.0
    %983 = vmatpush1.msra.mxu0 0.0
    %984 = vmatprep.subr.mxu0 0.0
    %985 = vmatpush1.msra.mxu0 0.0
    %986 = vmatprep.subr.mxu0 0.0
    %987 = vmatpush1.msra.mxu0 0.0
    %988 = vmatprep.subr.mxu0 0.0
    %989 = vmatpush1.msra.mxu0 0.0
    %990 = vmatprep.subr.mxu0 0.0
    %991 = vmatpush1.msra.mxu0 0.0
    %992 = vmatprep.subr.mxu0 0.0
    %993 = vmatpush1.msra.mxu0 0.0
    %994 = vmatprep.subr.mxu0 0.0
    %995 = vmatpush1.msra.mxu0 0.0
    %996 = vmatprep.subr.mxu0 0.0
    %997 = vmatpush1.msra.mxu0 0.0
    %998 = vmatprep.subr.mxu0 0.0
    %999 = vmatpush1.msra.mxu0 0.0
    %1000 = vmatprep.subr.mxu0 0.0
    %1001 = vmatpush1.msra.mxu0 0.0
    %1002 = vmatprep.subr.mxu0 0.0
    %1003 = vmatpush1.msra.mxu0 0.0
    %1004 = vmatprep.subr.mxu0 0.0
    %1005 = vmatpush1.msra.mxu0 0.0
    %1006 = vmatprep.subr.mxu0 0.0
    %1007 = vmatpush1.msra.mxu0 0.0
    %1008 = vmatprep.subr.mxu0 0.0
    %1009 = vmatpush1.msra.mxu0 0.0
    %1010 = vmatprep.mubr.f32.mxu0 0.0
    %1011 = vmatmul.mubr.f32.gmra.mrb[0].mxu0 %v790
    %v1012 = vpop.f32.mrb[0].mxu0
    %v1013 = vadd.f32 0.0, %v1012
    %v1014 = vpop.f32.mrb[0].mxu0
    %v1015 = vadd.f32 0.0, %v1014
    %1016 = vdwg.mxu0
    %1017 = vrot.lane.b32.xlu0 %v758, 19
    %v1018 = vpop.permute.xlu0 %1017
    %1019 = vrot.lane.b32.xlu0 %v767, 19
    %v1020 = vpop.permute.xlu0 %1019
    %1021 = vrot.lane.b32.xlu0 %v759, 19
    %v1022 = vpop.permute.xlu0 %1021
    %1023 = vrot.lane.b32.xlu0 %v768, 19
    %v1024 = vpop.permute.xlu0 %1023
    %1025 = vrot.lane.b32.xlu0 %v760, 19
    %v1026 = vpop.permute.xlu0 %1025
    %1027 = vrot.lane.b32.xlu0 %v769, 19
    %v1028 = vpop.permute.xlu0 %1027
    %v1029 = vsel %vm747, %v1018, %v1020
    %v1030 = vsel %vm747, %v1020, %v1022
    %v1031 = vsel %vm747, %v1022, %v1024
    %v1032 = vsel %vm747, %v1024, %v1026
    %v1033 = vsel %vm747, %v1026, %v1028
    %v1035 = vsel %vm788, %v761, 0
    %v1037 = vsel %vm116, %v1029, 0
    %v1039 = vsel %vm116, %v1030, 0
    %v1041 = vsel %vm116, %v1031, 0
    %v1043 = vsel %vm116, %v1032, 0
    %v1045 = vsel %vm116, %v1033, 0
    %v1047 = vsel %vm116, %v1028, 0
    %1049 = vmatprep.subr.mxu0 %v1039
    %1050 = vmatpush1.msra.mxu0 %v1037
    %1051 = vmatprep.subr.mxu0 0.0
    %1052 = vmatpush1.msra.mxu0 0.0
    %1053 = vmatprep.subr.mxu0 0.0
    %1054 = vmatpush1.msra.mxu0 0.0
    %1055 = vmatprep.subr.mxu0 0.0
    %1056 = vmatpush1.msra.mxu0 0.0
    %1057 = vmatprep.subr.mxu0 0.0
    %1058 = vmatpush1.msra.mxu0 0.0
    %1059 = vmatprep.subr.mxu0 0.0
    %1060 = vmatpush1.msra.mxu0 0.0
    %1061 = vmatprep.subr.mxu0 0.0
    %1062 = vmatpush1.msra.mxu0 0.0
    %1063 = vmatprep.subr.mxu0 0.0
    %1064 = vmatpush1.msra.mxu0 0.0
    %1065 = vmatprep.subr.mxu0 0.0
    %1066 = vmatpush1.msra.mxu0 0.0
    %1067 = vmatprep.subr.mxu0 0.0
    %1068 = vmatpush1.msra.mxu0 0.0
    %1069 = vmatprep.subr.mxu0 0.0
    %1070 = vmatpush1.msra.mxu0 0.0
    %1071 = vmatprep.subr.mxu0 0.0
    %1072 = vmatpush1.msra.mxu0 0.0
    %1073 = vmatprep.subr.mxu0 0.0
    %1074 = vmatpush1.msra.mxu0 0.0
    %1075 = vmatprep.subr.mxu0 0.0
    %1076 = vmatpush1.msra.mxu0 0.0
    %1077 = vmatprep.subr.mxu0 0.0
    %1078 = vmatpush1.msra.mxu0 0.0
    %1079 = vmatprep.subr.mxu0 0.0
    %1080 = vmatpush1.msra.mxu0 0.0
    %1081 = vmatprep.subr.mxu0 0.0
    %1082 = vmatpush1.msra.mxu0 0.0
    %1083 = vmatprep.subr.mxu0 0.0
    %1084 = vmatpush1.msra.mxu0 0.0
    %1085 = vmatprep.subr.mxu0 0.0
    %1086 = vmatpush1.msra.mxu0 0.0
    %1087 = vmatprep.subr.mxu0 0.0
    %1088 = vmatpush1.msra.mxu0 0.0
    %1089 = vmatprep.subr.mxu0 0.0
    %1090 = vmatpush1.msra.mxu0 0.0
    %1091 = vmatprep.subr.mxu0 0.0
    %1092 = vmatpush1.msra.mxu0 0.0
    %1093 = vmatprep.subr.mxu0 0.0
    %1094 = vmatpush1.msra.mxu0 0.0
    %1095 = vmatprep.subr.mxu0 0.0
    %1096 = vmatpush1.msra.mxu0 0.0
    %1097 = vmatprep.subr.mxu0 0.0
    %1098 = vmatpush1.msra.mxu0 0.0
    %1099 = vmatprep.subr.mxu0 0.0
    %1100 = vmatpush1.msra.mxu0 0.0
    %1101 = vmatprep.subr.mxu0 0.0
    %1102 = vmatpush1.msra.mxu0 0.0
    %1103 = vmatprep.subr.mxu0 0.0
    %1104 = vmatpush1.msra.mxu0 0.0
    %1105 = vmatprep.subr.mxu0 0.0
    %1106 = vmatpush1.msra.mxu0 0.0
    %1107 = vmatprep.subr.mxu0 0.0
    %1108 = vmatpush1.msra.mxu0 0.0
    %1109 = vmatprep.subr.mxu0 0.0
    %1110 = vmatpush1.msra.mxu0 0.0
    %1111 = vmatprep.subr.mxu0 0.0
    %1112 = vmatpush1.msra.mxu0 0.0
    %1113 = vmatprep.mubr.f32.mxu0 0.0
    %1114 = vmatmul.mubr.f32.gmra.mrb[0].mxu0 %v1035
    %v1115 = vpop.f32.mrb[0].mxu0
    %v1116 = vadd.f32 %v871, %v1115
    %v1117 = vpop.f32.mrb[0].mxu0
    %v1118 = vadd.f32 %v873, %v1117
    %1119 = vdwg.mxu0
    %1120 = vmatprep.subr.mxu0 %v1043
    %1121 = vmatpush1.msra.mxu0 %v1041
    %1122 = vmatprep.subr.mxu0 0.0
    %1123 = vmatpush1.msra.mxu0 0.0
    %1124 = vmatprep.subr.mxu0 0.0
    %1125 = vmatpush1.msra.mxu0 0.0
    %1126 = vmatprep.subr.mxu0 0.0
    %1127 = vmatpush1.msra.mxu0 0.0
    %1128 = vmatprep.subr.mxu0 0.0
    %1129 = vmatpush1.msra.mxu0 0.0
    %1130 = vmatprep.subr.mxu0 0.0
    %1131 = vmatpush1.msra.mxu0 0.0
    %1132 = vmatprep.subr.mxu0 0.0
    %1133 = vmatpush1.msra.mxu0 0.0
    %1134 = vmatprep.subr.mxu0 0.0
    %1135 = vmatpush1.msra.mxu0 0.0
    %1136 = vmatprep.subr.mxu0 0.0
    %1137 = vmatpush1.msra.mxu0 0.0
    %1138 = vmatprep.subr.mxu0 0.0
    %1139 = vmatpush1.msra.mxu0 0.0
    %1140 = vmatprep.subr.mxu0 0.0
    %1141 = vmatpush1.msra.mxu0 0.0
    %1142 = vmatprep.subr.mxu0 0.0
    %1143 = vmatpush1.msra.mxu0 0.0
    %1144 = vmatprep.subr.mxu0 0.0
    %1145 = vmatpush1.msra.mxu0 0.0
    %1146 = vmatprep.subr.mxu0 0.0
    %1147 = vmatpush1.msra.mxu0 0.0
    %1148 = vmatprep.subr.mxu0 0.0
    %1149 = vmatpush1.msra.mxu0 0.0
    %1150 = vmatprep.subr.mxu0 0.0
    %1151 = vmatpush1.msra.mxu0 0.0
    %1152 = vmatprep.subr.mxu0 0.0
    %1153 = vmatpush1.msra.mxu0 0.0
    %1154 = vmatprep.subr.mxu0 0.0
    %1155 = vmatpush1.msra.mxu0 0.0
    %1156 = vmatprep.subr.mxu0 0.0
    %1157 = vmatpush1.msra.mxu0 0.0
    %1158 = vmatprep.subr.mxu0 0.0
    %1159 = vmatpush1.msra.mxu0 0.0
    %1160 = vmatprep.subr.mxu0 0.0
    %1161 = vmatpush1.msra.mxu0 0.0
    %1162 = vmatprep.subr.mxu0 0.0
    %1163 = vmatpush1.msra.mxu0 0.0
    %1164 = vmatprep.subr.mxu0 0.0
    %1165 = vmatpush1.msra.mxu0 0.0
    %1166 = vmatprep.subr.mxu0 0.0
    %1167 = vmatpush1.msra.mxu0 0.0
    %1168 = vmatprep.subr.mxu0 0.0
    %1169 = vmatpush1.msra.mxu0 0.0
    %1170 = vmatprep.subr.mxu0 0.0
    %1171 = vmatpush1.msra.mxu0 0.0
    %1172 = vmatprep.subr.mxu0 0.0
    %1173 = vmatpush1.msra.mxu0 0.0
    %1174 = vmatprep.subr.mxu0 0.0
    %1175 = vmatpush1.msra.mxu0 0.0
    %1176 = vmatprep.subr.mxu0 0.0
    %1177 = vmatpush1.msra.mxu0 0.0
    %1178 = vmatprep.subr.mxu0 0.0
    %1179 = vmatpush1.msra.mxu0 0.0
    %1180 = vmatprep.subr.mxu0 0.0
    %1181 = vmatpush1.msra.mxu0 0.0
    %1182 = vmatprep.subr.mxu0 0.0
    %1183 = vmatpush1.msra.mxu0 0.0
    %1184 = vmatprep.mubr.f32.mxu0 0.0
    %1185 = vmatmul.mubr.f32.gmra.mrb[0].mxu0 %v1035
    %v1186 = vpop.f32.mrb[0].mxu0
    %v1187 = vadd.f32 %v942, %v1186
    %v1188 = vpop.f32.mrb[0].mxu0
    %v1189 = vadd.f32 %v944, %v1188
    %1190 = vdwg.mxu0
    %1191 = vmatprep.subr.mxu0 %v1047
    %1192 = vmatpush1.msra.mxu0 %v1045
    %1193 = vmatprep.subr.mxu0 0.0
    %1194 = vmatpush1.msra.mxu0 0.0
    %1195 = vmatprep.subr.mxu0 0.0
    %1196 = vmatpush1.msra.mxu0 0.0
    %1197 = vmatprep.subr.mxu0 0.0
    %1198 = vmatpush1.msra.mxu0 0.0
    %1199 = vmatprep.subr.mxu0 0.0
    %1200 = vmatpush1.msra.mxu0 0.0
    %1201 = vmatprep.subr.mxu0 0.0
    %1202 = vmatpush1.msra.mxu0 0.0
    %1203 = vmatprep.subr.mxu0 0.0
    %1204 = vmatpush1.msra.mxu0 0.0
    %1205 = vmatprep.subr.mxu0 0.0
    %1206 = vmatpush1.msra.mxu0 0.0
    %1207 = vmatprep.subr.mxu0 0.0
    %1208 = vmatpush1.msra.mxu0 0.0
    %1209 = vmatprep.subr.mxu0 0.0
    %1210 = vmatpush1.msra.mxu0 0.0
    %1211 = vmatprep.subr.mxu0 0.0
    %1212 = vmatpush1.msra.mxu0 0.0
    %1213 = vmatprep.subr.mxu0 0.0
    %1214 = vmatpush1.msra.mxu0 0.0
    %1215 = vmatprep.subr.mxu0 0.0
    %1216 = vmatpush1.msra.mxu0 0.0
    %1217 = vmatprep.subr.mxu0 0.0
    %1218 = vmatpush1.msra.mxu0 0.0
    %1219 = vmatprep.subr.mxu0 0.0
    %1220 = vmatpush1.msra.mxu0 0.0
    %1221 = vmatprep.subr.mxu0 0.0
    %1222 = vmatpush1.msra.mxu0 0.0
    %1223 = vmatprep.subr.mxu0 0.0
    %1224 = vmatpush1.msra.mxu0 0.0
    %1225 = vmatprep.subr.mxu0 0.0
    %1226 = vmatpush1.msra.mxu0 0.0
    %1227 = vmatprep.subr.mxu0 0.0
    %1228 = vmatpush1.msra.mxu0 0.0
    %1229 = vmatprep.subr.mxu0 0.0
    %1230 = vmatpush1.msra.mxu0 0.0
    %1231 = vmatprep.subr.mxu0 0.0
    %1232 = vmatpush1.msra.mxu0 0.0
    %1233 = vmatprep.subr.mxu0 0.0
    %1234 = vmatpush1.msra.mxu0 0.0
    %1235 = vmatprep.subr.mxu0 0.0
    %1236 = vmatpush1.msra.mxu0 0.0
    %1237 = vmatprep.subr.mxu0 0.0
    %1238 = vmatpush1.msra.mxu0 0.0
    %1239 = vmatprep.subr.mxu0 0.0
    %1240 = vmatpush1.msra.mxu0 0.0
    %1241 = vmatprep.subr.mxu0 0.0
    %1242 = vmatpush1.msra.mxu0 0.0
    %1243 = vmatprep.subr.mxu0 0.0
    %1244 = vmatpush1.msra.mxu0 0.0
    %1245 = vmatprep.subr.mxu0 0.0
    %1246 = vmatpush1.msra.mxu0 0.0
    %1247 = vmatprep.subr.mxu0 0.0
    %1248 = vmatpush1.msra.mxu0 0.0
    %1249 = vmatprep.subr.mxu0 0.0
    %1250 = vmatpush1.msra.mxu0 0.0
    %1251 = vmatprep.subr.mxu0 0.0
    %1252 = vmatpush1.msra.mxu0 0.0
    %1253 = vmatprep.subr.mxu0 0.0
    %1254 = vmatpush1.msra.mxu0 0.0
    %1255 = vmatprep.mubr.f32.mxu0 0.0
    %1256 = vmatmul.mubr.f32.gmra.mrb[0].mxu0 %v1035
    %v1257 = vpop.f32.mrb[0].mxu0
    %v1258 = vadd.f32 %v1013, %v1257
    %v1259 = vpop.f32.mrb[0].mxu0
    %v1260 = vadd.f32 %v1015, %v1259
    %1261 = vdwg.mxu0
    %v1262 = vld [vmem:[#allocation2] sm:$0xff]
    %v1263 = vld [vmem:[#allocation2 + $0x8] sm:$0xff]
    %v1264 = vld [vmem:[#allocation2 + $0x10] sm:$0xff]
    %s1265 = scalar_lea.vmem %s3, 8
    %v1266 = vld [vmem:[%s1265] sm:$0xf]
    %v1270 = vcombine.high %v1262, %v1262
    %v1271 = vcombine.high %v1263, %v1263
    %v1272 = vcombine.high %v1264, %v1264
    %1273 = vrot.lane.b32.xlu0 %v1262, 17
    %v1274 = vpop.permute.xlu0 %1273
    %1275 = vrot.lane.b32.xlu0 %v1270, 17
    %v1276 = vpop.permute.xlu0 %1275
    %1277 = vrot.lane.b32.xlu0 %v1263, 17
    %v1278 = vpop.permute.xlu0 %1277
    %1279 = vrot.lane.b32.xlu0 %v1271, 17
    %v1280 = vpop.permute.xlu0 %1279
    %1281 = vrot.lane.b32.xlu0 %v1264, 17
    %v1282 = vpop.permute.xlu0 %1281
    %1283 = vrot.lane.b32.xlu0 %v1272, 17
    %v1284 = vpop.permute.xlu0 %1283
    %vm1285 = vcmask 138240
    %v1286 = vsel %vm1285, %v1274, %v1276
    %v1287 = vsel %vm1285, %v1276, %v1278
    %v1288 = vsel %vm1285, %v1278, %v1280
    %v1289 = vsel %vm1285, %v1280, %v1282
    %v1290 = vsel %vm1285, %v1282, %v1284
    %v1292 = vsel %vm788, %v1266, 0
    %v1294 = vsel %vm116, %v1286, 0
    %v1296 = vsel %vm116, %v1287, 0
    %v1298 = vsel %vm116, %v1288, 0
    %v1300 = vsel %vm116, %v1289, 0
    %v1302 = vsel %vm116, %v1290, 0
    %v1304 = vsel %vm116, %v1284, 0
    %1306 = vmatprep.subr.mxu0 %v1296
    %1307 = vmatpush1.msra.mxu0 %v1294
    %1308 = vmatprep.subr.mxu0 0.0
    %1309 = vmatpush1.msra.mxu0 0.0
    %1310 = vmatprep.subr.mxu0 0.0
    %1311 = vmatpush1.msra.mxu0 0.0
    %1312 = vmatprep.subr.mxu0 0.0
    %1313 = vmatpush1.msra.mxu0 0.0
    %1314 = vmatprep.subr.mxu0 0.0
    %1315 = vmatpush1.msra.mxu0 0.0
    %1316 = vmatprep.subr.mxu0 0.0
    %1317 = vmatpush1.msra.mxu0 0.0
    %1318 = vmatprep.subr.mxu0 0.0
    %1319 = vmatpush1.msra.mxu0 0.0
    %1320 = vmatprep.subr.mxu0 0.0
    %1321 = vmatpush1.msra.mxu0 0.0
    %1322 = vmatprep.subr.mxu0 0.0
    %1323 = vmatpush1.msra.mxu0 0.0
    %1324 = vmatprep.subr.mxu0 0.0
    %1325 = vmatpush1.msra.mxu0 0.0
    %1326 = vmatprep.subr.mxu0 0.0
    %1327 = vmatpush1.msra.mxu0 0.0
    %1328 = vmatprep.subr.mxu0 0.0
    %1329 = vmatpush1.msra.mxu0 0.0
    %1330 = vmatprep.subr.mxu0 0.0
    %1331 = vmatpush1.msra.mxu0 0.0
    %1332 = vmatprep.subr.mxu0 0.0
    %1333 = vmatpush1.msra.mxu0 0.0
    %1334 = vmatprep.subr.mxu0 0.0
    %1335 = vmatpush1.msra.mxu0 0.0
    %1336 = vmatprep.subr.mxu0 0.0
    %1337 = vmatpush1.msra.mxu0 0.0
    %1338 = vmatprep.subr.mxu0 0.0
    %1339 = vmatpush1.msra.mxu0 0.0
    %1340 = vmatprep.subr.mxu0 0.0
    %1341 = vmatpush1.msra.mxu0 0.0
    %1342 = vmatprep.subr.mxu0 0.0
    %1343 = vmatpush1.msra.mxu0 0.0
    %1344 = vmatprep.subr.mxu0 0.0
    %1345 = vmatpush1.msra.mxu0 0.0
    %1346 = vmatprep.subr.mxu0 0.0
    %1347 = vmatpush1.msra.mxu0 0.0
    %1348 = vmatprep.subr.mxu0 0.0
    %1349 = vmatpush1.msra.mxu0 0.0
    %1350 = vmatprep.subr.mxu0 0.0
    %1351 = vmatpush1.msra.mxu0 0.0
    %1352 = vmatprep.subr.mxu0 0.0
    %1353 = vmatpush1.msra.mxu0 0.0
    %1354 = vmatprep.subr.mxu0 0.0
    %1355 = vmatpush1.msra.mxu0 0.0
    %1356 = vmatprep.subr.mxu0 0.0
    %1357 = vmatpush1.msra.mxu0 0.0
    %1358 = vmatprep.subr.mxu0 0.0
    %1359 = vmatpush1.msra.mxu0 0.0
    %1360 = vmatprep.subr.mxu0 0.0
    %1361 = vmatpush1.msra.mxu0 0.0
    %1362 = vmatprep.subr.mxu0 0.0
    %1363 = vmatpush1.msra.mxu0 0.0
    %1364 = vmatprep.subr.mxu0 0.0
    %1365 = vmatpush1.msra.mxu0 0.0
    %1366 = vmatprep.subr.mxu0 0.0
    %1367 = vmatpush1.msra.mxu0 0.0
    %1368 = vmatprep.subr.mxu0 0.0
    %1369 = vmatpush1.msra.mxu0 0.0
    %1370 = vmatprep.mubr.f32.mxu0 0.0
    %1371 = vmatmul.mubr.f32.gmra.mrb[0].mxu0 %v1292
    %v1372 = vpop.f32.mrb[0].mxu0
    %v1373 = vadd.f32 0.0, %v1372
    %v1374 = vpop.f32.mrb[0].mxu0
    %v1375 = vadd.f32 0.0, %v1374
    %1376 = vdwg.mxu0
    %1377 = vmatprep.subr.mxu0 %v1300
    %1378 = vmatpush1.msra.mxu0 %v1298
    %1379 = vmatprep.subr.mxu0 0.0
    %1380 = vmatpush1.msra.mxu0 0.0
    %1381 = vmatprep.subr.mxu0 0.0
    %1382 = vmatpush1.msra.mxu0 0.0
    %1383 = vmatprep.subr.mxu0 0.0
    %1384 = vmatpush1.msra.mxu0 0.0
    %1385 = vmatprep.subr.mxu0 0.0
    %1386 = vmatpush1.msra.mxu0 0.0
    %1387 = vmatprep.subr.mxu0 0.0
    %1388 = vmatpush1.msra.mxu0 0.0
    %1389 = vmatprep.subr.mxu0 0.0
    %1390 = vmatpush1.msra.mxu0 0.0
    %1391 = vmatprep.subr.mxu0 0.0
    %1392 = vmatpush1.msra.mxu0 0.0
    %1393 = vmatprep.subr.mxu0 0.0
    %1394 = vmatpush1.msra.mxu0 0.0
    %1395 = vmatprep.subr.mxu0 0.0
    %1396 = vmatpush1.msra.mxu0 0.0
    %1397 = vmatprep.subr.mxu0 0.0
    %1398 = vmatpush1.msra.mxu0 0.0
    %1399 = vmatprep.subr.mxu0 0.0
    %1400 = vmatpush1.msra.mxu0 0.0
    %1401 = vmatprep.subr.mxu0 0.0
    %1402 = vmatpush1.msra.mxu0 0.0
    %1403 = vmatprep.subr.mxu0 0.0
    %1404 = vmatpush1.msra.mxu0 0.0
    %1405 = vmatprep.subr.mxu0 0.0
    %1406 = vmatpush1.msra.mxu0 0.0
    %1407 = vmatprep.subr.mxu0 0.0
    %1408 = vmatpush1.msra.mxu0 0.0
    %1409 = vmatprep.subr.mxu0 0.0
    %1410 = vmatpush1.msra.mxu0 0.0
    %1411 = vmatprep.subr.mxu0 0.0
    %1412 = vmatpush1.msra.mxu0 0.0
    %1413 = vmatprep.subr.mxu0 0.0
    %1414 = vmatpush1.msra.mxu0 0.0
    %1415 = vmatprep.subr.mxu0 0.0
    %1416 = vmatpush1.msra.mxu0 0.0
    %1417 = vmatprep.subr.mxu0 0.0
    %1418 = vmatpush1.msra.mxu0 0.0
    %1419 = vmatprep.subr.mxu0 0.0
    %1420 = vmatpush1.msra.mxu0 0.0
    %1421 = vmatprep.subr.mxu0 0.0
    %1422 = vmatpush1.msra.mxu0 0.0
    %1423 = vmatprep.subr.mxu0 0.0
    %1424 = vmatpush1.msra.mxu0 0.0
    %1425 = vmatprep.subr.mxu0 0.0
    %1426 = vmatpush1.msra.mxu0 0.0
    %1427 = vmatprep.subr.mxu0 0.0
    %1428 = vmatpush1.msra.mxu0 0.0
    %1429 = vmatprep.subr.mxu0 0.0
    %1430 = vmatpush1.msra.mxu0 0.0
    %1431 = vmatprep.subr.mxu0 0.0
    %1432 = vmatpush1.msra.mxu0 0.0
    %1433 = vmatprep.subr.mxu0 0.0
    %1434 = vmatpush1.msra.mxu0 0.0
    %1435 = vmatprep.subr.mxu0 0.0
    %1436 = vmatpush1.msra.mxu0 0.0
    %1437 = vmatprep.subr.mxu0 0.0
    %1438 = vmatpush1.msra.mxu0 0.0
    %1439 = vmatprep.subr.mxu0 0.0
    %1440 = vmatpush1.msra.mxu0 0.0
    %1441 = vmatprep.mubr.f32.mxu0 0.0
    %1442 = vmatmul.mubr.f32.gmra.mrb[0].mxu0 %v1292
    %v1443 = vpop.f32.mrb[0].mxu0
    %v1444 = vadd.f32 0.0, %v1443
    %v1445 = vpop.f32.mrb[0].mxu0
    %v1446 = vadd.f32 0.0, %v1445
    %1447 = vdwg.mxu0
    %1448 = vmatprep.subr.mxu0 %v1304
    %1449 = vmatpush1.msra.mxu0 %v1302
    %1450 = vmatprep.subr.mxu0 0.0
    %1451 = vmatpush1.msra.mxu0 0.0
    %1452 = vmatprep.subr.mxu0 0.0
    %1453 = vmatpush1.msra.mxu0 0.0
    %1454 = vmatprep.subr.mxu0 0.0
    %1455 = vmatpush1.msra.mxu0 0.0
    %1456 = vmatprep.subr.mxu0 0.0
    %1457 = vmatpush1.msra.mxu0 0.0
    %1458 = vmatprep.subr.mxu0 0.0
    %1459 = vmatpush1.msra.mxu0 0.0
    %1460 = vmatprep.subr.mxu0 0.0
    %1461 = vmatpush1.msra.mxu0 0.0
    %1462 = vmatprep.subr.mxu0 0.0
    %1463 = vmatpush1.msra.mxu0 0.0
    %1464 = vmatprep.subr.mxu0 0.0
    %1465 = vmatpush1.msra.mxu0 0.0
    %1466 = vmatprep.subr.mxu0 0.0
    %1467 = vmatpush1.msra.mxu0 0.0
    %1468 = vmatprep.subr.mxu0 0.0
    %1469 = vmatpush1.msra.mxu0 0.0
    %1470 = vmatprep.subr.mxu0 0.0
    %1471 = vmatpush1.msra.mxu0 0.0
    %1472 = vmatprep.subr.mxu0 0.0
    %1473 = vmatpush1.msra.mxu0 0.0
    %1474 = vmatprep.subr.mxu0 0.0
    %1475 = vmatpush1.msra.mxu0 0.0
    %1476 = vmatprep.subr.mxu0 0.0
    %1477 = vmatpush1.msra.mxu0 0.0
    %1478 = vmatprep.subr.mxu0 0.0
    %1479 = vmatpush1.msra.mxu0 0.0
    %1480 = vmatprep.subr.mxu0 0.0
    %1481 = vmatpush1.msra.mxu0 0.0
    %1482 = vmatprep.subr.mxu0 0.0
    %1483 = vmatpush1.msra.mxu0 0.0
    %1484 = vmatprep.subr.mxu0 0.0
    %1485 = vmatpush1.msra.mxu0 0.0
    %1486 = vmatprep.subr.mxu0 0.0
    %1487 = vmatpush1.msra.mxu0 0.0
    %1488 = vmatprep.subr.mxu0 0.0
    %1489 = vmatpush1.msra.mxu0 0.0
    %1490 = vmatprep.subr.mxu0 0.0
    %1491 = vmatpush1.msra.mxu0 0.0
    %1492 = vmatprep.subr.mxu0 0.0
    %1493 = vmatpush1.msra.mxu0 0.0
    %1494 = vmatprep.subr.mxu0 0.0
    %1495 = vmatpush1.msra.mxu0 0.0
    %1496 = vmatprep.subr.mxu0 0.0
    %1497 = vmatpush1.msra.mxu0 0.0
    %1498 = vmatprep.subr.mxu0 0.0
    %1499 = vmatpush1.msra.mxu0 0.0
    %1500 = vmatprep.subr.mxu0 0.0
    %1501 = vmatpush1.msra.mxu0 0.0
    %1502 = vmatprep.subr.mxu0 0.0
    %1503 = vmatpush1.msra.mxu0 0.0
    %1504 = vmatprep.subr.mxu0 0.0
    %1505 = vmatpush1.msra.mxu0 0.0
    %1506 = vmatprep.subr.mxu0 0.0
    %1507 = vmatpush1.msra.mxu0 0.0
    %1508 = vmatprep.subr.mxu0 0.0
    %1509 = vmatpush1.msra.mxu0 0.0
    %1510 = vmatprep.subr.mxu0 0.0
    %1511 = vmatpush1.msra.mxu0 0.0
    %1512 = vmatprep.mubr.f32.mxu0 0.0
    %1513 = vmatmul.mubr.f32.gmra.mrb[0].mxu0 %v1292
    %v1514 = vpop.f32.mrb[0].mxu0
    %v1515 = vadd.f32 0.0, %v1514
    %v1516 = vpop.f32.mrb[0].mxu0
    %v1517 = vadd.f32 0.0, %v1516
    %1518 = vdwg.mxu0
    %v1519 = vadd.f32 %v1116, %v1373
    %v1520 = vadd.f32 %v1118, %v1375
    %v1521 = vadd.f32 %v1187, %v1444
    %v1522 = vadd.f32 %v1189, %v1446
    %v1523 = vadd.f32 %v1258, %v1515
    %v1524 = vadd.f32 %v1260, %v1517
    %v1525 = vld [vmem:[#allocation2] sm:$0xff]
    %v1526 = vld [vmem:[#allocation2 + $0x8] sm:$0xff]
    %v1527 = vld [vmem:[#allocation2 + $0x10] sm:$0xff]
    %v1528 = vld [vmem:[#allocation2 + $0x18] sm:$0xf]
    %s1529 = scalar_lea.vmem %s3, 12
    %v1530 = vld [vmem:[%s1529] sm:$0xf]
    %v1535 = vcombine.high %v1525, %v1525
    %v1536 = vcombine.high %v1526, %v1526
    %v1537 = vcombine.high %v1527, %v1527
    %1538 = vrot.lane.b32.xlu0 %v1525, 1
    %v1539 = vpop.permute.xlu0 %1538
    %1540 = vrot.lane.b32.xlu0 %v1535, 1
    %v1541 = vpop.permute.xlu0 %1540
    %1542 = vrot.lane.b32.xlu0 %v1526, 1
    %v1543 = vpop.permute.xlu0 %1542
    %1544 = vrot.lane.b32.xlu0 %v1536, 1
    %v1545 = vpop.permute.xlu0 %1544
    %1546 = vrot.lane.b32.xlu0 %v1527, 1
    %v1547 = vpop.permute.xlu0 %1546
    %1548 = vrot.lane.b32.xlu0 %v1537, 1
    %v1549 = vpop.permute.xlu0 %1548
    %1550 = vrot.lane.b32.xlu0 %v1528, 1
    %v1551 = vpop.permute.xlu0 %1550
    %vm1552 = vcmask 7168
    %v1553 = vsel %vm1552, %v1539, %v1541
    %v1554 = vsel %vm1552, %v1541, %v1543
    %v1555 = vsel %vm1552, %v1543, %v1545
    %v1556 = vsel %vm1552, %v1545, %v1547
    %v1557 = vsel %vm1552, %v1547, %v1549
    %v1558 = vsel %vm1552, %v1549, %v1551
    %v1560 = vsel %vm788, %v1530, 0
    %v1562 = vsel %vm116, %v1553, 0
    %v1564 = vsel %vm116, %v1554, 0
    %v1566 = vsel %vm116, %v1555, 0
    %v1568 = vsel %vm116, %v1556, 0
    %v1570 = vsel %vm116, %v1557, 0
    %v1572 = vsel %vm116, %v1558, 0
    %1574 = vmatprep.subr.mxu0 %v1564
    %1575 = vmatpush1.msra.mxu0 %v1562
    %1576 = vmatprep.subr.mxu0 0.0
    %1577 = vmatpush1.msra.mxu0 0.0
    %1578 = vmatprep.subr.mxu0 0.0
    %1579 = vmatpush1.msra.mxu0 0.0
    %1580 = vmatprep.subr.mxu0 0.0
    %1581 = vmatpush1.msra.mxu0 0.0
    %1582 = vmatprep.subr.mxu0 0.0
    %1583 = vmatpush1.msra.mxu0 0.0
    %1584 = vmatprep.subr.mxu0 0.0
    %1585 = vmatpush1.msra.mxu0 0.0
    %1586 = vmatprep.subr.mxu0 0.0
    %1587 = vmatpush1.msra.mxu0 0.0
    %1588 = vmatprep.subr.mxu0 0.0
    %1589 = vmatpush1.msra.mxu0 0.0
    %1590 = vmatprep.subr.mxu0 0.0
    %1591 = vmatpush1.msra.mxu0 0.0
    %1592 = vmatprep.subr.mxu0 0.0
    %1593 = vmatpush1.msra.mxu0 0.0
    %1594 = vmatprep.subr.mxu0 0.0
    %1595 = vmatpush1.msra.mxu0 0.0
    %1596 = vmatprep.subr.mxu0 0.0
    %1597 = vmatpush1.msra.mxu0 0.0
    %1598 = vmatprep.subr.mxu0 0.0
    %1599 = vmatpush1.msra.mxu0 0.0
    %1600 = vmatprep.subr.mxu0 0.0
    %1601 = vmatpush1.msra.mxu0 0.0
    %1602 = vmatprep.subr.mxu0 0.0
    %1603 = vmatpush1.msra.mxu0 0.0
    %1604 = vmatprep.subr.mxu0 0.0
    %1605 = vmatpush1.msra.mxu0 0.0
    %1606 = vmatprep.subr.mxu0 0.0
    %1607 = vmatpush1.msra.mxu0 0.0
    %1608 = vmatprep.subr.mxu0 0.0
    %1609 = vmatpush1.msra.mxu0 0.0
    %1610 = vmatprep.subr.mxu0 0.0
    %1611 = vmatpush1.msra.mxu0 0.0
    %1612 = vmatprep.subr.mxu0 0.0
    %1613 = vmatpush1.msra.mxu0 0.0
    %1614 = vmatprep.subr.mxu0 0.0
    %1615 = vmatpush1.msra.mxu0 0.0
    %1616 = vmatprep.subr.mxu0 0.0
    %1617 = vmatpush1.msra.mxu0 0.0
    %1618 = vmatprep.subr.mxu0 0.0
    %1619 = vmatpush1.msra.mxu0 0.0
    %1620 = vmatprep.subr.mxu0 0.0
    %1621 = vmatpush1.msra.mxu0 0.0
    %1622 = vmatprep.subr.mxu0 0.0
    %1623 = vmatpush1.msra.mxu0 0.0
    %1624 = vmatprep.subr.mxu0 0.0
    %1625 = vmatpush1.msra.mxu0 0.0
    %1626 = vmatprep.subr.mxu0 0.0
    %1627 = vmatpush1.msra.mxu0 0.0
    %1628 = vmatprep.subr.mxu0 0.0
    %1629 = vmatpush1.msra.mxu0 0.0
    %1630 = vmatprep.subr.mxu0 0.0
    %1631 = vmatpush1.msra.mxu0 0.0
    %1632 = vmatprep.subr.mxu0 0.0
    %1633 = vmatpush1.msra.mxu0 0.0
    %1634 = vmatprep.subr.mxu0 0.0
    %1635 = vmatpush1.msra.mxu0 0.0
    %1636 = vmatprep.subr.mxu0 0.0
    %1637 = vmatpush1.msra.mxu0 0.0
    %1638 = vmatprep.mubr.f32.mxu0 0.0
    %1639 = vmatmul.mubr.f32.gmra.mrb[0].mxu0 %v1560
    %v1640 = vpop.f32.mrb[0].mxu0
    %v1641 = vadd.f32 0.0, %v1640
    %v1642 = vpop.f32.mrb[0].mxu0
    %v1643 = vadd.f32 0.0, %v1642
    %1644 = vdwg.mxu0
    %1645 = vmatprep.subr.mxu0 %v1568
    %1646 = vmatpush1.msra.mxu0 %v1566
    %1647 = vmatprep.subr.mxu0 0.0
    %1648 = vmatpush1.msra.mxu0 0.0
    %1649 = vmatprep.subr.mxu0 0.0
    %1650 = vmatpush1.msra.mxu0 0.0
    %1651 = vmatprep.subr.mxu0 0.0
    %1652 = vmatpush1.msra.mxu0 0.0
    %1653 = vmatprep.subr.mxu0 0.0
    %1654 = vmatpush1.msra.mxu0 0.0
    %1655 = vmatprep.subr.mxu0 0.0
    %1656 = vmatpush1.msra.mxu0 0.0
    %1657 = vmatprep.subr.mxu0 0.0
    %1658 = vmatpush1.msra.mxu0 0.0
    %1659 = vmatprep.subr.mxu0 0.0
    %1660 = vmatpush1.msra.mxu0 0.0
    %1661 = vmatprep.subr.mxu0 0.0
    %1662 = vmatpush1.msra.mxu0 0.0
    %1663 = vmatprep.subr.mxu0 0.0
    %1664 = vmatpush1.msra.mxu0 0.0
    %1665 = vmatprep.subr.mxu0 0.0
    %1666 = vmatpush1.msra.mxu0 0.0
    %1667 = vmatprep.subr.mxu0 0.0
    %1668 = vmatpush1.msra.mxu0 0.0
    %1669 = vmatprep.subr.mxu0 0.0
    %1670 = vmatpush1.msra.mxu0 0.0
    %1671 = vmatprep.subr.mxu0 0.0
    %1672 = vmatpush1.msra.mxu0 0.0
    %1673 = vmatprep.subr.mxu0 0.0
    %1674 = vmatpush1.msra.mxu0 0.0
    %1675 = vmatprep.subr.mxu0 0.0
    %1676 = vmatpush1.msra.mxu0 0.0
    %1677 = vmatprep.subr.mxu0 0.0
    %1678 = vmatpush1.msra.mxu0 0.0
    %1679 = vmatprep.subr.mxu0 0.0
    %1680 = vmatpush1.msra.mxu0 0.0
    %1681 = vmatprep.subr.mxu0 0.0
    %1682 = vmatpush1.msra.mxu0 0.0
    %1683 = vmatprep.subr.mxu0 0.0
    %1684 = vmatpush1.msra.mxu0 0.0
    %1685 = vmatprep.subr.mxu0 0.0
    %1686 = vmatpush1.msra.mxu0 0.0
    %1687 = vmatprep.subr.mxu0 0.0
    %1688 = vmatpush1.msra.mxu0 0.0
    %1689 = vmatprep.subr.mxu0 0.0
    %1690 = vmatpush1.msra.mxu0 0.0
    %1691 = vmatprep.subr.mxu0 0.0
    %1692 = vmatpush1.msra.mxu0 0.0
    %1693 = vmatprep.subr.mxu0 0.0
    %1694 = vmatpush1.msra.mxu0 0.0
    %1695 = vmatprep.subr.mxu0 0.0
    %1696 = vmatpush1.msra.mxu0 0.0
    %1697 = vmatprep.subr.mxu0 0.0
    %1698 = vmatpush1.msra.mxu0 0.0
    %1699 = vmatprep.subr.mxu0 0.0
    %1700 = vmatpush1.msra.mxu0 0.0
    %1701 = vmatprep.subr.mxu0 0.0
    %1702 = vmatpush1.msra.mxu0 0.0
    %1703 = vmatprep.subr.mxu0 0.0
    %1704 = vmatpush1.msra.mxu0 0.0
    %1705 = vmatprep.subr.mxu0 0.0
    %1706 = vmatpush1.msra.mxu0 0.0
    %1707 = vmatprep.subr.mxu0 0.0
    %1708 = vmatpush1.msra.mxu0 0.0
    %1709 = vmatprep.mubr.f32.mxu0 0.0
    %1710 = vmatmul.mubr.f32.gmra.mrb[0].mxu0 %v1560
    %v1711 = vpop.f32.mrb[0].mxu0
    %v1712 = vadd.f32 0.0, %v1711
    %v1713 = vpop.f32.mrb[0].mxu0
    %v1714 = vadd.f32 0.0, %v1713
    %1715 = vdwg.mxu0
    %1716 = vmatprep.subr.mxu0 %v1572
    %1717 = vmatpush1.msra.mxu0 %v1570
    %1718 = vmatprep.subr.mxu0 0.0
    %1719 = vmatpush1.msra.mxu0 0.0
    %1720 = vmatprep.subr.mxu0 0.0
    %1721 = vmatpush1.msra.mxu0 0.0
    %1722 = vmatprep.subr.mxu0 0.0
    %1723 = vmatpush1.msra.mxu0 0.0
    %1724 = vmatprep.subr.mxu0 0.0
    %1725 = vmatpush1.msra.mxu0 0.0
    %1726 = vmatprep.subr.mxu0 0.0
    %1727 = vmatpush1.msra.mxu0 0.0
    %1728 = vmatprep.subr.mxu0 0.0
    %1729 = vmatpush1.msra.mxu0 0.0
    %1730 = vmatprep.subr.mxu0 0.0
    %1731 = vmatpush1.msra.mxu0 0.0
    %1732 = vmatprep.subr.mxu0 0.0
    %1733 = vmatpush1.msra.mxu0 0.0
    %1734 = vmatprep.subr.mxu0 0.0
    %1735 = vmatpush1.msra.mxu0 0.0
    %1736 = vmatprep.subr.mxu0 0.0
    %1737 = vmatpush1.msra.mxu0 0.0
    %1738 = vmatprep.subr.mxu0 0.0
    %1739 = vmatpush1.msra.mxu0 0.0
    %1740 = vmatprep.subr.mxu0 0.0
    %1741 = vmatpush1.msra.mxu0 0.0
    %1742 = vmatprep.subr.mxu0 0.0
    %1743 = vmatpush1.msra.mxu0 0.0
    %1744 = vmatprep.subr.mxu0 0.0
    %1745 = vmatpush1.msra.mxu0 0.0
    %1746 = vmatprep.subr.mxu0 0.0
    %1747 = vmatpush1.msra.mxu0 0.0
    %1748 = vmatprep.subr.mxu0 0.0
    %1749 = vmatpush1.msra.mxu0 0.0
    %1750 = vmatprep.subr.mxu0 0.0
    %1751 = vmatpush1.msra.mxu0 0.0
    %1752 = vmatprep.subr.mxu0 0.0
    %1753 = vmatpush1.msra.mxu0 0.0
    %1754 = vmatprep.subr.mxu0 0.0
    %1755 = vmatpush1.msra.mxu0 0.0
    %1756 = vmatprep.subr.mxu0 0.0
    %1757 = vmatpush1.msra.mxu0 0.0
    %1758 = vmatprep.subr.mxu0 0.0
    %1759 = vmatpush1.msra.mxu0 0.0
    %1760 = vmatprep.subr.mxu0 0.0
    %1761 = vmatpush1.msra.mxu0 0.0
    %1762 = vmatprep.subr.mxu0 0.0
    %1763 = vmatpush1.msra.mxu0 0.0
    %1764 = vmatprep.subr.mxu0 0.0
    %1765 = vmatpush1.msra.mxu0 0.0
    %1766 = vmatprep.subr.mxu0 0.0
    %1767 = vmatpush1.msra.mxu0 0.0
    %1768 = vmatprep.subr.mxu0 0.0
    %1769 = vmatpush1.msra.mxu0 0.0
    %1770 = vmatprep.subr.mxu0 0.0
    %1771 = vmatpush1.msra.mxu0 0.0
    %1772 = vmatprep.subr.mxu0 0.0
    %1773 = vmatpush1.msra.mxu0 0.0
    %1774 = vmatprep.subr.mxu0 0.0
    %1775 = vmatpush1.msra.mxu0 0.0
    %1776 = vmatprep.subr.mxu0 0.0
    %1777 = vmatpush1.msra.mxu0 0.0
    %1778 = vmatprep.subr.mxu0 0.0
    %1779 = vmatpush1.msra.mxu0 0.0
    %1780 = vmatprep.mubr.f32.mxu0 0.0
    %1781 = vmatmul.mubr.f32.gmra.mrb[0].mxu0 %v1560
    %v1782 = vpop.f32.mrb[0].mxu0
    %v1783 = vadd.f32 0.0, %v1782
    %v1784 = vpop.f32.mrb[0].mxu0
    %v1785 = vadd.f32 0.0, %v1784
    %1786 = vdwg.mxu0
    %v1787 = vadd.f32 %v1519, %v1641
    %v1788 = vadd.f32 %v1520, %v1643
    %v1789 = vadd.f32 %v1521, %v1712
    %v1790 = vadd.f32 %v1522, %v1714
    %v1791 = vadd.f32 %v1523, %v1783
    %v1792 = vadd.f32 %v1524, %v1785
    %v1793 = vld [vmem:[#allocation2 + $0x4] sm:$0xff]
    %v1794 = vld [vmem:[#allocation2 + $0xc] sm:$0xff]
    %v1795 = vld [vmem:[#allocation2 + $0x14] sm:$0xff]
    %s1796 = scalar_lea.vmem %s3, 16
    %v1797 = vld [vmem:[%s1796] sm:$0xf]
    %v1801 = vcombine.high %v1793, %v1793
    %v1802 = vcombine.high %v1794, %v1794
    %v1803 = vcombine.high %v1795, %v1795
    %v1805 = vsel %vm788, %v1797, 0
    %v1807 = vsel %vm116, %v1793, 0
    %v1809 = vsel %vm116, %v1801, 0
    %v1811 = vsel %vm116, %v1794, 0
    %v1813 = vsel %vm116, %v1802, 0
    %v1815 = vsel %vm116, %v1795, 0
    %v1817 = vsel %vm116, %v1803, 0
    %1819 = vmatprep.subr.mxu0 %v1809
    %1820 = vmatpush1.msra.mxu0 %v1807
    %1821 = vmatprep.subr.mxu0 0.0
    %1822 = vmatpush1.msra.mxu0 0.0
    %1823 = vmatprep.subr.mxu0 0.0
    %1824 = vmatpush1.msra.mxu0 0.0
    %1825 = vmatprep.subr.mxu0 0.0
    %1826 = vmatpush1.msra.mxu0 0.0
    %1827 = vmatprep.subr.mxu0 0.0
    %1828 = vmatpush1.msra.mxu0 0.0
    %1829 = vmatprep.subr.mxu0 0.0
    %1830 = vmatpush1.msra.mxu0 0.0
    %1831 = vmatprep.subr.mxu0 0.0
    %1832 = vmatpush1.msra.mxu0 0.0
    %1833 = vmatprep.subr.mxu0 0.0
    %1834 = vmatpush1.msra.mxu0 0.0
    %1835 = vmatprep.subr.mxu0 0.0
    %1836 = vmatpush1.msra.mxu0 0.0
    %1837 = vmatprep.subr.mxu0 0.0
    %1838 = vmatpush1.msra.mxu0 0.0
    %1839 = vmatprep.subr.mxu0 0.0
    %1840 = vmatpush1.msra.mxu0 0.0
    %1841 = vmatprep.subr.mxu0 0.0
    %1842 = vmatpush1.msra.mxu0 0.0
    %1843 = vmatprep.subr.mxu0 0.0
    %1844 = vmatpush1.msra.mxu0 0.0
    %1845 = vmatprep.subr.mxu0 0.0
    %1846 = vmatpush1.msra.mxu0 0.0
    %1847 = vmatprep.subr.mxu0 0.0
    %1848 = vmatpush1.msra.mxu0 0.0
    %1849 = vmatprep.subr.mxu0 0.0
    %1850 = vmatpush1.msra.mxu0 0.0
    %1851 = vmatprep.subr.mxu0 0.0
    %1852 = vmatpush1.msra.mxu0 0.0
    %1853 = vmatprep.subr.mxu0 0.0
    %1854 = vmatpush1.msra.mxu0 0.0
    %1855 = vmatprep.subr.mxu0 0.0
    %1856 = vmatpush1.msra.mxu0 0.0
    %1857 = vmatprep.subr.mxu0 0.0
    %1858 = vmatpush1.msra.mxu0 0.0
    %1859 = vmatprep.subr.mxu0 0.0
    %1860 = vmatpush1.msra.mxu0 0.0
    %1861 = vmatprep.subr.mxu0 0.0
    %1862 = vmatpush1.msra.mxu0 0.0
    %1863 = vmatprep.subr.mxu0 0.0
    %1864 = vmatpush1.msra.mxu0 0.0
    %1865 = vmatprep.subr.mxu0 0.0
    %1866 = vmatpush1.msra.mxu0 0.0
    %1867 = vmatprep.subr.mxu0 0.0
    %1868 = vmatpush1.msra.mxu0 0.0
    %1869 = vmatprep.subr.mxu0 0.0
    %1870 = vmatpush1.msra.mxu0 0.0
    %1871 = vmatprep.subr.mxu0 0.0
    %1872 = vmatpush1.msra.mxu0 0.0
    %1873 = vmatprep.subr.mxu0 0.0
    %1874 = vmatpush1.msra.mxu0 0.0
    %1875 = vmatprep.subr.mxu0 0.0
    %1876 = vmatpush1.msra.mxu0 0.0
    %1877 = vmatprep.subr.mxu0 0.0
    %1878 = vmatpush1.msra.mxu0 0.0
    %1879 = vmatprep.subr.mxu0 0.0
    %1880 = vmatpush1.msra.mxu0 0.0
    %1881 = vmatprep.subr.mxu0 0.0
    %1882 = vmatpush1.msra.mxu0 0.0
    %1883 = vmatprep.mubr.f32.mxu0 0.0
    %1884 = vmatmul.mubr.f32.gmra.mrb[0].mxu0 %v1805
    %v1885 = vpop.f32.mrb[0].mxu0
    %v1886 = vadd.f32 0.0, %v1885
    %v1887 = vpop.f32.mrb[0].mxu0
    %v1888 = vadd.f32 0.0, %v1887
    %1889 = vdwg.mxu0
    %1890 = vmatprep.subr.mxu0 %v1813
    %1891 = vmatpush1.msra.mxu0 %v1811
    %1892 = vmatprep.subr.mxu0 0.0
    %1893 = vmatpush1.msra.mxu0 0.0
    %1894 = vmatprep.subr.mxu0 0.0
    %1895 = vmatpush1.msra.mxu0 0.0
    %1896 = vmatprep.subr.mxu0 0.0
    %1897 = vmatpush1.msra.mxu0 0.0
    %1898 = vmatprep.subr.mxu0 0.0
    %1899 = vmatpush1.msra.mxu0 0.0
    %1900 = vmatprep.subr.mxu0 0.0
    %1901 = vmatpush1.msra.mxu0 0.0
    %1902 = vmatprep.subr.mxu0 0.0
    %1903 = vmatpush1.msra.mxu0 0.0
    %1904 = vmatprep.subr.mxu0 0.0
    %1905 = vmatpush1.msra.mxu0 0.0
    %1906 = vmatprep.subr.mxu0 0.0
    %1907 = vmatpush1.msra.mxu0 0.0
    %1908 = vmatprep.subr.mxu0 0.0
    %1909 = vmatpush1.msra.mxu0 0.0
    %1910 = vmatprep.subr.mxu0 0.0
    %1911 = vmatpush1.msra.mxu0 0.0
    %1912 = vmatprep.subr.mxu0 0.0
    %1913 = vmatpush1.msra.mxu0 0.0
    %1914 = vmatprep.subr.mxu0 0.0
    %1915 = vmatpush1.msra.mxu0 0.0
    %1916 = vmatprep.subr.mxu0 0.0
    %1917 = vmatpush1.msra.mxu0 0.0
    %1918 = vmatprep.subr.mxu0 0.0
    %1919 = vmatpush1.msra.mxu0 0.0
    %1920 = vmatprep.subr.mxu0 0.0
    %1921 = vmatpush1.msra.mxu0 0.0
    %1922 = vmatprep.subr.mxu0 0.0
    %1923 = vmatpush1.msra.mxu0 0.0
    %1924 = vmatprep.subr.mxu0 0.0
    %1925 = vmatpush1.msra.mxu0 0.0
    %1926 = vmatprep.subr.mxu0 0.0
    %1927 = vmatpush1.msra.mxu0 0.0
    %1928 = vmatprep.subr.mxu0 0.0
    %1929 = vmatpush1.msra.mxu0 0.0
    %1930 = vmatprep.subr.mxu0 0.0
    %1931 = vmatpush1.msra.mxu0 0.0
    %1932 = vmatprep.subr.mxu0 0.0
    %1933 = vmatpush1.msra.mxu0 0.0
    %1934 = vmatprep.subr.mxu0 0.0
    %1935 = vmatpush1.msra.mxu0 0.0
    %1936 = vmatprep.subr.mxu0 0.0
    %1937 = vmatpush1.msra.mxu0 0.0
    %1938 = vmatprep.subr.mxu0 0.0
    %1939 = vmatpush1.msra.mxu0 0.0
    %1940 = vmatprep.subr.mxu0 0.0
    %1941 = vmatpush1.msra.mxu0 0.0
    %1942 = vmatprep.subr.mxu0 0.0
    %1943 = vmatpush1.msra.mxu0 0.0
    %1944 = vmatprep.subr.mxu0 0.0
    %1945 = vmatpush1.msra.mxu0 0.0
    %1946 = vmatprep.subr.mxu0 0.0
    %1947 = vmatpush1.msra.mxu0 0.0
    %1948 = vmatprep.subr.mxu0 0.0
    %1949 = vmatpush1.msra.mxu0 0.0
    %1950 = vmatprep.subr.mxu0 0.0
    %1951 = vmatpush1.msra.mxu0 0.0
    %1952 = vmatprep.subr.mxu0 0.0
    %1953 = vmatpush1.msra.mxu0 0.0
    %1954 = vmatprep.mubr.f32.mxu0 0.0
    %1955 = vmatmul.mubr.f32.gmra.mrb[0].mxu0 %v1805
    %v1956 = vpop.f32.mrb[0].mxu0
    %v1957 = vadd.f32 0.0, %v1956
    %v1958 = vpop.f32.mrb[0].mxu0
    %v1959 = vadd.f32 0.0, %v1958
    %1960 = vdwg.mxu0
    %1961 = vmatprep.subr.mxu0 %v1817
    %1962 = vmatpush1.msra.mxu0 %v1815
    %1963 = vmatprep.subr.mxu0 0.0
    %1964 = vmatpush1.msra.mxu0 0.0
    %1965 = vmatprep.subr.mxu0 0.0
    %1966 = vmatpush1.msra.mxu0 0.0
    %1967 = vmatprep.subr.mxu0 0.0
    %1968 = vmatpush1.msra.mxu0 0.0
    %1969 = vmatprep.subr.mxu0 0.0
    %1970 = vmatpush1.msra.mxu0 0.0
    %1971 = vmatprep.subr.mxu0 0.0
    %1972 = vmatpush1.msra.mxu0 0.0
    %1973 = vmatprep.subr.mxu0 0.0
    %1974 = vmatpush1.msra.mxu0 0.0
    %1975 = vmatprep.subr.mxu0 0.0
    %1976 = vmatpush1.msra.mxu0 0.0
    %1977 = vmatprep.subr.mxu0 0.0
    %1978 = vmatpush1.msra.mxu0 0.0
    %1979 = vmatprep.subr.mxu0 0.0
    %1980 = vmatpush1.msra.mxu0 0.0
    %1981 = vmatprep.subr.mxu0 0.0
    %1982 = vmatpush1.msra.mxu0 0.0
    %1983 = vmatprep.subr.mxu0 0.0
    %1984 = vmatpush1.msra.mxu0 0.0
    %1985 = vmatprep.subr.mxu0 0.0
    %1986 = vmatpush1.msra.mxu0 0.0
    %1987 = vmatprep.subr.mxu0 0.0
    %1988 = vmatpush1.msra.mxu0 0.0
    %1989 = vmatprep.subr.mxu0 0.0
    %1990 = vmatpush1.msra.mxu0 0.0
    %1991 = vmatprep.subr.mxu0 0.0
    %1992 = vmatpush1.msra.mxu0 0.0
    %1993 = vmatprep.subr.mxu0 0.0
    %1994 = vmatpush1.msra.mxu0 0.0
    %1995 = vmatprep.subr.mxu0 0.0
    %1996 = vmatpush1.msra.mxu0 0.0
    %1997 = vmatprep.subr.mxu0 0.0
    %1998 = vmatpush1.msra.mxu0 0.0
    %1999 = vmatprep.subr.mxu0 0.0
    %2000 = vmatpush1.msra.mxu0 0.0
    %2001 = vmatprep.subr.mxu0 0.0
    %2002 = vmatpush1.msra.mxu0 0.0
    %2003 = vmatprep.subr.mxu0 0.0
    %2004 = vmatpush1.msra.mxu0 0.0
    %2005 = vmatprep.subr.mxu0 0.0
    %2006 = vmatpush1.msra.mxu0 0.0
    %2007 = vmatprep.subr.mxu0 0.0
    %2008 = vmatpush1.msra.mxu0 0.0
    %2009 = vmatprep.subr.mxu0 0.0
    %2010 = vmatpush1.msra.mxu0 0.0
    %2011 = vmatprep.subr.mxu0 0.0
    %2012 = vmatpush1.msra.mxu0 0.0
    %2013 = vmatprep.subr.mxu0 0.0
    %2014 = vmatpush1.msra.mxu0 0.0
    %2015 = vmatprep.subr.mxu0 0.0
    %2016 = vmatpush1.msra.mxu0 0.0
    %2017 = vmatprep.subr.mxu0 0.0
    %2018 = vmatpush1.msra.mxu0 0.0
    %2019 = vmatprep.subr.mxu0 0.0
    %2020 = vmatpush1.msra.mxu0 0.0
    %2021 = vmatprep.subr.mxu0 0.0
    %2022 = vmatpush1.msra.mxu0 0.0
    %2023 = vmatprep.subr.mxu0 0.0
    %2024 = vmatpush1.msra.mxu0 0.0
    %2025 = vmatprep.mubr.f32.mxu0 0.0
    %2026 = vmatmul.mubr.f32.gmra.mrb[0].mxu0 %v1805
    %v2027 = vpop.f32.mrb[0].mxu0
    %v2028 = vadd.f32 0.0, %v2027
    %v2029 = vpop.f32.mrb[0].mxu0
    %v2030 = vadd.f32 0.0, %v2029
    %2031 = vdwg.mxu0
    %v2032 = vadd.f32 %v1787, %v1886
    %v2033 = vadd.f32 %v1788, %v1888
    %v2034 = vadd.f32 %v1789, %v1957
    %v2035 = vadd.f32 %v1790, %v1959
    %v2036 = vadd.f32 %v1791, %v2028
    %v2037 = vadd.f32 %v1792, %v2030
    %v2038 = vld [vmem:[#allocation2 + $0x4] sm:$0xff]
    %v2039 = vld [vmem:[#allocation2 + $0xc] sm:$0xff]
    %v2040 = vld [vmem:[#allocation2 + $0x14] sm:$0xff]
    %s2041 = scalar_lea.vmem %s3, 20
    %v2042 = vld [vmem:[%s2041] sm:$0xf]
    %v2046 = vcombine.high %v2038, %v2038
    %v2047 = vcombine.high %v2039, %v2039
    %v2048 = vcombine.high %v2040, %v2040
    %2049 = vrot.lane.b32.xlu0 %v2038, 127
    %v2050 = vpop.permute.xlu0 %2049
    %2051 = vrot.lane.b32.xlu0 %v2046, 127
    %v2052 = vpop.permute.xlu0 %2051
    %2053 = vrot.lane.b32.xlu0 %v2039, 127
    %v2054 = vpop.permute.xlu0 %2053
    %2055 = vrot.lane.b32.xlu0 %v2047, 127
    %v2056 = vpop.permute.xlu0 %2055
    %2057 = vrot.lane.b32.xlu0 %v2040, 127
    %v2058 = vpop.permute.xlu0 %2057
    %2059 = vrot.lane.b32.xlu0 %v2048, 127
    %v2060 = vpop.permute.xlu0 %2059
    %v2061 = vsel %vm208, %v2050, %v2052
    %v2062 = vsel %vm208, %v2052, %v2054
    %v2063 = vsel %vm208, %v2054, %v2056
    %v2064 = vsel %vm208, %v2056, %v2058
    %v2065 = vsel %vm208, %v2058, %v2060
    %v2067 = vsel %vm788, %v2042, 0
    %v2069 = vsel %vm116, %v2061, 0
    %v2071 = vsel %vm116, %v2062, 0
    %v2073 = vsel %vm116, %v2063, 0
    %v2075 = vsel %vm116, %v2064, 0
    %v2077 = vsel %vm116, %v2065, 0
    %v2079 = vsel %vm116, %v2060, 0
    %2081 = vmatprep.subr.mxu0 %v2071
    %2082 = vmatpush1.msra.mxu0 %v2069
    %2083 = vmatprep.subr.mxu0 0.0
    %2084 = vmatpush1.msra.mxu0 0.0
    %2085 = vmatprep.subr.mxu0 0.0
    %2086 = vmatpush1.msra.mxu0 0.0
    %2087 = vmatprep.subr.mxu0 0.0
    %2088 = vmatpush1.msra.mxu0 0.0
    %2089 = vmatprep.subr.mxu0 0.0
    %2090 = vmatpush1.msra.mxu0 0.0
    %2091 = vmatprep.subr.mxu0 0.0
    %2092 = vmatpush1.msra.mxu0 0.0
    %2093 = vmatprep.subr.mxu0 0.0
    %2094 = vmatpush1.msra.mxu0 0.0
    %2095 = vmatprep.subr.mxu0 0.0
    %2096 = vmatpush1.msra.mxu0 0.0
    %2097 = vmatprep.subr.mxu0 0.0
    %2098 = vmatpush1.msra.mxu0 0.0
    %2099 = vmatprep.subr.mxu0 0.0
    %2100 = vmatpush1.msra.mxu0 0.0
    %2101 = vmatprep.subr.mxu0 0.0
    %2102 = vmatpush1.msra.mxu0 0.0
    %2103 = vmatprep.subr.mxu0 0.0
    %2104 = vmatpush1.msra.mxu0 0.0
    %2105 = vmatprep.subr.mxu0 0.0
    %2106 = vmatpush1.msra.mxu0 0.0
    %2107 = vmatprep.subr.mxu0 0.0
    %2108 = vmatpush1.msra.mxu0 0.0
    %2109 = vmatprep.subr.mxu0 0.0
    %2110 = vmatpush1.msra.mxu0 0.0
    %2111 = vmatprep.subr.mxu0 0.0
    %2112 = vmatpush1.msra.mxu0 0.0
    %2113 = vmatprep.subr.mxu0 0.0
    %2114 = vmatpush1.msra.mxu0 0.0
    %2115 = vmatprep.subr.mxu0 0.0
    %2116 = vmatpush1.msra.mxu0 0.0
    %2117 = vmatprep.subr.mxu0 0.0
    %2118 = vmatpush1.msra.mxu0 0.0
    %2119 = vmatprep.subr.mxu0 0.0
    %2120 = vmatpush1.msra.mxu0 0.0
    %2121 = vmatprep.subr.mxu0 0.0
    %2122 = vmatpush1.msra.mxu0 0.0
    %2123 = vmatprep.subr.mxu0 0.0
    %2124 = vmatpush1.msra.mxu0 0.0
    %2125 = vmatprep.subr.mxu0 0.0
    %2126 = vmatpush1.msra.mxu0 0.0
    %2127 = vmatprep.subr.mxu0 0.0
    %2128 = vmatpush1.msra.mxu0 0.0
    %2129 = vmatprep.subr.mxu0 0.0
    %2130 = vmatpush1.msra.mxu0 0.0
    %2131 = vmatprep.subr.mxu0 0.0
    %2132 = vmatpush1.msra.mxu0 0.0
    %2133 = vmatprep.subr.mxu0 0.0
    %2134 = vmatpush1.msra.mxu0 0.0
    %2135 = vmatprep.subr.mxu0 0.0
    %2136 = vmatpush1.msra.mxu0 0.0
    %2137 = vmatprep.subr.mxu0 0.0
    %2138 = vmatpush1.msra.mxu0 0.0
    %2139 = vmatprep.subr.mxu0 0.0
    %2140 = vmatpush1.msra.mxu0 0.0
    %2141 = vmatprep.subr.mxu0 0.0
    %2142 = vmatpush1.msra.mxu0 0.0
    %2143 = vmatprep.subr.mxu0 0.0
    %2144 = vmatpush1.msra.mxu0 0.0
    %2145 = vmatprep.mubr.f32.mxu0 0.0
    %2146 = vmatmul.mubr.f32.gmra.mrb[0].mxu0 %v2067
    %v2147 = vpop.f32.mrb[0].mxu0
    %v2148 = vadd.f32 0.0, %v2147
    %v2149 = vpop.f32.mrb[0].mxu0
    %v2150 = vadd.f32 0.0, %v2149
    %2151 = vdwg.mxu0
    %2152 = vmatprep.subr.mxu0 %v2075
    %2153 = vmatpush1.msra.mxu0 %v2073
    %2154 = vmatprep.subr.mxu0 0.0
    %2155 = vmatpush1.msra.mxu0 0.0
    %2156 = vmatprep.subr.mxu0 0.0
    %2157 = vmatpush1.msra.mxu0 0.0
    %2158 = vmatprep.subr.mxu0 0.0
    %2159 = vmatpush1.msra.mxu0 0.0
    %2160 = vmatprep.subr.mxu0 0.0
    %2161 = vmatpush1.msra.mxu0 0.0
    %2162 = vmatprep.subr.mxu0 0.0
    %2163 = vmatpush1.msra.mxu0 0.0
    %2164 = vmatprep.subr.mxu0 0.0
    %2165 = vmatpush1.msra.mxu0 0.0
    %2166 = vmatprep.subr.mxu0 0.0
    %2167 = vmatpush1.msra.mxu0 0.0
    %2168 = vmatprep.subr.mxu0 0.0
    %2169 = vmatpush1.msra.mxu0 0.0
    %2170 = vmatprep.subr.mxu0 0.0
    %2171 = vmatpush1.msra.mxu0 0.0
    %2172 = vmatprep.subr.mxu0 0.0
    %2173 = vmatpush1.msra.mxu0 0.0
    %2174 = vmatprep.subr.mxu0 0.0
    %2175 = vmatpush1.msra.mxu0 0.0
    %2176 = vmatprep.subr.mxu0 0.0
    %2177 = vmatpush1.msra.mxu0 0.0
    %2178 = vmatprep.subr.mxu0 0.0
    %2179 = vmatpush1.msra.mxu0 0.0
    %2180 = vmatprep.subr.mxu0 0.0
    %2181 = vmatpush1.msra.mxu0 0.0
    %2182 = vmatprep.subr.mxu0 0.0
    %2183 = vmatpush1.msra.mxu0 0.0
    %2184 = vmatprep.subr.mxu0 0.0
    %2185 = vmatpush1.msra.mxu0 0.0
    %2186 = vmatprep.subr.mxu0 0.0
    %2187 = vmatpush1.msra.mxu0 0.0
    %2188 = vmatprep.subr.mxu0 0.0
    %2189 = vmatpush1.msra.mxu0 0.0
    %2190 = vmatprep.subr.mxu0 0.0
    %2191 = vmatpush1.msra.mxu0 0.0
    %2192 = vmatprep.subr.mxu0 0.0
    %2193 = vmatpush1.msra.mxu0 0.0
    %2194 = vmatprep.subr.mxu0 0.0
    %2195 = vmatpush1.msra.mxu0 0.0
    %2196 = vmatprep.subr.mxu0 0.0
    %2197 = vmatpush1.msra.mxu0 0.0
    %2198 = vmatprep.subr.mxu0 0.0
    %2199 = vmatpush1.msra.mxu0 0.0
    %2200 = vmatprep.subr.mxu0 0.0
    %2201 = vmatpush1.msra.mxu0 0.0
    %2202 = vmatprep.subr.mxu0 0.0
    %2203 = vmatpush1.msra.mxu0 0.0
    %2204 = vmatprep.subr.mxu0 0.0
    %2205 = vmatpush1.msra.mxu0 0.0
    %2206 = vmatprep.subr.mxu0 0.0
    %2207 = vmatpush1.msra.mxu0 0.0
    %2208 = vmatprep.subr.mxu0 0.0
    %2209 = vmatpush1.msra.mxu0 0.0
    %2210 = vmatprep.subr.mxu0 0.0
    %2211 = vmatpush1.msra.mxu0 0.0
    %2212 = vmatprep.subr.mxu0 0.0
    %2213 = vmatpush1.msra.mxu0 0.0
    %2214 = vmatprep.subr.mxu0 0.0
    %2215 = vmatpush1.msra.mxu0 0.0
    %2216 = vmatprep.mubr.f32.mxu0 0.0
    %2217 = vmatmul.mubr.f32.gmra.mrb[0].mxu0 %v2067
    %v2218 = vpop.f32.mrb[0].mxu0
    %v2219 = vadd.f32 0.0, %v2218
    %v2220 = vpop.f32.mrb[0].mxu0
    %v2221 = vadd.f32 0.0, %v2220
    %2222 = vdwg.mxu0
    %2223 = vmatprep.subr.mxu0 %v2079
    %2224 = vmatpush1.msra.mxu0 %v2077
    %2225 = vmatprep.subr.mxu0 0.0
    %2226 = vmatpush1.msra.mxu0 0.0
    %2227 = vmatprep.subr.mxu0 0.0
    %2228 = vmatpush1.msra.mxu0 0.0
    %2229 = vmatprep.subr.mxu0 0.0
    %2230 = vmatpush1.msra.mxu0 0.0
    %2231 = vmatprep.subr.mxu0 0.0
    %2232 = vmatpush1.msra.mxu0 0.0
    %2233 = vmatprep.subr.mxu0 0.0
    %2234 = vmatpush1.msra.mxu0 0.0
    %2235 = vmatprep.subr.mxu0 0.0
    %2236 = vmatpush1.msra.mxu0 0.0
    %2237 = vmatprep.subr.mxu0 0.0
    %2238 = vmatpush1.msra.mxu0 0.0
    %2239 = vmatprep.subr.mxu0 0.0
    %2240 = vmatpush1.msra.mxu0 0.0
    %2241 = vmatprep.subr.mxu0 0.0
    %2242 = vmatpush1.msra.mxu0 0.0
    %2243 = vmatprep.subr.mxu0 0.0
    %2244 = vmatpush1.msra.mxu0 0.0
    %2245 = vmatprep.subr.mxu0 0.0
    %2246 = vmatpush1.msra.mxu0 0.0
    %2247 = vmatprep.subr.mxu0 0.0
    %2248 = vmatpush1.msra.mxu0 0.0
    %2249 = vmatprep.subr.mxu0 0.0
    %2250 = vmatpush1.msra.mxu0 0.0
    %2251 = vmatprep.subr.mxu0 0.0
    %2252 = vmatpush1.msra.mxu0 0.0
    %2253 = vmatprep.subr.mxu0 0.0
    %2254 = vmatpush1.msra.mxu0 0.0
    %2255 = vmatprep.subr.mxu0 0.0
    %2256 = vmatpush1.msra.mxu0 0.0
    %2257 = vmatprep.subr.mxu0 0.0
    %2258 = vmatpush1.msra.mxu0 0.0
    %2259 = vmatprep.subr.mxu0 0.0
    %2260 = vmatpush1.msra.mxu0 0.0
    %2261 = vmatprep.subr.mxu0 0.0
    %2262 = vmatpush1.msra.mxu0 0.0
    %2263 = vmatprep.subr.mxu0 0.0
    %2264 = vmatpush1.msra.mxu0 0.0
    %2265 = vmatprep.subr.mxu0 0.0
    %2266 = vmatpush1.msra.mxu0 0.0
    %2267 = vmatprep.subr.mxu0 0.0
    %2268 = vmatpush1.msra.mxu0 0.0
    %2269 = vmatprep.subr.mxu0 0.0
    %2270 = vmatpush1.msra.mxu0 0.0
    %2271 = vmatprep.subr.mxu0 0.0
    %2272 = vmatpush1.msra.mxu0 0.0
    %2273 = vmatprep.subr.mxu0 0.0
    %2274 = vmatpush1.msra.mxu0 0.0
    %2275 = vmatprep.subr.mxu0 0.0
    %2276 = vmatpush1.msra.mxu0 0.0
    %2277 = vmatprep.subr.mxu0 0.0
    %2278 = vmatpush1.msra.mxu0 0.0
    %2279 = vmatprep.subr.mxu0 0.0
    %2280 = vmatpush1.msra.mxu0 0.0
    %2281 = vmatprep.subr.mxu0 0.0
    %2282 = vmatpush1.msra.mxu0 0.0
    %2283 = vmatprep.subr.mxu0 0.0
    %2284 = vmatpush1.msra.mxu0 0.0
    %2285 = vmatprep.subr.mxu0 0.0
    %2286 = vmatpush1.msra.mxu0 0.0
    %2287 = vmatprep.mubr.f32.mxu0 0.0
    %2288 = vmatmul.mubr.f32.gmra.mrb[0].mxu0 %v2067
    %v2289 = vpop.f32.mrb[0].mxu0
    %v2290 = vadd.f32 0.0, %v2289
    %v2291 = vpop.f32.mrb[0].mxu0
    %v2292 = vadd.f32 0.0, %v2291
    %2293 = vdwg.mxu0
    %v2294 = vadd.f32 %v2032, %v2148
    %v2295 = vadd.f32 %v2033, %v2150
    %v2296 = vadd.f32 %v2034, %v2219
    %v2297 = vadd.f32 %v2035, %v2221
    %v2298 = vadd.f32 %v2036, %v2290
    %v2299 = vadd.f32 %v2037, %v2292
    %v2300 = vld [vmem:[#allocation2 + $0x4] sm:$0xff]
    %v2301 = vld [vmem:[#allocation2 + $0xc] sm:$0xff]
    %v2302 = vld [vmem:[#allocation2 + $0x14] sm:$0xff]
    %s2303 = scalar_lea.vmem %s3, 24
    %v2304 = vld [vmem:[%s2303] sm:$0xf]
    %v2308 = vcombine.high %v2300, %v2300
    %v2309 = vcombine.high %v2301, %v2301
    %v2310 = vcombine.high %v2302, %v2302
    %2311 = vrot.lane.b32.xlu0 %v2300, 111
    %v2312 = vpop.permute.xlu0 %2311
    %2313 = vrot.lane.b32.xlu0 %v2308, 111
    %v2314 = vpop.permute.xlu0 %2313
    %2315 = vrot.lane.b32.xlu0 %v2301, 111
    %v2316 = vpop.permute.xlu0 %2315
    %2317 = vrot.lane.b32.xlu0 %v2309, 111
    %v2318 = vpop.permute.xlu0 %2317
    %2319 = vrot.lane.b32.xlu0 %v2302, 111
    %v2320 = vpop.permute.xlu0 %2319
    %2321 = vrot.lane.b32.xlu0 %v2310, 111
    %v2322 = vpop.permute.xlu0 %2321
    %vm2323 = vcmask 908288
    %v2324 = vsel %vm2323, %v2312, %v2314
    %v2325 = vsel %vm2323, %v2314, %v2316
    %v2326 = vsel %vm2323, %v2316, %v2318
    %v2327 = vsel %vm2323, %v2318, %v2320
    %v2328 = vsel %vm2323, %v2320, %v2322
    %v2330 = vsel %vm788, %v2304, 0
    %v2332 = vsel %vm116, %v2324, 0
    %v2334 = vsel %vm116, %v2325, 0
    %v2336 = vsel %vm116, %v2326, 0
    %v2338 = vsel %vm116, %v2327, 0
    %v2340 = vsel %vm116, %v2328, 0
    %v2342 = vsel %vm116, %v2322, 0
    %2344 = vmatprep.subr.mxu0 %v2334
    %2345 = vmatpush1.msra.mxu0 %v2332
    %2346 = vmatprep.subr.mxu0 0.0
    %2347 = vmatpush1.msra.mxu0 0.0
    %2348 = vmatprep.subr.mxu0 0.0
    %2349 = vmatpush1.msra.mxu0 0.0
    %2350 = vmatprep.subr.mxu0 0.0
    %2351 = vmatpush1.msra.mxu0 0.0
    %2352 = vmatprep.subr.mxu0 0.0
    %2353 = vmatpush1.msra.mxu0 0.0
    %2354 = vmatprep.subr.mxu0 0.0
    %2355 = vmatpush1.msra.mxu0 0.0
    %2356 = vmatprep.subr.mxu0 0.0
    %2357 = vmatpush1.msra.mxu0 0.0
    %2358 = vmatprep.subr.mxu0 0.0
    %2359 = vmatpush1.msra.mxu0 0.0
    %2360 = vmatprep.subr.mxu0 0.0
    %2361 = vmatpush1.msra.mxu0 0.0
    %2362 = vmatprep.subr.mxu0 0.0
    %2363 = vmatpush1.msra.mxu0 0.0
    %2364 = vmatprep.subr.mxu0 0.0
    %2365 = vmatpush1.msra.mxu0 0.0
    %2366 = vmatprep.subr.mxu0 0.0
    %2367 = vmatpush1.msra.mxu0 0.0
    %2368 = vmatprep.subr.mxu0 0.0
    %2369 = vmatpush1.msra.mxu0 0.0
    %2370 = vmatprep.subr.mxu0 0.0
    %2371 = vmatpush1.msra.mxu0 0.0
    %2372 = vmatprep.subr.mxu0 0.0
    %2373 = vmatpush1.msra.mxu0 0.0
    %2374 = vmatprep.subr.mxu0 0.0
    %2375 = vmatpush1.msra.mxu0 0.0
    %2376 = vmatprep.subr.mxu0 0.0
    %2377 = vmatpush1.msra.mxu0 0.0
    %2378 = vmatprep.subr.mxu0 0.0
    %2379 = vmatpush1.msra.mxu0 0.0
    %2380 = vmatprep.subr.mxu0 0.0
    %2381 = vmatpush1.msra.mxu0 0.0
    %2382 = vmatprep.subr.mxu0 0.0
    %2383 = vmatpush1.msra.mxu0 0.0
    %2384 = vmatprep.subr.mxu0 0.0
    %2385 = vmatpush1.msra.mxu0 0.0
    %2386 = vmatprep.subr.mxu0 0.0
    %2387 = vmatpush1.msra.mxu0 0.0
    %2388 = vmatprep.subr.mxu0 0.0
    %2389 = vmatpush1.msra.mxu0 0.0
    %2390 = vmatprep.subr.mxu0 0.0
    %2391 = vmatpush1.msra.mxu0 0.0
    %2392 = vmatprep.subr.mxu0 0.0
    %2393 = vmatpush1.msra.mxu0 0.0
    %2394 = vmatprep.subr.mxu0 0.0
    %2395 = vmatpush1.msra.mxu0 0.0
    %2396 = vmatprep.subr.mxu0 0.0
    %2397 = vmatpush1.msra.mxu0 0.0
    %2398 = vmatprep.subr.mxu0 0.0
    %2399 = vmatpush1.msra.mxu0 0.0
    %2400 = vmatprep.subr.mxu0 0.0
    %2401 = vmatpush1.msra.mxu0 0.0
    %2402 = vmatprep.subr.mxu0 0.0
    %2403 = vmatpush1.msra.mxu0 0.0
    %2404 = vmatprep.subr.mxu0 0.0
    %2405 = vmatpush1.msra.mxu0 0.0
    %2406 = vmatprep.subr.mxu0 0.0
    %2407 = vmatpush1.msra.mxu0 0.0
    %2408 = vmatprep.mubr.f32.mxu0 0.0
    %2409 = vmatmul.mubr.f32.gmra.mrb[0].mxu0 %v2330
    %v2410 = vpop.f32.mrb[0].mxu0
    %v2411 = vadd.f32 0.0, %v2410
    %v2412 = vpop.f32.mrb[0].mxu0
    %v2413 = vadd.f32 0.0, %v2412
    %2414 = vdwg.mxu0
    %2415 = vmatprep.subr.mxu0 %v2338
    %2416 = vmatpush1.msra.mxu0 %v2336
    %2417 = vmatprep.subr.mxu0 0.0
    %2418 = vmatpush1.msra.mxu0 0.0
    %2419 = vmatprep.subr.mxu0 0.0
    %2420 = vmatpush1.msra.mxu0 0.0
    %2421 = vmatprep.subr.mxu0 0.0
    %2422 = vmatpush1.msra.mxu0 0.0
    %2423 = vmatprep.subr.mxu0 0.0
    %2424 = vmatpush1.msra.mxu0 0.0
    %2425 = vmatprep.subr.mxu0 0.0
    %2426 = vmatpush1.msra.mxu0 0.0
    %2427 = vmatprep.subr.mxu0 0.0
    %2428 = vmatpush1.msra.mxu0 0.0
    %2429 = vmatprep.subr.mxu0 0.0
    %2430 = vmatpush1.msra.mxu0 0.0
    %2431 = vmatprep.subr.mxu0 0.0
    %2432 = vmatpush1.msra.mxu0 0.0
    %2433 = vmatprep.subr.mxu0 0.0
    %2434 = vmatpush1.msra.mxu0 0.0
    %2435 = vmatprep.subr.mxu0 0.0
    %2436 = vmatpush1.msra.mxu0 0.0
    %2437 = vmatprep.subr.mxu0 0.0
    %2438 = vmatpush1.msra.mxu0 0.0
    %2439 = vmatprep.subr.mxu0 0.0
    %2440 = vmatpush1.msra.mxu0 0.0
    %2441 = vmatprep.subr.mxu0 0.0
    %2442 = vmatpush1.msra.mxu0 0.0
    %2443 = vmatprep.subr.mxu0 0.0
    %2444 = vmatpush1.msra.mxu0 0.0
    %2445 = vmatprep.subr.mxu0 0.0
    %2446 = vmatpush1.msra.mxu0 0.0
    %2447 = vmatprep.subr.mxu0 0.0
    %2448 = vmatpush1.msra.mxu0 0.0
    %2449 = vmatprep.subr.mxu0 0.0
    %2450 = vmatpush1.msra.mxu0 0.0
    %2451 = vmatprep.subr.mxu0 0.0
    %2452 = vmatpush1.msra.mxu0 0.0
    %2453 = vmatprep.subr.mxu0 0.0
    %2454 = vmatpush1.msra.mxu0 0.0
    %2455 = vmatprep.subr.mxu0 0.0
    %2456 = vmatpush1.msra.mxu0 0.0
    %2457 = vmatprep.subr.mxu0 0.0
    %2458 = vmatpush1.msra.mxu0 0.0
    %2459 = vmatprep.subr.mxu0 0.0
    %2460 = vmatpush1.msra.mxu0 0.0
    %2461 = vmatprep.subr.mxu0 0.0
    %2462 = vmatpush1.msra.mxu0 0.0
    %2463 = vmatprep.subr.mxu0 0.0
    %2464 = vmatpush1.msra.mxu0 0.0
    %2465 = vmatprep.subr.mxu0 0.0
    %2466 = vmatpush1.msra.mxu0 0.0
    %2467 = vmatprep.subr.mxu0 0.0
    %2468 = vmatpush1.msra.mxu0 0.0
    %2469 = vmatprep.subr.mxu0 0.0
    %2470 = vmatpush1.msra.mxu0 0.0
    %2471 = vmatprep.subr.mxu0 0.0
    %2472 = vmatpush1.msra.mxu0 0.0
    %2473 = vmatprep.subr.mxu0 0.0
    %2474 = vmatpush1.msra.mxu0 0.0
    %2475 = vmatprep.subr.mxu0 0.0
    %2476 = vmatpush1.msra.mxu0 0.0
    %2477 = vmatprep.subr.mxu0 0.0
    %2478 = vmatpush1.msra.mxu0 0.0
    %2479 = vmatprep.mubr.f32.mxu0 0.0
    %2480 = vmatmul.mubr.f32.gmra.mrb[0].mxu0 %v2330
    %v2481 = vpop.f32.mrb[0].mxu0
    %v2482 = vadd.f32 0.0, %v2481
    %v2483 = vpop.f32.mrb[0].mxu0
    %v2484 = vadd.f32 0.0, %v2483
    %2485 = vdwg.mxu0
    %2486 = vmatprep.subr.mxu0 %v2342
    %2487 = vmatpush1.msra.mxu0 %v2340
    %2488 = vmatprep.subr.mxu0 0.0
    %2489 = vmatpush1.msra.mxu0 0.0
    %2490 = vmatprep.subr.mxu0 0.0
    %2491 = vmatpush1.msra.mxu0 0.0
    %2492 = vmatprep.subr.mxu0 0.0
    %2493 = vmatpush1.msra.mxu0 0.0
    %2494 = vmatprep.subr.mxu0 0.0
    %2495 = vmatpush1.msra.mxu0 0.0
    %2496 = vmatprep.subr.mxu0 0.0
    %2497 = vmatpush1.msra.mxu0 0.0
    %2498 = vmatprep.subr.mxu0 0.0
    %2499 = vmatpush1.msra.mxu0 0.0
    %2500 = vmatprep.subr.mxu0 0.0
    %2501 = vmatpush1.msra.mxu0 0.0
    %2502 = vmatprep.subr.mxu0 0.0
    %2503 = vmatpush1.msra.mxu0 0.0
    %2504 = vmatprep.subr.mxu0 0.0
    %2505 = vmatpush1.msra.mxu0 0.0
    %2506 = vmatprep.subr.mxu0 0.0
    %2507 = vmatpush1.msra.mxu0 0.0
    %2508 = vmatprep.subr.mxu0 0.0
    %2509 = vmatpush1.msra.mxu0 0.0
    %2510 = vmatprep.subr.mxu0 0.0
    %2511 = vmatpush1.msra.mxu0 0.0
    %2512 = vmatprep.subr.mxu0 0.0
    %2513 = vmatpush1.msra.mxu0 0.0
    %2514 = vmatprep.subr.mxu0 0.0
    %2515 = vmatpush1.msra.mxu0 0.0
    %2516 = vmatprep.subr.mxu0 0.0
    %2517 = vmatpush1.msra.mxu0 0.0
    %2518 = vmatprep.subr.mxu0 0.0
    %2519 = vmatpush1.msra.mxu0 0.0
    %2520 = vmatprep.subr.mxu0 0.0
    %2521 = vmatpush1.msra.mxu0 0.0
    %2522 = vmatprep.subr.mxu0 0.0
    %2523 = vmatpush1.msra.mxu0 0.0
    %2524 = vmatprep.subr.mxu0 0.0
    %2525 = vmatpush1.msra.mxu0 0.0
    %2526 = vmatprep.subr.mxu0 0.0
    %2527 = vmatpush1.msra.mxu0 0.0
    %2528 = vmatprep.subr.mxu0 0.0
    %2529 = vmatpush1.msra.mxu0 0.0
    %2530 = vmatprep.subr.mxu0 0.0
    %2531 = vmatpush1.msra.mxu0 0.0
    %2532 = vmatprep.subr.mxu0 0.0
    %2533 = vmatpush1.msra.mxu0 0.0
    %2534 = vmatprep.subr.mxu0 0.0
    %2535 = vmatpush1.msra.mxu0 0.0
    %2536 = vmatprep.subr.mxu0 0.0
    %2537 = vmatpush1.msra.mxu0 0.0
    %2538 = vmatprep.subr.mxu0 0.0
    %2539 = vmatpush1.msra.mxu0 0.0
    %2540 = vmatprep.subr.mxu0 0.0
    %2541 = vmatpush1.msra.mxu0 0.0
    %2542 = vmatprep.subr.mxu0 0.0
    %2543 = vmatpush1.msra.mxu0 0.0
    %2544 = vmatprep.subr.mxu0 0.0
    %2545 = vmatpush1.msra.mxu0 0.0
    %2546 = vmatprep.subr.mxu0 0.0
    %2547 = vmatpush1.msra.mxu0 0.0
    %2548 = vmatprep.subr.mxu0 0.0
    %2549 = vmatpush1.msra.mxu0 0.0
    %2550 = vmatprep.mubr.f32.mxu0 0.0
    %2551 = vmatmul.mubr.f32.gmra.mrb[0].mxu0 %v2330
    %v2552 = vpop.f32.mrb[0].mxu0
    %v2553 = vadd.f32 0.0, %v2552
    %v2554 = vpop.f32.mrb[0].mxu0
    %v2555 = vadd.f32 0.0, %v2554
    %2556 = vdwg.mxu0
    %v2557 = vadd.f32 %v2294, %v2411
    %v2558 = vadd.f32 %v2295, %v2413
    %v2559 = vadd.f32 %v2296, %v2482
    %v2560 = vadd.f32 %v2297, %v2484
    %v2561 = vadd.f32 %v2298, %v2553
    %v2562 = vadd.f32 %v2299, %v2555
    %v2563 = vld [vmem:[#allocation2 + $0x4] sm:$0xff]
    %v2564 = vld [vmem:[#allocation2 + $0xc] sm:$0xff]
    %v2565 = vld [vmem:[#allocation2 + $0x14] sm:$0xff]
    %s2566 = scalar_lea.vmem %s3, 28
    %v2567 = vld [vmem:[%s2566] sm:$0xf]
    %v2571 = vcombine.high %v2563, %v2563
    %v2572 = vcombine.high %v2564, %v2564
    %v2573 = vcombine.high %v2565, %v2565
    %2574 = vrot.lane.b32.xlu0 %v2563, 110
    %v2575 = vpop.permute.xlu0 %2574
    %2576 = vrot.lane.b32.xlu0 %v2571, 110
    %v2577 = vpop.permute.xlu0 %2576
    %2578 = vrot.lane.b32.xlu0 %v2564, 110
    %v2579 = vpop.permute.xlu0 %2578
    %2580 = vrot.lane.b32.xlu0 %v2572, 110
    %v2581 = vpop.permute.xlu0 %2580
    %2582 = vrot.lane.b32.xlu0 %v2565, 110
    %v2583 = vpop.permute.xlu0 %2582
    %2584 = vrot.lane.b32.xlu0 %v2573, 110
    %v2585 = vpop.permute.xlu0 %2584
    %v2586 = vsel %vm347, %v2575, %v2577
    %v2587 = vsel %vm347, %v2577, %v2579
    %v2588 = vsel %vm347, %v2579, %v2581
    %v2589 = vsel %vm347, %v2581, %v2583
    %v2590 = vsel %vm347, %v2583, %v2585
    %v2592 = vsel %vm788, %v2567, 0
    %v2594 = vsel %vm116, %v2586, 0
    %v2596 = vsel %vm116, %v2587, 0
    %v2598 = vsel %vm116, %v2588, 0
    %v2600 = vsel %vm116, %v2589, 0
    %v2602 = vsel %vm116, %v2590, 0
    %v2604 = vsel %vm116, %v2585, 0
    %2606 = vmatprep.subr.mxu0 %v2596
    %2607 = vmatpush1.msra.mxu0 %v2594
    %2608 = vmatprep.subr.mxu0 0.0
    %2609 = vmatpush1.msra.mxu0 0.0
    %2610 = vmatprep.subr.mxu0 0.0
    %2611 = vmatpush1.msra.mxu0 0.0
    %2612 = vmatprep.subr.mxu0 0.0
    %2613 = vmatpush1.msra.mxu0 0.0
    %2614 = vmatprep.subr.mxu0 0.0
    %2615 = vmatpush1.msra.mxu0 0.0
    %2616 = vmatprep.subr.mxu0 0.0
    %2617 = vmatpush1.msra.mxu0 0.0
    %2618 = vmatprep.subr.mxu0 0.0
    %2619 = vmatpush1.msra.mxu0 0.0
    %2620 = vmatprep.subr.mxu0 0.0
    %2621 = vmatpush1.msra.mxu0 0.0
    %2622 = vmatprep.subr.mxu0 0.0
    %2623 = vmatpush1.msra.mxu0 0.0
    %2624 = vmatprep.subr.mxu0 0.0
    %2625 = vmatpush1.msra.mxu0 0.0
    %2626 = vmatprep.subr.mxu0 0.0
    %2627 = vmatpush1.msra.mxu0 0.0
    %2628 = vmatprep.subr.mxu0 0.0
    %2629 = vmatpush1.msra.mxu0 0.0
    %2630 = vmatprep.subr.mxu0 0.0
    %2631 = vmatpush1.msra.mxu0 0.0
    %2632 = vmatprep.subr.mxu0 0.0
    %2633 = vmatpush1.msra.mxu0 0.0
    %2634 = vmatprep.subr.mxu0 0.0
    %2635 = vmatpush1.msra.mxu0 0.0
    %2636 = vmatprep.subr.mxu0 0.0
    %2637 = vmatpush1.msra.mxu0 0.0
    %2638 = vmatprep.subr.mxu0 0.0
    %2639 = vmatpush1.msra.mxu0 0.0
    %2640 = vmatprep.subr.mxu0 0.0
    %2641 = vmatpush1.msra.mxu0 0.0
    %2642 = vmatprep.subr.mxu0 0.0
    %2643 = vmatpush1.msra.mxu0 0.0
    %2644 = vmatprep.subr.mxu0 0.0
    %2645 = vmatpush1.msra.mxu0 0.0
    %2646 = vmatprep.subr.mxu0 0.0
    %2647 = vmatpush1.msra.mxu0 0.0
    %2648 = vmatprep.subr.mxu0 0.0
    %2649 = vmatpush1.msra.mxu0 0.0
    %2650 = vmatprep.subr.mxu0 0.0
    %2651 = vmatpush1.msra.mxu0 0.0
    %2652 = vmatprep.subr.mxu0 0.0
    %2653 = vmatpush1.msra.mxu0 0.0
    %2654 = vmatprep.subr.mxu0 0.0
    %2655 = vmatpush1.msra.mxu0 0.0
    %2656 = vmatprep.subr.mxu0 0.0
    %2657 = vmatpush1.msra.mxu0 0.0
    %2658 = vmatprep.subr.mxu0 0.0
    %2659 = vmatpush1.msra.mxu0 0.0
    %2660 = vmatprep.subr.mxu0 0.0
    %2661 = vmatpush1.msra.mxu0 0.0
    %2662 = vmatprep.subr.mxu0 0.0
    %2663 = vmatpush1.msra.mxu0 0.0
    %2664 = vmatprep.subr.mxu0 0.0
    %2665 = vmatpush1.msra.mxu0 0.0
    %2666 = vmatprep.subr.mxu0 0.0
    %2667 = vmatpush1.msra.mxu0 0.0
    %2668 = vmatprep.subr.mxu0 0.0
    %2669 = vmatpush1.msra.mxu0 0.0
    %2670 = vmatprep.mubr.f32.mxu0 0.0
    %2671 = vmatmul.mubr.f32.gmra.mrb[0].mxu0 %v2592
    %v2672 = vpop.f32.mrb[0].mxu0
    %v2673 = vadd.f32 0.0, %v2672
    %v2674 = vpop.f32.mrb[0].mxu0
    %v2675 = vadd.f32 0.0, %v2674
    %2676 = vdwg.mxu0
    %2677 = vmatprep.subr.mxu0 %v2600
    %2678 = vmatpush1.msra.mxu0 %v2598
    %2679 = vmatprep.subr.mxu0 0.0
    %2680 = vmatpush1.msra.mxu0 0.0
    %2681 = vmatprep.subr.mxu0 0.0
    %2682 = vmatpush1.msra.mxu0 0.0
    %2683 = vmatprep.subr.mxu0 0.0
    %2684 = vmatpush1.msra.mxu0 0.0
    %2685 = vmatprep.subr.mxu0 0.0
    %2686 = vmatpush1.msra.mxu0 0.0
    %2687 = vmatprep.subr.mxu0 0.0
    %2688 = vmatpush1.msra.mxu0 0.0
    %2689 = vmatprep.subr.mxu0 0.0
    %2690 = vmatpush1.msra.mxu0 0.0
    %2691 = vmatprep.subr.mxu0 0.0
    %2692 = vmatpush1.msra.mxu0 0.0
    %2693 = vmatprep.subr.mxu0 0.0
    %2694 = vmatpush1.msra.mxu0 0.0
    %2695 = vmatprep.subr.mxu0 0.0
    %2696 = vmatpush1.msra.mxu0 0.0
    %2697 = vmatprep.subr.mxu0 0.0
    %2698 = vmatpush1.msra.mxu0 0.0
    %2699 = vmatprep.subr.mxu0 0.0
    %2700 = vmatpush1.msra.mxu0 0.0
    %2701 = vmatprep.subr.mxu0 0.0
    %2702 = vmatpush1.msra.mxu0 0.0
    %2703 = vmatprep.subr.mxu0 0.0
    %2704 = vmatpush1.msra.mxu0 0.0
    %2705 = vmatprep.subr.mxu0 0.0
    %2706 = vmatpush1.msra.mxu0 0.0
    %2707 = vmatprep.subr.mxu0 0.0
    %2708 = vmatpush1.msra.mxu0 0.0
    %2709 = vmatprep.subr.mxu0 0.0
    %2710 = vmatpush1.msra.mxu0 0.0
    %2711 = vmatprep.subr.mxu0 0.0
    %2712 = vmatpush1.msra.mxu0 0.0
    %2713 = vmatprep.subr.mxu0 0.0
    %2714 = vmatpush1.msra.mxu0 0.0
    %2715 = vmatprep.subr.mxu0 0.0
    %2716 = vmatpush1.msra.mxu0 0.0
    %2717 = vmatprep.subr.mxu0 0.0
    %2718 = vmatpush1.msra.mxu0 0.0
    %2719 = vmatprep.subr.mxu0 0.0
    %2720 = vmatpush1.msra.mxu0 0.0
    %2721 = vmatprep.subr.mxu0 0.0
    %2722 = vmatpush1.msra.mxu0 0.0
    %2723 = vmatprep.subr.mxu0 0.0
    %2724 = vmatpush1.msra.mxu0 0.0
    %2725 = vmatprep.subr.mxu0 0.0
    %2726 = vmatpush1.msra.mxu0 0.0
    %2727 = vmatprep.subr.mxu0 0.0
    %2728 = vmatpush1.msra.mxu0 0.0
    %2729 = vmatprep.subr.mxu0 0.0
    %2730 = vmatpush1.msra.mxu0 0.0
    %2731 = vmatprep.subr.mxu0 0.0
    %2732 = vmatpush1.msra.mxu0 0.0
    %2733 = vmatprep.subr.mxu0 0.0
    %2734 = vmatpush1.msra.mxu0 0.0
    %2735 = vmatprep.subr.mxu0 0.0
    %2736 = vmatpush1.msra.mxu0 0.0
    %2737 = vmatprep.subr.mxu0 0.0
    %2738 = vmatpush1.msra.mxu0 0.0
    %2739 = vmatprep.subr.mxu0 0.0
    %2740 = vmatpush1.msra.mxu0 0.0
    %2741 = vmatprep.mubr.f32.mxu0 0.0
    %2742 = vmatmul.mubr.f32.gmra.mrb[0].mxu0 %v2592
    %v2743 = vpop.f32.mrb[0].mxu0
    %v2744 = vadd.f32 0.0, %v2743
    %v2745 = vpop.f32.mrb[0].mxu0
    %v2746 = vadd.f32 0.0, %v2745
    %2747 = vdwg.mxu0
    %2748 = vmatprep.subr.mxu0 %v2604
    %2749 = vmatpush1.msra.mxu0 %v2602
    %2750 = vmatprep.subr.mxu0 0.0
    %2751 = vmatpush1.msra.mxu0 0.0
    %2752 = vmatprep.subr.mxu0 0.0
    %2753 = vmatpush1.msra.mxu0 0.0
    %2754 = vmatprep.subr.mxu0 0.0
    %2755 = vmatpush1.msra.mxu0 0.0
    %2756 = vmatprep.subr.mxu0 0.0
    %2757 = vmatpush1.msra.mxu0 0.0
    %2758 = vmatprep.subr.mxu0 0.0
    %2759 = vmatpush1.msra.mxu0 0.0
    %2760 = vmatprep.subr.mxu0 0.0
    %2761 = vmatpush1.msra.mxu0 0.0
    %2762 = vmatprep.subr.mxu0 0.0
    %2763 = vmatpush1.msra.mxu0 0.0
    %2764 = vmatprep.subr.mxu0 0.0
    %2765 = vmatpush1.msra.mxu0 0.0
    %2766 = vmatprep.subr.mxu0 0.0
    %2767 = vmatpush1.msra.mxu0 0.0
    %2768 = vmatprep.subr.mxu0 0.0
    %2769 = vmatpush1.msra.mxu0 0.0
    %2770 = vmatprep.subr.mxu0 0.0
    %2771 = vmatpush1.msra.mxu0 0.0
    %2772 = vmatprep.subr.mxu0 0.0
    %2773 = vmatpush1.msra.mxu0 0.0
    %2774 = vmatprep.subr.mxu0 0.0
    %2775 = vmatpush1.msra.mxu0 0.0
    %2776 = vmatprep.subr.mxu0 0.0
    %2777 = vmatpush1.msra.mxu0 0.0
    %2778 = vmatprep.subr.mxu0 0.0
    %2779 = vmatpush1.msra.mxu0 0.0
    %2780 = vmatprep.subr.mxu0 0.0
    %2781 = vmatpush1.msra.mxu0 0.0
    %2782 = vmatprep.subr.mxu0 0.0
    %2783 = vmatpush1.msra.mxu0 0.0
    %2784 = vmatprep.subr.mxu0 0.0
    %2785 = vmatpush1.msra.mxu0 0.0
    %2786 = vmatprep.subr.mxu0 0.0
    %2787 = vmatpush1.msra.mxu0 0.0
    %2788 = vmatprep.subr.mxu0 0.0
    %2789 = vmatpush1.msra.mxu0 0.0
    %2790 = vmatprep.subr.mxu0 0.0
    %2791 = vmatpush1.msra.mxu0 0.0
    %2792 = vmatprep.subr.mxu0 0.0
    %2793 = vmatpush1.msra.mxu0 0.0
    %2794 = vmatprep.subr.mxu0 0.0
    %2795 = vmatpush1.msra.mxu0 0.0
    %2796 = vmatprep.subr.mxu0 0.0
    %2797 = vmatpush1.msra.mxu0 0.0
    %2798 = vmatprep.subr.mxu0 0.0
    %2799 = vmatpush1.msra.mxu0 0.0
    %2800 = vmatprep.subr.mxu0 0.0
    %2801 = vmatpush1.msra.mxu0 0.0
    %2802 = vmatprep.subr.mxu0 0.0
    %2803 = vmatpush1.msra.mxu0 0.0
    %2804 = vmatprep.subr.mxu0 0.0
    %2805 = vmatpush1.msra.mxu0 0.0
    %2806 = vmatprep.subr.mxu0 0.0
    %2807 = vmatpush1.msra.mxu0 0.0
    %2808 = vmatprep.subr.mxu0 0.0
    %2809 = vmatpush1.msra.mxu0 0.0
    %2810 = vmatprep.subr.mxu0 0.0
    %2811 = vmatpush1.msra.mxu0 0.0
    %2812 = vmatprep.mubr.f32.mxu0 0.0
    %2813 = vmatmul.mubr.f32.gmra.mrb[0].mxu0 %v2592
    %v2814 = vpop.f32.mrb[0].mxu0
    %v2815 = vadd.f32 0.0, %v2814
    %v2816 = vpop.f32.mrb[0].mxu0
    %v2817 = vadd.f32 0.0, %v2816
    %2818 = vdwg.mxu0
    %v2819 = vadd.f32 %v2557, %v2673
    %v2820 = vadd.f32 %v2558, %v2675
    %v2821 = vadd.f32 %v2559, %v2744
    %v2822 = vadd.f32 %v2560, %v2746
    %v2823 = vadd.f32 %v2561, %v2815
    %v2824 = vadd.f32 %v2562, %v2817
    %v2825 = vld [vmem:[#allocation2 + $0x4] sm:$0xff]
    %v2826 = vld [vmem:[#allocation2 + $0xc] sm:$0xff]
    %v2827 = vld [vmem:[#allocation2 + $0x14] sm:$0xff]
    %s2828 = scalar_lea.vmem %s3, 32
    %v2829 = vld [vmem:[%s2828] sm:$0xf]
    %v2833 = vcombine.high %v2825, %v2825
    %v2834 = vcombine.high %v2826, %v2826
    %v2835 = vcombine.high %v2827, %v2827
    %2836 = vrot.lane.b32.xlu0 %v2825, 109
    %v2837 = vpop.permute.xlu0 %2836
    %2838 = vrot.lane.b32.xlu0 %v2833, 109
    %v2839 = vpop.permute.xlu0 %2838
    %2840 = vrot.lane.b32.xlu0 %v2826, 109
    %v2841 = vpop.permute.xlu0 %2840
    %2842 = vrot.lane.b32.xlu0 %v2834, 109
    %v2843 = vpop.permute.xlu0 %2842
    %2844 = vrot.lane.b32.xlu0 %v2827, 109
    %v2845 = vpop.permute.xlu0 %2844
    %2846 = vrot.lane.b32.xlu0 %v2835, 109
    %v2847 = vpop.permute.xlu0 %2846
    %v2848 = vsel %vm429, %v2837, %v2839
    %v2849 = vsel %vm429, %v2839, %v2841
    %v2850 = vsel %vm429, %v2841, %v2843
    %v2851 = vsel %vm429, %v2843, %v2845
    %v2852 = vsel %vm429, %v2845, %v2847
    %v2854 = vsel %vm788, %v2829, 0
    %v2856 = vsel %vm116, %v2848, 0
    %v2858 = vsel %vm116, %v2849, 0
    %v2860 = vsel %vm116, %v2850, 0
    %v2862 = vsel %vm116, %v2851, 0
    %v2864 = vsel %vm116, %v2852, 0
    %v2866 = vsel %vm116, %v2847, 0
    %2868 = vmatprep.subr.mxu0 %v2858
    %2869 = vmatpush1.msra.mxu0 %v2856
    %2870 = vmatprep.subr.mxu0 0.0
    %2871 = vmatpush1.msra.mxu0 0.0
    %2872 = vmatprep.subr.mxu0 0.0
    %2873 = vmatpush1.msra.mxu0 0.0
    %2874 = vmatprep.subr.mxu0 0.0
    %2875 = vmatpush1.msra.mxu0 0.0
    %2876 = vmatprep.subr.mxu0 0.0
    %2877 = vmatpush1.msra.mxu0 0.0
    %2878 = vmatprep.subr.mxu0 0.0
    %2879 = vmatpush1.msra.mxu0 0.0
    %2880 = vmatprep.subr.mxu0 0.0
    %2881 = vmatpush1.msra.mxu0 0.0
    %2882 = vmatprep.subr.mxu0 0.0
    %2883 = vmatpush1.msra.mxu0 0.0
    %2884 = vmatprep.subr.mxu0 0.0
    %2885 = vmatpush1.msra.mxu0 0.0
    %2886 = vmatprep.subr.mxu0 0.0
    %2887 = vmatpush1.msra.mxu0 0.0
    %2888 = vmatprep.subr.mxu0 0.0
    %2889 = vmatpush1.msra.mxu0 0.0
    %2890 = vmatprep.subr.mxu0 0.0
    %2891 = vmatpush1.msra.mxu0 0.0
    %2892 = vmatprep.subr.mxu0 0.0
    %2893 = vmatpush1.msra.mxu0 0.0
    %2894 = vmatprep.subr.mxu0 0.0
    %2895 = vmatpush1.msra.mxu0 0.0
    %2896 = vmatprep.subr.mxu0 0.0
    %2897 = vmatpush1.msra.mxu0 0.0
    %2898 = vmatprep.subr.mxu0 0.0
    %2899 = vmatpush1.msra.mxu0 0.0
    %2900 = vmatprep.subr.mxu0 0.0
    %2901 = vmatpush1.msra.mxu0 0.0
    %2902 = vmatprep.subr.mxu0 0.0
    %2903 = vmatpush1.msra.mxu0 0.0
    %2904 = vmatprep.subr.mxu0 0.0
    %2905 = vmatpush1.msra.mxu0 0.0
    %2906 = vmatprep.subr.mxu0 0.0
    %2907 = vmatpush1.msra.mxu0 0.0
    %2908 = vmatprep.subr.mxu0 0.0
    %2909 = vmatpush1.msra.mxu0 0.0
    %2910 = vmatprep.subr.mxu0 0.0
    %2911 = vmatpush1.msra.mxu0 0.0
    %2912 = vmatprep.subr.mxu0 0.0
    %2913 = vmatpush1.msra.mxu0 0.0
    %2914 = vmatprep.subr.mxu0 0.0
    %2915 = vmatpush1.msra.mxu0 0.0
    %2916 = vmatprep.subr.mxu0 0.0
    %2917 = vmatpush1.msra.mxu0 0.0
    %2918 = vmatprep.subr.mxu0 0.0
    %2919 = vmatpush1.msra.mxu0 0.0
    %2920 = vmatprep.subr.mxu0 0.0
    %2921 = vmatpush1.msra.mxu0 0.0
    %2922 = vmatprep.subr.mxu0 0.0
    %2923 = vmatpush1.msra.mxu0 0.0
    %2924 = vmatprep.subr.mxu0 0.0
    %2925 = vmatpush1.msra.mxu0 0.0
    %2926 = vmatprep.subr.mxu0 0.0
    %2927 = vmatpush1.msra.mxu0 0.0
    %2928 = vmatprep.subr.mxu0 0.0
    %2929 = vmatpush1.msra.mxu0 0.0
    %2930 = vmatprep.subr.mxu0 0.0
    %2931 = vmatpush1.msra.mxu0 0.0
    %2932 = vmatprep.mubr.f32.mxu0 0.0
    %2933 = vmatmul.mubr.f32.gmra.mrb[0].mxu0 %v2854
    %v2934 = vpop.f32.mrb[0].mxu0
    %v2935 = vadd.f32 0.0, %v2934
    %v2936 = vpop.f32.mrb[0].mxu0
    %v2937 = vadd.f32 0.0, %v2936
    %2938 = vdwg.mxu0
    %2939 = vmatprep.subr.mxu0 %v2862
    %2940 = vmatpush1.msra.mxu0 %v2860
    %2941 = vmatprep.subr.mxu0 0.0
    %2942 = vmatpush1.msra.mxu0 0.0
    %2943 = vmatprep.subr.mxu0 0.0
    %2944 = vmatpush1.msra.mxu0 0.0
    %2945 = vmatprep.subr.mxu0 0.0
    %2946 = vmatpush1.msra.mxu0 0.0
    %2947 = vmatprep.subr.mxu0 0.0
    %2948 = vmatpush1.msra.mxu0 0.0
    %2949 = vmatprep.subr.mxu0 0.0
    %2950 = vmatpush1.msra.mxu0 0.0
    %2951 = vmatprep.subr.mxu0 0.0
    %2952 = vmatpush1.msra.mxu0 0.0
    %2953 = vmatprep.subr.mxu0 0.0
    %2954 = vmatpush1.msra.mxu0 0.0
    %2955 = vmatprep.subr.mxu0 0.0
    %2956 = vmatpush1.msra.mxu0 0.0
    %2957 = vmatprep.subr.mxu0 0.0
    %2958 = vmatpush1.msra.mxu0 0.0
    %2959 = vmatprep.subr.mxu0 0.0
    %2960 = vmatpush1.msra.mxu0 0.0
    %2961 = vmatprep.subr.mxu0 0.0
    %2962 = vmatpush1.msra.mxu0 0.0
    %2963 = vmatprep.subr.mxu0 0.0
    %2964 = vmatpush1.msra.mxu0 0.0
    %2965 = vmatprep.subr.mxu0 0.0
    %2966 = vmatpush1.msra.mxu0 0.0
    %2967 = vmatprep.subr.mxu0 0.0
    %2968 = vmatpush1.msra.mxu0 0.0
    %2969 = vmatprep.subr.mxu0 0.0
    %2970 = vmatpush1.msra.mxu0 0.0
    %2971 = vmatprep.subr.mxu0 0.0
    %2972 = vmatpush1.msra.mxu0 0.0
    %2973 = vmatprep.subr.mxu0 0.0
    %2974 = vmatpush1.msra.mxu0 0.0
    %2975 = vmatprep.subr.mxu0 0.0
    %2976 = vmatpush1.msra.mxu0 0.0
    %2977 = vmatprep.subr.mxu0 0.0
    %2978 = vmatpush1.msra.mxu0 0.0
    %2979 = vmatprep.subr.mxu0 0.0
    %2980 = vmatpush1.msra.mxu0 0.0
    %2981 = vmatprep.subr.mxu0 0.0
    %2982 = vmatpush1.msra.mxu0 0.0
    %2983 = vmatprep.subr.mxu0 0.0
    %2984 = vmatpush1.msra.mxu0 0.0
    %2985 = vmatprep.subr.mxu0 0.0
    %2986 = vmatpush1.msra.mxu0 0.0
    %2987 = vmatprep.subr.mxu0 0.0
    %2988 = vmatpush1.msra.mxu0 0.0
    %2989 = vmatprep.subr.mxu0 0.0
    %2990 = vmatpush1.msra.mxu0 0.0
    %2991 = vmatprep.subr.mxu0 0.0
    %2992 = vmatpush1.msra.mxu0 0.0
    %2993 = vmatprep.subr.mxu0 0.0
    %2994 = vmatpush1.msra.mxu0 0.0
    %2995 = vmatprep.subr.mxu0 0.0
    %2996 = vmatpush1.msra.mxu0 0.0
    %2997 = vmatprep.subr.mxu0 0.0
    %2998 = vmatpush1.msra.mxu0 0.0
    %2999 = vmatprep.subr.mxu0 0.0
    %3000 = vmatpush1.msra.mxu0 0.0
    %3001 = vmatprep.subr.mxu0 0.0
    %3002 = vmatpush1.msra.mxu0 0.0
    %3003 = vmatprep.mubr.f32.mxu0 0.0
    %3004 = vmatmul.mubr.f32.gmra.mrb[0].mxu0 %v2854
    %v3005 = vpop.f32.mrb[0].mxu0
    %v3006 = vadd.f32 0.0, %v3005
    %v3007 = vpop.f32.mrb[0].mxu0
    %v3008 = vadd.f32 0.0, %v3007
    %3009 = vdwg.mxu0
    %3010 = vmatprep.subr.mxu0 %v2866
    %3011 = vmatpush1.msra.mxu0 %v2864
    %3012 = vmatprep.subr.mxu0 0.0
    %3013 = vmatpush1.msra.mxu0 0.0
    %3014 = vmatprep.subr.mxu0 0.0
    %3015 = vmatpush1.msra.mxu0 0.0
    %3016 = vmatprep.subr.mxu0 0.0
    %3017 = vmatpush1.msra.mxu0 0.0
    %3018 = vmatprep.subr.mxu0 0.0
    %3019 = vmatpush1.msra.mxu0 0.0
    %3020 = vmatprep.subr.mxu0 0.0
    %3021 = vmatpush1.msra.mxu0 0.0
    %3022 = vmatprep.subr.mxu0 0.0
    %3023 = vmatpush1.msra.mxu0 0.0
    %3024 = vmatprep.subr.mxu0 0.0
    %3025 = vmatpush1.msra.mxu0 0.0
    %3026 = vmatprep.subr.mxu0 0.0
    %3027 = vmatpush1.msra.mxu0 0.0
    %3028 = vmatprep.subr.mxu0 0.0
    %3029 = vmatpush1.msra.mxu0 0.0
    %3030 = vmatprep.subr.mxu0 0.0
    %3031 = vmatpush1.msra.mxu0 0.0
    %3032 = vmatprep.subr.mxu0 0.0
    %3033 = vmatpush1.msra.mxu0 0.0
    %3034 = vmatprep.subr.mxu0 0.0
    %3035 = vmatpush1.msra.mxu0 0.0
    %3036 = vmatprep.subr.mxu0 0.0
    %3037 = vmatpush1.msra.mxu0 0.0
    %3038 = vmatprep.subr.mxu0 0.0
    %3039 = vmatpush1.msra.mxu0 0.0
    %3040 = vmatprep.subr.mxu0 0.0
    %3041 = vmatpush1.msra.mxu0 0.0
    %3042 = vmatprep.subr.mxu0 0.0
    %3043 = vmatpush1.msra.mxu0 0.0
    %3044 = vmatprep.subr.mxu0 0.0
    %3045 = vmatpush1.msra.mxu0 0.0
    %3046 = vmatprep.subr.mxu0 0.0
    %3047 = vmatpush1.msra.mxu0 0.0
    %3048 = vmatprep.subr.mxu0 0.0
    %3049 = vmatpush1.msra.mxu0 0.0
    %3050 = vmatprep.subr.mxu0 0.0
    %3051 = vmatpush1.msra.mxu0 0.0
    %3052 = vmatprep.subr.mxu0 0.0
    %3053 = vmatpush1.msra.mxu0 0.0
    %3054 = vmatprep.subr.mxu0 0.0
    %3055 = vmatpush1.msra.mxu0 0.0
    %3056 = vmatprep.subr.mxu0 0.0
    %3057 = vmatpush1.msra.mxu0 0.0
    %3058 = vmatprep.subr.mxu0 0.0
    %3059 = vmatpush1.msra.mxu0 0.0
    %3060 = vmatprep.subr.mxu0 0.0
    %3061 = vmatpush1.msra.mxu0 0.0
    %3062 = vmatprep.subr.mxu0 0.0
    %3063 = vmatpush1.msra.mxu0 0.0
    %3064 = vmatprep.subr.mxu0 0.0
    %3065 = vmatpush1.msra.mxu0 0.0
    %3066 = vmatprep.subr.mxu0 0.0
    %3067 = vmatpush1.msra.mxu0 0.0
    %3068 = vmatprep.subr.mxu0 0.0
    %3069 = vmatpush1.msra.mxu0 0.0
    %3070 = vmatprep.subr.mxu0 0.0
    %3071 = vmatpush1.msra.mxu0 0.0
    %3072 = vmatprep.subr.mxu0 0.0
    %3073 = vmatpush1.msra.mxu0 0.0
    %3074 = vmatprep.mubr.f32.mxu0 0.0
    %3075 = vmatmul.mubr.f32.gmra.mrb[0].mxu0 %v2854
    %v3076 = vpop.f32.mrb[0].mxu0
    %v3077 = vadd.f32 0.0, %v3076
    %v3078 = vpop.f32.mrb[0].mxu0
    %v3079 = vadd.f32 0.0, %v3078
    %3080 = vdwg.mxu0
    %v3081 = vadd.f32 %v2819, %v2935
    %v3082 = vadd.f32 %v2820, %v2937
    %v3083 = vadd.f32 %v2821, %v3006
    %v3084 = vadd.f32 %v2822, %v3008
    %v3085 = vadd.f32 %v2823, %v3077
    %v3086 = vadd.f32 %v2824, %v3079
    %v3087 = vld [vmem:[%s4] sm:$0xf]
    %3089 = vset.pattern.permute.xlu0 0
    %3090 = vperm.xlu0 %3089, %v3087
    %v3091 = vpop.permute.xlu0 %3090
    %v3093 = vadd.f32 %v3081, %v3091
    %v3094 = vadd.f32 %v3082, %v3091
    %v3095 = vadd.f32 %v3083, %v3091
    %v3096 = vadd.f32 %v3084, %v3091
    %v3097 = vadd.f32 %v3085, %v3091
    %v3098 = vadd.f32 %v3086, %v3091
    %vm3099 = vcmp.gt.f32.partialorder %v3093, 0.0
    %vm3100 = vcmp.gt.f32.partialorder %v3094, 0.0
    %vm3101 = vcmp.gt.f32.partialorder %v3095, 0.0
    %vm3102 = vcmp.gt.f32.partialorder %v3096, 0.0
    %vm3103 = vcmp.gt.f32.partialorder %v3097, 0.0
    %vm3104 = vcmp.gt.f32.partialorder %v3098, 0.0
    %v3105 = vmul.f32 %v3093, 0.1
    %v3106 = vmul.f32 %v3094, 0.1
    %v3107 = vmul.f32 %v3095, 0.1
    %v3108 = vmul.f32 %v3096, 0.1
    %v3109 = vmul.f32 %v3097, 0.1
    %v3110 = vmul.f32 %v3098, 0.1
    %v3111 = vsel %vm3099, %v3093, %v3105
    %v3112 = vsel %vm3100, %v3094, %v3106
    %v3113 = vsel %vm3101, %v3095, %v3107
    %v3114 = vsel %vm3102, %v3096, %v3108
    %v3115 = vsel %vm3103, %v3097, %v3109
    %v3116 = vsel %vm3104, %v3098, %v3110
    %v3117 = vld [vmem:[#allocation8] sm:$0xff]
    %v3118 = vld [vmem:[#allocation8 + $0x8] sm:$0xff]
    %v3119 = vld [vmem:[#allocation8 + $0x10] sm:$0xff]
    %v3120 = vld [vmem:[#allocation8 + $0x18] sm:$0xff]
    %v3121 = vld [vmem:[#allocation8 + $0x20] sm:$0xff]
    %v3122 = vld [vmem:[#allocation8 + $0x28] sm:$0xff]
    %v3123 = vld [vmem:[#allocation8 + $0x30] sm:$0xff]
    %v3124 = vld [vmem:[#allocation8 + $0x38] sm:$0xff]
    %v3125 = vld [vmem:[#allocation8 + $0x40] sm:$0xff]
    %v3126 = vld [vmem:[#allocation8 + $0x48] sm:$0xff]
    %v3127 = vld [vmem:[#allocation8 + $0x50] sm:$0xff]
    %v3128 = vld [vmem:[#allocation8 + $0x58] sm:$0xff]
    %v3129 = vld [vmem:[#allocation8 + $0x60] sm:$0xff]
    %v3130 = vld [vmem:[#allocation8 + $0x68] sm:$0xff]
    %v3131 = vld [vmem:[#allocation8 + $0x70] sm:$0xff]
    %v3132 = vld [vmem:[#allocation8 + $0x78] sm:$0xff]
    %v3133 = vld [vmem:[#allocation8 + $0x80] sm:$0xff]
    %v3134 = vld [vmem:[#allocation8 + $0x88] sm:$0xff]
    %v3135 = vld [vmem:[#allocation8 + $0x90] sm:$0xff]
    %v3136 = vld [vmem:[#allocation8 + $0x98] sm:$0xff]
    %v3137 = vld [vmem:[#allocation8 + $0xa0] sm:$0xff]
    %v3138 = vld [vmem:[#allocation8 + $0xa8] sm:$0xff]
    %v3139 = vld [vmem:[#allocation8 + $0xb0] sm:$0xff]
    %v3140 = vld [vmem:[#allocation8 + $0xb8] sm:$0xff]
    %v3141 = vld [vmem:[#allocation8 + $0xc0] sm:$0xff]
    %v3142 = vld [vmem:[#allocation8 + $0xc8] sm:$0xff]
    %v3143 = vld [vmem:[#allocation8 + $0xd0] sm:$0xff]
    %v3144 = vld [vmem:[#allocation8 + $0xd8] sm:$0xff]
    %v3145 = vld [vmem:[#allocation8 + $0xe0] sm:$0xff]
    %v3146 = vld [vmem:[#allocation8 + $0xe8] sm:$0xff]
    %v3147 = vld [vmem:[#allocation8 + $0xf0] sm:$0xff]
    %v3148 = vld [vmem:[#allocation8 + $0xf8] sm:$0xff]
    %v3149 = vld [vmem:[#allocation8 + $0x100] sm:$0xff]
    %v3150 = vld [vmem:[#allocation8 + $0x108] sm:$0xff]
    %v3151 = vld [vmem:[#allocation8 + $0x110] sm:$0xff]
    %v3152 = vld [vmem:[#allocation8 + $0x118] sm:$0xff]
    %v3153 = vld [vmem:[#allocation8 + $0x120] sm:$0xff]
    %v3154 = vld [vmem:[#allocation8 + $0x128] sm:$0xff]
    %v3155 = vld [vmem:[#allocation8 + $0x130] sm:$0xff]
    %v3156 = vld [vmem:[#allocation8 + $0x138] sm:$0xff]
    %v3157 = vld [vmem:[#allocation8 + $0x140] sm:$0xff]
    %v3158 = vld [vmem:[#allocation8 + $0x148] sm:$0xff]
    %v3159 = vld [vmem:[#allocation8 + $0x150] sm:$0xff]
    %v3160 = vld [vmem:[#allocation8 + $0x158] sm:$0xff]
    %v3161 = vld [vmem:[#allocation8 + $0x160] sm:$0xff]
    %v3162 = vld [vmem:[#allocation8 + $0x168] sm:$0xff]
    %v3163 = vld [vmem:[#allocation8 + $0x170] sm:$0xff]
    %v3164 = vld [vmem:[#allocation8 + $0x178] sm:$0xff]
    %v3165 = vld [vmem:[#allocation8 + $0x180] sm:$0xff]
    %v3166 = vld [vmem:[#allocation8 + $0x188] sm:$0xff]
    %v3167 = vld [vmem:[#allocation8 + $0x190] sm:$0xff]
    %v3168 = vld [vmem:[#allocation8 + $0x198] sm:$0xff]
    %v3169 = vld [vmem:[#allocation8 + $0x1a0] sm:$0xff]
    %v3170 = vld [vmem:[#allocation8 + $0x1a8] sm:$0xff]
    %v3171 = vld [vmem:[#allocation8 + $0x1b0] sm:$0xff]
    %v3172 = vld [vmem:[#allocation8 + $0x1b8] sm:$0xff]
    %v3173 = vld [vmem:[#allocation8 + $0x1c0] sm:$0xff]
    %v3174 = vld [vmem:[#allocation8 + $0x1c8] sm:$0xff]
    %v3175 = vld [vmem:[#allocation8 + $0x1d0] sm:$0xff]
    %v3176 = vld [vmem:[#allocation8 + $0x1d8] sm:$0xff]
    %v3177 = vld [vmem:[#allocation8 + $0x1e0] sm:$0xff]
    %v3178 = vld [vmem:[#allocation8 + $0x1e8] sm:$0xff]
    %v3179 = vld [vmem:[#allocation8 + $0x1f0] sm:$0xff]
    %v3180 = vld [vmem:[#allocation8 + $0x1f8] sm:$0xff]
    %v3181 = vld [vmem:[#allocation8 + $0x200] sm:$0xff]
    %v3182 = vld [vmem:[#allocation8 + $0x208] sm:$0xff]
    %v3183 = vld [vmem:[#allocation8 + $0x210] sm:$0xff]
    %v3184 = vld [vmem:[#allocation8 + $0x218] sm:$0xff]
    %v3185 = vld [vmem:[#allocation8 + $0x220] sm:$0xff]
    %v3186 = vld [vmem:[#allocation8 + $0x228] sm:$0xff]
    %v3187 = vld [vmem:[#allocation8 + $0x230] sm:$0xff]
    %v3188 = vld [vmem:[#allocation8 + $0x238] sm:$0xff]
    %v3189 = vld [vmem:[#allocation8 + $0x240] sm:$0xff]
    %v3190 = vld [vmem:[#allocation8 + $0x248] sm:$0xff]
    %v3191 = vld [vmem:[#allocation8 + $0x250] sm:$0xff]
    %v3192 = vld [vmem:[#allocation8 + $0x258] sm:$0xff]
    %v3193 = vld [vmem:[#allocation8 + $0x260] sm:$0xff]
    %v3194 = vld [vmem:[#allocation8 + $0x268] sm:$0xff]
    %v3195 = vld [vmem:[#allocation8 + $0x270] sm:$0xff]
    %v3196 = vld [vmem:[#allocation8 + $0x278] sm:$0xff]
    %v3197 = vld [vmem:[#allocation8 + $0x280] sm:$0xff]
    %v3198 = vld [vmem:[#allocation8 + $0x288] sm:$0xff]
    %v3199 = vld [vmem:[#allocation8 + $0x290] sm:$0xff]
    %v3200 = vld [vmem:[#allocation8 + $0x298] sm:$0xff]
    %v3201 = vld [vmem:[#allocation8 + $0x2a0] sm:$0xff]
    %v3202 = vld [vmem:[#allocation8 + $0x2a8] sm:$0xff]
    %v3203 = vld [vmem:[#allocation8 + $0x2b0] sm:$0xff]
    %v3204 = vld [vmem:[#allocation8 + $0x2b8] sm:$0xff]
    %v3205 = vld [vmem:[#allocation8 + $0x2c0] sm:$0xff]
    %v3206 = vld [vmem:[#allocation8 + $0x2c8] sm:$0xff]
    %v3207 = vld [vmem:[#allocation8 + $0x2d0] sm:$0xff]
    %v3208 = vld [vmem:[#allocation8 + $0x2d8] sm:$0xff]
    %v3209 = vld [vmem:[#allocation8 + $0x2e0] sm:$0xff]
    %v3210 = vld [vmem:[#allocation8 + $0x2e8] sm:$0xff]
    %v3211 = vld [vmem:[#allocation8 + $0x2f0] sm:$0xff]
    %v3212 = vld [vmem:[#allocation8 + $0x2f8] sm:$0xff]
    %v3213 = vld [vmem:[#allocation8 + $0x300] sm:$0xff]
    %v3214 = vld [vmem:[#allocation8 + $0x308] sm:$0xff]
    %v3215 = vld [vmem:[#allocation8 + $0x310] sm:$0xff]
    %v3216 = vld [vmem:[#allocation8 + $0x318] sm:$0xff]
    %v3217 = vld [vmem:[#allocation8 + $0x320] sm:$0xff]
    %v3218 = vld [vmem:[#allocation8 + $0x328] sm:$0xff]
    %v3219 = vld [vmem:[#allocation8 + $0x330] sm:$0xff]
    %v3220 = vld [vmem:[#allocation8 + $0x338] sm:$0xff]
    %v3221 = vld [vmem:[#allocation8 + $0x340] sm:$0xff]
    %v3222 = vld [vmem:[#allocation8 + $0x348] sm:$0xff]
    %v3223 = vld [vmem:[#allocation8 + $0x350] sm:$0xff]
    %v3224 = vld [vmem:[#allocation8 + $0x358] sm:$0xff]
    %v3225 = vld [vmem:[#allocation8 + $0x360] sm:$0xff]
    %v3226 = vld [vmem:[#allocation8 + $0x368] sm:$0xff]
    %v3227 = vld [vmem:[#allocation8 + $0x370] sm:$0xff]
    %v3228 = vld [vmem:[#allocation8 + $0x378] sm:$0xff]
    %v3229 = vld [vmem:[#allocation8 + $0x380] sm:$0xff]
    %v3230 = vld [vmem:[#allocation8 + $0x388] sm:$0xff]
    %v3231 = vld [vmem:[#allocation8 + $0x390] sm:$0xff]
    %v3232 = vld [vmem:[#allocation8 + $0x398] sm:$0xff]
    %v3233 = vld [vmem:[#allocation8 + $0x3a0] sm:$0xff]
    %v3234 = vld [vmem:[#allocation8 + $0x3a8] sm:$0xff]
    %v3235 = vld [vmem:[#allocation8 + $0x3b0] sm:$0xff]
    %v3236 = vld [vmem:[#allocation8 + $0x3b8] sm:$0xff]
    %v3237 = vld [vmem:[#allocation8 + $0x3c0] sm:$0xff]
    %v3238 = vld [vmem:[#allocation8 + $0x3c8] sm:$0xff]
    %v3239 = vld [vmem:[#allocation8 + $0x3d0] sm:$0xff]
    %v3240 = vld [vmem:[#allocation8 + $0x3d8] sm:$0xff]
    %v3241 = vld [vmem:[#allocation8 + $0x3e0] sm:$0xff]
    %v3242 = vld [vmem:[#allocation8 + $0x3e8] sm:$0xff]
    %v3243 = vld [vmem:[#allocation8 + $0x3f0] sm:$0xff]
    %v3244 = vld [vmem:[#allocation8 + $0x3f8] sm:$0xff]
    %v3245 = vld [vmem:[#allocation8 + $0x400] sm:$0xff]
    %v3246 = vld [vmem:[#allocation8 + $0x408] sm:$0xff]
    %v3247 = vld [vmem:[#allocation8 + $0x410] sm:$0xff]
    %v3248 = vld [vmem:[#allocation8 + $0x418] sm:$0xff]
    %v3249 = vld [vmem:[#allocation8 + $0x420] sm:$0xff]
    %v3250 = vld [vmem:[#allocation8 + $0x428] sm:$0xff]
    %v3251 = vld [vmem:[#allocation8 + $0x430] sm:$0xff]
    %v3252 = vld [vmem:[#allocation8 + $0x438] sm:$0xff]
    %v3253 = vld [vmem:[#allocation8 + $0x440] sm:$0xff]
    %v3254 = vld [vmem:[#allocation8 + $0x448] sm:$0xff]
    %v3255 = vld [vmem:[#allocation8 + $0x450] sm:$0xff]
    %v3256 = vld [vmem:[#allocation8 + $0x458] sm:$0xff]
    %v3257 = vld [vmem:[#allocation8 + $0x460] sm:$0xff]
    %v3258 = vld [vmem:[#allocation8 + $0x468] sm:$0xff]
    %v3259 = vld [vmem:[#allocation8 + $0x470] sm:$0xff]
    %v3260 = vld [vmem:[#allocation8 + $0x478] sm:$0xff]
    %v3261 = vld [vmem:[#allocation8 + $0x480] sm:$0xff]
    %v3262 = vld [vmem:[#allocation8 + $0x488] sm:$0xff]
    %v3263 = vld [vmem:[#allocation8 + $0x490] sm:$0xff]
    %v3264 = vld [vmem:[#allocation8 + $0x498] sm:$0xff]
    %v3265 = vld [vmem:[#allocation8 + $0x4a0] sm:$0xff]
    %v3266 = vld [vmem:[#allocation8 + $0x4a8] sm:$0xff]
    %v3267 = vld [vmem:[#allocation8 + $0x4b0] sm:$0xff]
    %v3268 = vld [vmem:[#allocation8 + $0x4b8] sm:$0xff]
    %v3269 = vld [vmem:[#allocation8 + $0x4c0] sm:$0xff]
    %v3270 = vld [vmem:[#allocation8 + $0x4c8] sm:$0xff]
    %v3271 = vld [vmem:[#allocation8 + $0x4d0] sm:$0xff]
    %v3272 = vld [vmem:[#allocation8 + $0x4d8] sm:$0xff]
    %v3273 = vld [vmem:[#allocation8 + $0x4e0] sm:$0xff]
    %v3274 = vld [vmem:[#allocation8 + $0x4e8] sm:$0xff]
    %v3275 = vld [vmem:[#allocation8 + $0x4f0] sm:$0xff]
    %v3276 = vld [vmem:[#allocation8 + $0x4f8] sm:$0xff]
    %v3277 = vld [vmem:[#allocation8 + $0x500] sm:$0xff]
    %v3278 = vld [vmem:[#allocation8 + $0x508] sm:$0xff]
    %vm3279 = vcmask 64512
    %v3281 = vsel %vm3279, %v3116, 0
    %3283 = vmatprep.subr.mxu0 %v3118
    %3284 = vmatpush1.msra.mxu0 %v3117
    %3285 = vmatprep.subr.mxu0 %v3120
    %3286 = vmatpush1.msra.mxu0 %v3119
    %3287 = vmatprep.subr.mxu0 %v3122
    %3288 = vmatpush1.msra.mxu0 %v3121
    %3289 = vmatprep.subr.mxu0 %v3124
    %3290 = vmatpush1.msra.mxu0 %v3123
    %3291 = vmatprep.subr.mxu0 %v3126
    %3292 = vmatpush1.msra.mxu0 %v3125
    %3293 = vmatprep.subr.mxu0 %v3128
    %3294 = vmatpush1.msra.mxu0 %v3127
    %3295 = vmatprep.subr.mxu0 %v3130
    %3296 = vmatpush1.msra.mxu0 %v3129
    %3297 = vmatprep.subr.mxu0 %v3132
    %3298 = vmatpush1.msra.mxu0 %v3131
    %3299 = vmatprep.subr.mxu0 %v3134
    %3300 = vmatpush1.msra.mxu0 %v3133
    %3301 = vmatprep.subr.mxu0 %v3136
    %3302 = vmatpush1.msra.mxu0 %v3135
    %3303 = vmatprep.subr.mxu0 %v3138
    %3304 = vmatpush1.msra.mxu0 %v3137
    %3305 = vmatprep.subr.mxu0 %v3140
    %3306 = vmatpush1.msra.mxu0 %v3139
    %3307 = vmatprep.subr.mxu0 %v3142
    %3308 = vmatpush1.msra.mxu0 %v3141
    %3309 = vmatprep.subr.mxu0 %v3144
    %3310 = vmatpush1.msra.mxu0 %v3143
    %3311 = vmatprep.subr.mxu0 %v3146
    %3312 = vmatpush1.msra.mxu0 %v3145
    %3313 = vmatprep.subr.mxu0 %v3148
    %3314 = vmatpush1.msra.mxu0 %v3147
    %3315 = vmatprep.subr.mxu0 %v3150
    %3316 = vmatpush1.msra.mxu0 %v3149
    %3317 = vmatprep.subr.mxu0 %v3152
    %3318 = vmatpush1.msra.mxu0 %v3151
    %3319 = vmatprep.subr.mxu0 %v3154
    %3320 = vmatpush1.msra.mxu0 %v3153
    %3321 = vmatprep.subr.mxu0 %v3156
    %3322 = vmatpush1.msra.mxu0 %v3155
    %3323 = vmatprep.subr.mxu0 %v3158
    %3324 = vmatpush1.msra.mxu0 %v3157
    %3325 = vmatprep.subr.mxu0 %v3160
    %3326 = vmatpush1.msra.mxu0 %v3159
    %3327 = vmatprep.subr.mxu0 %v3162
    %3328 = vmatpush1.msra.mxu0 %v3161
    %3329 = vmatprep.subr.mxu0 %v3164
    %3330 = vmatpush1.msra.mxu0 %v3163
    %3331 = vmatprep.subr.mxu0 %v3166
    %3332 = vmatpush1.msra.mxu0 %v3165
    %3333 = vmatprep.subr.mxu0 %v3168
    %3334 = vmatpush1.msra.mxu0 %v3167
    %3335 = vmatprep.subr.mxu0 %v3170
    %3336 = vmatpush1.msra.mxu0 %v3169
    %3337 = vmatprep.subr.mxu0 %v3172
    %3338 = vmatpush1.msra.mxu0 %v3171
    %3339 = vmatprep.subr.mxu0 %v3174
    %3340 = vmatpush1.msra.mxu0 %v3173
    %3341 = vmatprep.subr.mxu0 %v3176
    %3342 = vmatpush1.msra.mxu0 %v3175
    %3343 = vmatprep.subr.mxu0 %v3178
    %3344 = vmatpush1.msra.mxu0 %v3177
    %3345 = vmatprep.subr.mxu0 %v3180
    %3346 = vmatpush1.msra.mxu0 %v3179
    %3347 = vmatprep.mubr.f32.mxu0 %v3112
    %3348 = vmatmul.mubr.f32.gmra.mrb[0].mxu0 %v3111
    %v3349 = vpop.f32.mrb[0].mxu0
    %v3350 = vadd.f32 0.0, %v3349
    %v3351 = vpop.f32.mrb[0].mxu0
    %v3352 = vadd.f32 0.0, %v3351
    %3353 = vdwg.mxu0
    %3354 = vmatprep.subr.mxu0 %v3182
    %3355 = vmatpush1.msra.mxu0 %v3181
    %3356 = vmatprep.subr.mxu0 %v3184
    %3357 = vmatpush1.msra.mxu0 %v3183
    %3358 = vmatprep.subr.mxu0 %v3186
    %3359 = vmatpush1.msra.mxu0 %v3185
    %3360 = vmatprep.subr.mxu0 %v3188
    %3361 = vmatpush1.msra.mxu0 %v3187
    %3362 = vmatprep.subr.mxu0 %v3190
    %3363 = vmatpush1.msra.mxu0 %v3189
    %3364 = vmatprep.subr.mxu0 %v3192
    %3365 = vmatpush1.msra.mxu0 %v3191
    %3366 = vmatprep.subr.mxu0 %v3194
    %3367 = vmatpush1.msra.mxu0 %v3193
    %3368 = vmatprep.subr.mxu0 %v3196
    %3369 = vmatpush1.msra.mxu0 %v3195
    %3370 = vmatprep.subr.mxu0 %v3198
    %3371 = vmatpush1.msra.mxu0 %v3197
    %3372 = vmatprep.subr.mxu0 %v3200
    %3373 = vmatpush1.msra.mxu0 %v3199
    %3374 = vmatprep.subr.mxu0 %v3202
    %3375 = vmatpush1.msra.mxu0 %v3201
    %3376 = vmatprep.subr.mxu0 %v3204
    %3377 = vmatpush1.msra.mxu0 %v3203
    %3378 = vmatprep.subr.mxu0 %v3206
    %3379 = vmatpush1.msra.mxu0 %v3205
    %3380 = vmatprep.subr.mxu0 %v3208
    %3381 = vmatpush1.msra.mxu0 %v3207
    %3382 = vmatprep.subr.mxu0 %v3210
    %3383 = vmatpush1.msra.mxu0 %v3209
    %3384 = vmatprep.subr.mxu0 %v3212
    %3385 = vmatpush1.msra.mxu0 %v3211
    %3386 = vmatprep.subr.mxu0 %v3214
    %3387 = vmatpush1.msra.mxu0 %v3213
    %3388 = vmatprep.subr.mxu0 %v3216
    %3389 = vmatpush1.msra.mxu0 %v3215
    %3390 = vmatprep.subr.mxu0 %v3218
    %3391 = vmatpush1.msra.mxu0 %v3217
    %3392 = vmatprep.subr.mxu0 %v3220
    %3393 = vmatpush1.msra.mxu0 %v3219
    %3394 = vmatprep.subr.mxu0 %v3222
    %3395 = vmatpush1.msra.mxu0 %v3221
    %3396 = vmatprep.subr.mxu0 %v3224
    %3397 = vmatpush1.msra.mxu0 %v3223
    %3398 = vmatprep.subr.mxu0 %v3226
    %3399 = vmatpush1.msra.mxu0 %v3225
    %3400 = vmatprep.subr.mxu0 %v3228
    %3401 = vmatpush1.msra.mxu0 %v3227
    %3402 = vmatprep.subr.mxu0 %v3230
    %3403 = vmatpush1.msra.mxu0 %v3229
    %3404 = vmatprep.subr.mxu0 %v3232
    %3405 = vmatpush1.msra.mxu0 %v3231
    %3406 = vmatprep.subr.mxu0 %v3234
    %3407 = vmatpush1.msra.mxu0 %v3233
    %3408 = vmatprep.subr.mxu0 %v3236
    %3409 = vmatpush1.msra.mxu0 %v3235
    %3410 = vmatprep.subr.mxu0 %v3238
    %3411 = vmatpush1.msra.mxu0 %v3237
    %3412 = vmatprep.subr.mxu0 %v3240
    %3413 = vmatpush1.msra.mxu0 %v3239
    %3414 = vmatprep.subr.mxu0 %v3242
    %3415 = vmatpush1.msra.mxu0 %v3241
    %3416 = vmatprep.subr.mxu0 %v3244
    %3417 = vmatpush1.msra.mxu0 %v3243
    %3418 = vmatprep.mubr.f32.mxu0 %v3114
    %3419 = vmatmul.mubr.f32.gmra.mrb[0].mxu0 %v3113
    %v3420 = vpop.f32.mrb[0].mxu0
    %v3421 = vadd.f32 %v3350, %v3420
    %v3422 = vpop.f32.mrb[0].mxu0
    %v3423 = vadd.f32 %v3352, %v3422
    %3424 = vdwg.mxu0
    %3425 = vmatprep.subr.mxu0 %v3246
    %3426 = vmatpush1.msra.mxu0 %v3245
    %3427 = vmatprep.subr.mxu0 %v3248
    %3428 = vmatpush1.msra.mxu0 %v3247
    %3429 = vmatprep.subr.mxu0 %v3250
    %3430 = vmatpush1.msra.mxu0 %v3249
    %3431 = vmatprep.subr.mxu0 %v3252
    %3432 = vmatpush1.msra.mxu0 %v3251
    %3433 = vmatprep.subr.mxu0 %v3254
    %3434 = vmatpush1.msra.mxu0 %v3253
    %3435 = vmatprep.subr.mxu0 %v3256
    %3436 = vmatpush1.msra.mxu0 %v3255
    %3437 = vmatprep.subr.mxu0 %v3258
    %3438 = vmatpush1.msra.mxu0 %v3257
    %3439 = vmatprep.subr.mxu0 %v3260
    %3440 = vmatpush1.msra.mxu0 %v3259
    %3441 = vmatprep.subr.mxu0 %v3262
    %3442 = vmatpush1.msra.mxu0 %v3261
    %3443 = vmatprep.subr.mxu0 %v3264
    %3444 = vmatpush1.msra.mxu0 %v3263
    %3445 = vmatprep.subr.mxu0 %v3266
    %3446 = vmatpush1.msra.mxu0 %v3265
    %3447 = vmatprep.subr.mxu0 %v3268
    %3448 = vmatpush1.msra.mxu0 %v3267
    %3449 = vmatprep.subr.mxu0 %v3270
    %3450 = vmatpush1.msra.mxu0 %v3269
    %3451 = vmatprep.subr.mxu0 %v3272
    %3452 = vmatpush1.msra.mxu0 %v3271
    %3453 = vmatprep.subr.mxu0 %v3274
    %3454 = vmatpush1.msra.mxu0 %v3273
    %3455 = vmatprep.subr.mxu0 %v3276
    %3456 = vmatpush1.msra.mxu0 %v3275
    %3457 = vmatprep.subr.mxu0 %v3278
    %3458 = vmatpush1.msra.mxu0 %v3277
    %3459 = vmatprep.subr.mxu0 0.0
    %3460 = vmatpush1.msra.mxu0 0.0
    %3461 = vmatprep.subr.mxu0 0.0
    %3462 = vmatpush1.msra.mxu0 0.0
    %3463 = vmatprep.subr.mxu0 0.0
    %3464 = vmatpush1.msra.mxu0 0.0
    %3465 = vmatprep.subr.mxu0 0.0
    %3466 = vmatpush1.msra.mxu0 0.0
    %3467 = vmatprep.subr.mxu0 0.0
    %3468 = vmatpush1.msra.mxu0 0.0
    %3469 = vmatprep.subr.mxu0 0.0
    %3470 = vmatpush1.msra.mxu0 0.0
    %3471 = vmatprep.subr.mxu0 0.0
    %3472 = vmatpush1.msra.mxu0 0.0
    %3473 = vmatprep.subr.mxu0 0.0
    %3474 = vmatpush1.msra.mxu0 0.0
    %3475 = vmatprep.subr.mxu0 0.0
    %3476 = vmatpush1.msra.mxu0 0.0
    %3477 = vmatprep.subr.mxu0 0.0
    %3478 = vmatpush1.msra.mxu0 0.0
    %3479 = vmatprep.subr.mxu0 0.0
    %3480 = vmatpush1.msra.mxu0 0.0
    %3481 = vmatprep.subr.mxu0 0.0
    %3482 = vmatpush1.msra.mxu0 0.0
    %3483 = vmatprep.subr.mxu0 0.0
    %3484 = vmatpush1.msra.mxu0 0.0
    %3485 = vmatprep.subr.mxu0 0.0
    %3486 = vmatpush1.msra.mxu0 0.0
    %3487 = vmatprep.subr.mxu0 0.0
    %3488 = vmatpush1.msra.mxu0 0.0
    %3489 = vmatprep.mubr.f32.mxu0 %v3281
    %3490 = vmatmul.mubr.f32.gmra.mrb[0].mxu0 %v3115
    %v3491 = vpop.f32.mrb[0].mxu0
    %v3492 = vadd.f32 %v3421, %v3491
    %v3493 = vpop.f32.mrb[0].mxu0
    %v3494 = vadd.f32 %v3423, %v3493
    %3495 = vdwg.mxu0
    %v3498 = vcombine.low %v3492, %v3494
    %3500 = vst [vmem:[%s14] sm:$0xff] %v3498
    %s3501 = scalar_lea.vmem [#allocation8], 1296
    %v3502 = vld [vmem:[%s3501] sm:$0xff]
    %v3503 = vld [vmem:[%s3501 + $0x8] sm:$0xff]
    %v3504 = vld [vmem:[%s3501 + $0x10] sm:$0xff]
    %v3505 = vld [vmem:[%s3501 + $0x18] sm:$0xff]
    %v3506 = vld [vmem:[%s3501 + $0x20] sm:$0xff]
    %v3507 = vld [vmem:[%s3501 + $0x28] sm:$0xff]
    %v3508 = vld [vmem:[%s3501 + $0x30] sm:$0xff]
    %v3509 = vld [vmem:[%s3501 + $0x38] sm:$0xff]
    %v3510 = vld [vmem:[%s3501 + $0x40] sm:$0xff]
    %v3511 = vld [vmem:[%s3501 + $0x48] sm:$0xff]
    %v3512 = vld [vmem:[%s3501 + $0x50] sm:$0xff]
    %v3513 = vld [vmem:[%s3501 + $0x58] sm:$0xff]
    %v3514 = vld [vmem:[%s3501 + $0x60] sm:$0xff]
    %v3515 = vld [vmem:[%s3501 + $0x68] sm:$0xff]
    %v3516 = vld [vmem:[%s3501 + $0x70] sm:$0xff]
    %v3517 = vld [vmem:[%s3501 + $0x78] sm:$0xff]
    %v3518 = vld [vmem:[%s3501 + $0x80] sm:$0xff]
    %v3519 = vld [vmem:[%s3501 + $0x88] sm:$0xff]
    %v3520 = vld [vmem:[%s3501 + $0x90] sm:$0xff]
    %v3521 = vld [vmem:[%s3501 + $0x98] sm:$0xff]
    %v3522 = vld [vmem:[%s3501 + $0xa0] sm:$0xff]
    %v3523 = vld [vmem:[%s3501 + $0xa8] sm:$0xff]
    %v3524 = vld [vmem:[%s3501 + $0xb0] sm:$0xff]
    %v3525 = vld [vmem:[%s3501 + $0xb8] sm:$0xff]
    %v3526 = vld [vmem:[%s3501 + $0xc0] sm:$0xff]
    %v3527 = vld [vmem:[%s3501 + $0xc8] sm:$0xff]
    %v3528 = vld [vmem:[%s3501 + $0xd0] sm:$0xff]
    %v3529 = vld [vmem:[%s3501 + $0xd8] sm:$0xff]
    %v3530 = vld [vmem:[%s3501 + $0xe0] sm:$0xff]
    %v3531 = vld [vmem:[%s3501 + $0xe8] sm:$0xff]
    %v3532 = vld [vmem:[%s3501 + $0xf0] sm:$0xff]
    %v3533 = vld [vmem:[%s3501 + $0xf8] sm:$0xff]
    %v3534 = vld [vmem:[%s3501 + $0x100] sm:$0xff]
    %v3535 = vld [vmem:[%s3501 + $0x108] sm:$0xff]
    %v3536 = vld [vmem:[%s3501 + $0x110] sm:$0xff]
    %v3537 = vld [vmem:[%s3501 + $0x118] sm:$0xff]
    %v3538 = vld [vmem:[%s3501 + $0x120] sm:$0xff]
    %v3539 = vld [vmem:[%s3501 + $0x128] sm:$0xff]
    %v3540 = vld [vmem:[%s3501 + $0x130] sm:$0xff]
    %v3541 = vld [vmem:[%s3501 + $0x138] sm:$0xff]
    %v3542 = vld [vmem:[%s3501 + $0x140] sm:$0xff]
    %v3543 = vld [vmem:[%s3501 + $0x148] sm:$0xff]
    %v3544 = vld [vmem:[%s3501 + $0x150] sm:$0xff]
    %v3545 = vld [vmem:[%s3501 + $0x158] sm:$0xff]
    %v3546 = vld [vmem:[%s3501 + $0x160] sm:$0xff]
    %v3547 = vld [vmem:[%s3501 + $0x168] sm:$0xff]
    %v3548 = vld [vmem:[%s3501 + $0x170] sm:$0xff]
    %v3549 = vld [vmem:[%s3501 + $0x178] sm:$0xff]
    %v3550 = vld [vmem:[%s3501 + $0x180] sm:$0xff]
    %v3551 = vld [vmem:[%s3501 + $0x188] sm:$0xff]
    %v3552 = vld [vmem:[%s3501 + $0x190] sm:$0xff]
    %v3553 = vld [vmem:[%s3501 + $0x198] sm:$0xff]
    %v3554 = vld [vmem:[%s3501 + $0x1a0] sm:$0xff]
    %v3555 = vld [vmem:[%s3501 + $0x1a8] sm:$0xff]
    %v3556 = vld [vmem:[%s3501 + $0x1b0] sm:$0xff]
    %v3557 = vld [vmem:[%s3501 + $0x1b8] sm:$0xff]
    %v3558 = vld [vmem:[%s3501 + $0x1c0] sm:$0xff]
    %v3559 = vld [vmem:[%s3501 + $0x1c8] sm:$0xff]
    %v3560 = vld [vmem:[%s3501 + $0x1d0] sm:$0xff]
    %v3561 = vld [vmem:[%s3501 + $0x1d8] sm:$0xff]
    %v3562 = vld [vmem:[%s3501 + $0x1e0] sm:$0xff]
    %v3563 = vld [vmem:[%s3501 + $0x1e8] sm:$0xff]
    %v3564 = vld [vmem:[%s3501 + $0x1f0] sm:$0xff]
    %v3565 = vld [vmem:[%s3501 + $0x1f8] sm:$0xff]
    %v3566 = vld [vmem:[%s3501 + $0x200] sm:$0xff]
    %v3567 = vld [vmem:[%s3501 + $0x208] sm:$0xff]
    %v3568 = vld [vmem:[%s3501 + $0x210] sm:$0xff]
    %v3569 = vld [vmem:[%s3501 + $0x218] sm:$0xff]
    %v3570 = vld [vmem:[%s3501 + $0x220] sm:$0xff]
    %v3571 = vld [vmem:[%s3501 + $0x228] sm:$0xff]
    %v3572 = vld [vmem:[%s3501 + $0x230] sm:$0xff]
    %v3573 = vld [vmem:[%s3501 + $0x238] sm:$0xff]
    %v3574 = vld [vmem:[%s3501 + $0x240] sm:$0xff]
    %v3575 = vld [vmem:[%s3501 + $0x248] sm:$0xff]
    %v3576 = vld [vmem:[%s3501 + $0x250] sm:$0xff]
    %v3577 = vld [vmem:[%s3501 + $0x258] sm:$0xff]
    %v3578 = vld [vmem:[%s3501 + $0x260] sm:$0xff]
    %v3579 = vld [vmem:[%s3501 + $0x268] sm:$0xff]
    %v3580 = vld [vmem:[%s3501 + $0x270] sm:$0xff]
    %v3581 = vld [vmem:[%s3501 + $0x278] sm:$0xff]
    %v3582 = vld [vmem:[%s3501 + $0x280] sm:$0xff]
    %v3583 = vld [vmem:[%s3501 + $0x288] sm:$0xff]
    %v3584 = vld [vmem:[%s3501 + $0x290] sm:$0xff]
    %v3585 = vld [vmem:[%s3501 + $0x298] sm:$0xff]
    %v3586 = vld [vmem:[%s3501 + $0x2a0] sm:$0xff]
    %v3587 = vld [vmem:[%s3501 + $0x2a8] sm:$0xff]
    %v3588 = vld [vmem:[%s3501 + $0x2b0] sm:$0xff]
    %v3589 = vld [vmem:[%s3501 + $0x2b8] sm:$0xff]
    %v3590 = vld [vmem:[%s3501 + $0x2c0] sm:$0xff]
    %v3591 = vld [vmem:[%s3501 + $0x2c8] sm:$0xff]
    %v3592 = vld [vmem:[%s3501 + $0x2d0] sm:$0xff]
    %v3593 = vld [vmem:[%s3501 + $0x2d8] sm:$0xff]
    %v3594 = vld [vmem:[%s3501 + $0x2e0] sm:$0xff]
    %v3595 = vld [vmem:[%s3501 + $0x2e8] sm:$0xff]
    %v3596 = vld [vmem:[%s3501 + $0x2f0] sm:$0xff]
    %v3597 = vld [vmem:[%s3501 + $0x2f8] sm:$0xff]
    %v3598 = vld [vmem:[%s3501 + $0x300] sm:$0xff]
    %v3599 = vld [vmem:[%s3501 + $0x308] sm:$0xff]
    %v3600 = vld [vmem:[%s3501 + $0x310] sm:$0xff]
    %v3601 = vld [vmem:[%s3501 + $0x318] sm:$0xff]
    %v3602 = vld [vmem:[%s3501 + $0x320] sm:$0xff]
    %v3603 = vld [vmem:[%s3501 + $0x328] sm:$0xff]
    %v3604 = vld [vmem:[%s3501 + $0x330] sm:$0xff]
    %v3605 = vld [vmem:[%s3501 + $0x338] sm:$0xff]
    %v3606 = vld [vmem:[%s3501 + $0x340] sm:$0xff]
    %v3607 = vld [vmem:[%s3501 + $0x348] sm:$0xff]
    %v3608 = vld [vmem:[%s3501 + $0x350] sm:$0xff]
    %v3609 = vld [vmem:[%s3501 + $0x358] sm:$0xff]
    %v3610 = vld [vmem:[%s3501 + $0x360] sm:$0xff]
    %v3611 = vld [vmem:[%s3501 + $0x368] sm:$0xff]
    %v3612 = vld [vmem:[%s3501 + $0x370] sm:$0xff]
    %v3613 = vld [vmem:[%s3501 + $0x378] sm:$0xff]
    %v3614 = vld [vmem:[%s3501 + $0x380] sm:$0xff]
    %v3615 = vld [vmem:[%s3501 + $0x388] sm:$0xff]
    %v3616 = vld [vmem:[%s3501 + $0x390] sm:$0xff]
    %v3617 = vld [vmem:[%s3501 + $0x398] sm:$0xff]
    %v3618 = vld [vmem:[%s3501 + $0x3a0] sm:$0xff]
    %v3619 = vld [vmem:[%s3501 + $0x3a8] sm:$0xff]
    %v3620 = vld [vmem:[%s3501 + $0x3b0] sm:$0xff]
    %v3621 = vld [vmem:[%s3501 + $0x3b8] sm:$0xff]
    %v3622 = vld [vmem:[%s3501 + $0x3c0] sm:$0xff]
    %v3623 = vld [vmem:[%s3501 + $0x3c8] sm:$0xff]
    %v3624 = vld [vmem:[%s3501 + $0x3d0] sm:$0xff]
    %v3625 = vld [vmem:[%s3501 + $0x3d8] sm:$0xff]
    %v3626 = vld [vmem:[%s3501 + $0x3e0] sm:$0xff]
    %v3627 = vld [vmem:[%s3501 + $0x3e8] sm:$0xff]
    %v3628 = vld [vmem:[%s3501 + $0x3f0] sm:$0xff]
    %v3629 = vld [vmem:[%s3501 + $0x3f8] sm:$0xff]
    %v3630 = vld [vmem:[%s3501 + $0x400] sm:$0xff]
    %v3631 = vld [vmem:[%s3501 + $0x408] sm:$0xff]
    %v3632 = vld [vmem:[%s3501 + $0x410] sm:$0xff]
    %v3633 = vld [vmem:[%s3501 + $0x418] sm:$0xff]
    %v3634 = vld [vmem:[%s3501 + $0x420] sm:$0xff]
    %v3635 = vld [vmem:[%s3501 + $0x428] sm:$0xff]
    %v3636 = vld [vmem:[%s3501 + $0x430] sm:$0xff]
    %v3637 = vld [vmem:[%s3501 + $0x438] sm:$0xff]
    %v3638 = vld [vmem:[%s3501 + $0x440] sm:$0xff]
    %v3639 = vld [vmem:[%s3501 + $0x448] sm:$0xff]
    %v3640 = vld [vmem:[%s3501 + $0x450] sm:$0xff]
    %v3641 = vld [vmem:[%s3501 + $0x458] sm:$0xff]
    %v3642 = vld [vmem:[%s3501 + $0x460] sm:$0xff]
    %v3643 = vld [vmem:[%s3501 + $0x468] sm:$0xff]
    %v3644 = vld [vmem:[%s3501 + $0x470] sm:$0xff]
    %v3645 = vld [vmem:[%s3501 + $0x478] sm:$0xff]
    %v3646 = vld [vmem:[%s3501 + $0x480] sm:$0xff]
    %v3647 = vld [vmem:[%s3501 + $0x488] sm:$0xff]
    %v3648 = vld [vmem:[%s3501 + $0x490] sm:$0xff]
    %v3649 = vld [vmem:[%s3501 + $0x498] sm:$0xff]
    %v3650 = vld [vmem:[%s3501 + $0x4a0] sm:$0xff]
    %v3651 = vld [vmem:[%s3501 + $0x4a8] sm:$0xff]
    %v3652 = vld [vmem:[%s3501 + $0x4b0] sm:$0xff]
    %v3653 = vld [vmem:[%s3501 + $0x4b8] sm:$0xff]
    %v3654 = vld [vmem:[%s3501 + $0x4c0] sm:$0xff]
    %v3655 = vld [vmem:[%s3501 + $0x4c8] sm:$0xff]
    %v3656 = vld [vmem:[%s3501 + $0x4d0] sm:$0xff]
    %v3657 = vld [vmem:[%s3501 + $0x4d8] sm:$0xff]
    %v3658 = vld [vmem:[%s3501 + $0x4e0] sm:$0xff]
    %v3659 = vld [vmem:[%s3501 + $0x4e8] sm:$0xff]
    %v3660 = vld [vmem:[%s3501 + $0x4f0] sm:$0xff]
    %v3661 = vld [vmem:[%s3501 + $0x4f8] sm:$0xff]
    %v3662 = vld [vmem:[%s3501 + $0x500] sm:$0xff]
    %v3663 = vld [vmem:[%s3501 + $0x508] sm:$0xff]
    %3664 = vmatprep.subr.mxu0 %v3503
    %3665 = vmatpush1.msra.mxu0 %v3502
    %3666 = vmatprep.subr.mxu0 %v3505
    %3667 = vmatpush1.msra.mxu0 %v3504
    %3668 = vmatprep.subr.mxu0 %v3507
    %3669 = vmatpush1.msra.mxu0 %v3506
    %3670 = vmatprep.subr.mxu0 %v3509
    %3671 = vmatpush1.msra.mxu0 %v3508
    %3672 = vmatprep.subr.mxu0 %v3511
    %3673 = vmatpush1.msra.mxu0 %v3510
    %3674 = vmatprep.subr.mxu0 %v3513
    %3675 = vmatpush1.msra.mxu0 %v3512
    %3676 = vmatprep.subr.mxu0 %v3515
    %3677 = vmatpush1.msra.mxu0 %v3514
    %3678 = vmatprep.subr.mxu0 %v3517
    %3679 = vmatpush1.msra.mxu0 %v3516
    %3680 = vmatprep.subr.mxu0 %v3519
    %3681 = vmatpush1.msra.mxu0 %v3518
    %3682 = vmatprep.subr.mxu0 %v3521
    %3683 = vmatpush1.msra.mxu0 %v3520
    %3684 = vmatprep.subr.mxu0 %v3523
    %3685 = vmatpush1.msra.mxu0 %v3522
    %3686 = vmatprep.subr.mxu0 %v3525
    %3687 = vmatpush1.msra.mxu0 %v3524
    %3688 = vmatprep.subr.mxu0 %v3527
    %3689 = vmatpush1.msra.mxu0 %v3526
    %3690 = vmatprep.subr.mxu0 %v3529
    %3691 = vmatpush1.msra.mxu0 %v3528
    %3692 = vmatprep.subr.mxu0 %v3531
    %3693 = vmatpush1.msra.mxu0 %v3530
    %3694 = vmatprep.subr.mxu0 %v3533
    %3695 = vmatpush1.msra.mxu0 %v3532
    %3696 = vmatprep.subr.mxu0 %v3535
    %3697 = vmatpush1.msra.mxu0 %v3534
    %3698 = vmatprep.subr.mxu0 %v3537
    %3699 = vmatpush1.msra.mxu0 %v3536
    %3700 = vmatprep.subr.mxu0 %v3539
    %3701 = vmatpush1.msra.mxu0 %v3538
    %3702 = vmatprep.subr.mxu0 %v3541
    %3703 = vmatpush1.msra.mxu0 %v3540
    %3704 = vmatprep.subr.mxu0 %v3543
    %3705 = vmatpush1.msra.mxu0 %v3542
    %3706 = vmatprep.subr.mxu0 %v3545
    %3707 = vmatpush1.msra.mxu0 %v3544
    %3708 = vmatprep.subr.mxu0 %v3547
    %3709 = vmatpush1.msra.mxu0 %v3546
    %3710 = vmatprep.subr.mxu0 %v3549
    %3711 = vmatpush1.msra.mxu0 %v3548
    %3712 = vmatprep.subr.mxu0 %v3551
    %3713 = vmatpush1.msra.mxu0 %v3550
    %3714 = vmatprep.subr.mxu0 %v3553
    %3715 = vmatpush1.msra.mxu0 %v3552
    %3716 = vmatprep.subr.mxu0 %v3555
    %3717 = vmatpush1.msra.mxu0 %v3554
    %3718 = vmatprep.subr.mxu0 %v3557
    %3719 = vmatpush1.msra.mxu0 %v3556
    %3720 = vmatprep.subr.mxu0 %v3559
    %3721 = vmatpush1.msra.mxu0 %v3558
    %3722 = vmatprep.subr.mxu0 %v3561
    %3723 = vmatpush1.msra.mxu0 %v3560
    %3724 = vmatprep.subr.mxu0 %v3563
    %3725 = vmatpush1.msra.mxu0 %v3562
    %3726 = vmatprep.subr.mxu0 %v3565
    %3727 = vmatpush1.msra.mxu0 %v3564
    %3728 = vmatprep.mubr.f32.mxu0 %v3112
    %3729 = vmatmul.mubr.f32.gmra.mrb[0].mxu0 %v3111
    %v3730 = vpop.f32.mrb[0].mxu0
    %v3731 = vadd.f32 0.0, %v3730
    %v3732 = vpop.f32.mrb[0].mxu0
    %v3733 = vadd.f32 0.0, %v3732
    %3734 = vdwg.mxu0
    %3735 = vmatprep.subr.mxu0 %v3567
    %3736 = vmatpush1.msra.mxu0 %v3566
    %3737 = vmatprep.subr.mxu0 %v3569
    %3738 = vmatpush1.msra.mxu0 %v3568
    %3739 = vmatprep.subr.mxu0 %v3571
    %3740 = vmatpush1.msra.mxu0 %v3570
    %3741 = vmatprep.subr.mxu0 %v3573
    %3742 = vmatpush1.msra.mxu0 %v3572
    %3743 = vmatprep.subr.mxu0 %v3575
    %3744 = vmatpush1.msra.mxu0 %v3574
    %3745 = vmatprep.subr.mxu0 %v3577
    %3746 = vmatpush1.msra.mxu0 %v3576
    %3747 = vmatprep.subr.mxu0 %v3579
    %3748 = vmatpush1.msra.mxu0 %v3578
    %3749 = vmatprep.subr.mxu0 %v3581
    %3750 = vmatpush1.msra.mxu0 %v3580
    %3751 = vmatprep.subr.mxu0 %v3583
    %3752 = vmatpush1.msra.mxu0 %v3582
    %3753 = vmatprep.subr.mxu0 %v3585
    %3754 = vmatpush1.msra.mxu0 %v3584
    %3755 = vmatprep.subr.mxu0 %v3587
    %3756 = vmatpush1.msra.mxu0 %v3586
    %3757 = vmatprep.subr.mxu0 %v3589
    %3758 = vmatpush1.msra.mxu0 %v3588
    %3759 = vmatprep.subr.mxu0 %v3591
    %3760 = vmatpush1.msra.mxu0 %v3590
    %3761 = vmatprep.subr.mxu0 %v3593
    %3762 = vmatpush1.msra.mxu0 %v3592
    %3763 = vmatprep.subr.mxu0 %v3595
    %3764 = vmatpush1.msra.mxu0 %v3594
    %3765 = vmatprep.subr.mxu0 %v3597
    %3766 = vmatpush1.msra.mxu0 %v3596
    %3767 = vmatprep.subr.mxu0 %v3599
    %3768 = vmatpush1.msra.mxu0 %v3598
    %3769 = vmatprep.subr.mxu0 %v3601
    %3770 = vmatpush1.msra.mxu0 %v3600
    %3771 = vmatprep.subr.mxu0 %v3603
    %3772 = vmatpush1.msra.mxu0 %v3602
    %3773 = vmatprep.subr.mxu0 %v3605
    %3774 = vmatpush1.msra.mxu0 %v3604
    %3775 = vmatprep.subr.mxu0 %v3607
    %3776 = vmatpush1.msra.mxu0 %v3606
    %3777 = vmatprep.subr.mxu0 %v3609
    %3778 = vmatpush1.msra.mxu0 %v3608
    %3779 = vmatprep.subr.mxu0 %v3611
    %3780 = vmatpush1.msra.mxu0 %v3610
    %3781 = vmatprep.subr.mxu0 %v3613
    %3782 = vmatpush1.msra.mxu0 %v3612
    %3783 = vmatprep.subr.mxu0 %v3615
    %3784 = vmatpush1.msra.mxu0 %v3614
    %3785 = vmatprep.subr.mxu0 %v3617
    %3786 = vmatpush1.msra.mxu0 %v3616
    %3787 = vmatprep.subr.mxu0 %v3619
    %3788 = vmatpush1.msra.mxu0 %v3618
    %3789 = vmatprep.subr.mxu0 %v3621
    %3790 = vmatpush1.msra.mxu0 %v3620
    %3791 = vmatprep.subr.mxu0 %v3623
    %3792 = vmatpush1.msra.mxu0 %v3622
    %3793 = vmatprep.subr.mxu0 %v3625
    %3794 = vmatpush1.msra.mxu0 %v3624
    %3795 = vmatprep.subr.mxu0 %v3627
    %3796 = vmatpush1.msra.mxu0 %v3626
    %3797 = vmatprep.subr.mxu0 %v3629
    %3798 = vmatpush1.msra.mxu0 %v3628
    %3799 = vmatprep.mubr.f32.mxu0 %v3114
    %3800 = vmatmul.mubr.f32.gmra.mrb[0].mxu0 %v3113
    %v3801 = vpop.f32.mrb[0].mxu0
    %v3802 = vadd.f32 %v3731, %v3801
    %v3803 = vpop.f32.mrb[0].mxu0
    %v3804 = vadd.f32 %v3733, %v3803
    %3805 = vdwg.mxu0
    %3806 = vmatprep.subr.mxu0 %v3631
    %3807 = vmatpush1.msra.mxu0 %v3630
    %3808 = vmatprep.subr.mxu0 %v3633
    %3809 = vmatpush1.msra.mxu0 %v3632
    %3810 = vmatprep.subr.mxu0 %v3635
    %3811 = vmatpush1.msra.mxu0 %v3634
    %3812 = vmatprep.subr.mxu0 %v3637
    %3813 = vmatpush1.msra.mxu0 %v3636
    %3814 = vmatprep.subr.mxu0 %v3639
    %3815 = vmatpush1.msra.mxu0 %v3638
    %3816 = vmatprep.subr.mxu0 %v3641
    %3817 = vmatpush1.msra.mxu0 %v3640
    %3818 = vmatprep.subr.mxu0 %v3643
    %3819 = vmatpush1.msra.mxu0 %v3642
    %3820 = vmatprep.subr.mxu0 %v3645
    %3821 = vmatpush1.msra.mxu0 %v3644
    %3822 = vmatprep.subr.mxu0 %v3647
    %3823 = vmatpush1.msra.mxu0 %v3646
    %3824 = vmatprep.subr.mxu0 %v3649
    %3825 = vmatpush1.msra.mxu0 %v3648
    %3826 = vmatprep.subr.mxu0 %v3651
    %3827 = vmatpush1.msra.mxu0 %v3650
    %3828 = vmatprep.subr.mxu0 %v3653
    %3829 = vmatpush1.msra.mxu0 %v3652
    %3830 = vmatprep.subr.mxu0 %v3655
    %3831 = vmatpush1.msra.mxu0 %v3654
    %3832 = vmatprep.subr.mxu0 %v3657
    %3833 = vmatpush1.msra.mxu0 %v3656
    %3834 = vmatprep.subr.mxu0 %v3659
    %3835 = vmatpush1.msra.mxu0 %v3658
    %3836 = vmatprep.subr.mxu0 %v3661
    %3837 = vmatpush1.msra.mxu0 %v3660
    %3838 = vmatprep.subr.mxu0 %v3663
    %3839 = vmatpush1.msra.mxu0 %v3662
    %3840 = vmatprep.subr.mxu0 0.0
    %3841 = vmatpush1.msra.mxu0 0.0
    %3842 = vmatprep.subr.mxu0 0.0
    %3843 = vmatpush1.msra.mxu0 0.0
    %3844 = vmatprep.subr.mxu0 0.0
    %3845 = vmatpush1.msra.mxu0 0.0
    %3846 = vmatprep.subr.mxu0 0.0
    %3847 = vmatpush1.msra.mxu0 0.0
    %3848 = vmatprep.subr.mxu0 0.0
    %3849 = vmatpush1.msra.mxu0 0.0
    %3850 = vmatprep.subr.mxu0 0.0
    %3851 = vmatpush1.msra.mxu0 0.0
    %3852 = vmatprep.subr.mxu0 0.0
    %3853 = vmatpush1.msra.mxu0 0.0
    %3854 = vmatprep.subr.mxu0 0.0
    %3855 = vmatpush1.msra.mxu0 0.0
    %3856 = vmatprep.subr.mxu0 0.0
    %3857 = vmatpush1.msra.mxu0 0.0
    %3858 = vmatprep.subr.mxu0 0.0
    %3859 = vmatpush1.msra.mxu0 0.0
    %3860 = vmatprep.subr.mxu0 0.0
    %3861 = vmatpush1.msra.mxu0 0.0
    %3862 = vmatprep.subr.mxu0 0.0
    %3863 = vmatpush1.msra.mxu0 0.0
    %3864 = vmatprep.subr.mxu0 0.0
    %3865 = vmatpush1.msra.mxu0 0.0
    %3866 = vmatprep.subr.mxu0 0.0
    %3867 = vmatpush1.msra.mxu0 0.0
    %3868 = vmatprep.subr.mxu0 0.0
    %3869 = vmatpush1.msra.mxu0 0.0
    %3870 = vmatprep.mubr.f32.mxu0 %v3281
    %3871 = vmatmul.mubr.f32.gmra.mrb[0].mxu0 %v3115
    %v3872 = vpop.f32.mrb[0].mxu0
    %v3873 = vadd.f32 %v3802, %v3872
    %v3874 = vpop.f32.mrb[0].mxu0
    %v3875 = vadd.f32 %v3804, %v3874
    %3876 = vdwg.mxu0
    %v3879 = vcombine.low %v3873, %v3875
    %s3881 = scalar_lea.vmem %s14, 8
    %3882 = vst [vmem:[%s3881] sm:$0xff] %v3879
    %v3888 = vcombine.low %v3111, %v3112
    %v3889 = vcombine.low %v3113, %v3114
    %v3890 = vcombine.low %v3115, %v3116
    %3894 = vst [vmem:[#allocation3 + $0x4] sm:$0xff] %v3888
    %3895 = vst [vmem:[#allocation3 + $0xc] sm:$0xff] %v3889
    %3896 = vst.msk [vmem:[#allocation3 + $0x14] sm:$0xff] %vm118, %v3890
    %v3897 = vld [vmem:[#allocation3 + $0x4] sm:$0xff]
    %v3898 = vld [vmem:[#allocation3 + $0xc] sm:$0xff]
    %v3899 = vld [vmem:[#allocation3 + $0x14] sm:$0xff]
    %v3903 = vcombine.high %v3897, %v3897
    %v3904 = vcombine.high %v3898, %v3898
    %v3905 = vcombine.high %v3899, %v3899
    %3906 = vrot.lane.b32.xlu0 %v3897, 127
    %v3907 = vpop.permute.xlu0 %3906
    %3908 = vrot.lane.b32.xlu0 %v3903, 127
    %v3909 = vpop.permute.xlu0 %3908
    %3910 = vrot.lane.b32.xlu0 %v3898, 127
    %v3911 = vpop.permute.xlu0 %3910
    %3912 = vrot.lane.b32.xlu0 %v3904, 127
    %v3913 = vpop.permute.xlu0 %3912
    %3914 = vrot.lane.b32.xlu0 %v3899, 127
    %v3915 = vpop.permute.xlu0 %3914
    %3916 = vrot.lane.b32.xlu0 %v3905, 127
    %v3917 = vpop.permute.xlu0 %3916
    %v3918 = vsel %vm208, %v3907, %v3909
    %v3919 = vsel %vm208, %v3909, %v3911
    %v3920 = vsel %vm208, %v3911, %v3913
    %v3921 = vsel %vm208, %v3913, %v3915
    %v3922 = vsel %vm208, %v3915, %v3917
    %v3929 = vmax.f32 %v3111, %v3918
    %v3930 = vmax.f32 %v3112, %v3919
    %v3931 = vmax.f32 %v3113, %v3920
    %v3932 = vmax.f32 %v3114, %v3921
    %v3933 = vmax.f32 %v3115, %v3922
    %v3934 = vmax.f32 %v3116, %v3917
    %3935 = vrot.lane.b32.xlu0 %v3897, 110
    %v3936 = vpop.permute.xlu0 %3935
    %3937 = vrot.lane.b32.xlu0 %v3903, 110
    %v3938 = vpop.permute.xlu0 %3937
    %3939 = vrot.lane.b32.xlu0 %v3898, 110
    %v3940 = vpop.permute.xlu0 %3939
    %3941 = vrot.lane.b32.xlu0 %v3904, 110
    %v3942 = vpop.permute.xlu0 %3941
    %3943 = vrot.lane.b32.xlu0 %v3899, 110
    %v3944 = vpop.permute.xlu0 %3943
    %3945 = vrot.lane.b32.xlu0 %v3905, 110
    %v3946 = vpop.permute.xlu0 %3945
    %v3947 = vsel %vm347, %v3936, %v3938
    %v3948 = vsel %vm347, %v3938, %v3940
    %v3949 = vsel %vm347, %v3940, %v3942
    %v3950 = vsel %vm347, %v3942, %v3944
    %v3951 = vsel %vm347, %v3944, %v3946
    %v3958 = vmax.f32 %v3929, %v3947
    %v3959 = vmax.f32 %v3930, %v3948
    %v3960 = vmax.f32 %v3931, %v3949
    %v3961 = vmax.f32 %v3932, %v3950
    %v3962 = vmax.f32 %v3933, %v3951
    %v3963 = vmax.f32 %v3934, %v3946
    %3964 = vrot.lane.b32.xlu0 %v3897, 109
    %v3965 = vpop.permute.xlu0 %3964
    %3966 = vrot.lane.b32.xlu0 %v3903, 109
    %v3967 = vpop.permute.xlu0 %3966
    %3968 = vrot.lane.b32.xlu0 %v3898, 109
    %v3969 = vpop.permute.xlu0 %3968
    %3970 = vrot.lane.b32.xlu0 %v3904, 109
    %v3971 = vpop.permute.xlu0 %3970
    %3972 = vrot.lane.b32.xlu0 %v3899, 109
    %v3973 = vpop.permute.xlu0 %3972
    %3974 = vrot.lane.b32.xlu0 %v3905, 109
    %v3975 = vpop.permute.xlu0 %3974
    %v3976 = vsel %vm429, %v3965, %v3967
    %v3977 = vsel %vm429, %v3967, %v3969
    %v3978 = vsel %vm429, %v3969, %v3971
    %v3979 = vsel %vm429, %v3971, %v3973
    %v3980 = vsel %vm429, %v3973, %v3975
    %v3987 = vmax.f32 %v3958, %v3976
    %v3988 = vmax.f32 %v3959, %v3977
    %v3989 = vmax.f32 %v3960, %v3978
    %v3990 = vmax.f32 %v3961, %v3979
    %v3991 = vmax.f32 %v3962, %v3980
    %v3992 = vmax.f32 %v3963, %v3975
    %v3993 = vld [vmem:[#allocation10] sm:$0xff]
    %v3994 = vld [vmem:[#allocation10 + $0x8] sm:$0xff]
    %v3995 = vld [vmem:[#allocation10 + $0x10] sm:$0xff]
    %v3996 = vld [vmem:[#allocation10 + $0x18] sm:$0xff]
    %v3997 = vld [vmem:[#allocation10 + $0x20] sm:$0xff]
    %v3998 = vld [vmem:[#allocation10 + $0x28] sm:$0xff]
    %v3999 = vld [vmem:[#allocation10 + $0x30] sm:$0xff]
    %v4000 = vld [vmem:[#allocation10 + $0x38] sm:$0xff]
    %v4001 = vld [vmem:[#allocation10 + $0x40] sm:$0xff]
    %v4002 = vld [vmem:[#allocation10 + $0x48] sm:$0xff]
    %v4003 = vld [vmem:[#allocation10 + $0x50] sm:$0xff]
    %v4004 = vld [vmem:[#allocation10 + $0x58] sm:$0xff]
    %v4005 = vld [vmem:[#allocation10 + $0x60] sm:$0xff]
    %v4006 = vld [vmem:[#allocation10 + $0x68] sm:$0xff]
    %v4007 = vld [vmem:[#allocation10 + $0x70] sm:$0xff]
    %v4008 = vld [vmem:[#allocation10 + $0x78] sm:$0xff]
    %v4009 = vld [vmem:[#allocation10 + $0x80] sm:$0xff]
    %v4010 = vld [vmem:[#allocation10 + $0x88] sm:$0xff]
    %v4011 = vld [vmem:[#allocation10 + $0x90] sm:$0xff]
    %v4012 = vld [vmem:[#allocation10 + $0x98] sm:$0xff]
    %v4013 = vld [vmem:[#allocation10 + $0xa0] sm:$0xff]
    %v4014 = vld [vmem:[#allocation10 + $0xa8] sm:$0xff]
    %v4015 = vld [vmem:[#allocation10 + $0xb0] sm:$0xff]
    %v4016 = vld [vmem:[#allocation10 + $0xb8] sm:$0xff]
    %v4017 = vld [vmem:[#allocation10 + $0xc0] sm:$0xff]
    %v4018 = vld [vmem:[#allocation10 + $0xc8] sm:$0xff]
    %v4019 = vld [vmem:[#allocation10 + $0xd0] sm:$0xff]
    %v4020 = vld [vmem:[#allocation10 + $0xd8] sm:$0xff]
    %v4021 = vld [vmem:[#allocation10 + $0xe0] sm:$0xff]
    %v4022 = vld [vmem:[#allocation10 + $0xe8] sm:$0xff]
    %v4023 = vld [vmem:[#allocation10 + $0xf0] sm:$0xff]
    %v4024 = vld [vmem:[#allocation10 + $0xf8] sm:$0xff]
    %v4025 = vld [vmem:[#allocation10 + $0x100] sm:$0xff]
    %v4026 = vld [vmem:[#allocation10 + $0x108] sm:$0xff]
    %v4027 = vld [vmem:[#allocation10 + $0x110] sm:$0xff]
    %v4028 = vld [vmem:[#allocation10 + $0x118] sm:$0xff]
    %v4029 = vld [vmem:[#allocation10 + $0x120] sm:$0xff]
    %v4030 = vld [vmem:[#allocation10 + $0x128] sm:$0xff]
    %v4031 = vld [vmem:[#allocation10 + $0x130] sm:$0xff]
    %v4032 = vld [vmem:[#allocation10 + $0x138] sm:$0xff]
    %v4033 = vld [vmem:[#allocation10 + $0x140] sm:$0xff]
    %v4034 = vld [vmem:[#allocation10 + $0x148] sm:$0xff]
    %v4035 = vld [vmem:[#allocation10 + $0x150] sm:$0xff]
    %v4036 = vld [vmem:[#allocation10 + $0x158] sm:$0xff]
    %v4037 = vld [vmem:[#allocation10 + $0x160] sm:$0xff]
    %v4038 = vld [vmem:[#allocation10 + $0x168] sm:$0xff]
    %v4039 = vld [vmem:[#allocation10 + $0x170] sm:$0xff]
    %v4040 = vld [vmem:[#allocation10 + $0x178] sm:$0xff]
    %v4041 = vld [vmem:[#allocation10 + $0x180] sm:$0xff]
    %v4042 = vld [vmem:[#allocation10 + $0x188] sm:$0xff]
    %v4043 = vld [vmem:[#allocation10 + $0x190] sm:$0xff]
    %v4044 = vld [vmem:[#allocation10 + $0x198] sm:$0xff]
    %v4045 = vld [vmem:[#allocation10 + $0x1a0] sm:$0xff]
    %v4046 = vld [vmem:[#allocation10 + $0x1a8] sm:$0xff]
    %v4047 = vld [vmem:[#allocation10 + $0x1b0] sm:$0xff]
    %v4048 = vld [vmem:[#allocation10 + $0x1b8] sm:$0xff]
    %v4049 = vld [vmem:[#allocation10 + $0x1c0] sm:$0xff]
    %v4050 = vld [vmem:[#allocation10 + $0x1c8] sm:$0xff]
    %v4051 = vld [vmem:[#allocation10 + $0x1d0] sm:$0xff]
    %v4052 = vld [vmem:[#allocation10 + $0x1d8] sm:$0xff]
    %v4053 = vld [vmem:[#allocation10 + $0x1e0] sm:$0xff]
    %v4054 = vld [vmem:[#allocation10 + $0x1e8] sm:$0xff]
    %v4055 = vld [vmem:[#allocation10 + $0x1f0] sm:$0xff]
    %v4056 = vld [vmem:[#allocation10 + $0x1f8] sm:$0xff]
    %v4057 = vld [vmem:[#allocation10 + $0x200] sm:$0xff]
    %v4058 = vld [vmem:[#allocation10 + $0x208] sm:$0xff]
    %v4059 = vld [vmem:[#allocation10 + $0x210] sm:$0xff]
    %v4060 = vld [vmem:[#allocation10 + $0x218] sm:$0xff]
    %v4061 = vld [vmem:[#allocation10 + $0x220] sm:$0xff]
    %v4062 = vld [vmem:[#allocation10 + $0x228] sm:$0xff]
    %v4063 = vld [vmem:[#allocation10 + $0x230] sm:$0xff]
    %v4064 = vld [vmem:[#allocation10 + $0x238] sm:$0xff]
    %v4065 = vld [vmem:[#allocation10 + $0x240] sm:$0xff]
    %v4066 = vld [vmem:[#allocation10 + $0x248] sm:$0xff]
    %v4067 = vld [vmem:[#allocation10 + $0x250] sm:$0xff]
    %v4068 = vld [vmem:[#allocation10 + $0x258] sm:$0xff]
    %v4069 = vld [vmem:[#allocation10 + $0x260] sm:$0xff]
    %v4070 = vld [vmem:[#allocation10 + $0x268] sm:$0xff]
    %v4071 = vld [vmem:[#allocation10 + $0x270] sm:$0xff]
    %v4072 = vld [vmem:[#allocation10 + $0x278] sm:$0xff]
    %v4073 = vld [vmem:[#allocation10 + $0x280] sm:$0xff]
    %v4074 = vld [vmem:[#allocation10 + $0x288] sm:$0xff]
    %v4075 = vld [vmem:[#allocation10 + $0x290] sm:$0xff]
    %v4076 = vld [vmem:[#allocation10 + $0x298] sm:$0xff]
    %v4077 = vld [vmem:[#allocation10 + $0x2a0] sm:$0xff]
    %v4078 = vld [vmem:[#allocation10 + $0x2a8] sm:$0xff]
    %v4079 = vld [vmem:[#allocation10 + $0x2b0] sm:$0xff]
    %v4080 = vld [vmem:[#allocation10 + $0x2b8] sm:$0xff]
    %v4081 = vld [vmem:[#allocation10 + $0x2c0] sm:$0xff]
    %v4082 = vld [vmem:[#allocation10 + $0x2c8] sm:$0xff]
    %v4083 = vld [vmem:[#allocation10 + $0x2d0] sm:$0xff]
    %v4084 = vld [vmem:[#allocation10 + $0x2d8] sm:$0xff]
    %v4085 = vld [vmem:[#allocation10 + $0x2e0] sm:$0xff]
    %v4086 = vld [vmem:[#allocation10 + $0x2e8] sm:$0xff]
    %v4087 = vld [vmem:[#allocation10 + $0x2f0] sm:$0xff]
    %v4088 = vld [vmem:[#allocation10 + $0x2f8] sm:$0xff]
    %v4089 = vld [vmem:[#allocation10 + $0x300] sm:$0xff]
    %v4090 = vld [vmem:[#allocation10 + $0x308] sm:$0xff]
    %v4091 = vld [vmem:[#allocation10 + $0x310] sm:$0xff]
    %v4092 = vld [vmem:[#allocation10 + $0x318] sm:$0xff]
    %v4093 = vld [vmem:[#allocation10 + $0x320] sm:$0xff]
    %v4094 = vld [vmem:[#allocation10 + $0x328] sm:$0xff]
    %v4095 = vld [vmem:[#allocation10 + $0x330] sm:$0xff]
    %v4096 = vld [vmem:[#allocation10 + $0x338] sm:$0xff]
    %v4097 = vld [vmem:[#allocation10 + $0x340] sm:$0xff]
    %v4098 = vld [vmem:[#allocation10 + $0x348] sm:$0xff]
    %v4099 = vld [vmem:[#allocation10 + $0x350] sm:$0xff]
    %v4100 = vld [vmem:[#allocation10 + $0x358] sm:$0xff]
    %v4101 = vld [vmem:[#allocation10 + $0x360] sm:$0xff]
    %v4102 = vld [vmem:[#allocation10 + $0x368] sm:$0xff]
    %v4103 = vld [vmem:[#allocation10 + $0x370] sm:$0xff]
    %v4104 = vld [vmem:[#allocation10 + $0x378] sm:$0xff]
    %v4105 = vld [vmem:[#allocation10 + $0x380] sm:$0xff]
    %v4106 = vld [vmem:[#allocation10 + $0x388] sm:$0xff]
    %v4107 = vld [vmem:[#allocation10 + $0x390] sm:$0xff]
    %v4108 = vld [vmem:[#allocation10 + $0x398] sm:$0xff]
    %v4109 = vld [vmem:[#allocation10 + $0x3a0] sm:$0xff]
    %v4110 = vld [vmem:[#allocation10 + $0x3a8] sm:$0xff]
    %v4111 = vld [vmem:[#allocation10 + $0x3b0] sm:$0xff]
    %v4112 = vld [vmem:[#allocation10 + $0x3b8] sm:$0xff]
    %v4113 = vld [vmem:[#allocation10 + $0x3c0] sm:$0xff]
    %v4114 = vld [vmem:[#allocation10 + $0x3c8] sm:$0xff]
    %v4115 = vld [vmem:[#allocation10 + $0x3d0] sm:$0xff]
    %v4116 = vld [vmem:[#allocation10 + $0x3d8] sm:$0xff]
    %v4117 = vld [vmem:[#allocation10 + $0x3e0] sm:$0xff]
    %v4118 = vld [vmem:[#allocation10 + $0x3e8] sm:$0xff]
    %v4119 = vld [vmem:[#allocation10 + $0x3f0] sm:$0xff]
    %v4120 = vld [vmem:[#allocation10 + $0x3f8] sm:$0xff]
    %v4121 = vld [vmem:[#allocation10 + $0x400] sm:$0xff]
    %v4122 = vld [vmem:[#allocation10 + $0x408] sm:$0xff]
    %v4123 = vld [vmem:[#allocation10 + $0x410] sm:$0xff]
    %v4124 = vld [vmem:[#allocation10 + $0x418] sm:$0xff]
    %v4125 = vld [vmem:[#allocation10 + $0x420] sm:$0xff]
    %v4126 = vld [vmem:[#allocation10 + $0x428] sm:$0xff]
    %v4127 = vld [vmem:[#allocation10 + $0x430] sm:$0xff]
    %v4128 = vld [vmem:[#allocation10 + $0x438] sm:$0xff]
    %v4129 = vld [vmem:[#allocation10 + $0x440] sm:$0xff]
    %v4130 = vld [vmem:[#allocation10 + $0x448] sm:$0xff]
    %v4131 = vld [vmem:[#allocation10 + $0x450] sm:$0xff]
    %v4132 = vld [vmem:[#allocation10 + $0x458] sm:$0xff]
    %v4133 = vld [vmem:[#allocation10 + $0x460] sm:$0xff]
    %v4134 = vld [vmem:[#allocation10 + $0x468] sm:$0xff]
    %v4135 = vld [vmem:[#allocation10 + $0x470] sm:$0xff]
    %v4136 = vld [vmem:[#allocation10 + $0x478] sm:$0xff]
    %v4137 = vld [vmem:[#allocation10 + $0x480] sm:$0xff]
    %v4138 = vld [vmem:[#allocation10 + $0x488] sm:$0xff]
    %v4139 = vld [vmem:[#allocation10 + $0x490] sm:$0xff]
    %v4140 = vld [vmem:[#allocation10 + $0x498] sm:$0xff]
    %v4141 = vld [vmem:[#allocation10 + $0x4a0] sm:$0xff]
    %v4142 = vld [vmem:[#allocation10 + $0x4a8] sm:$0xff]
    %v4143 = vld [vmem:[#allocation10 + $0x4b0] sm:$0xff]
    %v4144 = vld [vmem:[#allocation10 + $0x4b8] sm:$0xff]
    %v4145 = vld [vmem:[#allocation10 + $0x4c0] sm:$0xff]
    %v4146 = vld [vmem:[#allocation10 + $0x4c8] sm:$0xff]
    %v4147 = vld [vmem:[#allocation10 + $0x4d0] sm:$0xff]
    %v4148 = vld [vmem:[#allocation10 + $0x4d8] sm:$0xff]
    %v4149 = vld [vmem:[#allocation10 + $0x4e0] sm:$0xff]
    %v4150 = vld [vmem:[#allocation10 + $0x4e8] sm:$0xff]
    %v4151 = vld [vmem:[#allocation10 + $0x4f0] sm:$0xff]
    %v4152 = vld [vmem:[#allocation10 + $0x4f8] sm:$0xff]
    %v4153 = vld [vmem:[#allocation10 + $0x500] sm:$0xff]
    %v4154 = vld [vmem:[#allocation10 + $0x508] sm:$0xff]
    %v4156 = vsel %vm3279, %v3992, 0
    %4158 = vmatprep.subr.mxu0 %v3994
    %4159 = vmatpush1.msra.mxu0 %v3993
    %4160 = vmatprep.subr.mxu0 %v3996
    %4161 = vmatpush1.msra.mxu0 %v3995
    %4162 = vmatprep.subr.mxu0 %v3998
    %4163 = vmatpush1.msra.mxu0 %v3997
    %4164 = vmatprep.subr.mxu0 %v4000
    %4165 = vmatpush1.msra.mxu0 %v3999
    %4166 = vmatprep.subr.mxu0 %v4002
    %4167 = vmatpush1.msra.mxu0 %v4001
    %4168 = vmatprep.subr.mxu0 %v4004
    %4169 = vmatpush1.msra.mxu0 %v4003
    %4170 = vmatprep.subr.mxu0 %v4006
    %4171 = vmatpush1.msra.mxu0 %v4005
    %4172 = vmatprep.subr.mxu0 %v4008
    %4173 = vmatpush1.msra.mxu0 %v4007
    %4174 = vmatprep.subr.mxu0 %v4010
    %4175 = vmatpush1.msra.mxu0 %v4009
    %4176 = vmatprep.subr.mxu0 %v4012
    %4177 = vmatpush1.msra.mxu0 %v4011
    %4178 = vmatprep.subr.mxu0 %v4014
    %4179 = vmatpush1.msra.mxu0 %v4013
    %4180 = vmatprep.subr.mxu0 %v4016
    %4181 = vmatpush1.msra.mxu0 %v4015
    %4182 = vmatprep.subr.mxu0 %v4018
    %4183 = vmatpush1.msra.mxu0 %v4017
    %4184 = vmatprep.subr.mxu0 %v4020
    %4185 = vmatpush1.msra.mxu0 %v4019
    %4186 = vmatprep.subr.mxu0 %v4022
    %4187 = vmatpush1.msra.mxu0 %v4021
    %4188 = vmatprep.subr.mxu0 %v4024
    %4189 = vmatpush1.msra.mxu0 %v4023
    %4190 = vmatprep.subr.mxu0 %v4026
    %4191 = vmatpush1.msra.mxu0 %v4025
    %4192 = vmatprep.subr.mxu0 %v4028
    %4193 = vmatpush1.msra.mxu0 %v4027
    %4194 = vmatprep.subr.mxu0 %v4030
    %4195 = vmatpush1.msra.mxu0 %v4029
    %4196 = vmatprep.subr.mxu0 %v4032
    %4197 = vmatpush1.msra.mxu0 %v4031
    %4198 = vmatprep.subr.mxu0 %v4034
    %4199 = vmatpush1.msra.mxu0 %v4033
    %4200 = vmatprep.subr.mxu0 %v4036
    %4201 = vmatpush1.msra.mxu0 %v4035
    %4202 = vmatprep.subr.mxu0 %v4038
    %4203 = vmatpush1.msra.mxu0 %v4037
    %4204 = vmatprep.subr.mxu0 %v4040
    %4205 = vmatpush1.msra.mxu0 %v4039
    %4206 = vmatprep.subr.mxu0 %v4042
    %4207 = vmatpush1.msra.mxu0 %v4041
    %4208 = vmatprep.subr.mxu0 %v4044
    %4209 = vmatpush1.msra.mxu0 %v4043
    %4210 = vmatprep.subr.mxu0 %v4046
    %4211 = vmatpush1.msra.mxu0 %v4045
    %4212 = vmatprep.subr.mxu0 %v4048
    %4213 = vmatpush1.msra.mxu0 %v4047
    %4214 = vmatprep.subr.mxu0 %v4050
    %4215 = vmatpush1.msra.mxu0 %v4049
    %4216 = vmatprep.subr.mxu0 %v4052
    %4217 = vmatpush1.msra.mxu0 %v4051
    %4218 = vmatprep.subr.mxu0 %v4054
    %4219 = vmatpush1.msra.mxu0 %v4053
    %4220 = vmatprep.subr.mxu0 %v4056
    %4221 = vmatpush1.msra.mxu0 %v4055
    %4222 = vmatprep.mubr.f32.mxu0 %v3988
    %4223 = vmatmul.mubr.f32.gmra.mrb[0].mxu0 %v3987
    %v4224 = vpop.f32.mrb[0].mxu0
    %v4225 = vadd.f32 0.0, %v4224
    %v4226 = vpop.f32.mrb[0].mxu0
    %v4227 = vadd.f32 0.0, %v4226
    %4228 = vdwg.mxu0
    %4229 = vmatprep.subr.mxu0 %v4058
    %4230 = vmatpush1.msra.mxu0 %v4057
    %4231 = vmatprep.subr.mxu0 %v4060
    %4232 = vmatpush1.msra.mxu0 %v4059
    %4233 = vmatprep.subr.mxu0 %v4062
    %4234 = vmatpush1.msra.mxu0 %v4061
    %4235 = vmatprep.subr.mxu0 %v4064
    %4236 = vmatpush1.msra.mxu0 %v4063
    %4237 = vmatprep.subr.mxu0 %v4066
    %4238 = vmatpush1.msra.mxu0 %v4065
    %4239 = vmatprep.subr.mxu0 %v4068
    %4240 = vmatpush1.msra.mxu0 %v4067
    %4241 = vmatprep.subr.mxu0 %v4070
    %4242 = vmatpush1.msra.mxu0 %v4069
    %4243 = vmatprep.subr.mxu0 %v4072
    %4244 = vmatpush1.msra.mxu0 %v4071
    %4245 = vmatprep.subr.mxu0 %v4074
    %4246 = vmatpush1.msra.mxu0 %v4073
    %4247 = vmatprep.subr.mxu0 %v4076
    %4248 = vmatpush1.msra.mxu0 %v4075
    %4249 = vmatprep.subr.mxu0 %v4078
    %4250 = vmatpush1.msra.mxu0 %v4077
    %4251 = vmatprep.subr.mxu0 %v4080
    %4252 = vmatpush1.msra.mxu0 %v4079
    %4253 = vmatprep.subr.mxu0 %v4082
    %4254 = vmatpush1.msra.mxu0 %v4081
    %4255 = vmatprep.subr.mxu0 %v4084
    %4256 = vmatpush1.msra.mxu0 %v4083
    %4257 = vmatprep.subr.mxu0 %v4086
    %4258 = vmatpush1.msra.mxu0 %v4085
    %4259 = vmatprep.subr.mxu0 %v4088
    %4260 = vmatpush1.msra.mxu0 %v4087
    %4261 = vmatprep.subr.mxu0 %v4090
    %4262 = vmatpush1.msra.mxu0 %v4089
    %4263 = vmatprep.subr.mxu0 %v4092
    %4264 = vmatpush1.msra.mxu0 %v4091
    %4265 = vmatprep.subr.mxu0 %v4094
    %4266 = vmatpush1.msra.mxu0 %v4093
    %4267 = vmatprep.subr.mxu0 %v4096
    %4268 = vmatpush1.msra.mxu0 %v4095
    %4269 = vmatprep.subr.mxu0 %v4098
    %4270 = vmatpush1.msra.mxu0 %v4097
    %4271 = vmatprep.subr.mxu0 %v4100
    %4272 = vmatpush1.msra.mxu0 %v4099
    %4273 = vmatprep.subr.mxu0 %v4102
    %4274 = vmatpush1.msra.mxu0 %v4101
    %4275 = vmatprep.subr.mxu0 %v4104
    %4276 = vmatpush1.msra.mxu0 %v4103
    %4277 = vmatprep.subr.mxu0 %v4106
    %4278 = vmatpush1.msra.mxu0 %v4105
    %4279 = vmatprep.subr.mxu0 %v4108
    %4280 = vmatpush1.msra.mxu0 %v4107
    %4281 = vmatprep.subr.mxu0 %v4110
    %4282 = vmatpush1.msra.mxu0 %v4109
    %4283 = vmatprep.subr.mxu0 %v4112
    %4284 = vmatpush1.msra.mxu0 %v4111
    %4285 = vmatprep.subr.mxu0 %v4114
    %4286 = vmatpush1.msra.mxu0 %v4113
    %4287 = vmatprep.subr.mxu0 %v4116
    %4288 = vmatpush1.msra.mxu0 %v4115
    %4289 = vmatprep.subr.mxu0 %v4118
    %4290 = vmatpush1.msra.mxu0 %v4117
    %4291 = vmatprep.subr.mxu0 %v4120
    %4292 = vmatpush1.msra.mxu0 %v4119
    %4293 = vmatprep.mubr.f32.mxu0 %v3990
    %4294 = vmatmul.mubr.f32.gmra.mrb[0].mxu0 %v3989
    %v4295 = vpop.f32.mrb[0].mxu0
    %v4296 = vadd.f32 %v4225, %v4295
    %v4297 = vpop.f32.mrb[0].mxu0
    %v4298 = vadd.f32 %v4227, %v4297
    %4299 = vdwg.mxu0
    %4300 = vmatprep.subr.mxu0 %v4122
    %4301 = vmatpush1.msra.mxu0 %v4121
    %4302 = vmatprep.subr.mxu0 %v4124
    %4303 = vmatpush1.msra.mxu0 %v4123
    %4304 = vmatprep.subr.mxu0 %v4126
    %4305 = vmatpush1.msra.mxu0 %v4125
    %4306 = vmatprep.subr.mxu0 %v4128
    %4307 = vmatpush1.msra.mxu0 %v4127
    %4308 = vmatprep.subr.mxu0 %v4130
    %4309 = vmatpush1.msra.mxu0 %v4129
    %4310 = vmatprep.subr.mxu0 %v4132
    %4311 = vmatpush1.msra.mxu0 %v4131
    %4312 = vmatprep.subr.mxu0 %v4134
    %4313 = vmatpush1.msra.mxu0 %v4133
    %4314 = vmatprep.subr.mxu0 %v4136
    %4315 = vmatpush1.msra.mxu0 %v4135
    %4316 = vmatprep.subr.mxu0 %v4138
    %4317 = vmatpush1.msra.mxu0 %v4137
    %4318 = vmatprep.subr.mxu0 %v4140
    %4319 = vmatpush1.msra.mxu0 %v4139
    %4320 = vmatprep.subr.mxu0 %v4142
    %4321 = vmatpush1.msra.mxu0 %v4141
    %4322 = vmatprep.subr.mxu0 %v4144
    %4323 = vmatpush1.msra.mxu0 %v4143
    %4324 = vmatprep.subr.mxu0 %v4146
    %4325 = vmatpush1.msra.mxu0 %v4145
    %4326 = vmatprep.subr.mxu0 %v4148
    %4327 = vmatpush1.msra.mxu0 %v4147
    %4328 = vmatprep.subr.mxu0 %v4150
    %4329 = vmatpush1.msra.mxu0 %v4149
    %4330 = vmatprep.subr.mxu0 %v4152
    %4331 = vmatpush1.msra.mxu0 %v4151
    %4332 = vmatprep.subr.mxu0 %v4154
    %4333 = vmatpush1.msra.mxu0 %v4153
    %4334 = vmatprep.subr.mxu0 0.0
    %4335 = vmatpush1.msra.mxu0 0.0
    %4336 = vmatprep.subr.mxu0 0.0
    %4337 = vmatpush1.msra.mxu0 0.0
    %4338 = vmatprep.subr.mxu0 0.0
    %4339 = vmatpush1.msra.mxu0 0.0
    %4340 = vmatprep.subr.mxu0 0.0
    %4341 = vmatpush1.msra.mxu0 0.0
    %4342 = vmatprep.subr.mxu0 0.0
    %4343 = vmatpush1.msra.mxu0 0.0
    %4344 = vmatprep.subr.mxu0 0.0
    %4345 = vmatpush1.msra.mxu0 0.0
    %4346 = vmatprep.subr.mxu0 0.0
    %4347 = vmatpush1.msra.mxu0 0.0
    %4348 = vmatprep.subr.mxu0 0.0
    %4349 = vmatpush1.msra.mxu0 0.0
    %4350 = vmatprep.subr.mxu0 0.0
    %4351 = vmatpush1.msra.mxu0 0.0
    %4352 = vmatprep.subr.mxu0 0.0
    %4353 = vmatpush1.msra.mxu0 0.0
    %4354 = vmatprep.subr.mxu0 0.0
    %4355 = vmatpush1.msra.mxu0 0.0
    %4356 = vmatprep.subr.mxu0 0.0
    %4357 = vmatpush1.msra.mxu0 0.0
    %4358 = vmatprep.subr.mxu0 0.0
    %4359 = vmatpush1.msra.mxu0 0.0
    %4360 = vmatprep.subr.mxu0 0.0
    %4361 = vmatpush1.msra.mxu0 0.0
    %4362 = vmatprep.subr.mxu0 0.0
    %4363 = vmatpush1.msra.mxu0 0.0
    %4364 = vmatprep.mubr.f32.mxu0 %v4156
    %4365 = vmatmul.mubr.f32.gmra.mrb[0].mxu0 %v3991
    %v4366 = vpop.f32.mrb[0].mxu0
    %v4367 = vadd.f32 %v4296, %v4366
    %v4368 = vpop.f32.mrb[0].mxu0
    %v4369 = vadd.f32 %v4298, %v4368
    %4370 = vdwg.mxu0
    %v4373 = vcombine.low %v4367, %v4369
    %4375 = vst.msk [vmem:[#allocation4 + $0x4] sm:$0xff] %vm126, %v4373
    %v4376 = vld [vmem:[#allocation4] sm:$0xff]
    %v4377 = vld [vmem:[#allocation4 + $0x8] sm:$0xf]
    %v4378 = vld [vmem:[%s8] sm:$0xff]
    %s4379 = scalar_lea.vmem %s8, 8
    %v4380 = vld [vmem:[%s4379] sm:$0xff]
    %v4383 = vcombine.high %v4376, %v4376
    %4384 = vrot.lane.b32.xlu0 %v4376, 10
    %v4385 = vpop.permute.xlu0 %4384
    %4386 = vrot.lane.b32.xlu0 %v4383, 10
    %v4387 = vpop.permute.xlu0 %4386
    %4388 = vrot.lane.b32.xlu0 %v4377, 10
    %v4389 = vpop.permute.xlu0 %4388
    %vm4390 = vcmask 80896
    %v4391 = vsel %vm4390, %v4385, %v4387
    %v4392 = vsel %vm4390, %v4387, %v4389
    %v4394 = vsel %vm788, %v4380, 0
    %v4396 = vsel %vm116, %v4391, 0
    %v4398 = vsel %vm116, %v4392, 0
    %4400 = vmatprep.subr.mxu0 %v4398
    %4401 = vmatpush1.msra.mxu0 %v4396
    %4402 = vmatprep.subr.mxu0 0.0
    %4403 = vmatpush1.msra.mxu0 0.0
    %4404 = vmatprep.subr.mxu0 0.0
    %4405 = vmatpush1.msra.mxu0 0.0
    %4406 = vmatprep.subr.mxu0 0.0
    %4407 = vmatpush1.msra.mxu0 0.0
    %4408 = vmatprep.subr.mxu0 0.0
    %4409 = vmatpush1.msra.mxu0 0.0
    %4410 = vmatprep.subr.mxu0 0.0
    %4411 = vmatpush1.msra.mxu0 0.0
    %4412 = vmatprep.subr.mxu0 0.0
    %4413 = vmatpush1.msra.mxu0 0.0
    %4414 = vmatprep.subr.mxu0 0.0
    %4415 = vmatpush1.msra.mxu0 0.0
    %4416 = vmatprep.subr.mxu0 0.0
    %4417 = vmatpush1.msra.mxu0 0.0
    %4418 = vmatprep.subr.mxu0 0.0
    %4419 = vmatpush1.msra.mxu0 0.0
    %4420 = vmatprep.subr.mxu0 0.0
    %4421 = vmatpush1.msra.mxu0 0.0
    %4422 = vmatprep.subr.mxu0 0.0
    %4423 = vmatpush1.msra.mxu0 0.0
    %4424 = vmatprep.subr.mxu0 0.0
    %4425 = vmatpush1.msra.mxu0 0.0
    %4426 = vmatprep.subr.mxu0 0.0
    %4427 = vmatpush1.msra.mxu0 0.0
    %4428 = vmatprep.subr.mxu0 0.0
    %4429 = vmatpush1.msra.mxu0 0.0
    %4430 = vmatprep.subr.mxu0 0.0
    %4431 = vmatpush1.msra.mxu0 0.0
    %4432 = vmatprep.subr.mxu0 0.0
    %4433 = vmatpush1.msra.mxu0 0.0
    %4434 = vmatprep.subr.mxu0 0.0
    %4435 = vmatpush1.msra.mxu0 0.0
    %4436 = vmatprep.subr.mxu0 0.0
    %4437 = vmatpush1.msra.mxu0 0.0
    %4438 = vmatprep.subr.mxu0 0.0
    %4439 = vmatpush1.msra.mxu0 0.0
    %4440 = vmatprep.subr.mxu0 0.0
    %4441 = vmatpush1.msra.mxu0 0.0
    %4442 = vmatprep.subr.mxu0 0.0
    %4443 = vmatpush1.msra.mxu0 0.0
    %4444 = vmatprep.subr.mxu0 0.0
    %4445 = vmatpush1.msra.mxu0 0.0
    %4446 = vmatprep.subr.mxu0 0.0
    %4447 = vmatpush1.msra.mxu0 0.0
    %4448 = vmatprep.subr.mxu0 0.0
    %4449 = vmatpush1.msra.mxu0 0.0
    %4450 = vmatprep.subr.mxu0 0.0
    %4451 = vmatpush1.msra.mxu0 0.0
    %4452 = vmatprep.subr.mxu0 0.0
    %4453 = vmatpush1.msra.mxu0 0.0
    %4454 = vmatprep.subr.mxu0 0.0
    %4455 = vmatpush1.msra.mxu0 0.0
    %4456 = vmatprep.subr.mxu0 0.0
    %4457 = vmatpush1.msra.mxu0 0.0
    %4458 = vmatprep.subr.mxu0 0.0
    %4459 = vmatpush1.msra.mxu0 0.0
    %4460 = vmatprep.subr.mxu0 0.0
    %4461 = vmatpush1.msra.mxu0 0.0
    %4462 = vmatprep.subr.mxu0 0.0
    %4463 = vmatpush1.msra.mxu0 0.0
    %4464 = vmatprep.mubr.f32.mxu0 0.0
    %4465 = vmatmul.mubr.f32.gmra.mrb[0].mxu0 %v4394
    %v4466 = vpop.f32.mrb[0].mxu0
    %v4467 = vadd.f32 0.0, %v4466
    %v4468 = vpop.f32.mrb[0].mxu0
    %v4469 = vadd.f32 0.0, %v4468
    %4470 = vdwg.mxu0
    %4471 = vrot.lane.b32.xlu0 %v4376, 11
    %v4472 = vpop.permute.xlu0 %4471
    %4473 = vrot.lane.b32.xlu0 %v4383, 11
    %v4474 = vpop.permute.xlu0 %4473
    %4475 = vrot.lane.b32.xlu0 %v4377, 11
    %v4476 = vpop.permute.xlu0 %4475
    %vm4477 = vcmask 89088
    %v4478 = vsel %vm4477, %v4472, %v4474
    %v4479 = vsel %vm4477, %v4474, %v4476
    %v4481 = vsel %vm788, %v4378, 0
    %v4483 = vsel %vm116, %v4478, 0
    %v4485 = vsel %vm116, %v4479, 0
    %4487 = vmatprep.subr.mxu0 %v4485
    %4488 = vmatpush1.msra.mxu0 %v4483
    %4489 = vmatprep.subr.mxu0 0.0
    %4490 = vmatpush1.msra.mxu0 0.0
    %4491 = vmatprep.subr.mxu0 0.0
    %4492 = vmatpush1.msra.mxu0 0.0
    %4493 = vmatprep.subr.mxu0 0.0
    %4494 = vmatpush1.msra.mxu0 0.0
    %4495 = vmatprep.subr.mxu0 0.0
    %4496 = vmatpush1.msra.mxu0 0.0
    %4497 = vmatprep.subr.mxu0 0.0
    %4498 = vmatpush1.msra.mxu0 0.0
    %4499 = vmatprep.subr.mxu0 0.0
    %4500 = vmatpush1.msra.mxu0 0.0
    %4501 = vmatprep.subr.mxu0 0.0
    %4502 = vmatpush1.msra.mxu0 0.0
    %4503 = vmatprep.subr.mxu0 0.0
    %4504 = vmatpush1.msra.mxu0 0.0
    %4505 = vmatprep.subr.mxu0 0.0
    %4506 = vmatpush1.msra.mxu0 0.0
    %4507 = vmatprep.subr.mxu0 0.0
    %4508 = vmatpush1.msra.mxu0 0.0
    %4509 = vmatprep.subr.mxu0 0.0
    %4510 = vmatpush1.msra.mxu0 0.0
    %4511 = vmatprep.subr.mxu0 0.0
    %4512 = vmatpush1.msra.mxu0 0.0
    %4513 = vmatprep.subr.mxu0 0.0
    %4514 = vmatpush1.msra.mxu0 0.0
    %4515 = vmatprep.subr.mxu0 0.0
    %4516 = vmatpush1.msra.mxu0 0.0
    %4517 = vmatprep.subr.mxu0 0.0
    %4518 = vmatpush1.msra.mxu0 0.0
    %4519 = vmatprep.subr.mxu0 0.0
    %4520 = vmatpush1.msra.mxu0 0.0
    %4521 = vmatprep.subr.mxu0 0.0
    %4522 = vmatpush1.msra.mxu0 0.0
    %4523 = vmatprep.subr.mxu0 0.0
    %4524 = vmatpush1.msra.mxu0 0.0
    %4525 = vmatprep.subr.mxu0 0.0
    %4526 = vmatpush1.msra.mxu0 0.0
    %4527 = vmatprep.subr.mxu0 0.0
    %4528 = vmatpush1.msra.mxu0 0.0
    %4529 = vmatprep.subr.mxu0 0.0
    %4530 = vmatpush1.msra.mxu0 0.0
    %4531 = vmatprep.subr.mxu0 0.0
    %4532 = vmatpush1.msra.mxu0 0.0
    %4533 = vmatprep.subr.mxu0 0.0
    %4534 = vmatpush1.msra.mxu0 0.0
    %4535 = vmatprep.subr.mxu0 0.0
    %4536 = vmatpush1.msra.mxu0 0.0
    %4537 = vmatprep.subr.mxu0 0.0
    %4538 = vmatpush1.msra.mxu0 0.0
    %4539 = vmatprep.subr.mxu0 0.0
    %4540 = vmatpush1.msra.mxu0 0.0
    %4541 = vmatprep.subr.mxu0 0.0
    %4542 = vmatpush1.msra.mxu0 0.0
    %4543 = vmatprep.subr.mxu0 0.0
    %4544 = vmatpush1.msra.mxu0 0.0
    %4545 = vmatprep.subr.mxu0 0.0
    %4546 = vmatpush1.msra.mxu0 0.0
    %4547 = vmatprep.subr.mxu0 0.0
    %4548 = vmatpush1.msra.mxu0 0.0
    %4549 = vmatprep.subr.mxu0 0.0
    %4550 = vmatpush1.msra.mxu0 0.0
    %4551 = vmatprep.mubr.f32.mxu0 0.0
    %4552 = vmatmul.mubr.f32.gmra.mrb[0].mxu0 %v4481
    %v4553 = vpop.f32.mrb[0].mxu0
    %v4554 = vadd.f32 %v4467, %v4553
    %v4555 = vpop.f32.mrb[0].mxu0
    %v4556 = vadd.f32 %v4469, %v4555
    %4557 = vdwg.mxu0
    %v4558 = vld [vmem:[#allocation4] sm:$0xff]
    %v4559 = vld [vmem:[#allocation4 + $0x8] sm:$0xf]
    %s4560 = scalar_lea.vmem %s8, 16
    %v4561 = vld [vmem:[%s4560] sm:$0xff]
    %v4564 = vcombine.high %v4558, %v4558
    %4565 = vrot.lane.b32.xlu0 %v4558, 9
    %v4566 = vpop.permute.xlu0 %4565
    %4567 = vrot.lane.b32.xlu0 %v4564, 9
    %v4568 = vpop.permute.xlu0 %4567
    %4569 = vrot.lane.b32.xlu0 %v4559, 9
    %v4570 = vpop.permute.xlu0 %4569
    %vm4571 = vcmask 72704
    %v4572 = vsel %vm4571, %v4566, %v4568
    %v4573 = vsel %vm4571, %v4568, %v4570
    %v4575 = vsel %vm788, %v4561, 0
    %v4577 = vsel %vm116, %v4572, 0
    %v4579 = vsel %vm116, %v4573, 0
    %4581 = vmatprep.subr.mxu0 %v4579
    %4582 = vmatpush1.msra.mxu0 %v4577
    %4583 = vmatprep.subr.mxu0 0.0
    %4584 = vmatpush1.msra.mxu0 0.0
    %4585 = vmatprep.subr.mxu0 0.0
    %4586 = vmatpush1.msra.mxu0 0.0
    %4587 = vmatprep.subr.mxu0 0.0
    %4588 = vmatpush1.msra.mxu0 0.0
    %4589 = vmatprep.subr.mxu0 0.0
    %4590 = vmatpush1.msra.mxu0 0.0
    %4591 = vmatprep.subr.mxu0 0.0
    %4592 = vmatpush1.msra.mxu0 0.0
    %4593 = vmatprep.subr.mxu0 0.0
    %4594 = vmatpush1.msra.mxu0 0.0
    %4595 = vmatprep.subr.mxu0 0.0
    %4596 = vmatpush1.msra.mxu0 0.0
    %4597 = vmatprep.subr.mxu0 0.0
    %4598 = vmatpush1.msra.mxu0 0.0
    %4599 = vmatprep.subr.mxu0 0.0
    %4600 = vmatpush1.msra.mxu0 0.0
    %4601 = vmatprep.subr.mxu0 0.0
    %4602 = vmatpush1.msra.mxu0 0.0
    %4603 = vmatprep.subr.mxu0 0.0
    %4604 = vmatpush1.msra.mxu0 0.0
    %4605 = vmatprep.subr.mxu0 0.0
    %4606 = vmatpush1.msra.mxu0 0.0
    %4607 = vmatprep.subr.mxu0 0.0
    %4608 = vmatpush1.msra.mxu0 0.0
    %4609 = vmatprep.subr.mxu0 0.0
    %4610 = vmatpush1.msra.mxu0 0.0
    %4611 = vmatprep.subr.mxu0 0.0
    %4612 = vmatpush1.msra.mxu0 0.0
    %4613 = vmatprep.subr.mxu0 0.0
    %4614 = vmatpush1.msra.mxu0 0.0
    %4615 = vmatprep.subr.mxu0 0.0
    %4616 = vmatpush1.msra.mxu0 0.0
    %4617 = vmatprep.subr.mxu0 0.0
    %4618 = vmatpush1.msra.mxu0 0.0
    %4619 = vmatprep.subr.mxu0 0.0
    %4620 = vmatpush1.msra.mxu0 0.0
    %4621 = vmatprep.subr.mxu0 0.0
    %4622 = vmatpush1.msra.mxu0 0.0
    %4623 = vmatprep.subr.mxu0 0.0
    %4624 = vmatpush1.msra.mxu0 0.0
    %4625 = vmatprep.subr.mxu0 0.0
    %4626 = vmatpush1.msra.mxu0 0.0
    %4627 = vmatprep.subr.mxu0 0.0
    %4628 = vmatpush1.msra.mxu0 0.0
    %4629 = vmatprep.subr.mxu0 0.0
    %4630 = vmatpush1.msra.mxu0 0.0
    %4631 = vmatprep.subr.mxu0 0.0
    %4632 = vmatpush1.msra.mxu0 0.0
    %4633 = vmatprep.subr.mxu0 0.0
    %4634 = vmatpush1.msra.mxu0 0.0
    %4635 = vmatprep.subr.mxu0 0.0
    %4636 = vmatpush1.msra.mxu0 0.0
    %4637 = vmatprep.subr.mxu0 0.0
    %4638 = vmatpush1.msra.mxu0 0.0
    %4639 = vmatprep.subr.mxu0 0.0
    %4640 = vmatpush1.msra.mxu0 0.0
    %4641 = vmatprep.subr.mxu0 0.0
    %4642 = vmatpush1.msra.mxu0 0.0
    %4643 = vmatprep.subr.mxu0 0.0
    %4644 = vmatpush1.msra.mxu0 0.0
    %4645 = vmatprep.mubr.f32.mxu0 0.0
    %4646 = vmatmul.mubr.f32.gmra.mrb[0].mxu0 %v4575
    %v4647 = vpop.f32.mrb[0].mxu0
    %v4648 = vadd.f32 0.0, %v4647
    %v4649 = vpop.f32.mrb[0].mxu0
    %v4650 = vadd.f32 0.0, %v4649
    %4651 = vdwg.mxu0
    %v4652 = vadd.f32 %v4554, %v4648
    %v4653 = vadd.f32 %v4556, %v4650
    %v4654 = vld [vmem:[#allocation4] sm:$0xff]
    %v4655 = vld [vmem:[#allocation4 + $0x8] sm:$0xf]
    %s4656 = scalar_lea.vmem %s8, 24
    %v4657 = vld [vmem:[%s4656] sm:$0xff]
    %v4660 = vcombine.high %v4654, %v4654
    %4661 = vrot.lane.b32.xlu0 %v4654, 1
    %v4662 = vpop.permute.xlu0 %4661
    %4663 = vrot.lane.b32.xlu0 %v4660, 1
    %v4664 = vpop.permute.xlu0 %4663
    %4665 = vrot.lane.b32.xlu0 %v4655, 1
    %v4666 = vpop.permute.xlu0 %4665
    %v4667 = vsel %vm1552, %v4662, %v4664
    %v4668 = vsel %vm1552, %v4664, %v4666
    %v4670 = vsel %vm788, %v4657, 0
    %v4672 = vsel %vm116, %v4667, 0
    %v4674 = vsel %vm116, %v4668, 0
    %4676 = vmatprep.subr.mxu0 %v4674
    %4677 = vmatpush1.msra.mxu0 %v4672
    %4678 = vmatprep.subr.mxu0 0.0
    %4679 = vmatpush1.msra.mxu0 0.0
    %4680 = vmatprep.subr.mxu0 0.0
    %4681 = vmatpush1.msra.mxu0 0.0
    %4682 = vmatprep.subr.mxu0 0.0
    %4683 = vmatpush1.msra.mxu0 0.0
    %4684 = vmatprep.subr.mxu0 0.0
    %4685 = vmatpush1.msra.mxu0 0.0
    %4686 = vmatprep.subr.mxu0 0.0
    %4687 = vmatpush1.msra.mxu0 0.0
    %4688 = vmatprep.subr.mxu0 0.0
    %4689 = vmatpush1.msra.mxu0 0.0
    %4690 = vmatprep.subr.mxu0 0.0
    %4691 = vmatpush1.msra.mxu0 0.0
    %4692 = vmatprep.subr.mxu0 0.0
    %4693 = vmatpush1.msra.mxu0 0.0
    %4694 = vmatprep.subr.mxu0 0.0
    %4695 = vmatpush1.msra.mxu0 0.0
    %4696 = vmatprep.subr.mxu0 0.0
    %4697 = vmatpush1.msra.mxu0 0.0
    %4698 = vmatprep.subr.mxu0 0.0
    %4699 = vmatpush1.msra.mxu0 0.0
    %4700 = vmatprep.subr.mxu0 0.0
    %4701 = vmatpush1.msra.mxu0 0.0
    %4702 = vmatprep.subr.mxu0 0.0
    %4703 = vmatpush1.msra.mxu0 0.0
    %4704 = vmatprep.subr.mxu0 0.0
    %4705 = vmatpush1.msra.mxu0 0.0
    %4706 = vmatprep.subr.mxu0 0.0
    %4707 = vmatpush1.msra.mxu0 0.0
    %4708 = vmatprep.subr.mxu0 0.0
    %4709 = vmatpush1.msra.mxu0 0.0
    %4710 = vmatprep.subr.mxu0 0.0
    %4711 = vmatpush1.msra.mxu0 0.0
    %4712 = vmatprep.subr.mxu0 0.0
    %4713 = vmatpush1.msra.mxu0 0.0
    %4714 = vmatprep.subr.mxu0 0.0
    %4715 = vmatpush1.msra.mxu0 0.0
    %4716 = vmatprep.subr.mxu0 0.0
    %4717 = vmatpush1.msra.mxu0 0.0
    %4718 = vmatprep.subr.mxu0 0.0
    %4719 = vmatpush1.msra.mxu0 0.0
    %4720 = vmatprep.subr.mxu0 0.0
    %4721 = vmatpush1.msra.mxu0 0.0
    %4722 = vmatprep.subr.mxu0 0.0
    %4723 = vmatpush1.msra.mxu0 0.0
    %4724 = vmatprep.subr.mxu0 0.0
    %4725 = vmatpush1.msra.mxu0 0.0
    %4726 = vmatprep.subr.mxu0 0.0
    %4727 = vmatpush1.msra.mxu0 0.0
    %4728 = vmatprep.subr.mxu0 0.0
    %4729 = vmatpush1.msra.mxu0 0.0
    %4730 = vmatprep.subr.mxu0 0.0
    %4731 = vmatpush1.msra.mxu0 0.0
    %4732 = vmatprep.subr.mxu0 0.0
    %4733 = vmatpush1.msra.mxu0 0.0
    %4734 = vmatprep.subr.mxu0 0.0
    %4735 = vmatpush1.msra.mxu0 0.0
    %4736 = vmatprep.subr.mxu0 0.0
    %4737 = vmatpush1.msra.mxu0 0.0
    %4738 = vmatprep.subr.mxu0 0.0
    %4739 = vmatpush1.msra.mxu0 0.0
    %4740 = vmatprep.mubr.f32.mxu0 0.0
    %4741 = vmatmul.mubr.f32.gmra.mrb[0].mxu0 %v4670
    %v4742 = vpop.f32.mrb[0].mxu0
    %v4743 = vadd.f32 0.0, %v4742
    %v4744 = vpop.f32.mrb[0].mxu0
    %v4745 = vadd.f32 0.0, %v4744
    %4746 = vdwg.mxu0
    %v4747 = vadd.f32 %v4652, %v4743
    %v4748 = vadd.f32 %v4653, %v4745
    %v4749 = vld [vmem:[#allocation4 + $0x4] sm:$0xff]
    %s4750 = scalar_lea.vmem %s8, 32
    %v4751 = vld [vmem:[%s4750] sm:$0xff]
    %v4753 = vcombine.high %v4749, %v4749
    %v4755 = vsel %vm788, %v4751, 0
    %v4757 = vsel %vm116, %v4749, 0
    %v4759 = vsel %vm116, %v4753, 0
    %4761 = vmatprep.subr.mxu0 %v4759
    %4762 = vmatpush1.msra.mxu0 %v4757
    %4763 = vmatprep.subr.mxu0 0.0
    %4764 = vmatpush1.msra.mxu0 0.0
    %4765 = vmatprep.subr.mxu0 0.0
    %4766 = vmatpush1.msra.mxu0 0.0
    %4767 = vmatprep.subr.mxu0 0.0
    %4768 = vmatpush1.msra.mxu0 0.0
    %4769 = vmatprep.subr.mxu0 0.0
    %4770 = vmatpush1.msra.mxu0 0.0
    %4771 = vmatprep.subr.mxu0 0.0
    %4772 = vmatpush1.msra.mxu0 0.0
    %4773 = vmatprep.subr.mxu0 0.0
    %4774 = vmatpush1.msra.mxu0 0.0
    %4775 = vmatprep.subr.mxu0 0.0
    %4776 = vmatpush1.msra.mxu0 0.0
    %4777 = vmatprep.subr.mxu0 0.0
    %4778 = vmatpush1.msra.mxu0 0.0
    %4779 = vmatprep.subr.mxu0 0.0
    %4780 = vmatpush1.msra.mxu0 0.0
    %4781 = vmatprep.subr.mxu0 0.0
    %4782 = vmatpush1.msra.mxu0 0.0
    %4783 = vmatprep.subr.mxu0 0.0
    %4784 = vmatpush1.msra.mxu0 0.0
    %4785 = vmatprep.subr.mxu0 0.0
    %4786 = vmatpush1.msra.mxu0 0.0
    %4787 = vmatprep.subr.mxu0 0.0
    %4788 = vmatpush1.msra.mxu0 0.0
    %4789 = vmatprep.subr.mxu0 0.0
    %4790 = vmatpush1.msra.mxu0 0.0
    %4791 = vmatprep.subr.mxu0 0.0
    %4792 = vmatpush1.msra.mxu0 0.0
    %4793 = vmatprep.subr.mxu0 0.0
    %4794 = vmatpush1.msra.mxu0 0.0
    %4795 = vmatprep.subr.mxu0 0.0
    %4796 = vmatpush1.msra.mxu0 0.0
    %4797 = vmatprep.subr.mxu0 0.0
    %4798 = vmatpush1.msra.mxu0 0.0
    %4799 = vmatprep.subr.mxu0 0.0
    %4800 = vmatpush1.msra.mxu0 0.0
    %4801 = vmatprep.subr.mxu0 0.0
    %4802 = vmatpush1.msra.mxu0 0.0
    %4803 = vmatprep.subr.mxu0 0.0
    %4804 = vmatpush1.msra.mxu0 0.0
    %4805 = vmatprep.subr.mxu0 0.0
    %4806 = vmatpush1.msra.mxu0 0.0
    %4807 = vmatprep.subr.mxu0 0.0
    %4808 = vmatpush1.msra.mxu0 0.0
    %4809 = vmatprep.subr.mxu0 0.0
    %4810 = vmatpush1.msra.mxu0 0.0
    %4811 = vmatprep.subr.mxu0 0.0
    %4812 = vmatpush1.msra.mxu0 0.0
    %4813 = vmatprep.subr.mxu0 0.0
    %4814 = vmatpush1.msra.mxu0 0.0
    %4815 = vmatprep.subr.mxu0 0.0
    %4816 = vmatpush1.msra.mxu0 0.0
    %4817 = vmatprep.subr.mxu0 0.0
    %4818 = vmatpush1.msra.mxu0 0.0
    %4819 = vmatprep.subr.mxu0 0.0
    %4820 = vmatpush1.msra.mxu0 0.0
    %4821 = vmatprep.subr.mxu0 0.0
    %4822 = vmatpush1.msra.mxu0 0.0
    %4823 = vmatprep.subr.mxu0 0.0
    %4824 = vmatpush1.msra.mxu0 0.0
    %4825 = vmatprep.mubr.f32.mxu0 0.0
    %4826 = vmatmul.mubr.f32.gmra.mrb[0].mxu0 %v4755
    %v4827 = vpop.f32.mrb[0].mxu0
    %v4828 = vadd.f32 0.0, %v4827
    %v4829 = vpop.f32.mrb[0].mxu0
    %v4830 = vadd.f32 0.0, %v4829
    %4831 = vdwg.mxu0
    %v4832 = vadd.f32 %v4747, %v4828
    %v4833 = vadd.f32 %v4748, %v4830
    %v4834 = vld [vmem:[#allocation4 + $0x4] sm:$0xff]
    %s4835 = scalar_lea.vmem %s8, 40
    %v4836 = vld [vmem:[%s4835] sm:$0xff]
    %v4838 = vcombine.high %v4834, %v4834
    %4839 = vrot.lane.b32.xlu0 %v4834, 127
    %v4840 = vpop.permute.xlu0 %4839
    %4841 = vrot.lane.b32.xlu0 %v4838, 127
    %v4842 = vpop.permute.xlu0 %4841
    %v4843 = vsel %vm208, %v4840, %v4842
    %v4845 = vsel %vm788, %v4836, 0
    %v4847 = vsel %vm116, %v4843, 0
    %v4849 = vsel %vm116, %v4842, 0
    %4851 = vmatprep.subr.mxu0 %v4849
    %4852 = vmatpush1.msra.mxu0 %v4847
    %4853 = vmatprep.subr.mxu0 0.0
    %4854 = vmatpush1.msra.mxu0 0.0
    %4855 = vmatprep.subr.mxu0 0.0
    %4856 = vmatpush1.msra.mxu0 0.0
    %4857 = vmatprep.subr.mxu0 0.0
    %4858 = vmatpush1.msra.mxu0 0.0
    %4859 = vmatprep.subr.mxu0 0.0
    %4860 = vmatpush1.msra.mxu0 0.0
    %4861 = vmatprep.subr.mxu0 0.0
    %4862 = vmatpush1.msra.mxu0 0.0
    %4863 = vmatprep.subr.mxu0 0.0
    %4864 = vmatpush1.msra.mxu0 0.0
    %4865 = vmatprep.subr.mxu0 0.0
    %4866 = vmatpush1.msra.mxu0 0.0
    %4867 = vmatprep.subr.mxu0 0.0
    %4868 = vmatpush1.msra.mxu0 0.0
    %4869 = vmatprep.subr.mxu0 0.0
    %4870 = vmatpush1.msra.mxu0 0.0
    %4871 = vmatprep.subr.mxu0 0.0
    %4872 = vmatpush1.msra.mxu0 0.0
    %4873 = vmatprep.subr.mxu0 0.0
    %4874 = vmatpush1.msra.mxu0 0.0
    %4875 = vmatprep.subr.mxu0 0.0
    %4876 = vmatpush1.msra.mxu0 0.0
    %4877 = vmatprep.subr.mxu0 0.0
    %4878 = vmatpush1.msra.mxu0 0.0
    %4879 = vmatprep.subr.mxu0 0.0
    %4880 = vmatpush1.msra.mxu0 0.0
    %4881 = vmatprep.subr.mxu0 0.0
    %4882 = vmatpush1.msra.mxu0 0.0
    %4883 = vmatprep.subr.mxu0 0.0
    %4884 = vmatpush1.msra.mxu0 0.0
    %4885 = vmatprep.subr.mxu0 0.0
    %4886 = vmatpush1.msra.mxu0 0.0
    %4887 = vmatprep.subr.mxu0 0.0
    %4888 = vmatpush1.msra.mxu0 0.0
    %4889 = vmatprep.subr.mxu0 0.0
    %4890 = vmatpush1.msra.mxu0 0.0
    %4891 = vmatprep.subr.mxu0 0.0
    %4892 = vmatpush1.msra.mxu0 0.0
    %4893 = vmatprep.subr.mxu0 0.0
    %4894 = vmatpush1.msra.mxu0 0.0
    %4895 = vmatprep.subr.mxu0 0.0
    %4896 = vmatpush1.msra.mxu0 0.0
    %4897 = vmatprep.subr.mxu0 0.0
    %4898 = vmatpush1.msra.mxu0 0.0
    %4899 = vmatprep.subr.mxu0 0.0
    %4900 = vmatpush1.msra.mxu0 0.0
    %4901 = vmatprep.subr.mxu0 0.0
    %4902 = vmatpush1.msra.mxu0 0.0
    %4903 = vmatprep.subr.mxu0 0.0
    %4904 = vmatpush1.msra.mxu0 0.0
    %4905 = vmatprep.subr.mxu0 0.0
    %4906 = vmatpush1.msra.mxu0 0.0
    %4907 = vmatprep.subr.mxu0 0.0
    %4908 = vmatpush1.msra.mxu0 0.0
    %4909 = vmatprep.subr.mxu0 0.0
    %4910 = vmatpush1.msra.mxu0 0.0
    %4911 = vmatprep.subr.mxu0 0.0
    %4912 = vmatpush1.msra.mxu0 0.0
    %4913 = vmatprep.subr.mxu0 0.0
    %4914 = vmatpush1.msra.mxu0 0.0
    %4915 = vmatprep.mubr.f32.mxu0 0.0
    %4916 = vmatmul.mubr.f32.gmra.mrb[0].mxu0 %v4845
    %v4917 = vpop.f32.mrb[0].mxu0
    %v4918 = vadd.f32 0.0, %v4917
    %v4919 = vpop.f32.mrb[0].mxu0
    %v4920 = vadd.f32 0.0, %v4919
    %4921 = vdwg.mxu0
    %v4922 = vadd.f32 %v4832, %v4918
    %v4923 = vadd.f32 %v4833, %v4920
    %v4924 = vld [vmem:[#allocation4 + $0x4] sm:$0xff]
    %s4925 = scalar_lea.vmem %s8, 48
    %v4926 = vld [vmem:[%s4925] sm:$0xff]
    %v4928 = vcombine.high %v4924, %v4924
    %4929 = vrot.lane.b32.xlu0 %v4924, 119
    %v4930 = vpop.permute.xlu0 %4929
    %4931 = vrot.lane.b32.xlu0 %v4928, 119
    %v4932 = vpop.permute.xlu0 %4931
    %vm4933 = vcmask 973824
    %v4934 = vsel %vm4933, %v4930, %v4932
    %v4936 = vsel %vm788, %v4926, 0
    %v4938 = vsel %vm116, %v4934, 0
    %v4940 = vsel %vm116, %v4932, 0
    %4942 = vmatprep.subr.mxu0 %v4940
    %4943 = vmatpush1.msra.mxu0 %v4938
    %4944 = vmatprep.subr.mxu0 0.0
    %4945 = vmatpush1.msra.mxu0 0.0
    %4946 = vmatprep.subr.mxu0 0.0
    %4947 = vmatpush1.msra.mxu0 0.0
    %4948 = vmatprep.subr.mxu0 0.0
    %4949 = vmatpush1.msra.mxu0 0.0
    %4950 = vmatprep.subr.mxu0 0.0
    %4951 = vmatpush1.msra.mxu0 0.0
    %4952 = vmatprep.subr.mxu0 0.0
    %4953 = vmatpush1.msra.mxu0 0.0
    %4954 = vmatprep.subr.mxu0 0.0
    %4955 = vmatpush1.msra.mxu0 0.0
    %4956 = vmatprep.subr.mxu0 0.0
    %4957 = vmatpush1.msra.mxu0 0.0
    %4958 = vmatprep.subr.mxu0 0.0
    %4959 = vmatpush1.msra.mxu0 0.0
    %4960 = vmatprep.subr.mxu0 0.0
    %4961 = vmatpush1.msra.mxu0 0.0
    %4962 = vmatprep.subr.mxu0 0.0
    %4963 = vmatpush1.msra.mxu0 0.0
    %4964 = vmatprep.subr.mxu0 0.0
    %4965 = vmatpush1.msra.mxu0 0.0
    %4966 = vmatprep.subr.mxu0 0.0
    %4967 = vmatpush1.msra.mxu0 0.0
    %4968 = vmatprep.subr.mxu0 0.0
    %4969 = vmatpush1.msra.mxu0 0.0
    %4970 = vmatprep.subr.mxu0 0.0
    %4971 = vmatpush1.msra.mxu0 0.0
    %4972 = vmatprep.subr.mxu0 0.0
    %4973 = vmatpush1.msra.mxu0 0.0
    %4974 = vmatprep.subr.mxu0 0.0
    %4975 = vmatpush1.msra.mxu0 0.0
    %4976 = vmatprep.subr.mxu0 0.0
    %4977 = vmatpush1.msra.mxu0 0.0
    %4978 = vmatprep.subr.mxu0 0.0
    %4979 = vmatpush1.msra.mxu0 0.0
    %4980 = vmatprep.subr.mxu0 0.0
    %4981 = vmatpush1.msra.mxu0 0.0
    %4982 = vmatprep.subr.mxu0 0.0
    %4983 = vmatpush1.msra.mxu0 0.0
    %4984 = vmatprep.subr.mxu0 0.0
    %4985 = vmatpush1.msra.mxu0 0.0
    %4986 = vmatprep.subr.mxu0 0.0
    %4987 = vmatpush1.msra.mxu0 0.0
    %4988 = vmatprep.subr.mxu0 0.0
    %4989 = vmatpush1.msra.mxu0 0.0
    %4990 = vmatprep.subr.mxu0 0.0
    %4991 = vmatpush1.msra.mxu0 0.0
    %4992 = vmatprep.subr.mxu0 0.0
    %4993 = vmatpush1.msra.mxu0 0.0
    %4994 = vmatprep.subr.mxu0 0.0
    %4995 = vmatpush1.msra.mxu0 0.0
    %4996 = vmatprep.subr.mxu0 0.0
    %4997 = vmatpush1.msra.mxu0 0.0
    %4998 = vmatprep.subr.mxu0 0.0
    %4999 = vmatpush1.msra.mxu0 0.0
    %5000 = vmatprep.subr.mxu0 0.0
    %5001 = vmatpush1.msra.mxu0 0.0
    %5002 = vmatprep.subr.mxu0 0.0
    %5003 = vmatpush1.msra.mxu0 0.0
    %5004 = vmatprep.subr.mxu0 0.0
    %5005 = vmatpush1.msra.mxu0 0.0
    %5006 = vmatprep.mubr.f32.mxu0 0.0
    %5007 = vmatmul.mubr.f32.gmra.mrb[0].mxu0 %v4936
    %v5008 = vpop.f32.mrb[0].mxu0
    %v5009 = vadd.f32 0.0, %v5008
    %v5010 = vpop.f32.mrb[0].mxu0
    %v5011 = vadd.f32 0.0, %v5010
    %5012 = vdwg.mxu0
    %v5013 = vadd.f32 %v4922, %v5009
    %v5014 = vadd.f32 %v4923, %v5011
    %v5015 = vld [vmem:[#allocation4 + $0x4] sm:$0xff]
    %s5016 = scalar_lea.vmem %s8, 56
    %v5017 = vld [vmem:[%s5016] sm:$0xff]
    %v5019 = vcombine.high %v5015, %v5015
    %5020 = vrot.lane.b32.xlu0 %v5015, 118
    %v5021 = vpop.permute.xlu0 %5020
    %5022 = vrot.lane.b32.xlu0 %v5019, 118
    %v5023 = vpop.permute.xlu0 %5022
    %vm5024 = vcmask 965632
    %v5025 = vsel %vm5024, %v5021, %v5023
    %v5027 = vsel %vm788, %v5017, 0
    %v5029 = vsel %vm116, %v5025, 0
    %v5031 = vsel %vm116, %v5023, 0
    %5033 = vmatprep.subr.mxu0 %v5031
    %5034 = vmatpush1.msra.mxu0 %v5029
    %5035 = vmatprep.subr.mxu0 0.0
    %5036 = vmatpush1.msra.mxu0 0.0
    %5037 = vmatprep.subr.mxu0 0.0
    %5038 = vmatpush1.msra.mxu0 0.0
    %5039 = vmatprep.subr.mxu0 0.0
    %5040 = vmatpush1.msra.mxu0 0.0
    %5041 = vmatprep.subr.mxu0 0.0
    %5042 = vmatpush1.msra.mxu0 0.0
    %5043 = vmatprep.subr.mxu0 0.0
    %5044 = vmatpush1.msra.mxu0 0.0
    %5045 = vmatprep.subr.mxu0 0.0
    %5046 = vmatpush1.msra.mxu0 0.0
    %5047 = vmatprep.subr.mxu0 0.0
    %5048 = vmatpush1.msra.mxu0 0.0
    %5049 = vmatprep.subr.mxu0 0.0
    %5050 = vmatpush1.msra.mxu0 0.0
    %5051 = vmatprep.subr.mxu0 0.0
    %5052 = vmatpush1.msra.mxu0 0.0
    %5053 = vmatprep.subr.mxu0 0.0
    %5054 = vmatpush1.msra.mxu0 0.0
    %5055 = vmatprep.subr.mxu0 0.0
    %5056 = vmatpush1.msra.mxu0 0.0
    %5057 = vmatprep.subr.mxu0 0.0
    %5058 = vmatpush1.msra.mxu0 0.0
    %5059 = vmatprep.subr.mxu0 0.0
    %5060 = vmatpush1.msra.mxu0 0.0
    %5061 = vmatprep.subr.mxu0 0.0
    %5062 = vmatpush1.msra.mxu0 0.0
    %5063 = vmatprep.subr.mxu0 0.0
    %5064 = vmatpush1.msra.mxu0 0.0
    %5065 = vmatprep.subr.mxu0 0.0
    %5066 = vmatpush1.msra.mxu0 0.0
    %5067 = vmatprep.subr.mxu0 0.0
    %5068 = vmatpush1.msra.mxu0 0.0
    %5069 = vmatprep.subr.mxu0 0.0
    %5070 = vmatpush1.msra.mxu0 0.0
    %5071 = vmatprep.subr.mxu0 0.0
    %5072 = vmatpush1.msra.mxu0 0.0
    %5073 = vmatprep.subr.mxu0 0.0
    %5074 = vmatpush1.msra.mxu0 0.0
    %5075 = vmatprep.subr.mxu0 0.0
    %5076 = vmatpush1.msra.mxu0 0.0
    %5077 = vmatprep.subr.mxu0 0.0
    %5078 = vmatpush1.msra.mxu0 0.0
    %5079 = vmatprep.subr.mxu0 0.0
    %5080 = vmatpush1.msra.mxu0 0.0
    %5081 = vmatprep.subr.mxu0 0.0
    %5082 = vmatpush1.msra.mxu0 0.0
    %5083 = vmatprep.subr.mxu0 0.0
    %5084 = vmatpush1.msra.mxu0 0.0
    %5085 = vmatprep.subr.mxu0 0.0
    %5086 = vmatpush1.msra.mxu0 0.0
    %5087 = vmatprep.subr.mxu0 0.0
    %5088 = vmatpush1.msra.mxu0 0.0
    %5089 = vmatprep.subr.mxu0 0.0
    %5090 = vmatpush1.msra.mxu0 0.0
    %5091 = vmatprep.subr.mxu0 0.0
    %5092 = vmatpush1.msra.mxu0 0.0
    %5093 = vmatprep.subr.mxu0 0.0
    %5094 = vmatpush1.msra.mxu0 0.0
    %5095 = vmatprep.subr.mxu0 0.0
    %5096 = vmatpush1.msra.mxu0 0.0
    %5097 = vmatprep.mubr.f32.mxu0 0.0
    %5098 = vmatmul.mubr.f32.gmra.mrb[0].mxu0 %v5027
    %v5099 = vpop.f32.mrb[0].mxu0
    %v5100 = vadd.f32 0.0, %v5099
    %v5101 = vpop.f32.mrb[0].mxu0
    %v5102 = vadd.f32 0.0, %v5101
    %5103 = vdwg.mxu0
    %v5104 = vadd.f32 %v5013, %v5100
    %v5105 = vadd.f32 %v5014, %v5102
    %v5106 = vld [vmem:[#allocation4 + $0x4] sm:$0xff]
    %s5107 = scalar_lea.vmem %s8, 64
    %v5108 = vld [vmem:[%s5107] sm:$0xff]
    %v5110 = vcombine.high %v5106, %v5106
    %5111 = vrot.lane.b32.xlu0 %v5106, 117
    %v5112 = vpop.permute.xlu0 %5111
    %5113 = vrot.lane.b32.xlu0 %v5110, 117
    %v5114 = vpop.permute.xlu0 %5113
    %vm5115 = vcmask 957440
    %v5116 = vsel %vm5115, %v5112, %v5114
    %v5118 = vsel %vm788, %v5108, 0
    %v5120 = vsel %vm116, %v5116, 0
    %v5122 = vsel %vm116, %v5114, 0
    %5124 = vmatprep.subr.mxu0 %v5122
    %5125 = vmatpush1.msra.mxu0 %v5120
    %5126 = vmatprep.subr.mxu0 0.0
    %5127 = vmatpush1.msra.mxu0 0.0
    %5128 = vmatprep.subr.mxu0 0.0
    %5129 = vmatpush1.msra.mxu0 0.0
    %5130 = vmatprep.subr.mxu0 0.0
    %5131 = vmatpush1.msra.mxu0 0.0
    %5132 = vmatprep.subr.mxu0 0.0
    %5133 = vmatpush1.msra.mxu0 0.0
    %5134 = vmatprep.subr.mxu0 0.0
    %5135 = vmatpush1.msra.mxu0 0.0
    %5136 = vmatprep.subr.mxu0 0.0
    %5137 = vmatpush1.msra.mxu0 0.0
    %5138 = vmatprep.subr.mxu0 0.0
    %5139 = vmatpush1.msra.mxu0 0.0
    %5140 = vmatprep.subr.mxu0 0.0
    %5141 = vmatpush1.msra.mxu0 0.0
    %5142 = vmatprep.subr.mxu0 0.0
    %5143 = vmatpush1.msra.mxu0 0.0
    %5144 = vmatprep.subr.mxu0 0.0
    %5145 = vmatpush1.msra.mxu0 0.0
    %5146 = vmatprep.subr.mxu0 0.0
    %5147 = vmatpush1.msra.mxu0 0.0
    %5148 = vmatprep.subr.mxu0 0.0
    %5149 = vmatpush1.msra.mxu0 0.0
    %5150 = vmatprep.subr.mxu0 0.0
    %5151 = vmatpush1.msra.mxu0 0.0
    %5152 = vmatprep.subr.mxu0 0.0
    %5153 = vmatpush1.msra.mxu0 0.0
    %5154 = vmatprep.subr.mxu0 0.0
    %5155 = vmatpush1.msra.mxu0 0.0
    %5156 = vmatprep.subr.mxu0 0.0
    %5157 = vmatpush1.msra.mxu0 0.0
    %5158 = vmatprep.subr.mxu0 0.0
    %5159 = vmatpush1.msra.mxu0 0.0
    %5160 = vmatprep.subr.mxu0 0.0
    %5161 = vmatpush1.msra.mxu0 0.0
    %5162 = vmatprep.subr.mxu0 0.0
    %5163 = vmatpush1.msra.mxu0 0.0
    %5164 = vmatprep.subr.mxu0 0.0
    %5165 = vmatpush1.msra.mxu0 0.0
    %5166 = vmatprep.subr.mxu0 0.0
    %5167 = vmatpush1.msra.mxu0 0.0
    %5168 = vmatprep.subr.mxu0 0.0
    %5169 = vmatpush1.msra.mxu0 0.0
    %5170 = vmatprep.subr.mxu0 0.0
    %5171 = vmatpush1.msra.mxu0 0.0
    %5172 = vmatprep.subr.mxu0 0.0
    %5173 = vmatpush1.msra.mxu0 0.0
    %5174 = vmatprep.subr.mxu0 0.0
    %5175 = vmatpush1.msra.mxu0 0.0
    %5176 = vmatprep.subr.mxu0 0.0
    %5177 = vmatpush1.msra.mxu0 0.0
    %5178 = vmatprep.subr.mxu0 0.0
    %5179 = vmatpush1.msra.mxu0 0.0
    %5180 = vmatprep.subr.mxu0 0.0
    %5181 = vmatpush1.msra.mxu0 0.0
    %5182 = vmatprep.subr.mxu0 0.0
    %5183 = vmatpush1.msra.mxu0 0.0
    %5184 = vmatprep.subr.mxu0 0.0
    %5185 = vmatpush1.msra.mxu0 0.0
    %5186 = vmatprep.subr.mxu0 0.0
    %5187 = vmatpush1.msra.mxu0 0.0
    %5188 = vmatprep.mubr.f32.mxu0 0.0
    %5189 = vmatmul.mubr.f32.gmra.mrb[0].mxu0 %v5118
    %v5190 = vpop.f32.mrb[0].mxu0
    %v5191 = vadd.f32 0.0, %v5190
    %v5192 = vpop.f32.mrb[0].mxu0
    %v5193 = vadd.f32 0.0, %v5192
    %5194 = vdwg.mxu0
    %v5195 = vadd.f32 %v5104, %v5191
    %v5196 = vadd.f32 %v5105, %v5193
    %v5197 = vld [vmem:[%s9] sm:$0xff]
    %5199 = vset.pattern.permute.xlu0 0
    %5200 = vperm.xlu0 %5199, %v5197
    %v5201 = vpop.permute.xlu0 %5200
    %v5203 = vadd.f32 %v5195, %v5201
    %v5204 = vadd.f32 %v5196, %v5201
    %vm5205 = vcmp.gt.f32.partialorder %v5203, 0.0
    %vm5206 = vcmp.gt.f32.partialorder %v5204, 0.0
    %v5207 = vmul.f32 %v5203, 0.1
    %v5208 = vmul.f32 %v5204, 0.1
    %v5209 = vsel %vm5205, %v5203, %v5207
    %v5210 = vsel %vm5206, %v5204, %v5208
    %v5211 = vld [vmem:[#allocation11] sm:$0x3]
    %v5213 = vlaneseq
    %v5214 = vshrl.u32 %v5213, 7
    %v5215 = vsub.s32 0, %v5214
    %v5216 = vrot.slane %v5211, %v5215
    %v5217 = vlaneseq
    %v5218 = vshrl.u32 %v5217, 7
    %v5219 = vsub.s32 1, %v5218
    %v5220 = vrot.slane %v5211, %v5219
    %v5223 = vmul.f32 %v5209, %v5216
    %v5224 = vmul.f32 %v5210, %v5220
    %5225 = vst [vmem:[#allocation5 + $0x8] sm:$0xff] %v5223
    %5226 = vst.msk [vmem:[#allocation5 + $0x10] sm:$0xff] %vm131, %v5224
    %v5227 = vld [vmem:[#allocation5] sm:$0xff]
    %v5228 = vld [vmem:[#allocation5 + $0x8] sm:$0xff]
    %v5229 = vld [vmem:[#allocation5 + $0x10] sm:$0xff]
    %v5230 = vld [vmem:[%s10] sm:$0xff]
    %s5231 = scalar_lea.vmem %s10, 8
    %v5232 = vld [vmem:[%s5231] sm:$0xff]
    %5236 = vrot.lane.b32.xlu0 %v5227, 10
    %v5237 = vpop.permute.xlu0 %5236
    %5238 = vrot.lane.b32.xlu0 %v5228, 10
    %v5239 = vpop.permute.xlu0 %5238
    %5240 = vrot.lane.b32.xlu0 %v5229, 10
    %v5241 = vpop.permute.xlu0 %5240
    %v5242 = vsel %vm4390, %v5237, %v5239
    %v5243 = vsel %vm4390, %v5239, %v5241
    %v5247 = vsel %vm3279, %v5232, 0
    %5249 = vmatprep.subr.mxu0 %v5243
    %5250 = vmatpush1.msra.mxu0 %v5242
    %5251 = vmatprep.subr.mxu0 0.0
    %5252 = vmatpush1.msra.mxu0 0.0
    %5253 = vmatprep.subr.mxu0 0.0
    %5254 = vmatpush1.msra.mxu0 0.0
    %5255 = vmatprep.subr.mxu0 0.0
    %5256 = vmatpush1.msra.mxu0 0.0
    %5257 = vmatprep.subr.mxu0 0.0
    %5258 = vmatpush1.msra.mxu0 0.0
    %5259 = vmatprep.subr.mxu0 0.0
    %5260 = vmatpush1.msra.mxu0 0.0
    %5261 = vmatprep.subr.mxu0 0.0
    %5262 = vmatpush1.msra.mxu0 0.0
    %5263 = vmatprep.subr.mxu0 0.0
    %5264 = vmatpush1.msra.mxu0 0.0
    %5265 = vmatprep.subr.mxu0 0.0
    %5266 = vmatpush1.msra.mxu0 0.0
    %5267 = vmatprep.subr.mxu0 0.0
    %5268 = vmatpush1.msra.mxu0 0.0
    %5269 = vmatprep.subr.mxu0 0.0
    %5270 = vmatpush1.msra.mxu0 0.0
    %5271 = vmatprep.subr.mxu0 0.0
    %5272 = vmatpush1.msra.mxu0 0.0
    %5273 = vmatprep.subr.mxu0 0.0
    %5274 = vmatpush1.msra.mxu0 0.0
    %5275 = vmatprep.subr.mxu0 0.0
    %5276 = vmatpush1.msra.mxu0 0.0
    %5277 = vmatprep.subr.mxu0 0.0
    %5278 = vmatpush1.msra.mxu0 0.0
    %5279 = vmatprep.subr.mxu0 0.0
    %5280 = vmatpush1.msra.mxu0 0.0
    %5281 = vmatprep.subr.mxu0 0.0
    %5282 = vmatpush1.msra.mxu0 0.0
    %5283 = vmatprep.subr.mxu0 0.0
    %5284 = vmatpush1.msra.mxu0 0.0
    %5285 = vmatprep.subr.mxu0 0.0
    %5286 = vmatpush1.msra.mxu0 0.0
    %5287 = vmatprep.subr.mxu0 0.0
    %5288 = vmatpush1.msra.mxu0 0.0
    %5289 = vmatprep.subr.mxu0 0.0
    %5290 = vmatpush1.msra.mxu0 0.0
    %5291 = vmatprep.subr.mxu0 0.0
    %5292 = vmatpush1.msra.mxu0 0.0
    %5293 = vmatprep.subr.mxu0 0.0
    %5294 = vmatpush1.msra.mxu0 0.0
    %5295 = vmatprep.subr.mxu0 0.0
    %5296 = vmatpush1.msra.mxu0 0.0
    %5297 = vmatprep.subr.mxu0 0.0
    %5298 = vmatpush1.msra.mxu0 0.0
    %5299 = vmatprep.subr.mxu0 0.0
    %5300 = vmatpush1.msra.mxu0 0.0
    %5301 = vmatprep.subr.mxu0 0.0
    %5302 = vmatpush1.msra.mxu0 0.0
    %5303 = vmatprep.subr.mxu0 0.0
    %5304 = vmatpush1.msra.mxu0 0.0
    %5305 = vmatprep.subr.mxu0 0.0
    %5306 = vmatpush1.msra.mxu0 0.0
    %5307 = vmatprep.subr.mxu0 0.0
    %5308 = vmatpush1.msra.mxu0 0.0
    %5309 = vmatprep.subr.mxu0 0.0
    %5310 = vmatpush1.msra.mxu0 0.0
    %5311 = vmatprep.subr.mxu0 0.0
    %5312 = vmatpush1.msra.mxu0 0.0
    %5313 = vmatprep.mubr.f32.mxu0 0.0
    %5314 = vmatmul.mubr.f32.gmra.mrb[0].mxu0 %v5247
    %v5315 = vpop.f32.mrb[0].mxu0
    %v5316 = vadd.f32 0.0, %v5315
    %v5317 = vpop.f32.mrb[0].mxu0
    %v5318 = vadd.f32 0.0, %v5317
    %5319 = vdwg.mxu0
    %5320 = vrot.lane.b32.xlu0 %v5227, 11
    %v5321 = vpop.permute.xlu0 %5320
    %5322 = vrot.lane.b32.xlu0 %v5228, 11
    %v5323 = vpop.permute.xlu0 %5322
    %5324 = vrot.lane.b32.xlu0 %v5229, 11
    %v5325 = vpop.permute.xlu0 %5324
    %v5326 = vsel %vm4477, %v5321, %v5323
    %v5327 = vsel %vm4477, %v5323, %v5325
    %v5331 = vsel %vm3279, %v5230, 0
    %5333 = vmatprep.subr.mxu0 %v5327
    %5334 = vmatpush1.msra.mxu0 %v5326
    %5335 = vmatprep.subr.mxu0 0.0
    %5336 = vmatpush1.msra.mxu0 0.0
    %5337 = vmatprep.subr.mxu0 0.0
    %5338 = vmatpush1.msra.mxu0 0.0
    %5339 = vmatprep.subr.mxu0 0.0
    %5340 = vmatpush1.msra.mxu0 0.0
    %5341 = vmatprep.subr.mxu0 0.0
    %5342 = vmatpush1.msra.mxu0 0.0
    %5343 = vmatprep.subr.mxu0 0.0
    %5344 = vmatpush1.msra.mxu0 0.0
    %5345 = vmatprep.subr.mxu0 0.0
    %5346 = vmatpush1.msra.mxu0 0.0
    %5347 = vmatprep.subr.mxu0 0.0
    %5348 = vmatpush1.msra.mxu0 0.0
    %5349 = vmatprep.subr.mxu0 0.0
    %5350 = vmatpush1.msra.mxu0 0.0
    %5351 = vmatprep.subr.mxu0 0.0
    %5352 = vmatpush1.msra.mxu0 0.0
    %5353 = vmatprep.subr.mxu0 0.0
    %5354 = vmatpush1.msra.mxu0 0.0
    %5355 = vmatprep.subr.mxu0 0.0
    %5356 = vmatpush1.msra.mxu0 0.0
    %5357 = vmatprep.subr.mxu0 0.0
    %5358 = vmatpush1.msra.mxu0 0.0
    %5359 = vmatprep.subr.mxu0 0.0
    %5360 = vmatpush1.msra.mxu0 0.0
    %5361 = vmatprep.subr.mxu0 0.0
    %5362 = vmatpush1.msra.mxu0 0.0
    %5363 = vmatprep.subr.mxu0 0.0
    %5364 = vmatpush1.msra.mxu0 0.0
    %5365 = vmatprep.subr.mxu0 0.0
    %5366 = vmatpush1.msra.mxu0 0.0
    %5367 = vmatprep.subr.mxu0 0.0
    %5368 = vmatpush1.msra.mxu0 0.0
    %5369 = vmatprep.subr.mxu0 0.0
    %5370 = vmatpush1.msra.mxu0 0.0
    %5371 = vmatprep.subr.mxu0 0.0
    %5372 = vmatpush1.msra.mxu0 0.0
    %5373 = vmatprep.subr.mxu0 0.0
    %5374 = vmatpush1.msra.mxu0 0.0
    %5375 = vmatprep.subr.mxu0 0.0
    %5376 = vmatpush1.msra.mxu0 0.0
    %5377 = vmatprep.subr.mxu0 0.0
    %5378 = vmatpush1.msra.mxu0 0.0
    %5379 = vmatprep.subr.mxu0 0.0
    %5380 = vmatpush1.msra.mxu0 0.0
    %5381 = vmatprep.subr.mxu0 0.0
    %5382 = vmatpush1.msra.mxu0 0.0
    %5383 = vmatprep.subr.mxu0 0.0
    %5384 = vmatpush1.msra.mxu0 0.0
    %5385 = vmatprep.subr.mxu0 0.0
    %5386 = vmatpush1.msra.mxu0 0.0
    %5387 = vmatprep.subr.mxu0 0.0
    %5388 = vmatpush1.msra.mxu0 0.0
    %5389 = vmatprep.subr.mxu0 0.0
    %5390 = vmatpush1.msra.mxu0 0.0
    %5391 = vmatprep.subr.mxu0 0.0
    %5392 = vmatpush1.msra.mxu0 0.0
    %5393 = vmatprep.subr.mxu0 0.0
    %5394 = vmatpush1.msra.mxu0 0.0
    %5395 = vmatprep.subr.mxu0 0.0
    %5396 = vmatpush1.msra.mxu0 0.0
    %5397 = vmatprep.mubr.f32.mxu0 0.0
    %5398 = vmatmul.mubr.f32.gmra.mrb[0].mxu0 %v5331
    %v5399 = vpop.f32.mrb[0].mxu0
    %v5400 = vadd.f32 %v5316, %v5399
    %v5401 = vpop.f32.mrb[0].mxu0
    %v5402 = vadd.f32 %v5318, %v5401
    %5403 = vdwg.mxu0
    %s5404 = scalar_lea.vmem %s10, 16
    %v5405 = vld [vmem:[%s5404] sm:$0xff]
    %5406 = vrot.lane.b32.xlu0 %v5227, 9
    %v5407 = vpop.permute.xlu0 %5406
    %5408 = vrot.lane.b32.xlu0 %v5228, 9
    %v5409 = vpop.permute.xlu0 %5408
    %5410 = vrot.lane.b32.xlu0 %v5229, 9
    %v5411 = vpop.permute.xlu0 %5410
    %v5412 = vsel %vm4571, %v5407, %v5409
    %v5413 = vsel %vm4571, %v5409, %v5411
    %v5417 = vsel %vm3279, %v5405, 0
    %5419 = vmatprep.subr.mxu0 %v5413
    %5420 = vmatpush1.msra.mxu0 %v5412
    %5421 = vmatprep.subr.mxu0 0.0
    %5422 = vmatpush1.msra.mxu0 0.0
    %5423 = vmatprep.subr.mxu0 0.0
    %5424 = vmatpush1.msra.mxu0 0.0
    %5425 = vmatprep.subr.mxu0 0.0
    %5426 = vmatpush1.msra.mxu0 0.0
    %5427 = vmatprep.subr.mxu0 0.0
    %5428 = vmatpush1.msra.mxu0 0.0
    %5429 = vmatprep.subr.mxu0 0.0
    %5430 = vmatpush1.msra.mxu0 0.0
    %5431 = vmatprep.subr.mxu0 0.0
    %5432 = vmatpush1.msra.mxu0 0.0
    %5433 = vmatprep.subr.mxu0 0.0
    %5434 = vmatpush1.msra.mxu0 0.0
    %5435 = vmatprep.subr.mxu0 0.0
    %5436 = vmatpush1.msra.mxu0 0.0
    %5437 = vmatprep.subr.mxu0 0.0
    %5438 = vmatpush1.msra.mxu0 0.0
    %5439 = vmatprep.subr.mxu0 0.0
    %5440 = vmatpush1.msra.mxu0 0.0
    %5441 = vmatprep.subr.mxu0 0.0
    %5442 = vmatpush1.msra.mxu0 0.0
    %5443 = vmatprep.subr.mxu0 0.0
    %5444 = vmatpush1.msra.mxu0 0.0
    %5445 = vmatprep.subr.mxu0 0.0
    %5446 = vmatpush1.msra.mxu0 0.0
    %5447 = vmatprep.subr.mxu0 0.0
    %5448 = vmatpush1.msra.mxu0 0.0
    %5449 = vmatprep.subr.mxu0 0.0
    %5450 = vmatpush1.msra.mxu0 0.0
    %5451 = vmatprep.subr.mxu0 0.0
    %5452 = vmatpush1.msra.mxu0 0.0
    %5453 = vmatprep.subr.mxu0 0.0
    %5454 = vmatpush1.msra.mxu0 0.0
    %5455 = vmatprep.subr.mxu0 0.0
    %5456 = vmatpush1.msra.mxu0 0.0
    %5457 = vmatprep.subr.mxu0 0.0
    %5458 = vmatpush1.msra.mxu0 0.0
    %5459 = vmatprep.subr.mxu0 0.0
    %5460 = vmatpush1.msra.mxu0 0.0
    %5461 = vmatprep.subr.mxu0 0.0
    %5462 = vmatpush1.msra.mxu0 0.0
    %5463 = vmatprep.subr.mxu0 0.0
    %5464 = vmatpush1.msra.mxu0 0.0
    %5465 = vmatprep.subr.mxu0 0.0
    %5466 = vmatpush1.msra.mxu0 0.0
    %5467 = vmatprep.subr.mxu0 0.0
    %5468 = vmatpush1.msra.mxu0 0.0
    %5469 = vmatprep.subr.mxu0 0.0
    %5470 = vmatpush1.msra.mxu0 0.0
    %5471 = vmatprep.subr.mxu0 0.0
    %5472 = vmatpush1.msra.mxu0 0.0
    %5473 = vmatprep.subr.mxu0 0.0
    %5474 = vmatpush1.msra.mxu0 0.0
    %5475 = vmatprep.subr.mxu0 0.0
    %5476 = vmatpush1.msra.mxu0 0.0
    %5477 = vmatprep.subr.mxu0 0.0
    %5478 = vmatpush1.msra.mxu0 0.0
    %5479 = vmatprep.subr.mxu0 0.0
    %5480 = vmatpush1.msra.mxu0 0.0
    %5481 = vmatprep.subr.mxu0 0.0
    %5482 = vmatpush1.msra.mxu0 0.0
    %5483 = vmatprep.mubr.f32.mxu0 0.0
    %5484 = vmatmul.mubr.f32.gmra.mrb[0].mxu0 %v5417
    %v5485 = vpop.f32.mrb[0].mxu0
    %v5486 = vadd.f32 0.0, %v5485
    %v5487 = vpop.f32.mrb[0].mxu0
    %v5488 = vadd.f32 0.0, %v5487
    %5489 = vdwg.mxu0
    %v5490 = vadd.f32 %v5400, %v5486
    %v5491 = vadd.f32 %v5402, %v5488
    %s5492 = scalar_lea.vmem %s10, 24
    %v5493 = vld [vmem:[%s5492] sm:$0xff]
    %5494 = vrot.lane.b32.xlu0 %v5227, 1
    %v5495 = vpop.permute.xlu0 %5494
    %5496 = vrot.lane.b32.xlu0 %v5228, 1
    %v5497 = vpop.permute.xlu0 %5496
    %5498 = vrot.lane.b32.xlu0 %v5229, 1
    %v5499 = vpop.permute.xlu0 %5498
    %v5500 = vsel %vm1552, %v5495, %v5497
    %v5501 = vsel %vm1552, %v5497, %v5499
    %v5505 = vsel %vm3279, %v5493, 0
    %5507 = vmatprep.subr.mxu0 %v5501
    %5508 = vmatpush1.msra.mxu0 %v5500
    %5509 = vmatprep.subr.mxu0 0.0
    %5510 = vmatpush1.msra.mxu0 0.0
    %5511 = vmatprep.subr.mxu0 0.0
    %5512 = vmatpush1.msra.mxu0 0.0
    %5513 = vmatprep.subr.mxu0 0.0
    %5514 = vmatpush1.msra.mxu0 0.0
    %5515 = vmatprep.subr.mxu0 0.0
    %5516 = vmatpush1.msra.mxu0 0.0
    %5517 = vmatprep.subr.mxu0 0.0
    %5518 = vmatpush1.msra.mxu0 0.0
    %5519 = vmatprep.subr.mxu0 0.0
    %5520 = vmatpush1.msra.mxu0 0.0
    %5521 = vmatprep.subr.mxu0 0.0
    %5522 = vmatpush1.msra.mxu0 0.0
    %5523 = vmatprep.subr.mxu0 0.0
    %5524 = vmatpush1.msra.mxu0 0.0
    %5525 = vmatprep.subr.mxu0 0.0
    %5526 = vmatpush1.msra.mxu0 0.0
    %5527 = vmatprep.subr.mxu0 0.0
    %5528 = vmatpush1.msra.mxu0 0.0
    %5529 = vmatprep.subr.mxu0 0.0
    %5530 = vmatpush1.msra.mxu0 0.0
    %5531 = vmatprep.subr.mxu0 0.0
    %5532 = vmatpush1.msra.mxu0 0.0
    %5533 = vmatprep.subr.mxu0 0.0
    %5534 = vmatpush1.msra.mxu0 0.0
    %5535 = vmatprep.subr.mxu0 0.0
    %5536 = vmatpush1.msra.mxu0 0.0
    %5537 = vmatprep.subr.mxu0 0.0
    %5538 = vmatpush1.msra.mxu0 0.0
    %5539 = vmatprep.subr.mxu0 0.0
    %5540 = vmatpush1.msra.mxu0 0.0
    %5541 = vmatprep.subr.mxu0 0.0
    %5542 = vmatpush1.msra.mxu0 0.0
    %5543 = vmatprep.subr.mxu0 0.0
    %5544 = vmatpush1.msra.mxu0 0.0
    %5545 = vmatprep.subr.mxu0 0.0
    %5546 = vmatpush1.msra.mxu0 0.0
    %5547 = vmatprep.subr.mxu0 0.0
    %5548 = vmatpush1.msra.mxu0 0.0
    %5549 = vmatprep.subr.mxu0 0.0
    %5550 = vmatpush1.msra.mxu0 0.0
    %5551 = vmatprep.subr.mxu0 0.0
    %5552 = vmatpush1.msra.mxu0 0.0
    %5553 = vmatprep.subr.mxu0 0.0
    %5554 = vmatpush1.msra.mxu0 0.0
    %5555 = vmatprep.subr.mxu0 0.0
    %5556 = vmatpush1.msra.mxu0 0.0
    %5557 = vmatprep.subr.mxu0 0.0
    %5558 = vmatpush1.msra.mxu0 0.0
    %5559 = vmatprep.subr.mxu0 0.0
    %5560 = vmatpush1.msra.mxu0 0.0
    %5561 = vmatprep.subr.mxu0 0.0
    %5562 = vmatpush1.msra.mxu0 0.0
    %5563 = vmatprep.subr.mxu0 0.0
    %5564 = vmatpush1.msra.mxu0 0.0
    %5565 = vmatprep.subr.mxu0 0.0
    %5566 = vmatpush1.msra.mxu0 0.0
    %5567 = vmatprep.subr.mxu0 0.0
    %5568 = vmatpush1.msra.mxu0 0.0
    %5569 = vmatprep.subr.mxu0 0.0
    %5570 = vmatpush1.msra.mxu0 0.0
    %5571 = vmatprep.mubr.f32.mxu0 0.0
    %5572 = vmatmul.mubr.f32.gmra.mrb[0].mxu0 %v5505
    %v5573 = vpop.f32.mrb[0].mxu0
    %v5574 = vadd.f32 0.0, %v5573
    %v5575 = vpop.f32.mrb[0].mxu0
    %v5576 = vadd.f32 0.0, %v5575
    %5577 = vdwg.mxu0
    %v5578 = vadd.f32 %v5490, %v5574
    %v5579 = vadd.f32 %v5491, %v5576
    %s5580 = scalar_lea.vmem %s10, 32
    %v5581 = vld [vmem:[%s5580] sm:$0xff]
    %v5583 = vsel %vm3279, %v5581, 0
    %5585 = vmatprep.subr.mxu0 %v5229
    %5586 = vmatpush1.msra.mxu0 %v5228
    %5587 = vmatprep.subr.mxu0 0.0
    %5588 = vmatpush1.msra.mxu0 0.0
    %5589 = vmatprep.subr.mxu0 0.0
    %5590 = vmatpush1.msra.mxu0 0.0
    %5591 = vmatprep.subr.mxu0 0.0
    %5592 = vmatpush1.msra.mxu0 0.0
    %5593 = vmatprep.subr.mxu0 0.0
    %5594 = vmatpush1.msra.mxu0 0.0
    %5595 = vmatprep.subr.mxu0 0.0
    %5596 = vmatpush1.msra.mxu0 0.0
    %5597 = vmatprep.subr.mxu0 0.0
    %5598 = vmatpush1.msra.mxu0 0.0
    %5599 = vmatprep.subr.mxu0 0.0
    %5600 = vmatpush1.msra.mxu0 0.0
    %5601 = vmatprep.subr.mxu0 0.0
    %5602 = vmatpush1.msra.mxu0 0.0
    %5603 = vmatprep.subr.mxu0 0.0
    %5604 = vmatpush1.msra.mxu0 0.0
    %5605 = vmatprep.subr.mxu0 0.0
    %5606 = vmatpush1.msra.mxu0 0.0
    %5607 = vmatprep.subr.mxu0 0.0
    %5608 = vmatpush1.msra.mxu0 0.0
    %5609 = vmatprep.subr.mxu0 0.0
    %5610 = vmatpush1.msra.mxu0 0.0
    %5611 = vmatprep.subr.mxu0 0.0
    %5612 = vmatpush1.msra.mxu0 0.0
    %5613 = vmatprep.subr.mxu0 0.0
    %5614 = vmatpush1.msra.mxu0 0.0
    %5615 = vmatprep.subr.mxu0 0.0
    %5616 = vmatpush1.msra.mxu0 0.0
    %5617 = vmatprep.subr.mxu0 0.0
    %5618 = vmatpush1.msra.mxu0 0.0
    %5619 = vmatprep.subr.mxu0 0.0
    %5620 = vmatpush1.msra.mxu0 0.0
    %5621 = vmatprep.subr.mxu0 0.0
    %5622 = vmatpush1.msra.mxu0 0.0
    %5623 = vmatprep.subr.mxu0 0.0
    %5624 = vmatpush1.msra.mxu0 0.0
    %5625 = vmatprep.subr.mxu0 0.0
    %5626 = vmatpush1.msra.mxu0 0.0
    %5627 = vmatprep.subr.mxu0 0.0
    %5628 = vmatpush1.msra.mxu0 0.0
    %5629 = vmatprep.subr.mxu0 0.0
    %5630 = vmatpush1.msra.mxu0 0.0
    %5631 = vmatprep.subr.mxu0 0.0
    %5632 = vmatpush1.msra.mxu0 0.0
    %5633 = vmatprep.subr.mxu0 0.0
    %5634 = vmatpush1.msra.mxu0 0.0
    %5635 = vmatprep.subr.mxu0 0.0
    %5636 = vmatpush1.msra.mxu0 0.0
    %5637 = vmatprep.subr.mxu0 0.0
    %5638 = vmatpush1.msra.mxu0 0.0
    %5639 = vmatprep.subr.mxu0 0.0
    %5640 = vmatpush1.msra.mxu0 0.0
    %5641 = vmatprep.subr.mxu0 0.0
    %5642 = vmatpush1.msra.mxu0 0.0
    %5643 = vmatprep.subr.mxu0 0.0
    %5644 = vmatpush1.msra.mxu0 0.0
    %5645 = vmatprep.subr.mxu0 0.0
    %5646 = vmatpush1.msra.mxu0 0.0
    %5647 = vmatprep.subr.mxu0 0.0
    %5648 = vmatpush1.msra.mxu0 0.0
    %5649 = vmatprep.mubr.f32.mxu0 0.0
    %5650 = vmatmul.mubr.f32.gmra.mrb[0].mxu0 %v5583
    %v5651 = vpop.f32.mrb[0].mxu0
    %v5652 = vadd.f32 0.0, %v5651
    %v5653 = vpop.f32.mrb[0].mxu0
    %v5654 = vadd.f32 0.0, %v5653
    %5655 = vdwg.mxu0
    %v5656 = vadd.f32 %v5578, %v5652
    %v5657 = vadd.f32 %v5579, %v5654
    %s5658 = scalar_lea.vmem %s10, 40
    %v5659 = vld [vmem:[%s5658] sm:$0xff]
    %5660 = vrot.lane.b32.xlu0 %v5228, 127
    %v5661 = vpop.permute.xlu0 %5660
    %5662 = vrot.lane.b32.xlu0 %v5229, 127
    %v5663 = vpop.permute.xlu0 %5662
    %v5664 = vsel %vm208, %v5661, %v5663
    %v5668 = vsel %vm3279, %v5659, 0
    %5670 = vmatprep.subr.mxu0 %v5663
    %5671 = vmatpush1.msra.mxu0 %v5664
    %5672 = vmatprep.subr.mxu0 0.0
    %5673 = vmatpush1.msra.mxu0 0.0
    %5674 = vmatprep.subr.mxu0 0.0
    %5675 = vmatpush1.msra.mxu0 0.0
    %5676 = vmatprep.subr.mxu0 0.0
    %5677 = vmatpush1.msra.mxu0 0.0
    %5678 = vmatprep.subr.mxu0 0.0
    %5679 = vmatpush1.msra.mxu0 0.0
    %5680 = vmatprep.subr.mxu0 0.0
    %5681 = vmatpush1.msra.mxu0 0.0
    %5682 = vmatprep.subr.mxu0 0.0
    %5683 = vmatpush1.msra.mxu0 0.0
    %5684 = vmatprep.subr.mxu0 0.0
    %5685 = vmatpush1.msra.mxu0 0.0
    %5686 = vmatprep.subr.mxu0 0.0
    %5687 = vmatpush1.msra.mxu0 0.0
    %5688 = vmatprep.subr.mxu0 0.0
    %5689 = vmatpush1.msra.mxu0 0.0
    %5690 = vmatprep.subr.mxu0 0.0
    %5691 = vmatpush1.msra.mxu0 0.0
    %5692 = vmatprep.subr.mxu0 0.0
    %5693 = vmatpush1.msra.mxu0 0.0
    %5694 = vmatprep.subr.mxu0 0.0
    %5695 = vmatpush1.msra.mxu0 0.0
    %5696 = vmatprep.subr.mxu0 0.0
    %5697 = vmatpush1.msra.mxu0 0.0
    %5698 = vmatprep.subr.mxu0 0.0
    %5699 = vmatpush1.msra.mxu0 0.0
    %5700 = vmatprep.subr.mxu0 0.0
    %5701 = vmatpush1.msra.mxu0 0.0
    %5702 = vmatprep.subr.mxu0 0.0
    %5703 = vmatpush1.msra.mxu0 0.0
    %5704 = vmatprep.subr.mxu0 0.0
    %5705 = vmatpush1.msra.mxu0 0.0
    %5706 = vmatprep.subr.mxu0 0.0
    %5707 = vmatpush1.msra.mxu0 0.0
    %5708 = vmatprep.subr.mxu0 0.0
    %5709 = vmatpush1.msra.mxu0 0.0
    %5710 = vmatprep.subr.mxu0 0.0
    %5711 = vmatpush1.msra.mxu0 0.0
    %5712 = vmatprep.subr.mxu0 0.0
    %5713 = vmatpush1.msra.mxu0 0.0
    %5714 = vmatprep.subr.mxu0 0.0
    %5715 = vmatpush1.msra.mxu0 0.0
    %5716 = vmatprep.subr.mxu0 0.0
    %5717 = vmatpush1.msra.mxu0 0.0
    %5718 = vmatprep.subr.mxu0 0.0
    %5719 = vmatpush1.msra.mxu0 0.0
    %5720 = vmatprep.subr.mxu0 0.0
    %5721 = vmatpush1.msra.mxu0 0.0
    %5722 = vmatprep.subr.mxu0 0.0
    %5723 = vmatpush1.msra.mxu0 0.0
    %5724 = vmatprep.subr.mxu0 0.0
    %5725 = vmatpush1.msra.mxu0 0.0
    %5726 = vmatprep.subr.mxu0 0.0
    %5727 = vmatpush1.msra.mxu0 0.0
    %5728 = vmatprep.subr.mxu0 0.0
    %5729 = vmatpush1.msra.mxu0 0.0
    %5730 = vmatprep.subr.mxu0 0.0
    %5731 = vmatpush1.msra.mxu0 0.0
    %5732 = vmatprep.subr.mxu0 0.0
    %5733 = vmatpush1.msra.mxu0 0.0
    %5734 = vmatprep.mubr.f32.mxu0 0.0
    %5735 = vmatmul.mubr.f32.gmra.mrb[0].mxu0 %v5668
    %v5736 = vpop.f32.mrb[0].mxu0
    %v5737 = vadd.f32 0.0, %v5736
    %v5738 = vpop.f32.mrb[0].mxu0
    %v5739 = vadd.f32 0.0, %v5738
    %5740 = vdwg.mxu0
    %v5741 = vadd.f32 %v5656, %v5737
    %v5742 = vadd.f32 %v5657, %v5739
    %s5743 = scalar_lea.vmem %s10, 48
    %v5744 = vld [vmem:[%s5743] sm:$0xff]
    %5745 = vrot.lane.b32.xlu0 %v5228, 119
    %v5746 = vpop.permute.xlu0 %5745
    %5747 = vrot.lane.b32.xlu0 %v5229, 119
    %v5748 = vpop.permute.xlu0 %5747
    %v5749 = vsel %vm4933, %v5746, %v5748
    %v5753 = vsel %vm3279, %v5744, 0
    %5755 = vmatprep.subr.mxu0 %v5748
    %5756 = vmatpush1.msra.mxu0 %v5749
    %5757 = vmatprep.subr.mxu0 0.0
    %5758 = vmatpush1.msra.mxu0 0.0
    %5759 = vmatprep.subr.mxu0 0.0
    %5760 = vmatpush1.msra.mxu0 0.0
    %5761 = vmatprep.subr.mxu0 0.0
    %5762 = vmatpush1.msra.mxu0 0.0
    %5763 = vmatprep.subr.mxu0 0.0
    %5764 = vmatpush1.msra.mxu0 0.0
    %5765 = vmatprep.subr.mxu0 0.0
    %5766 = vmatpush1.msra.mxu0 0.0
    %5767 = vmatprep.subr.mxu0 0.0
    %5768 = vmatpush1.msra.mxu0 0.0
    %5769 = vmatprep.subr.mxu0 0.0
    %5770 = vmatpush1.msra.mxu0 0.0
    %5771 = vmatprep.subr.mxu0 0.0
    %5772 = vmatpush1.msra.mxu0 0.0
    %5773 = vmatprep.subr.mxu0 0.0
    %5774 = vmatpush1.msra.mxu0 0.0
    %5775 = vmatprep.subr.mxu0 0.0
    %5776 = vmatpush1.msra.mxu0 0.0
    %5777 = vmatprep.subr.mxu0 0.0
    %5778 = vmatpush1.msra.mxu0 0.0
    %5779 = vmatprep.subr.mxu0 0.0
    %5780 = vmatpush1.msra.mxu0 0.0
    %5781 = vmatprep.subr.mxu0 0.0
    %5782 = vmatpush1.msra.mxu0 0.0
    %5783 = vmatprep.subr.mxu0 0.0
    %5784 = vmatpush1.msra.mxu0 0.0
    %5785 = vmatprep.subr.mxu0 0.0
    %5786 = vmatpush1.msra.mxu0 0.0
    %5787 = vmatprep.subr.mxu0 0.0
    %5788 = vmatpush1.msra.mxu0 0.0
    %5789 = vmatprep.subr.mxu0 0.0
    %5790 = vmatpush1.msra.mxu0 0.0
    %5791 = vmatprep.subr.mxu0 0.0
    %5792 = vmatpush1.msra.mxu0 0.0
    %5793 = vmatprep.subr.mxu0 0.0
    %5794 = vmatpush1.msra.mxu0 0.0
    %5795 = vmatprep.subr.mxu0 0.0
    %5796 = vmatpush1.msra.mxu0 0.0
    %5797 = vmatprep.subr.mxu0 0.0
    %5798 = vmatpush1.msra.mxu0 0.0
    %5799 = vmatprep.subr.mxu0 0.0
    %5800 = vmatpush1.msra.mxu0 0.0
    %5801 = vmatprep.subr.mxu0 0.0
    %5802 = vmatpush1.msra.mxu0 0.0
    %5803 = vmatprep.subr.mxu0 0.0
    %5804 = vmatpush1.msra.mxu0 0.0
    %5805 = vmatprep.subr.mxu0 0.0
    %5806 = vmatpush1.msra.mxu0 0.0
    %5807 = vmatprep.subr.mxu0 0.0
    %5808 = vmatpush1.msra.mxu0 0.0
    %5809 = vmatprep.subr.mxu0 0.0
    %5810 = vmatpush1.msra.mxu0 0.0
    %5811 = vmatprep.subr.mxu0 0.0
    %5812 = vmatpush1.msra.mxu0 0.0
    %5813 = vmatprep.subr.mxu0 0.0
    %5814 = vmatpush1.msra.mxu0 0.0
    %5815 = vmatprep.subr.mxu0 0.0
    %5816 = vmatpush1.msra.mxu0 0.0
    %5817 = vmatprep.subr.mxu0 0.0
    %5818 = vmatpush1.msra.mxu0 0.0
    %5819 = vmatprep.mubr.f32.mxu0 0.0
    %5820 = vmatmul.mubr.f32.gmra.mrb[0].mxu0 %v5753
    %v5821 = vpop.f32.mrb[0].mxu0
    %v5822 = vadd.f32 0.0, %v5821
    %v5823 = vpop.f32.mrb[0].mxu0
    %v5824 = vadd.f32 0.0, %v5823
    %5825 = vdwg.mxu0
    %v5826 = vadd.f32 %v5741, %v5822
    %v5827 = vadd.f32 %v5742, %v5824
    %s5828 = scalar_lea.vmem %s10, 56
    %v5829 = vld [vmem:[%s5828] sm:$0xff]
    %5830 = vrot.lane.b32.xlu0 %v5228, 118
    %v5831 = vpop.permute.xlu0 %5830
    %5832 = vrot.lane.b32.xlu0 %v5229, 118
    %v5833 = vpop.permute.xlu0 %5832
    %v5834 = vsel %vm5024, %v5831, %v5833
    %v5838 = vsel %vm3279, %v5829, 0
    %5840 = vmatprep.subr.mxu0 %v5833
    %5841 = vmatpush1.msra.mxu0 %v5834
    %5842 = vmatprep.subr.mxu0 0.0
    %5843 = vmatpush1.msra.mxu0 0.0
    %5844 = vmatprep.subr.mxu0 0.0
    %5845 = vmatpush1.msra.mxu0 0.0
    %5846 = vmatprep.subr.mxu0 0.0
    %5847 = vmatpush1.msra.mxu0 0.0
    %5848 = vmatprep.subr.mxu0 0.0
    %5849 = vmatpush1.msra.mxu0 0.0
    %5850 = vmatprep.subr.mxu0 0.0
    %5851 = vmatpush1.msra.mxu0 0.0
    %5852 = vmatprep.subr.mxu0 0.0
    %5853 = vmatpush1.msra.mxu0 0.0
    %5854 = vmatprep.subr.mxu0 0.0
    %5855 = vmatpush1.msra.mxu0 0.0
    %5856 = vmatprep.subr.mxu0 0.0
    %5857 = vmatpush1.msra.mxu0 0.0
    %5858 = vmatprep.subr.mxu0 0.0
    %5859 = vmatpush1.msra.mxu0 0.0
    %5860 = vmatprep.subr.mxu0 0.0
    %5861 = vmatpush1.msra.mxu0 0.0
    %5862 = vmatprep.subr.mxu0 0.0
    %5863 = vmatpush1.msra.mxu0 0.0
    %5864 = vmatprep.subr.mxu0 0.0
    %5865 = vmatpush1.msra.mxu0 0.0
    %5866 = vmatprep.subr.mxu0 0.0
    %5867 = vmatpush1.msra.mxu0 0.0
    %5868 = vmatprep.subr.mxu0 0.0
    %5869 = vmatpush1.msra.mxu0 0.0
    %5870 = vmatprep.subr.mxu0 0.0
    %5871 = vmatpush1.msra.mxu0 0.0
    %5872 = vmatprep.subr.mxu0 0.0
    %5873 = vmatpush1.msra.mxu0 0.0
    %5874 = vmatprep.subr.mxu0 0.0
    %5875 = vmatpush1.msra.mxu0 0.0
    %5876 = vmatprep.subr.mxu0 0.0
    %5877 = vmatpush1.msra.mxu0 0.0
    %5878 = vmatprep.subr.mxu0 0.0
    %5879 = vmatpush1.msra.mxu0 0.0
    %5880 = vmatprep.subr.mxu0 0.0
    %5881 = vmatpush1.msra.mxu0 0.0
    %5882 = vmatprep.subr.mxu0 0.0
    %5883 = vmatpush1.msra.mxu0 0.0
    %5884 = vmatprep.subr.mxu0 0.0
    %5885 = vmatpush1.msra.mxu0 0.0
    %5886 = vmatprep.subr.mxu0 0.0
    %5887 = vmatpush1.msra.mxu0 0.0
    %5888 = vmatprep.subr.mxu0 0.0
    %5889 = vmatpush1.msra.mxu0 0.0
    %5890 = vmatprep.subr.mxu0 0.0
    %5891 = vmatpush1.msra.mxu0 0.0
    %5892 = vmatprep.subr.mxu0 0.0
    %5893 = vmatpush1.msra.mxu0 0.0
    %5894 = vmatprep.subr.mxu0 0.0
    %5895 = vmatpush1.msra.mxu0 0.0
    %5896 = vmatprep.subr.mxu0 0.0
    %5897 = vmatpush1.msra.mxu0 0.0
    %5898 = vmatprep.subr.mxu0 0.0
    %5899 = vmatpush1.msra.mxu0 0.0
    %5900 = vmatprep.subr.mxu0 0.0
    %5901 = vmatpush1.msra.mxu0 0.0
    %5902 = vmatprep.subr.mxu0 0.0
    %5903 = vmatpush1.msra.mxu0 0.0
    %5904 = vmatprep.mubr.f32.mxu0 0.0
    %5905 = vmatmul.mubr.f32.gmra.mrb[0].mxu0 %v5838
    %v5906 = vpop.f32.mrb[0].mxu0
    %v5907 = vadd.f32 0.0, %v5906
    %v5908 = vpop.f32.mrb[0].mxu0
    %v5909 = vadd.f32 0.0, %v5908
    %5910 = vdwg.mxu0
    %v5911 = vadd.f32 %v5826, %v5907
    %v5912 = vadd.f32 %v5827, %v5909
    %s5913 = scalar_lea.vmem %s10, 64
    %v5914 = vld [vmem:[%s5913] sm:$0xff]
    %5915 = vrot.lane.b32.xlu0 %v5228, 117
    %v5916 = vpop.permute.xlu0 %5915
    %5917 = vrot.lane.b32.xlu0 %v5229, 117
    %v5918 = vpop.permute.xlu0 %5917
    %v5919 = vsel %vm5115, %v5916, %v5918
    %v5923 = vsel %vm3279, %v5914, 0
    %5925 = vmatprep.subr.mxu0 %v5918
    %5926 = vmatpush1.msra.mxu0 %v5919
    %5927 = vmatprep.subr.mxu0 0.0
    %5928 = vmatpush1.msra.mxu0 0.0
    %5929 = vmatprep.subr.mxu0 0.0
    %5930 = vmatpush1.msra.mxu0 0.0
    %5931 = vmatprep.subr.mxu0 0.0
    %5932 = vmatpush1.msra.mxu0 0.0
    %5933 = vmatprep.subr.mxu0 0.0
    %5934 = vmatpush1.msra.mxu0 0.0
    %5935 = vmatprep.subr.mxu0 0.0
    %5936 = vmatpush1.msra.mxu0 0.0
    %5937 = vmatprep.subr.mxu0 0.0
    %5938 = vmatpush1.msra.mxu0 0.0
    %5939 = vmatprep.subr.mxu0 0.0
    %5940 = vmatpush1.msra.mxu0 0.0
    %5941 = vmatprep.subr.mxu0 0.0
    %5942 = vmatpush1.msra.mxu0 0.0
    %5943 = vmatprep.subr.mxu0 0.0
    %5944 = vmatpush1.msra.mxu0 0.0
    %5945 = vmatprep.subr.mxu0 0.0
    %5946 = vmatpush1.msra.mxu0 0.0
    %5947 = vmatprep.subr.mxu0 0.0
    %5948 = vmatpush1.msra.mxu0 0.0
    %5949 = vmatprep.subr.mxu0 0.0
    %5950 = vmatpush1.msra.mxu0 0.0
    %5951 = vmatprep.subr.mxu0 0.0
    %5952 = vmatpush1.msra.mxu0 0.0
    %5953 = vmatprep.subr.mxu0 0.0
    %5954 = vmatpush1.msra.mxu0 0.0
    %5955 = vmatprep.subr.mxu0 0.0
    %5956 = vmatpush1.msra.mxu0 0.0
    %5957 = vmatprep.subr.mxu0 0.0
    %5958 = vmatpush1.msra.mxu0 0.0
    %5959 = vmatprep.subr.mxu0 0.0
    %5960 = vmatpush1.msra.mxu0 0.0
    %5961 = vmatprep.subr.mxu0 0.0
    %5962 = vmatpush1.msra.mxu0 0.0
    %5963 = vmatprep.subr.mxu0 0.0
    %5964 = vmatpush1.msra.mxu0 0.0
    %5965 = vmatprep.subr.mxu0 0.0
    %5966 = vmatpush1.msra.mxu0 0.0
    %5967 = vmatprep.subr.mxu0 0.0
    %5968 = vmatpush1.msra.mxu0 0.0
    %5969 = vmatprep.subr.mxu0 0.0
    %5970 = vmatpush1.msra.mxu0 0.0
    %5971 = vmatprep.subr.mxu0 0.0
    %5972 = vmatpush1.msra.mxu0 0.0
    %5973 = vmatprep.subr.mxu0 0.0
    %5974 = vmatpush1.msra.mxu0 0.0
    %5975 = vmatprep.subr.mxu0 0.0
    %5976 = vmatpush1.msra.mxu0 0.0
    %5977 = vmatprep.subr.mxu0 0.0
    %5978 = vmatpush1.msra.mxu0 0.0
    %5979 = vmatprep.subr.mxu0 0.0
    %5980 = vmatpush1.msra.mxu0 0.0
    %5981 = vmatprep.subr.mxu0 0.0
    %5982 = vmatpush1.msra.mxu0 0.0
    %5983 = vmatprep.subr.mxu0 0.0
    %5984 = vmatpush1.msra.mxu0 0.0
    %5985 = vmatprep.subr.mxu0 0.0
    %5986 = vmatpush1.msra.mxu0 0.0
    %5987 = vmatprep.subr.mxu0 0.0
    %5988 = vmatpush1.msra.mxu0 0.0
    %5989 = vmatprep.mubr.f32.mxu0 0.0
    %5990 = vmatmul.mubr.f32.gmra.mrb[0].mxu0 %v5923
    %v5991 = vpop.f32.mrb[0].mxu0
    %v5992 = vadd.f32 0.0, %v5991
    %v5993 = vpop.f32.mrb[0].mxu0
    %v5994 = vadd.f32 0.0, %v5993
    %5995 = vdwg.mxu0
    %v5996 = vadd.f32 %v5911, %v5992
    %v5997 = vadd.f32 %v5912, %v5994
    %v5998 = vld [vmem:[%s11] sm:$0xff]
    %6000 = vset.pattern.permute.xlu0 0
    %6001 = vperm.xlu0 %6000, %v5998
    %v6002 = vpop.permute.xlu0 %6001
    %v6004 = vadd.f32 %v5996, %v6002
    %v6005 = vadd.f32 %v5997, %v6002
    %vm6006 = vcmp.gt.f32.partialorder %v6004, 0.0
    %vm6007 = vcmp.gt.f32.partialorder %v6005, 0.0
    %v6008 = vmul.f32 %v6004, 0.1
    %v6009 = vmul.f32 %v6005, 0.1
    %v6010 = vsel %vm6006, %v6004, %v6008
    %v6011 = vsel %vm6007, %v6005, %v6009
    %v6012 = vld [vmem:[#allocation13] sm:$0xff]
    %v6013 = vld [vmem:[#allocation13 + $0x8] sm:$0xff]
    %v6014 = vld [vmem:[#allocation13 + $0x10] sm:$0xff]
    %v6015 = vld [vmem:[#allocation13 + $0x18] sm:$0xff]
    %v6016 = vld [vmem:[#allocation13 + $0x20] sm:$0xff]
    %v6017 = vld [vmem:[#allocation13 + $0x28] sm:$0xff]
    %v6018 = vld [vmem:[#allocation13 + $0x30] sm:$0xff]
    %v6019 = vld [vmem:[#allocation13 + $0x38] sm:$0xff]
    %v6020 = vld [vmem:[#allocation13 + $0x40] sm:$0xff]
    %v6021 = vld [vmem:[#allocation13 + $0x48] sm:$0xff]
    %v6022 = vld [vmem:[#allocation13 + $0x50] sm:$0xff]
    %v6023 = vld [vmem:[#allocation13 + $0x58] sm:$0xff]
    %v6024 = vld [vmem:[#allocation13 + $0x60] sm:$0xff]
    %v6025 = vld [vmem:[#allocation13 + $0x68] sm:$0xff]
    %v6026 = vld [vmem:[#allocation13 + $0x70] sm:$0xff]
    %v6027 = vld [vmem:[#allocation13 + $0x78] sm:$0xff]
    %v6028 = vld [vmem:[#allocation13 + $0x80] sm:$0xff]
    %v6029 = vld [vmem:[#allocation13 + $0x88] sm:$0xff]
    %v6030 = vld [vmem:[#allocation13 + $0x90] sm:$0xff]
    %v6031 = vld [vmem:[#allocation13 + $0x98] sm:$0xff]
    %v6032 = vld [vmem:[#allocation13 + $0xa0] sm:$0xff]
    %v6033 = vld [vmem:[#allocation13 + $0xa8] sm:$0xff]
    %v6034 = vld [vmem:[#allocation13 + $0xb0] sm:$0xff]
    %v6035 = vld [vmem:[#allocation13 + $0xb8] sm:$0xff]
    %v6036 = vld [vmem:[#allocation13 + $0xc0] sm:$0xff]
    %v6038 = vsel %vm131, %v6011, 0
    %6040 = vmatprep.subr.mxu0 0.0
    %6041 = vmatpush1.msra.mxu0 %v6012
    %6042 = vmatprep.subr.mxu0 0.0
    %6043 = vmatpush1.msra.mxu0 %v6013
    %6044 = vmatprep.subr.mxu0 0.0
    %6045 = vmatpush1.msra.mxu0 %v6014
    %6046 = vmatprep.subr.mxu0 0.0
    %6047 = vmatpush1.msra.mxu0 %v6015
    %6048 = vmatprep.subr.mxu0 0.0
    %6049 = vmatpush1.msra.mxu0 %v6016
    %6050 = vmatprep.subr.mxu0 0.0
    %6051 = vmatpush1.msra.mxu0 %v6017
    %6052 = vmatprep.subr.mxu0 0.0
    %6053 = vmatpush1.msra.mxu0 %v6018
    %6054 = vmatprep.subr.mxu0 0.0
    %6055 = vmatpush1.msra.mxu0 %v6019
    %6056 = vmatprep.subr.mxu0 0.0
    %6057 = vmatpush1.msra.mxu0 %v6020
    %6058 = vmatprep.subr.mxu0 0.0
    %6059 = vmatpush1.msra.mxu0 %v6021
    %6060 = vmatprep.subr.mxu0 0.0
    %6061 = vmatpush1.msra.mxu0 %v6022
    %6062 = vmatprep.subr.mxu0 0.0
    %6063 = vmatpush1.msra.mxu0 %v6023
    %6064 = vmatprep.subr.mxu0 0.0
    %6065 = vmatpush1.msra.mxu0 %v6024
    %6066 = vmatprep.subr.mxu0 0.0
    %6067 = vmatpush1.msra.mxu0 %v6025
    %6068 = vmatprep.subr.mxu0 0.0
    %6069 = vmatpush1.msra.mxu0 %v6026
    %6070 = vmatprep.subr.mxu0 0.0
    %6071 = vmatpush1.msra.mxu0 %v6027
    %6072 = vmatprep.subr.mxu0 0.0
    %6073 = vmatpush1.msra.mxu0 %v6028
    %6074 = vmatprep.subr.mxu0 0.0
    %6075 = vmatpush1.msra.mxu0 %v6029
    %6076 = vmatprep.subr.mxu0 0.0
    %6077 = vmatpush1.msra.mxu0 %v6030
    %6078 = vmatprep.subr.mxu0 0.0
    %6079 = vmatpush1.msra.mxu0 %v6031
    %6080 = vmatprep.subr.mxu0 0.0
    %6081 = vmatpush1.msra.mxu0 %v6032
    %6082 = vmatprep.subr.mxu0 0.0
    %6083 = vmatpush1.msra.mxu0 %v6033
    %6084 = vmatprep.subr.mxu0 0.0
    %6085 = vmatpush1.msra.mxu0 %v6034
    %6086 = vmatprep.subr.mxu0 0.0
    %6087 = vmatpush1.msra.mxu0 %v6035
    %6088 = vmatprep.subr.mxu0 0.0
    %6089 = vmatpush1.msra.mxu0 %v6036
    %6090 = vmatprep.subr.mxu0 0.0
    %6091 = vmatpush1.msra.mxu0 0.0
    %6092 = vmatprep.subr.mxu0 0.0
    %6093 = vmatpush1.msra.mxu0 0.0
    %6094 = vmatprep.subr.mxu0 0.0
    %6095 = vmatpush1.msra.mxu0 0.0
    %6096 = vmatprep.subr.mxu0 0.0
    %6097 = vmatpush1.msra.mxu0 0.0
    %6098 = vmatprep.subr.mxu0 0.0
    %6099 = vmatpush1.msra.mxu0 0.0
    %6100 = vmatprep.subr.mxu0 0.0
    %6101 = vmatpush1.msra.mxu0 0.0
    %6102 = vmatprep.subr.mxu0 0.0
    %6103 = vmatpush1.msra.mxu0 0.0
    %6104 = vmatprep.mubr.f32.mxu0 %v6038
    %6105 = vmatmul.mubr.f32.gmra.mrb[0].mxu0 %v6010
    %v6106 = vpop.f32.mrb[0].mxu0
    %v6107 = vadd.f32 0.0, %v6106
    %v6108 = vpop.f32.mrb[0].mxu0
    %6109 = vdwg.mxu0
    %vm6110 = vcmask 523264
    %6111 = vst.msk [vmem:[%s15] sm:$0xff] %vm6110, %v6107
    %s6112 = scalar_lea.vmem [#allocation13], 200
    %v6113 = vld [vmem:[%s6112] sm:$0xff]
    %v6114 = vld [vmem:[%s6112 + $0x8] sm:$0xff]
    %v6115 = vld [vmem:[%s6112 + $0x10] sm:$0xff]
    %v6116 = vld [vmem:[%s6112 + $0x18] sm:$0xff]
    %v6117 = vld [vmem:[%s6112 + $0x20] sm:$0xff]
    %v6118 = vld [vmem:[%s6112 + $0x28] sm:$0xff]
    %v6119 = vld [vmem:[%s6112 + $0x30] sm:$0xff]
    %v6120 = vld [vmem:[%s6112 + $0x38] sm:$0xff]
    %v6121 = vld [vmem:[%s6112 + $0x40] sm:$0xff]
    %v6122 = vld [vmem:[%s6112 + $0x48] sm:$0xff]
    %v6123 = vld [vmem:[%s6112 + $0x50] sm:$0xff]
    %v6124 = vld [vmem:[%s6112 + $0x58] sm:$0xff]
    %v6125 = vld [vmem:[%s6112 + $0x60] sm:$0xff]
    %v6126 = vld [vmem:[%s6112 + $0x68] sm:$0xff]
    %v6127 = vld [vmem:[%s6112 + $0x70] sm:$0xff]
    %v6128 = vld [vmem:[%s6112 + $0x78] sm:$0xff]
    %v6129 = vld [vmem:[%s6112 + $0x80] sm:$0xff]
    %v6130 = vld [vmem:[%s6112 + $0x88] sm:$0xff]
    %v6131 = vld [vmem:[%s6112 + $0x90] sm:$0xff]
    %v6132 = vld [vmem:[%s6112 + $0x98] sm:$0xff]
    %v6133 = vld [vmem:[%s6112 + $0xa0] sm:$0xff]
    %v6134 = vld [vmem:[%s6112 + $0xa8] sm:$0xff]
    %v6135 = vld [vmem:[%s6112 + $0xb0] sm:$0xff]
    %v6136 = vld [vmem:[%s6112 + $0xb8] sm:$0xff]
    %v6137 = vld [vmem:[%s6112 + $0xc0] sm:$0xff]
    %6138 = vmatprep.subr.mxu0 0.0
    %6139 = vmatpush1.msra.mxu0 %v6113
    %6140 = vmatprep.subr.mxu0 0.0
    %6141 = vmatpush1.msra.mxu0 %v6114
    %6142 = vmatprep.subr.mxu0 0.0
    %6143 = vmatpush1.msra.mxu0 %v6115
    %6144 = vmatprep.subr.mxu0 0.0
    %6145 = vmatpush1.msra.mxu0 %v6116
    %6146 = vmatprep.subr.mxu0 0.0
    %6147 = vmatpush1.msra.mxu0 %v6117
    %6148 = vmatprep.subr.mxu0 0.0
    %6149 = vmatpush1.msra.mxu0 %v6118
    %6150 = vmatprep.subr.mxu0 0.0
    %6151 = vmatpush1.msra.mxu0 %v6119
    %6152 = vmatprep.subr.mxu0 0.0
    %6153 = vmatpush1.msra.mxu0 %v6120
    %6154 = vmatprep.subr.mxu0 0.0
    %6155 = vmatpush1.msra.mxu0 %v6121
    %6156 = vmatprep.subr.mxu0 0.0
    %6157 = vmatpush1.msra.mxu0 %v6122
    %6158 = vmatprep.subr.mxu0 0.0
    %6159 = vmatpush1.msra.mxu0 %v6123
    %6160 = vmatprep.subr.mxu0 0.0
    %6161 = vmatpush1.msra.mxu0 %v6124
    %6162 = vmatprep.subr.mxu0 0.0
    %6163 = vmatpush1.msra.mxu0 %v6125
    %6164 = vmatprep.subr.mxu0 0.0
    %6165 = vmatpush1.msra.mxu0 %v6126
    %6166 = vmatprep.subr.mxu0 0.0
    %6167 = vmatpush1.msra.mxu0 %v6127
    %6168 = vmatprep.subr.mxu0 0.0
    %6169 = vmatpush1.msra.mxu0 %v6128
    %6170 = vmatprep.subr.mxu0 0.0
    %6171 = vmatpush1.msra.mxu0 %v6129
    %6172 = vmatprep.subr.mxu0 0.0
    %6173 = vmatpush1.msra.mxu0 %v6130
    %6174 = vmatprep.subr.mxu0 0.0
    %6175 = vmatpush1.msra.mxu0 %v6131
    %6176 = vmatprep.subr.mxu0 0.0
    %6177 = vmatpush1.msra.mxu0 %v6132
    %6178 = vmatprep.subr.mxu0 0.0
    %6179 = vmatpush1.msra.mxu0 %v6133
    %6180 = vmatprep.subr.mxu0 0.0
    %6181 = vmatpush1.msra.mxu0 %v6134
    %6182 = vmatprep.subr.mxu0 0.0
    %6183 = vmatpush1.msra.mxu0 %v6135
    %6184 = vmatprep.subr.mxu0 0.0
    %6185 = vmatpush1.msra.mxu0 %v6136
    %6186 = vmatprep.subr.mxu0 0.0
    %6187 = vmatpush1.msra.mxu0 %v6137
    %6188 = vmatprep.subr.mxu0 0.0
    %6189 = vmatpush1.msra.mxu0 0.0
    %6190 = vmatprep.subr.mxu0 0.0
    %6191 = vmatpush1.msra.mxu0 0.0
    %6192 = vmatprep.subr.mxu0 0.0
    %6193 = vmatpush1.msra.mxu0 0.0
    %6194 = vmatprep.subr.mxu0 0.0
    %6195 = vmatpush1.msra.mxu0 0.0
    %6196 = vmatprep.subr.mxu0 0.0
    %6197 = vmatpush1.msra.mxu0 0.0
    %6198 = vmatprep.subr.mxu0 0.0
    %6199 = vmatpush1.msra.mxu0 0.0
    %6200 = vmatprep.subr.mxu0 0.0
    %6201 = vmatpush1.msra.mxu0 0.0
    %6202 = vmatprep.mubr.f32.mxu0 %v6038
    %6203 = vmatmul.mubr.f32.gmra.mrb[0].mxu0 %v6010
    %v6204 = vpop.f32.mrb[0].mxu0
    %v6205 = vadd.f32 0.0, %v6204
    %v6206 = vpop.f32.mrb[0].mxu0
    %6207 = vdwg.mxu0
    %s6208 = scalar_lea.vmem %s15, 8
    %6209 = vst.msk [vmem:[%s6208] sm:$0xff] %vm6110, %v6205
    // Predicated region
    $region78: #{encoder_forward.1} parent=1 // pred_check
      _
    $region79: #{encoder_forward.1} parent=1 // pred_check_branch
      %6211 = sbr.rel (0) target = $region81
    $region80: #{encoder_forward.1} parent=1 // pred_region
      _
    $region81: #{encoder_forward.1} parent=1 // pred_fallthru
      _
    // Predicated region
    $region82: #{encoder_forward.1} parent=1 // pred_check
      _
    $region83: #{encoder_forward.1} parent=1 // pred_check_branch
      %6213 = sbr.rel (0) target = $region85
    $region84: #{encoder_forward.1} parent=1 // pred_region
      _
    $region85: #{encoder_forward.1} parent=1 // pred_fallthru
      _
    // Predicated region
    $region86: #{encoder_forward.1} parent=1 // pred_check
      _
    $region87: #{encoder_forward.1} parent=1 // pred_check_branch
      %6215 = sbr.rel (0) target = $region89
    $region88: #{encoder_forward.1} parent=1 // pred_region
      _
    $region89: #{encoder_forward.1} parent=1 // pred_fallthru
      _
    // Predicated region
    $region90: #{encoder_forward.1} parent=1 // pred_check
      _
    $region91: #{encoder_forward.1} parent=1 // pred_check_branch
      %6217 = sbr.rel (0) target = $region93
    $region92: #{encoder_forward.1} parent=1 // pred_region
      _
    $region93: #{encoder_forward.1} parent=1 // pred_fallthru
      _
    %6218 = vsyncpa [#allocation7], 1
    %6219 = vsyncpa [#allocation9], 1
    %6220 = vsyncpa [#allocation12], 1

</llo_original>
